<compile_context>
chip_gen: v6e
topology: v6e:2x2x1
jax: 0.10.0
libtpu: 0.0.40
codegen_flags: <defaults>
</compile_context>

<pallas_src>
import jax
import jax.numpy as jnp
import numpy as np
from jax.experimental import pallas as pl
from jax.experimental.pallas import tpu as pltpu

EPS = 1e-5   # nn.BatchNorm2d default eps
LANE = 128


def _round_up(x, m):
    return ((x + m - 1) // m) * m


def _vmem_cap_bytes():
    """Physical VMEM minus headroom for Mosaic internal scratch/semaphores."""
    try:
        phys = int(pltpu.get_tpu_info().vmem_capacity_bytes)
    except Exception:
        phys = 64 << 20          # conservative default (v7x per-TC VMEM)
    return max(phys - (16 << 20), 32 << 20)


def _vmem_limit_bytes(blocks, scratch):
    """blocks/scratch: lists of (shape, dtype). Double-buffered blocks + scratch."""
    nb = lambda s, d: int(np.prod(s)) * int(jnp.dtype(d).itemsize)
    need = 2 * sum(nb(s, d) for s, d in blocks) + sum(nb(s, d) for s, d in scratch)
    return int(min(need + (8 << 20), _vmem_cap_bytes()))


# ---------------------------------------------------------------------------
# Pass 1: conv1 (3x3, per-tap matmuls) + BN1 partial stats
#         + shortcut 1x1 conv computed ONLY for its BN partial stats
# ---------------------------------------------------------------------------
def _pass1_kernel(x_ref, w1_ref, wsc_ref, y1_ref, st1_ref, stsc_ref, xpad):
    # x_ref  : (1, H, W, Ci)  bf16, one NHWC image, channel-padded
    # w1_ref : (9*Ci, Cp)     bf16, tap-major (kh, kw, ci) x co
    # wsc_ref: (Ci, Cp)       bf16, 1x1 shortcut weights
    # y1_ref : (1, H, W, Cp)  bf16, conv1 pre-BN output
    # st*_ref: (1, 2, Cp)     f32, per-image [sum, sum-of-squares]
    # xpad   : (H+2, W+2, Ci) bf16 VMEM scratch (halo-only zeroing)
    _, H, W, Ci = x_ref.shape
    Cp = y1_ref.shape[3]
    bf16, f32 = jnp.bfloat16, jnp.float32

    x = x_ref[0]                                            # (H, W, Ci) bf16

    # zero only the 1-wide halo, then copy the interior (no full memset)
    xpad[0:1, :, :] = jnp.zeros((1, W + 2, Ci), bf16)
    xpad[H + 1:H + 2, :, :] = jnp.zeros((1, W + 2, Ci), bf16)
    xpad[1:H + 1, 0:1, :] = jnp.zeros((H, 1, Ci), bf16)
    xpad[1:H + 1, W + 1:W + 2, :] = jnp.zeros((H, 1, Ci), bf16)
    xpad[1:H + 1, 1:W + 1, :] = x

    # conv1: 9 per-tap (K = Ci) bf16 matmuls accumulated in f32
    acc = None
    for kh in range(3):
        for kw in range(3):
            t = kh * 3 + kw
            patch = xpad[kh:kh + H, kw:kw + W, :].reshape(H * W, Ci)
            part = jnp.dot(patch, w1_ref[t * Ci:(t + 1) * Ci, :],
                           preferred_element_type=f32)
            acc = part if acc is None else acc + part        # (H*W, Cp) f32

    # shortcut 1x1 conv: only to get global-BN partial stats; NOT written to
    # HBM (recomputed in pass 3).
    sc = jnp.dot(x.reshape(H * W, Ci), wsc_ref[...],
                 preferred_element_type=f32)                 # (H*W, Cp) f32

    y1_ref[0] = acc.reshape(H, W, Cp).astype(y1_ref.dtype)

    # one-pass partial BN statistics (finalized across images in the wrapper)
    st1_ref[0, 0:1, :] = jnp.sum(acc, axis=0, keepdims=True)
    st1_ref[0, 1:2, :] = jnp.sum(acc * acc, axis=0, keepdims=True)
    stsc_ref[0, 0:1, :] = jnp.sum(sc, axis=0, keepdims=True)
    stsc_ref[0, 1:2, :] = jnp.sum(sc * sc, axis=0, keepdims=True)


# ---------------------------------------------------------------------------
# Pass 2: BN1 (folded affine FMA) + ReLU + conv2 (3x3 per-tap) + partial stats
# ---------------------------------------------------------------------------
def _pass2_kernel(y1_ref, aff1_ref, w2_ref, y2_ref, st2_ref, apad):
    # y1_ref : (1, H, W, Cp) bf16
    # aff1_ref: (2, Cp)      f32  [scale1, shift1]
    # w2_ref : (9*Cp, Cp)    bf16
    _, H, W, Cp = y1_ref.shape
    bf16, f32 = jnp.bfloat16, jnp.float32

    scale = aff1_ref[0:1, :].reshape(1, 1, Cp)
    shift = aff1_ref[1:2, :].reshape(1, 1, Cp)
    # BN1 as a single f32 FMA fused with ReLU, then down to bf16 for the MXU
    a = jnp.maximum(y1_ref[0].astype(f32) * scale + shift, 0.0).astype(bf16)

    apad[0:1, :, :] = jnp.zeros((1, W + 2, Cp), bf16)
    apad[H + 1:H + 2, :, :] = jnp.zeros((1, W + 2, Cp), bf16)
    apad[1:H + 1, 0:1, :] = jnp.zeros((H, 1, Cp), bf16)
    apad[1:H + 1, W + 1:W + 2, :] = jnp.zeros((H, 1, Cp), bf16)
    apad[1:H + 1, 1:W + 1, :] = a

    acc = None
    for kh in range(3):
        for kw in range(3):
            t = kh * 3 + kw
            patch = apad[kh:kh + H, kw:kw + W, :].reshape(H * W, Cp)
            part = jnp.dot(patch, w2_ref[t * Cp:(t + 1) * Cp, :],
                           preferred_element_type=f32)
            acc = part if acc is None else acc + part        # (H*W, Cp) f32

    y2_ref[0] = acc.reshape(H, W, Cp).astype(y2_ref.dtype)
    st2_ref[0, 0:1, :] = jnp.sum(acc, axis=0, keepdims=True)
    st2_ref[0, 1:2, :] = jnp.sum(acc * acc, axis=0, keepdims=True)


# ---------------------------------------------------------------------------
# Pass 3: BN2 + ReLU (branch), recomputed 1x1 shortcut + BN_sc, residual add
# ---------------------------------------------------------------------------
def _pass3_kernel(y2_ref, x_ref, wsc_ref, aff_ref, out_ref):
    # aff_ref: (4, Cp) f32 = [scale2, shift2, scale_sc, shift_sc]
    _, H, W, Cp = y2_ref.shape
    Ci = x_ref.shape[3]
    f32 = jnp.float32

    s2 = aff_ref[0:1, :].reshape(1, 1, Cp)
    b2 = aff_ref[1:2, :].reshape(1, 1, Cp)
    ssc = aff_ref[2:3, :].reshape(1, 1, Cp)
    bsc = aff_ref[3:4, :].reshape(1, 1, Cp)

    branch = jnp.maximum(y2_ref[0].astype(f32) * s2 + b2, 0.0)     # (H, W, Cp)
    # cheap 1x1 MXU matmul hides under this memory-bound pass
    sc = jnp.dot(x_ref[0].reshape(H * W, Ci), wsc_ref[...],
                 preferred_element_type=f32).reshape(H, W, Cp)
    out_ref[0] = branch + sc * ssc + bsc


# ---------------------------------------------------------------------------
# Wrapper
# ---------------------------------------------------------------------------
def _bn_affine(partial_stats, gamma, beta, count):
    """Fold global training-mode BN into per-channel (scale, shift) in f32."""
    # NOTE: one-pass E[x^2]-E[x]^2 in f32; at very large N*H*W consider
    # shifted sums / Welford combination to avoid cancellation.
    s = jnp.sum(partial_stats, axis=0)                      # (2, Cp)
    mean = s[0] / count
    var = jnp.maximum(s[1] / count - mean * mean, 0.0)      # biased variance
    scale = gamma * jax.lax.rsqrt(var + EPS)
    shift = beta - mean * scale
    return scale, shift


def resblock_forward_nhwc(x_nhwc, params):
    """Pallas ResBlock forward, NHWC in / NHWC out (assumes conv shortcut)."""
    N, H, W, Cin = x_nhwc.shape
    Cout = params["w1"].shape[0]
    Ci = _round_up(Cin, LANE)
    Cp = _round_up(Cout, LANE)
    f32, bf16 = jnp.float32, jnp.bfloat16

    # lane-dense, channel-padded operands; activations / weights in bf16
    x_p = jnp.pad(x_nhwc.astype(f32),
                  ((0, 0), (0, 0), (0, 0), (0, Ci - Cin))).astype(bf16)

    w1 = jnp.pad(jnp.transpose(params["w1"], (2, 3, 1, 0)),          # HWIO
                 ((0, 0), (0, 0), (0, Ci - Cin), (0, Cp - Cout))
                 ).reshape(9 * Ci, Cp).astype(bf16)
    w2 = jnp.pad(jnp.transpose(params["w2"], (2, 3, 1, 0)),
                 ((0, 0), (0, 0), (0, Cp - Cout), (0, Cp - Cout))
                 ).reshape(9 * Cp, Cp).astype(bf16)
    wsc = jnp.pad(jnp.transpose(params["wsc"][:, :, 0, 0], (1, 0)),
                  ((0, Ci - Cin), (0, Cp - Cout))).astype(bf16)      # (Ci, Cp)

    def padc(v, value=0.0):
        return jnp.pad(v.astype(f32), (0, Cp - Cout), constant_values=value)
    g1, b1 = padc(params["g1"], 1.0), padc(params["b1"])
    g2, b2 = padc(params["g2"], 1.0), padc(params["b2"])
    gsc, bsc = padc(params["gsc"], 1.0), padc(params["bsc"])

    grid = (N,)
    x_spec = pl.BlockSpec((1, H, W, Ci), lambda n: (n, 0, 0, 0))
    act_spec = pl.BlockSpec((1, H, W, Cp), lambda n: (n, 0, 0, 0))
    stat_spec = pl.BlockSpec((1, 2, Cp), lambda n: (n, 0, 0))

    def cparams(blocks, scratch):
        return pltpu.CompilerParams(
            dimension_semantics=("parallel",),
            vmem_limit_bytes=_vmem_limit_bytes(blocks, scratch))

    # --- pass 1: conv1 + shortcut-stats ------------------------------------
    y1, st1, stsc = pl.pallas_call(
        _pass1_kernel,
        grid=grid,
        in_specs=[x_spec,
                  pl.BlockSpec((9 * Ci, Cp), lambda n: (0, 0)),
                  pl.BlockSpec((Ci, Cp), lambda n: (0, 0))],
        out_specs=[act_spec, stat_spec, stat_spec],
        out_shape=[jax.ShapeDtypeStruct((N, H, W, Cp), bf16),
                   jax.ShapeDtypeStruct((N, 2, Cp), f32),
                   jax.ShapeDtypeStruct((N, 2, Cp), f32)],
        scratch_shapes=[pltpu.VMEM((H + 2, W + 2, Ci), bf16)],
        compiler_params=cparams(
            [((1, H, W, Ci), bf16), ((9 * Ci, Cp), bf16), ((Ci, Cp), bf16),
             ((1, H, W, Cp), bf16), ((1, 2, Cp), f32), ((1, 2, Cp), f32),
             ((H * W, Cp), f32)],                 # in-kernel f32 accumulator
            [((H + 2, W + 2, Ci), bf16)]),
    )(x_p, w1, wsc)

    count = float(N * H * W)
    scale1, shift1 = _bn_affine(st1, g1, b1, count)
    aff1 = jnp.stack([scale1, shift1], axis=0)               # (2, Cp) f32

    # --- pass 2: BN1+ReLU (FMA) + conv2 ------------------------------------
    y2, st2 = pl.pallas_call(
        _pass2_kernel,
        grid=grid,
        in_specs=[act_spec,
                  pl.BlockSpec((2, Cp), lambda n: (0, 0)),
                  pl.BlockSpec((9 * Cp, Cp), lambda n: (0, 0))],
        out_specs=[act_spec, stat_spec],
        out_shape=[jax.ShapeDtypeStruct((N, H, W, Cp), bf16),
                   jax.ShapeDtypeStruct((N, 2, Cp), f32)],
        scratch_shapes=[pltpu.VMEM((H + 2, W + 2, Cp), bf16)],
        compiler_params=cparams(
            [((1, H, W, Cp), bf16), ((2, Cp), f32), ((9 * Cp, Cp), bf16),
             ((1, H, W, Cp), bf16), ((1, 2, Cp), f32), ((H * W, Cp), f32)],
            [((H + 2, W + 2, Cp), bf16)]),
    )(y1, aff1, w2)

    scale2, shift2 = _bn_affine(st2, g2, b2, count)
    scale_sc, shift_sc = _bn_affine(stsc, gsc, bsc, count)
    aff23 = jnp.stack([scale2, shift2, scale_sc, shift_sc], axis=0)  # (4, Cp)

    # --- pass 3: BN2+ReLU, recomputed shortcut + BN_sc, residual add --------
    out_p = pl.pallas_call(
        _pass3_kernel,
        grid=grid,
        in_specs=[act_spec, x_spec,
                  pl.BlockSpec((Ci, Cp), lambda n: (0, 0)),
                  pl.BlockSpec((4, Cp), lambda n: (0, 0))],
        out_specs=act_spec,
        out_shape=jax.ShapeDtypeStruct((N, H, W, Cp), f32),
        compiler_params=cparams(
            [((1, H, W, Cp), bf16), ((1, H, W, Ci), bf16), ((Ci, Cp), bf16),
             ((4, Cp), f32), ((1, H, W, Cp), f32)],
            []),
    )(y2, x_p, wsc, aff23)

    return out_p[:, :, :, :Cout]                             # drop channel pad


@jax.jit
def resblock_forward(x_nchw, params):
    """PyTorch-layout API: (N, Cin, H, W) -> (N, Cout, H, W)."""
    x_nhwc = jnp.transpose(x_nchw, (0, 2, 3, 1))
    out_nhwc = resblock_forward_nhwc(x_nhwc, params)
    return jnp.transpose(out_nhwc, (0, 3, 1, 2))


# ---------------------------------------------------------------------------
# Pure-JAX reference (matches the PyTorch module in training mode)
# ---------------------------------------------------------------------------
def _ref_forward(x, params):
    def conv(y, w, pad):
        return jax.lax.conv_general_dilated(
            y, w, window_strides=(1, 1), padding=pad,
            dimension_numbers=("NCHW", "OIHW", "NCHW"))

    def bn(y, gamma, beta):
        mu = jnp.mean(y, axis=(0, 2, 3), keepdims=True)
        var = jnp.mean((y - mu) ** 2, axis=(0, 2, 3), keepdims=True)
        return ((y - mu) * jax.lax.rsqrt(var + EPS)
                * gamma.reshape(1, -1, 1, 1) + beta.reshape(1, -1, 1, 1))

    b = jnp.maximum(bn(conv(x, params["w1"], ((1, 1), (1, 1))),
                       params["g1"], params["b1"]), 0.0)
    b = jnp.maximum(bn(conv(b, params["w2"], ((1, 1), (1, 1))),
                       params["g2"], params["b2"]), 0.0)
    s = bn(conv(x, params["wsc"], ((0, 0), (0, 0))),
           params["gsc"], params["bsc"])
    return b + s


if __name__ == "__main__":
    key = jax.random.PRNGKey(0)
    N, Cin, Cout, H, W = 2, 4, 8, 16, 16
    ks = jax.random.split(key, 10)

    params = {
        "w1":  0.1 * jax.random.normal(ks[0], (Cout, Cin, 3, 3), jnp.float32),
        "w2":  0.1 * jax.random.normal(ks[1], (Cout, Cout, 3, 3), jnp.float32),
        "wsc": 0.1 * jax.random.normal(ks[2], (Cout, Cin, 1, 1), jnp.float32),
        "g1":  1.0 + 0.1 * jax.random.normal(ks[3], (Cout,), jnp.float32),
        "b1":  0.1 * jax.random.normal(ks[4], (Cout,), jnp.float32),
        "g2":  1.0 + 0.1 * jax.random.normal(ks[5], (Cout,), jnp.float32),
        "b2":  0.1 * jax.random.normal(ks[6], (Cout,), jnp.float32),
        "gsc": 1.0 + 0.1 * jax.random.normal(ks[7], (Cout,), jnp.float32),
        "bsc": 0.1 * jax.random.normal(ks[8], (Cout,), jnp.float32),
    }
    x = jax.random.normal(ks[9], (N, Cin, H, W), jnp.float32)

    out = jax.block_until_ready(resblock_forward(x, params))
    ref = jax.block_until_ready(_ref_forward(x, params))
    # bf16 MXU operands + bf16 HBM intermediates (f32 accumulation/statistics)
    # set the achievable tolerance; structural errors would be O(1).
    np.testing.assert_allclose(np.asarray(out), np.asarray(ref),
                               rtol=5e-2, atol=5e-2)
    print("KERNEL_OK")
</pallas_src>

<mosaic_0001>
module attributes {stable_mosaic.version = 11 : i64} {
  func.func @_pass1_kernel(%arg0: i32, %arg1: memref<1x16x16x128xbf16, #tpu.memory_space<vmem>>, %arg2: memref<1152x128xbf16, #tpu.memory_space<vmem>>, %arg3: memref<128x128xbf16, #tpu.memory_space<vmem>>, %arg4: memref<1x16x16x128xbf16, #tpu.memory_space<vmem>>, %arg5: memref<1x2x128xf32, #tpu.memory_space<vmem>>, %arg6: memref<1x2x128xf32, #tpu.memory_space<vmem>>, %arg7: memref<18x18x128xbf16, #tpu.memory_space<vmem>>) attributes {dimension_semantics = [#tpu.dimension_semantics<parallel>], iteration_bounds = array<i64: 2>, scalar_prefetch = 0 : i64, scratch_operands = 1 : i64, tpu.core_type = #tpu.core_type<tc>, window_params = [{transform_indices = @transform_0, window_bounds = array<i64: 1, 16, 16, 128>}, {pipeline_mode = #tpu.pipeline_mode<synchronous>, transform_indices = @transform_1, window_bounds = array<i64: 1152, 128>}, {pipeline_mode = #tpu.pipeline_mode<synchronous>, transform_indices = @transform_2, window_bounds = array<i64: 128, 128>}, {transform_indices = @transform_3, window_bounds = array<i64: 1, 16, 16, 128>}, {transform_indices = @transform_4, window_bounds = array<i64: 1, 2, 128>}, {transform_indices = @transform_5, window_bounds = array<i64: 1, 2, 128>}]} {
    %c0 = arith.constant 0 : index
    %c0_0 = arith.constant 0 : index
    %c0_1 = arith.constant 0 : index
    %c0_2 = arith.constant 0 : index
    %0 = vector.load %arg1[%c0, %c0_0, %c0_1, %c0_2] : memref<1x16x16x128xbf16, #tpu.memory_space<vmem>>, vector<1x16x16x128xbf16>
    %1 = vector.shape_cast %0 : vector<1x16x16x128xbf16> to vector<16x16x128xbf16>
    %cst = arith.constant 0.000000e+00 : bf16
    %2 = vector.broadcast %cst : bf16 to vector<1x18x128xbf16>
    %c0_3 = arith.constant 0 : index
    %c0_4 = arith.constant 0 : index
    %c0_5 = arith.constant 0 : index
    %3 = vector.load %arg7[%c0_3, %c0_4, %c0_5] : memref<18x18x128xbf16, #tpu.memory_space<vmem>>, vector<1x18x128xbf16>
    tpu.vector_store %arg7[%c0_3, %c0_4, %c0_5], %2 {strides = array<i32>} : memref<18x18x128xbf16, #tpu.memory_space<vmem>>, vector<1x18x128xbf16>,
    %cst_6 = arith.constant 0.000000e+00 : bf16
    %4 = vector.broadcast %cst_6 : bf16 to vector<1x18x128xbf16>
    %c17 = arith.constant 17 : index
    %c0_7 = arith.constant 0 : index
    %c0_8 = arith.constant 0 : index
    %5 = vector.load %arg7[%c17, %c0_7, %c0_8] : memref<18x18x128xbf16, #tpu.memory_space<vmem>>, vector<1x18x128xbf16>
    tpu.vector_store %arg7[%c17, %c0_7, %c0_8], %4 {strides = array<i32>} : memref<18x18x128xbf16, #tpu.memory_space<vmem>>, vector<1x18x128xbf16>,
    %cst_9 = arith.constant 0.000000e+00 : bf16
    %6 = vector.broadcast %cst_9 : bf16 to vector<16x1x128xbf16>
    %c1 = arith.constant 1 : index
    %c0_10 = arith.constant 0 : index
    %c0_11 = arith.constant 0 : index
    %7 = vector.load %arg7[%c1, %c0_10, %c0_11] : memref<18x18x128xbf16, #tpu.memory_space<vmem>>, vector<16x1x128xbf16>
    tpu.vector_store %arg7[%c1, %c0_10, %c0_11], %6 {strides = array<i32>} : memref<18x18x128xbf16, #tpu.memory_space<vmem>>, vector<16x1x128xbf16>,
    %cst_12 = arith.constant 0.000000e+00 : bf16
    %8 = vector.broadcast %cst_12 : bf16 to vector<16x1x128xbf16>
    %c1_13 = arith.constant 1 : index
    %c17_14 = arith.constant 17 : index
    %c0_15 = arith.constant 0 : index
    %9 = vector.load %arg7[%c1_13, %c17_14, %c0_15] : memref<18x18x128xbf16, #tpu.memory_space<vmem>>, vector<16x1x128xbf16>
    tpu.vector_store %arg7[%c1_13, %c17_14, %c0_15], %8 {strides = array<i32>} : memref<18x18x128xbf16, #tpu.memory_space<vmem>>, vector<16x1x128xbf16>,
    %c1_16 = arith.constant 1 : index
    %c1_17 = arith.constant 1 : index
    %c0_18 = arith.constant 0 : index
    %10 = vector.load %arg7[%c1_16, %c1_17, %c0_18] : memref<18x18x128xbf16, #tpu.memory_space<vmem>>, vector<16x16x128xbf16>
    tpu.vector_store %arg7[%c1_16, %c1_17, %c0_18], %1 {strides = array<i32>} : memref<18x18x128xbf16, #tpu.memory_space<vmem>>, vector<16x16x128xbf16>,
    %c0_19 = arith.constant 0 : index
    %c0_20 = arith.constant 0 : index
    %c0_21 = arith.constant 0 : index
    %11 = vector.load %arg7[%c0_19, %c0_20, %c0_21] : memref<18x18x128xbf16, #tpu.memory_space<vmem>>, vector<16x16x128xbf16>
    %12 = vector.shape_cast %11 : vector<16x16x128xbf16> to vector<256x128xbf16>
    %c0_22 = arith.constant 0 : index
    %c0_23 = arith.constant 0 : index
    %13 = vector.load %arg2[%c0_22, %c0_23] : memref<1152x128xbf16, #tpu.memory_space<vmem>>, vector<128x128xbf16>
    %cst_24 = arith.constant dense<0.000000e+00> : vector<256x128xf32>
    %14 = tpu.matmul %12, %13, %cst_24 {dimension_numbers = #tpu.dot_dimension_numbers<[1], [0], [0], [1], [0, 0, 1, 1], [], []>} : vector<256x128xbf16>, vector<128x128xbf16>, vector<256x128xf32> -> vector<256x128xf32>
    %c0_25 = arith.constant 0 : index
    %c1_26 = arith.constant 1 : index
    %c0_27 = arith.constant 0 : index
    %15 = vector.load %arg7[%c0_25, %c1_26, %c0_27] : memref<18x18x128xbf16, #tpu.memory_space<vmem>>, vector<16x16x128xbf16>
    %16 = vector.shape_cast %15 : vector<16x16x128xbf16> to vector<256x128xbf16>
    %c128 = arith.constant 128 : index
    %c0_28 = arith.constant 0 : index
    %17 = vector.load %arg2[%c128, %c0_28] : memref<1152x128xbf16, #tpu.memory_space<vmem>>, vector<128x128xbf16>
    %cst_29 = arith.constant dense<0.000000e+00> : vector<256x128xf32>
    %18 = tpu.matmul %16, %17, %cst_29 {dimension_numbers = #tpu.dot_dimension_numbers<[1], [0], [0], [1], [0, 0, 1, 1], [], []>} : vector<256x128xbf16>, vector<128x128xbf16>, vector<256x128xf32> -> vector<256x128xf32>
    %19 = arith.addf %14, %18 : vector<256x128xf32>
    %c0_30 = arith.constant 0 : index
    %c2 = arith.constant 2 : index
    %c0_31 = arith.constant 0 : index
    %20 = vector.load %arg7[%c0_30, %c2, %c0_31] : memref<18x18x128xbf16, #tpu.memory_space<vmem>>, vector<16x16x128xbf16>
    %21 = vector.shape_cast %20 : vector<16x16x128xbf16> to vector<256x128xbf16>
    %c256 = arith.constant 256 : index
    %c0_32 = arith.constant 0 : index
    %22 = vector.load %arg2[%c256, %c0_32] : memref<1152x128xbf16, #tpu.memory_space<vmem>>, vector<128x128xbf16>
    %cst_33 = arith.constant dense<0.000000e+00> : vector<256x128xf32>
    %23 = tpu.matmul %21, %22, %cst_33 {dimension_numbers = #tpu.dot_dimension_numbers<[1], [0], [0], [1], [0, 0, 1, 1], [], []>} : vector<256x128xbf16>, vector<128x128xbf16>, vector<256x128xf32> -> vector<256x128xf32>
    %24 = arith.addf %19, %23 : vector<256x128xf32>
    %c1_34 = arith.constant 1 : index
    %c0_35 = arith.constant 0 : index
    %c0_36 = arith.constant 0 : index
    %25 = vector.load %arg7[%c1_34, %c0_35, %c0_36] : memref<18x18x128xbf16, #tpu.memory_space<vmem>>, vector<16x16x128xbf16>
    %26 = vector.shape_cast %25 : vector<16x16x128xbf16> to vector<256x128xbf16>
    %c384 = arith.constant 384 : index
    %c0_37 = arith.constant 0 : index
    %27 = vector.load %arg2[%c384, %c0_37] : memref<1152x128xbf16, #tpu.memory_space<vmem>>, vector<128x128xbf16>
    %cst_38 = arith.constant dense<0.000000e+00> : vector<256x128xf32>
    %28 = tpu.matmul %26, %27, %cst_38 {dimension_numbers = #tpu.dot_dimension_numbers<[1], [0], [0], [1], [0, 0, 1, 1], [], []>} : vector<256x128xbf16>, vector<128x128xbf16>, vector<256x128xf32> -> vector<256x128xf32>
    %29 = arith.addf %24, %28 : vector<256x128xf32>
    %c1_39 = arith.constant 1 : index
    %c1_40 = arith.constant 1 : index
    %c0_41 = arith.constant 0 : index
    %30 = vector.load %arg7[%c1_39, %c1_40, %c0_41] : memref<18x18x128xbf16, #tpu.memory_space<vmem>>, vector<16x16x128xbf16>
    %31 = vector.shape_cast %30 : vector<16x16x128xbf16> to vector<256x128xbf16>
    %c512 = arith.constant 512 : index
    %c0_42 = arith.constant 0 : index
    %32 = vector.load %arg2[%c512, %c0_42] : memref<1152x128xbf16, #tpu.memory_space<vmem>>, vector<128x128xbf16>
    %cst_43 = arith.constant dense<0.000000e+00> : vector<256x128xf32>
    %33 = tpu.matmul %31, %32, %cst_43 {dimension_numbers = #tpu.dot_dimension_numbers<[1], [0], [0], [1], [0, 0, 1, 1], [], []>} : vector<256x128xbf16>, vector<128x128xbf16>, vector<256x128xf32> -> vector<256x128xf32>
    %34 = arith.addf %29, %33 : vector<256x128xf32>
    %c1_44 = arith.constant 1 : index
    %c2_45 = arith.constant 2 : index
    %c0_46 = arith.constant 0 : index
    %35 = vector.load %arg7[%c1_44, %c2_45, %c0_46] : memref<18x18x128xbf16, #tpu.memory_space<vmem>>, vector<16x16x128xbf16>
    %36 = vector.shape_cast %35 : vector<16x16x128xbf16> to vector<256x128xbf16>
    %c640 = arith.constant 640 : index
    %c0_47 = arith.constant 0 : index
    %37 = vector.load %arg2[%c640, %c0_47] : memref<1152x128xbf16, #tpu.memory_space<vmem>>, vector<128x128xbf16>
    %cst_48 = arith.constant dense<0.000000e+00> : vector<256x128xf32>
    %38 = tpu.matmul %36, %37, %cst_48 {dimension_numbers = #tpu.dot_dimension_numbers<[1], [0], [0], [1], [0, 0, 1, 1], [], []>} : vector<256x128xbf16>, vector<128x128xbf16>, vector<256x128xf32> -> vector<256x128xf32>
    %39 = arith.addf %34, %38 : vector<256x128xf32>
    %c2_49 = arith.constant 2 : index
    %c0_50 = arith.constant 0 : index
    %c0_51 = arith.constant 0 : index
    %40 = vector.load %arg7[%c2_49, %c0_50, %c0_51] : memref<18x18x128xbf16, #tpu.memory_space<vmem>>, vector<16x16x128xbf16>
    %41 = vector.shape_cast %40 : vector<16x16x128xbf16> to vector<256x128xbf16>
    %c768 = arith.constant 768 : index
    %c0_52 = arith.constant 0 : index
    %42 = vector.load %arg2[%c768, %c0_52] : memref<1152x128xbf16, #tpu.memory_space<vmem>>, vector<128x128xbf16>
    %cst_53 = arith.constant dense<0.000000e+00> : vector<256x128xf32>
    %43 = tpu.matmul %41, %42, %cst_53 {dimension_numbers = #tpu.dot_dimension_numbers<[1], [0], [0], [1], [0, 0, 1, 1], [], []>} : vector<256x128xbf16>, vector<128x128xbf16>, vector<256x128xf32> -> vector<256x128xf32>
    %44 = arith.addf %39, %43 : vector<256x128xf32>
    %c2_54 = arith.constant 2 : index
    %c1_55 = arith.constant 1 : index
    %c0_56 = arith.constant 0 : index
    %45 = vector.load %arg7[%c2_54, %c1_55, %c0_56] : memref<18x18x128xbf16, #tpu.memory_space<vmem>>, vector<16x16x128xbf16>
    %46 = vector.shape_cast %45 : vector<16x16x128xbf16> to vector<256x128xbf16>
    %c896 = arith.constant 896 : index
    %c0_57 = arith.constant 0 : index
    %47 = vector.load %arg2[%c896, %c0_57] : memref<1152x128xbf16, #tpu.memory_space<vmem>>, vector<128x128xbf16>
    %cst_58 = arith.constant dense<0.000000e+00> : vector<256x128xf32>
    %48 = tpu.matmul %46, %47, %cst_58 {dimension_numbers = #tpu.dot_dimension_numbers<[1], [0], [0], [1], [0, 0, 1, 1], [], []>} : vector<256x128xbf16>, vector<128x128xbf16>, vector<256x128xf32> -> vector<256x128xf32>
    %49 = arith.addf %44, %48 : vector<256x128xf32>
    %c2_59 = arith.constant 2 : index
    %c2_60 = arith.constant 2 : index
    %c0_61 = arith.constant 0 : index
    %50 = vector.load %arg7[%c2_59, %c2_60, %c0_61] : memref<18x18x128xbf16, #tpu.memory_space<vmem>>, vector<16x16x128xbf16>
    %51 = vector.shape_cast %50 : vector<16x16x128xbf16> to vector<256x128xbf16>
    %c1024 = arith.constant 1024 : index
    %c0_62 = arith.constant 0 : index
    %52 = vector.load %arg2[%c1024, %c0_62] : memref<1152x128xbf16, #tpu.memory_space<vmem>>, vector<128x128xbf16>
    %cst_63 = arith.constant dense<0.000000e+00> : vector<256x128xf32>
    %53 = tpu.matmul %51, %52, %cst_63 {dimension_numbers = #tpu.dot_dimension_numbers<[1], [0], [0], [1], [0, 0, 1, 1], [], []>} : vector<256x128xbf16>, vector<128x128xbf16>, vector<256x128xf32> -> vector<256x128xf32>
    %54 = arith.addf %49, %53 : vector<256x128xf32>
    %55 = vector.shape_cast %1 : vector<16x16x128xbf16> to vector<256x128xbf16>
    %c0_64 = arith.constant 0 : index
    %c0_65 = arith.constant 0 : index
    %56 = vector.load %arg3[%c0_64, %c0_65] : memref<128x128xbf16, #tpu.memory_space<vmem>>, vector<128x128xbf16>
    %cst_66 = arith.constant dense<0.000000e+00> : vector<256x128xf32>
    %57 = tpu.matmul %55, %56, %cst_66 {dimension_numbers = #tpu.dot_dimension_numbers<[1], [0], [0], [1], [0, 0, 1, 1], [], []>} : vector<256x128xbf16>, vector<128x128xbf16>, vector<256x128xf32> -> vector<256x128xf32>
    %58 = vector.shape_cast %54 : vector<256x128xf32> to vector<16x16x128xf32>
    %59 = arith.truncf %58 : vector<16x16x128xf32> to vector<16x16x128xbf16>
    %c0_67 = arith.constant 0 : index
    %c0_68 = arith.constant 0 : index
    %c0_69 = arith.constant 0 : index
    %c0_70 = arith.constant 0 : index
    %60 = vector.load %arg4[%c0_67, %c0_68, %c0_69, %c0_70] : memref<1x16x16x128xbf16, #tpu.memory_space<vmem>>, vector<1x16x16x128xbf16>
    %61 = vector.shape_cast %60 : vector<1x16x16x128xbf16> to vector<16x16x128xbf16>
    %62 = vector.shape_cast %59 : vector<16x16x128xbf16> to vector<1x16x16x128xbf16>
    tpu.vector_store %arg4[%c0_67, %c0_68, %c0_69, %c0_70], %62 {strides = array<i32>} : memref<1x16x16x128xbf16, #tpu.memory_space<vmem>>, vector<1x16x16x128xbf16>,
    %cst_71 = arith.constant dense<0.000000e+00> : vector<128xf32>
    %63 = vector.multi_reduction <add>, %54, %cst_71 [0] : vector<256x128xf32> to vector<128xf32>
    %64 = vector.shape_cast %63 : vector<128xf32> to vector<1x128xf32>
    %c0_72 = arith.constant 0 : index
    %c0_73 = arith.constant 0 : index
    %c0_74 = arith.constant 0 : index
    %65 = vector.load %arg5[%c0_72, %c0_73, %c0_74] : memref<1x2x128xf32, #tpu.memory_space<vmem>>, vector<1x1x128xf32>
    %66 = vector.shape_cast %65 : vector<1x1x128xf32> to vector<1x128xf32>
    %67 = vector.shape_cast %64 : vector<1x128xf32> to vector<1x1x128xf32>
    tpu.vector_store %arg5[%c0_72, %c0_73, %c0_74], %67 {strides = array<i32>} : memref<1x2x128xf32, #tpu.memory_space<vmem>>, vector<1x1x128xf32>,
    %68 = arith.mulf %54, %54 : vector<256x128xf32>
    %cst_75 = arith.constant dense<0.000000e+00> : vector<128xf32>
    %69 = vector.multi_reduction <add>, %68, %cst_75 [0] : vector<256x128xf32> to vector<128xf32>
    %70 = vector.shape_cast %69 : vector<128xf32> to vector<1x128xf32>
    %c0_76 = arith.constant 0 : index
    %c1_77 = arith.constant 1 : index
    %c0_78 = arith.constant 0 : index
    %71 = vector.load %arg5[%c0_76, %c1_77, %c0_78] : memref<1x2x128xf32, #tpu.memory_space<vmem>>, vector<1x1x128xf32>
    %72 = vector.shape_cast %71 : vector<1x1x128xf32> to vector<1x128xf32>
    %73 = vector.shape_cast %70 : vector<1x128xf32> to vector<1x1x128xf32>
    tpu.vector_store %arg5[%c0_76, %c1_77, %c0_78], %73 {strides = array<i32>} : memref<1x2x128xf32, #tpu.memory_space<vmem>>, vector<1x1x128xf32>,
    %cst_79 = arith.constant dense<0.000000e+00> : vector<128xf32>
    %74 = vector.multi_reduction <add>, %57, %cst_79 [0] : vector<256x128xf32> to vector<128xf32>
    %75 = vector.shape_cast %74 : vector<128xf32> to vector<1x128xf32>
    %c0_80 = arith.constant 0 : index
    %c0_81 = arith.constant 0 : index
    %c0_82 = arith.constant 0 : index
    %76 = vector.load %arg6[%c0_80, %c0_81, %c0_82] : memref<1x2x128xf32, #tpu.memory_space<vmem>>, vector<1x1x128xf32>
    %77 = vector.shape_cast %76 : vector<1x1x128xf32> to vector<1x128xf32>
    %78 = vector.shape_cast %75 : vector<1x128xf32> to vector<1x1x128xf32>
    tpu.vector_store %arg6[%c0_80, %c0_81, %c0_82], %78 {strides = array<i32>} : memref<1x2x128xf32, #tpu.memory_space<vmem>>, vector<1x1x128xf32>,
    %79 = arith.mulf %57, %57 : vector<256x128xf32>
    %cst_83 = arith.constant dense<0.000000e+00> : vector<128xf32>
    %80 = vector.multi_reduction <add>, %79, %cst_83 [0] : vector<256x128xf32> to vector<128xf32>
    %81 = vector.shape_cast %80 : vector<128xf32> to vector<1x128xf32>
    %c0_84 = arith.constant 0 : index
    %c1_85 = arith.constant 1 : index
    %c0_86 = arith.constant 0 : index
    %82 = vector.load %arg6[%c0_84, %c1_85, %c0_86] : memref<1x2x128xf32, #tpu.memory_space<vmem>>, vector<1x1x128xf32>
    %83 = vector.shape_cast %82 : vector<1x1x128xf32> to vector<1x128xf32>
    %84 = vector.shape_cast %81 : vector<1x128xf32> to vector<1x1x128xf32>
    tpu.vector_store %arg6[%c0_84, %c1_85, %c0_86], %84 {strides = array<i32>} : memref<1x2x128xf32, #tpu.memory_space<vmem>>, vector<1x1x128xf32>,
    return
  }
  func.func @transform_0(%arg0: i32) -> (i32, i32, i32, i32) {
    %c0_i32 = arith.constant 0 : i32
    %c0_i32_0 = arith.constant 0 : i32
    %c0_i32_1 = arith.constant 0 : i32
    %c0_i32_2 = arith.constant 0 : i32
    return %arg0, %c0_i32, %c0_i32_0, %c0_i32_1 : i32, i32, i32, i32
  }
  func.func @transform_1(%arg0: i32) -> (i32, i32) {
    %c0_i32 = arith.constant 0 : i32
    %c0_i32_0 = arith.constant 0 : i32
    %c0_i32_1 = arith.constant 0 : i32
    return %c0_i32, %c0_i32_0 : i32, i32
  }
  func.func @transform_2(%arg0: i32) -> (i32, i32) {
    %c0_i32 = arith.constant 0 : i32
    %c0_i32_0 = arith.constant 0 : i32
    %c0_i32_1 = arith.constant 0 : i32
    return %c0_i32, %c0_i32_0 : i32, i32
  }
  func.func @transform_3(%arg0: i32) -> (i32, i32, i32, i32) {
    %c0_i32 = arith.constant 0 : i32
    %c0_i32_0 = arith.constant 0 : i32
    %c0_i32_1 = arith.constant 0 : i32
    %c0_i32_2 = arith.constant 0 : i32
    return %arg0, %c0_i32, %c0_i32_0, %c0_i32_1 : i32, i32, i32, i32
  }
  func.func @transform_4(%arg0: i32) -> (i32, i32, i32) {
    %c0_i32 = arith.constant 0 : i32
    %c0_i32_0 = arith.constant 0 : i32
    %c0_i32_1 = arith.constant 0 : i32
    return %arg0, %c0_i32, %c0_i32_0 : i32, i32, i32
  }
  func.func @transform_5(%arg0: i32) -> (i32, i32, i32) {
    %c0_i32 = arith.constant 0 : i32
    %c0_i32_0 = arith.constant 0 : i32
    %c0_i32_1 = arith.constant 0 : i32
    return %arg0, %c0_i32, %c0_i32_0 : i32, i32, i32
  }
}

module attributes {stable_mosaic.version = 11 : i64} {
  func.func @_pass2_kernel(%arg0: i32, %arg1: memref<1x16x16x128xbf16, #tpu.memory_space<vmem>>, %arg2: memref<2x128xf32, #tpu.memory_space<vmem>>, %arg3: memref<1152x128xbf16, #tpu.memory_space<vmem>>, %arg4: memref<1x16x16x128xbf16, #tpu.memory_space<vmem>>, %arg5: memref<1x2x128xf32, #tpu.memory_space<vmem>>, %arg6: memref<18x18x128xbf16, #tpu.memory_space<vmem>>) attributes {dimension_semantics = [#tpu.dimension_semantics<parallel>], iteration_bounds = array<i64: 2>, scalar_prefetch = 0 : i64, scratch_operands = 1 : i64, tpu.core_type = #tpu.core_type<tc>, window_params = [{transform_indices = @transform_0, window_bounds = array<i64: 1, 16, 16, 128>}, {pipeline_mode = #tpu.pipeline_mode<synchronous>, transform_indices = @transform_1, window_bounds = array<i64: 2, 128>}, {pipeline_mode = #tpu.pipeline_mode<synchronous>, transform_indices = @transform_2, window_bounds = array<i64: 1152, 128>}, {transform_indices = @transform_3, window_bounds = array<i64: 1, 16, 16, 128>}, {transform_indices = @transform_4, window_bounds = array<i64: 1, 2, 128>}]} {
    %c0 = arith.constant 0 : index
    %c0_0 = arith.constant 0 : index
    %0 = vector.load %arg2[%c0, %c0_0] : memref<2x128xf32, #tpu.memory_space<vmem>>, vector<1x128xf32>
    %1 = vector.shape_cast %0 : vector<1x128xf32> to vector<1x1x128xf32>
    %c1 = arith.constant 1 : index
    %c0_1 = arith.constant 0 : index
    %2 = vector.load %arg2[%c1, %c0_1] : memref<2x128xf32, #tpu.memory_space<vmem>>, vector<1x128xf32>
    %3 = vector.shape_cast %2 : vector<1x128xf32> to vector<1x1x128xf32>
    %c0_2 = arith.constant 0 : index
    %c0_3 = arith.constant 0 : index
    %c0_4 = arith.constant 0 : index
    %c0_5 = arith.constant 0 : index
    %4 = vector.load %arg1[%c0_2, %c0_3, %c0_4, %c0_5] : memref<1x16x16x128xbf16, #tpu.memory_space<vmem>>, vector<1x16x16x128xbf16>
    %5 = vector.shape_cast %4 : vector<1x16x16x128xbf16> to vector<16x16x128xbf16>
    %6 = arith.extf %5 : vector<16x16x128xbf16> to vector<16x16x128xf32>
    %7 = vector.broadcast %1 : vector<1x1x128xf32> to vector<16x16x128xf32>
    %8 = arith.mulf %6, %7 : vector<16x16x128xf32>
    %9 = vector.broadcast %3 : vector<1x1x128xf32> to vector<16x16x128xf32>
    %10 = arith.addf %8, %9 : vector<16x16x128xf32>
    %cst = arith.constant 0.000000e+00 : f32
    %11 = vector.broadcast %cst : f32 to vector<16x16x128xf32>
    %12 = arith.maximumf %10, %11 : vector<16x16x128xf32>
    %13 = arith.truncf %12 : vector<16x16x128xf32> to vector<16x16x128xbf16>
    %cst_6 = arith.constant 0.000000e+00 : bf16
    %14 = vector.broadcast %cst_6 : bf16 to vector<1x18x128xbf16>
    %c0_7 = arith.constant 0 : index
    %c0_8 = arith.constant 0 : index
    %c0_9 = arith.constant 0 : index
    %15 = vector.load %arg6[%c0_7, %c0_8, %c0_9] : memref<18x18x128xbf16, #tpu.memory_space<vmem>>, vector<1x18x128xbf16>
    tpu.vector_store %arg6[%c0_7, %c0_8, %c0_9], %14 {strides = array<i32>} : memref<18x18x128xbf16, #tpu.memory_space<vmem>>, vector<1x18x128xbf16>,
    %cst_10 = arith.constant 0.000000e+00 : bf16
    %16 = vector.broadcast %cst_10 : bf16 to vector<1x18x128xbf16>
    %c17 = arith.constant 17 : index
    %c0_11 = arith.constant 0 : index
    %c0_12 = arith.constant 0 : index
    %17 = vector.load %arg6[%c17, %c0_11, %c0_12] : memref<18x18x128xbf16, #tpu.memory_space<vmem>>, vector<1x18x128xbf16>
    tpu.vector_store %arg6[%c17, %c0_11, %c0_12], %16 {strides = array<i32>} : memref<18x18x128xbf16, #tpu.memory_space<vmem>>, vector<1x18x128xbf16>,
    %cst_13 = arith.constant 0.000000e+00 : bf16
    %18 = vector.broadcast %cst_13 : bf16 to vector<16x1x128xbf16>
    %c1_14 = arith.constant 1 : index
    %c0_15 = arith.constant 0 : index
    %c0_16 = arith.constant 0 : index
    %19 = vector.load %arg6[%c1_14, %c0_15, %c0_16] : memref<18x18x128xbf16, #tpu.memory_space<vmem>>, vector<16x1x128xbf16>
    tpu.vector_store %arg6[%c1_14, %c0_15, %c0_16], %18 {strides = array<i32>} : memref<18x18x128xbf16, #tpu.memory_space<vmem>>, vector<16x1x128xbf16>,
    %cst_17 = arith.constant 0.000000e+00 : bf16
    %20 = vector.broadcast %cst_17 : bf16 to vector<16x1x128xbf16>
    %c1_18 = arith.constant 1 : index
    %c17_19 = arith.constant 17 : index
    %c0_20 = arith.constant 0 : index
    %21 = vector.load %arg6[%c1_18, %c17_19, %c0_20] : memref<18x18x128xbf16, #tpu.memory_space<vmem>>, vector<16x1x128xbf16>
    tpu.vector_store %arg6[%c1_18, %c17_19, %c0_20], %20 {strides = array<i32>} : memref<18x18x128xbf16, #tpu.memory_space<vmem>>, vector<16x1x128xbf16>,
    %c1_21 = arith.constant 1 : index
    %c1_22 = arith.constant 1 : index
    %c0_23 = arith.constant 0 : index
    %22 = vector.load %arg6[%c1_21, %c1_22, %c0_23] : memref<18x18x128xbf16, #tpu.memory_space<vmem>>, vector<16x16x128xbf16>
    tpu.vector_store %arg6[%c1_21, %c1_22, %c0_23], %13 {strides = array<i32>} : memref<18x18x128xbf16, #tpu.memory_space<vmem>>, vector<16x16x128xbf16>,
    %c0_24 = arith.constant 0 : index
    %c0_25 = arith.constant 0 : index
    %c0_26 = arith.constant 0 : index
    %23 = vector.load %arg6[%c0_24, %c0_25, %c0_26] : memref<18x18x128xbf16, #tpu.memory_space<vmem>>, vector<16x16x128xbf16>
    %24 = vector.shape_cast %23 : vector<16x16x128xbf16> to vector<256x128xbf16>
    %c0_27 = arith.constant 0 : index
    %c0_28 = arith.constant 0 : index
    %25 = vector.load %arg3[%c0_27, %c0_28] : memref<1152x128xbf16, #tpu.memory_space<vmem>>, vector<128x128xbf16>
    %cst_29 = arith.constant dense<0.000000e+00> : vector<256x128xf32>
    %26 = tpu.matmul %24, %25, %cst_29 {dimension_numbers = #tpu.dot_dimension_numbers<[1], [0], [0], [1], [0, 0, 1, 1], [], []>} : vector<256x128xbf16>, vector<128x128xbf16>, vector<256x128xf32> -> vector<256x128xf32>
    %c0_30 = arith.constant 0 : index
    %c1_31 = arith.constant 1 : index
    %c0_32 = arith.constant 0 : index
    %27 = vector.load %arg6[%c0_30, %c1_31, %c0_32] : memref<18x18x128xbf16, #tpu.memory_space<vmem>>, vector<16x16x128xbf16>
    %28 = vector.shape_cast %27 : vector<16x16x128xbf16> to vector<256x128xbf16>
    %c128 = arith.constant 128 : index
    %c0_33 = arith.constant 0 : index
    %29 = vector.load %arg3[%c128, %c0_33] : memref<1152x128xbf16, #tpu.memory_space<vmem>>, vector<128x128xbf16>
    %cst_34 = arith.constant dense<0.000000e+00> : vector<256x128xf32>
    %30 = tpu.matmul %28, %29, %cst_34 {dimension_numbers = #tpu.dot_dimension_numbers<[1], [0], [0], [1], [0, 0, 1, 1], [], []>} : vector<256x128xbf16>, vector<128x128xbf16>, vector<256x128xf32> -> vector<256x128xf32>
    %31 = arith.addf %26, %30 : vector<256x128xf32>
    %c0_35 = arith.constant 0 : index
    %c2 = arith.constant 2 : index
    %c0_36 = arith.constant 0 : index
    %32 = vector.load %arg6[%c0_35, %c2, %c0_36] : memref<18x18x128xbf16, #tpu.memory_space<vmem>>, vector<16x16x128xbf16>
    %33 = vector.shape_cast %32 : vector<16x16x128xbf16> to vector<256x128xbf16>
    %c256 = arith.constant 256 : index
    %c0_37 = arith.constant 0 : index
    %34 = vector.load %arg3[%c256, %c0_37] : memref<1152x128xbf16, #tpu.memory_space<vmem>>, vector<128x128xbf16>
    %cst_38 = arith.constant dense<0.000000e+00> : vector<256x128xf32>
    %35 = tpu.matmul %33, %34, %cst_38 {dimension_numbers = #tpu.dot_dimension_numbers<[1], [0], [0], [1], [0, 0, 1, 1], [], []>} : vector<256x128xbf16>, vector<128x128xbf16>, vector<256x128xf32> -> vector<256x128xf32>
    %36 = arith.addf %31, %35 : vector<256x128xf32>
    %c1_39 = arith.constant 1 : index
    %c0_40 = arith.constant 0 : index
    %c0_41 = arith.constant 0 : index
    %37 = vector.load %arg6[%c1_39, %c0_40, %c0_41] : memref<18x18x128xbf16, #tpu.memory_space<vmem>>, vector<16x16x128xbf16>
    %38 = vector.shape_cast %37 : vector<16x16x128xbf16> to vector<256x128xbf16>
    %c384 = arith.constant 384 : index
    %c0_42 = arith.constant 0 : index
    %39 = vector.load %arg3[%c384, %c0_42] : memref<1152x128xbf16, #tpu.memory_space<vmem>>, vector<128x128xbf16>
    %cst_43 = arith.constant dense<0.000000e+00> : vector<256x128xf32>
    %40 = tpu.matmul %38, %39, %cst_43 {dimension_numbers = #tpu.dot_dimension_numbers<[1], [0], [0], [1], [0, 0, 1, 1], [], []>} : vector<256x128xbf16>, vector<128x128xbf16>, vector<256x128xf32> -> vector<256x128xf32>
    %41 = arith.addf %36, %40 : vector<256x128xf32>
    %c1_44 = arith.constant 1 : index
    %c1_45 = arith.constant 1 : index
    %c0_46 = arith.constant 0 : index
    %42 = vector.load %arg6[%c1_44, %c1_45, %c0_46] : memref<18x18x128xbf16, #tpu.memory_space<vmem>>, vector<16x16x128xbf16>
    %43 = vector.shape_cast %42 : vector<16x16x128xbf16> to vector<256x128xbf16>
    %c512 = arith.constant 512 : index
    %c0_47 = arith.constant 0 : index
    %44 = vector.load %arg3[%c512, %c0_47] : memref<1152x128xbf16, #tpu.memory_space<vmem>>, vector<128x128xbf16>
    %cst_48 = arith.constant dense<0.000000e+00> : vector<256x128xf32>
    %45 = tpu.matmul %43, %44, %cst_48 {dimension_numbers = #tpu.dot_dimension_numbers<[1], [0], [0], [1], [0, 0, 1, 1], [], []>} : vector<256x128xbf16>, vector<128x128xbf16>, vector<256x128xf32> -> vector<256x128xf32>
    %46 = arith.addf %41, %45 : vector<256x128xf32>
    %c1_49 = arith.constant 1 : index
    %c2_50 = arith.constant 2 : index
    %c0_51 = arith.constant 0 : index
    %47 = vector.load %arg6[%c1_49, %c2_50, %c0_51] : memref<18x18x128xbf16, #tpu.memory_space<vmem>>, vector<16x16x128xbf16>
    %48 = vector.shape_cast %47 : vector<16x16x128xbf16> to vector<256x128xbf16>
    %c640 = arith.constant 640 : index
    %c0_52 = arith.constant 0 : index
    %49 = vector.load %arg3[%c640, %c0_52] : memref<1152x128xbf16, #tpu.memory_space<vmem>>, vector<128x128xbf16>
    %cst_53 = arith.constant dense<0.000000e+00> : vector<256x128xf32>
    %50 = tpu.matmul %48, %49, %cst_53 {dimension_numbers = #tpu.dot_dimension_numbers<[1], [0], [0], [1], [0, 0, 1, 1], [], []>} : vector<256x128xbf16>, vector<128x128xbf16>, vector<256x128xf32> -> vector<256x128xf32>
    %51 = arith.addf %46, %50 : vector<256x128xf32>
    %c2_54 = arith.constant 2 : index
    %c0_55 = arith.constant 0 : index
    %c0_56 = arith.constant 0 : index
    %52 = vector.load %arg6[%c2_54, %c0_55, %c0_56] : memref<18x18x128xbf16, #tpu.memory_space<vmem>>, vector<16x16x128xbf16>
    %53 = vector.shape_cast %52 : vector<16x16x128xbf16> to vector<256x128xbf16>
    %c768 = arith.constant 768 : index
    %c0_57 = arith.constant 0 : index
    %54 = vector.load %arg3[%c768, %c0_57] : memref<1152x128xbf16, #tpu.memory_space<vmem>>, vector<128x128xbf16>
    %cst_58 = arith.constant dense<0.000000e+00> : vector<256x128xf32>
    %55 = tpu.matmul %53, %54, %cst_58 {dimension_numbers = #tpu.dot_dimension_numbers<[1], [0], [0], [1], [0, 0, 1, 1], [], []>} : vector<256x128xbf16>, vector<128x128xbf16>, vector<256x128xf32> -> vector<256x128xf32>
    %56 = arith.addf %51, %55 : vector<256x128xf32>
    %c2_59 = arith.constant 2 : index
    %c1_60 = arith.constant 1 : index
    %c0_61 = arith.constant 0 : index
    %57 = vector.load %arg6[%c2_59, %c1_60, %c0_61] : memref<18x18x128xbf16, #tpu.memory_space<vmem>>, vector<16x16x128xbf16>
    %58 = vector.shape_cast %57 : vector<16x16x128xbf16> to vector<256x128xbf16>
    %c896 = arith.constant 896 : index
    %c0_62 = arith.constant 0 : index
    %59 = vector.load %arg3[%c896, %c0_62] : memref<1152x128xbf16, #tpu.memory_space<vmem>>, vector<128x128xbf16>
    %cst_63 = arith.constant dense<0.000000e+00> : vector<256x128xf32>
    %60 = tpu.matmul %58, %59, %cst_63 {dimension_numbers = #tpu.dot_dimension_numbers<[1], [0], [0], [1], [0, 0, 1, 1], [], []>} : vector<256x128xbf16>, vector<128x128xbf16>, vector<256x128xf32> -> vector<256x128xf32>
    %61 = arith.addf %56, %60 : vector<256x128xf32>
    %c2_64 = arith.constant 2 : index
    %c2_65 = arith.constant 2 : index
    %c0_66 = arith.constant 0 : index
    %62 = vector.load %arg6[%c2_64, %c2_65, %c0_66] : memref<18x18x128xbf16, #tpu.memory_space<vmem>>, vector<16x16x128xbf16>
    %63 = vector.shape_cast %62 : vector<16x16x128xbf16> to vector<256x128xbf16>
    %c1024 = arith.constant 1024 : index
    %c0_67 = arith.constant 0 : index
    %64 = vector.load %arg3[%c1024, %c0_67] : memref<1152x128xbf16, #tpu.memory_space<vmem>>, vector<128x128xbf16>
    %cst_68 = arith.constant dense<0.000000e+00> : vector<256x128xf32>
    %65 = tpu.matmul %63, %64, %cst_68 {dimension_numbers = #tpu.dot_dimension_numbers<[1], [0], [0], [1], [0, 0, 1, 1], [], []>} : vector<256x128xbf16>, vector<128x128xbf16>, vector<256x128xf32> -> vector<256x128xf32>
    %66 = arith.addf %61, %65 : vector<256x128xf32>
    %67 = vector.shape_cast %66 : vector<256x128xf32> to vector<16x16x128xf32>
    %68 = arith.truncf %67 : vector<16x16x128xf32> to vector<16x16x128xbf16>
    %c0_69 = arith.constant 0 : index
    %c0_70 = arith.constant 0 : index
    %c0_71 = arith.constant 0 : index
    %c0_72 = arith.constant 0 : index
    %69 = vector.load %arg4[%c0_69, %c0_70, %c0_71, %c0_72] : memref<1x16x16x128xbf16, #tpu.memory_space<vmem>>, vector<1x16x16x128xbf16>
    %70 = vector.shape_cast %69 : vector<1x16x16x128xbf16> to vector<16x16x128xbf16>
    %71 = vector.shape_cast %68 : vector<16x16x128xbf16> to vector<1x16x16x128xbf16>
    tpu.vector_store %arg4[%c0_69, %c0_70, %c0_71, %c0_72], %71 {strides = array<i32>} : memref<1x16x16x128xbf16, #tpu.memory_space<vmem>>, vector<1x16x16x128xbf16>,
    %cst_73 = arith.constant dense<0.000000e+00> : vector<128xf32>
    %72 = vector.multi_reduction <add>, %66, %cst_73 [0] : vector<256x128xf32> to vector<128xf32>
    %73 = vector.shape_cast %72 : vector<128xf32> to vector<1x128xf32>
    %c0_74 = arith.constant 0 : index
    %c0_75 = arith.constant 0 : index
    %c0_76 = arith.constant 0 : index
    %74 = vector.load %arg5[%c0_74, %c0_75, %c0_76] : memref<1x2x128xf32, #tpu.memory_space<vmem>>, vector<1x1x128xf32>
    %75 = vector.shape_cast %74 : vector<1x1x128xf32> to vector<1x128xf32>
    %76 = vector.shape_cast %73 : vector<1x128xf32> to vector<1x1x128xf32>
    tpu.vector_store %arg5[%c0_74, %c0_75, %c0_76], %76 {strides = array<i32>} : memref<1x2x128xf32, #tpu.memory_space<vmem>>, vector<1x1x128xf32>,
    %77 = arith.mulf %66, %66 : vector<256x128xf32>
    %cst_77 = arith.constant dense<0.000000e+00> : vector<128xf32>
    %78 = vector.multi_reduction <add>, %77, %cst_77 [0] : vector<256x128xf32> to vector<128xf32>
    %79 = vector.shape_cast %78 : vector<128xf32> to vector<1x128xf32>
    %c0_78 = arith.constant 0 : index
    %c1_79 = arith.constant 1 : index
    %c0_80 = arith.constant 0 : index
    %80 = vector.load %arg5[%c0_78, %c1_79, %c0_80] : memref<1x2x128xf32, #tpu.memory_space<vmem>>, vector<1x1x128xf32>
    %81 = vector.shape_cast %80 : vector<1x1x128xf32> to vector<1x128xf32>
    %82 = vector.shape_cast %79 : vector<1x128xf32> to vector<1x1x128xf32>
    tpu.vector_store %arg5[%c0_78, %c1_79, %c0_80], %82 {strides = array<i32>} : memref<1x2x128xf32, #tpu.memory_space<vmem>>, vector<1x1x128xf32>,
    return
  }
  func.func @transform_0(%arg0: i32) -> (i32, i32, i32, i32) {
    %c0_i32 = arith.constant 0 : i32
    %c0_i32_0 = arith.constant 0 : i32
    %c0_i32_1 = arith.constant 0 : i32
    %c0_i32_2 = arith.constant 0 : i32
    return %arg0, %c0_i32, %c0_i32_0, %c0_i32_1 : i32, i32, i32, i32
  }
  func.func @transform_1(%arg0: i32) -> (i32, i32) {
    %c0_i32 = arith.constant 0 : i32
    %c0_i32_0 = arith.constant 0 : i32
    %c0_i32_1 = arith.constant 0 : i32
    return %c0_i32, %c0_i32_0 : i32, i32
  }
  func.func @transform_2(%arg0: i32) -> (i32, i32) {
    %c0_i32 = arith.constant 0 : i32
    %c0_i32_0 = arith.constant 0 : i32
    %c0_i32_1 = arith.constant 0 : i32
    return %c0_i32, %c0_i32_0 : i32, i32
  }
  func.func @transform_3(%arg0: i32) -> (i32, i32, i32, i32) {
    %c0_i32 = arith.constant 0 : i32
    %c0_i32_0 = arith.constant 0 : i32
    %c0_i32_1 = arith.constant 0 : i32
    %c0_i32_2 = arith.constant 0 : i32
    return %arg0, %c0_i32, %c0_i32_0, %c0_i32_1 : i32, i32, i32, i32
  }
  func.func @transform_4(%arg0: i32) -> (i32, i32, i32) {
    %c0_i32 = arith.constant 0 : i32
    %c0_i32_0 = arith.constant 0 : i32
    %c0_i32_1 = arith.constant 0 : i32
    return %arg0, %c0_i32, %c0_i32_0 : i32, i32, i32
  }
}

module attributes {stable_mosaic.version = 11 : i64} {
  func.func @_pass3_kernel(%arg0: i32, %arg1: memref<1x16x16x128xbf16, #tpu.memory_space<vmem>>, %arg2: memref<1x16x16x128xbf16, #tpu.memory_space<vmem>>, %arg3: memref<128x128xbf16, #tpu.memory_space<vmem>>, %arg4: memref<4x128xf32, #tpu.memory_space<vmem>>, %arg5: memref<1x16x16x128xf32, #tpu.memory_space<vmem>>) attributes {dimension_semantics = [#tpu.dimension_semantics<parallel>], iteration_bounds = array<i64: 2>, scalar_prefetch = 0 : i64, scratch_operands = 0 : i64, tpu.core_type = #tpu.core_type<tc>, window_params = [{transform_indices = @transform_0, window_bounds = array<i64: 1, 16, 16, 128>}, {transform_indices = @transform_1, window_bounds = array<i64: 1, 16, 16, 128>}, {pipeline_mode = #tpu.pipeline_mode<synchronous>, transform_indices = @transform_2, window_bounds = array<i64: 128, 128>}, {pipeline_mode = #tpu.pipeline_mode<synchronous>, transform_indices = @transform_3, window_bounds = array<i64: 4, 128>}, {transform_indices = @transform_4, window_bounds = array<i64: 1, 16, 16, 128>}]} {
    %c0 = arith.constant 0 : index
    %c0_0 = arith.constant 0 : index
    %0 = vector.load %arg4[%c0, %c0_0] : memref<4x128xf32, #tpu.memory_space<vmem>>, vector<1x128xf32>
    %1 = vector.shape_cast %0 : vector<1x128xf32> to vector<1x1x128xf32>
    %c1 = arith.constant 1 : index
    %c0_1 = arith.constant 0 : index
    %2 = vector.load %arg4[%c1, %c0_1] : memref<4x128xf32, #tpu.memory_space<vmem>>, vector<1x128xf32>
    %3 = vector.shape_cast %2 : vector<1x128xf32> to vector<1x1x128xf32>
    %c2 = arith.constant 2 : index
    %c0_2 = arith.constant 0 : index
    %4 = vector.load %arg4[%c2, %c0_2] : memref<4x128xf32, #tpu.memory_space<vmem>>, vector<1x128xf32>
    %5 = vector.shape_cast %4 : vector<1x128xf32> to vector<1x1x128xf32>
    %c3 = arith.constant 3 : index
    %c0_3 = arith.constant 0 : index
    %6 = vector.load %arg4[%c3, %c0_3] : memref<4x128xf32, #tpu.memory_space<vmem>>, vector<1x128xf32>
    %7 = vector.shape_cast %6 : vector<1x128xf32> to vector<1x1x128xf32>
    %c0_4 = arith.constant 0 : index
    %c0_5 = arith.constant 0 : index
    %c0_6 = arith.constant 0 : index
    %c0_7 = arith.constant 0 : index
    %8 = vector.load %arg1[%c0_4, %c0_5, %c0_6, %c0_7] : memref<1x16x16x128xbf16, #tpu.memory_space<vmem>>, vector<1x16x16x128xbf16>
    %9 = vector.shape_cast %8 : vector<1x16x16x128xbf16> to vector<16x16x128xbf16>
    %10 = arith.extf %9 : vector<16x16x128xbf16> to vector<16x16x128xf32>
    %11 = vector.broadcast %1 : vector<1x1x128xf32> to vector<16x16x128xf32>
    %12 = arith.mulf %10, %11 : vector<16x16x128xf32>
    %13 = vector.broadcast %3 : vector<1x1x128xf32> to vector<16x16x128xf32>
    %14 = arith.addf %12, %13 : vector<16x16x128xf32>
    %cst = arith.constant 0.000000e+00 : f32
    %15 = vector.broadcast %cst : f32 to vector<16x16x128xf32>
    %16 = arith.maximumf %14, %15 : vector<16x16x128xf32>
    %c0_8 = arith.constant 0 : index
    %c0_9 = arith.constant 0 : index
    %c0_10 = arith.constant 0 : index
    %c0_11 = arith.constant 0 : index
    %17 = vector.load %arg2[%c0_8, %c0_9, %c0_10, %c0_11] : memref<1x16x16x128xbf16, #tpu.memory_space<vmem>>, vector<1x16x16x128xbf16>
    %18 = vector.shape_cast %17 : vector<1x16x16x128xbf16> to vector<16x16x128xbf16>
    %19 = vector.shape_cast %18 : vector<16x16x128xbf16> to vector<256x128xbf16>
    %c0_12 = arith.constant 0 : index
    %c0_13 = arith.constant 0 : index
    %20 = vector.load %arg3[%c0_12, %c0_13] : memref<128x128xbf16, #tpu.memory_space<vmem>>, vector<128x128xbf16>
    %cst_14 = arith.constant dense<0.000000e+00> : vector<256x128xf32>
    %21 = tpu.matmul %19, %20, %cst_14 {dimension_numbers = #tpu.dot_dimension_numbers<[1], [0], [0], [1], [0, 0, 1, 1], [], []>} : vector<256x128xbf16>, vector<128x128xbf16>, vector<256x128xf32> -> vector<256x128xf32>
    %22 = vector.shape_cast %21 : vector<256x128xf32> to vector<16x16x128xf32>
    %23 = vector.broadcast %5 : vector<1x1x128xf32> to vector<16x16x128xf32>
    %24 = arith.mulf %22, %23 : vector<16x16x128xf32>
    %25 = arith.addf %16, %24 : vector<16x16x128xf32>
    %26 = vector.broadcast %7 : vector<1x1x128xf32> to vector<16x16x128xf32>
    %27 = arith.addf %25, %26 : vector<16x16x128xf32>
    %c0_15 = arith.constant 0 : index
    %c0_16 = arith.constant 0 : index
    %c0_17 = arith.constant 0 : index
    %c0_18 = arith.constant 0 : index
    %28 = vector.load %arg5[%c0_15, %c0_16, %c0_17, %c0_18] : memref<1x16x16x128xf32, #tpu.memory_space<vmem>>, vector<1x16x16x128xf32>
    %29 = vector.shape_cast %28 : vector<1x16x16x128xf32> to vector<16x16x128xf32>
    %30 = vector.shape_cast %27 : vector<16x16x128xf32> to vector<1x16x16x128xf32>
    tpu.vector_store %arg5[%c0_15, %c0_16, %c0_17, %c0_18], %30 {strides = array<i32>} : memref<1x16x16x128xf32, #tpu.memory_space<vmem>>, vector<1x16x16x128xf32>,
    return
  }
  func.func @transform_0(%arg0: i32) -> (i32, i32, i32, i32) {
    %c0_i32 = arith.constant 0 : i32
    %c0_i32_0 = arith.constant 0 : i32
    %c0_i32_1 = arith.constant 0 : i32
    %c0_i32_2 = arith.constant 0 : i32
    return %arg0, %c0_i32, %c0_i32_0, %c0_i32_1 : i32, i32, i32, i32
  }
  func.func @transform_1(%arg0: i32) -> (i32, i32, i32, i32) {
    %c0_i32 = arith.constant 0 : i32
    %c0_i32_0 = arith.constant 0 : i32
    %c0_i32_1 = arith.constant 0 : i32
    %c0_i32_2 = arith.constant 0 : i32
    return %arg0, %c0_i32, %c0_i32_0, %c0_i32_1 : i32, i32, i32, i32
  }
  func.func @transform_2(%arg0: i32) -> (i32, i32) {
    %c0_i32 = arith.constant 0 : i32
    %c0_i32_0 = arith.constant 0 : i32
    %c0_i32_1 = arith.constant 0 : i32
    return %c0_i32, %c0_i32_0 : i32, i32
  }
  func.func @transform_3(%arg0: i32) -> (i32, i32) {
    %c0_i32 = arith.constant 0 : i32
    %c0_i32_0 = arith.constant 0 : i32
    %c0_i32_1 = arith.constant 0 : i32
    return %c0_i32, %c0_i32_0 : i32, i32
  }
  func.func @transform_4(%arg0: i32) -> (i32, i32, i32, i32) {
    %c0_i32 = arith.constant 0 : i32
    %c0_i32_0 = arith.constant 0 : i32
    %c0_i32_1 = arith.constant 0 : i32
    %c0_i32_2 = arith.constant 0 : i32
    return %arg0, %c0_i32, %c0_i32_0, %c0_i32_1 : i32, i32, i32, i32
  }
}

</mosaic_0001>

<llo_original>
// kernel: resblock_forward.5
$region0: #{resblock_forward.5}
  #allocation0 [shape = 'u32[]', space=smem, size = 0x4, offset = 0x4, fixed_abs, tag = 'smem constant byte address 0x4 - core index']
  #allocation1 [shape = 'u32[144,128]{1,0:T(1,128)}', space=vmem, size = 0x12000, scoped, tag = 'internal scratch']
  %s0 = inlined_call_operand.vmem [shape: bf16[2,16,16,128], index: 0, kind: input, shape index: {}]
  %s1 = inlined_call_operand.vmem [shape: bf16[2,16,16,128], index: 1, kind: input, shape index: {}]
  %s2 = inlined_call_operand.vmem [shape: bf16[128,128], index: 2, kind: input, shape index: {}]
  %s3 = inlined_call_operand.vmem [shape: f32[4,128], index: 3, kind: input, shape index: {}]
  %s4 = inlined_call_operand.vmem [shape: f32[2,16,16,128], index: 4, kind: output, shape index: {}]
  %s5 = sld [smem:[#allocation0]]
  $region49: #{resblock_forward.5} parent=0
    _
  %s7 = ssub.s32 1, %s5
  %s8 = scalar_select 0, %s7, %s5
  loop: start=0, step=1, limit=4
  $region2: #{resblock_forward.5} parent=0 // loop_pre_header
    _
  $region3: #{resblock_forward.5} parent=0 // loop_header
    %s10 = sphi 0, %s14
    %p11 = scmp.ge.s32.totalorder %s10, 4
    %s20 = sphi 0, %s22
    %s23 = sphi 0, %s20
    %s24 = sphi 0, %s23
    %s40 = sphi 0, %s24
    %s46 = sphi 0, %s48
    %s49 = sphi 0, %s46
    %s50 = sphi 0, %s49
    %s66 = sphi 0, %s50
    %s70 = sphi 0, %s70
    %s72 = sphi 0, %s70
    %s73 = sphi 0, %s72
    %s87 = sphi 0, %s73
    %s91 = sphi 0, %s91
    %s93 = sphi 0, %s91
    %s94 = sphi 0, %s93
    %s108 = sphi 0, %s94
    %s114 = sphi 0, %s116
    %s117 = sphi 0, %s114
    %s118 = sphi 0, %s117
    %s134 = sphi 0, %s118
  $region4: #{resblock_forward.5} parent=0 // loop_header_branch
    %13 = sbr.rel (%p11) target = $region8
  $region5: #{resblock_forward.5} parent=0 // loop_body
    %s15 = ssub.s32 %s10, 1
    %s16 = ssub.s32 %s10, 2
    %s17 = sadd.s32 %s10, 1
    %s18 = ssub.s32 %s10, %s17
    %p19 = scmp.eq.s32.totalorder %s18, 0
    %s21 = sadd.s32 %s20, 1
    %s22 = scalar_select %p19, %s20, %s21
    %p25 = pneg %p19
    %p26 = scmp.eq.s32.totalorder %s10, 1
    %p27 = por %p25, %p26
    %p28 = scmp.ne.s32.totalorder %s20, %s23
    %p29 = scmp.eq.s32.totalorder %s10, 0
    %p30 = por %p28, %p29
    %p31 = scmp.ne.s32.totalorder %s20, %s23
    %p32 = scmp.eq.s32.totalorder %s15, 1
    %p33 = por %p31, %p32
    %p34 = scmp.ne.s32.totalorder %s23, %s24
    %p35 = scmp.eq.s32.totalorder %s15, 0
    %p36 = por %p34, %p35
    %p37 = scmp.ne.s32.totalorder %s23, %s24
    %p38 = scmp.eq.s32.totalorder %s16, 1
    %p39 = por %p37, %p38
    %p41 = scmp.ne.s32.totalorder %s24, %s40
    %p42 = scmp.eq.s32.totalorder %s16, 0
    %p43 = por %p41, %p42
    %s44 = ssub.s32 %s10, %s17
    %p45 = scmp.eq.s32.totalorder %s44, 0
    %s47 = sadd.s32 %s46, 1
    %s48 = scalar_select %p45, %s46, %s47
    %p51 = pneg %p45
    %p52 = scmp.eq.s32.totalorder %s10, 1
    %p53 = por %p51, %p52
    %p54 = scmp.ne.s32.totalorder %s46, %s49
    %p55 = scmp.eq.s32.totalorder %s10, 0
    %p56 = por %p54, %p55
    %p57 = scmp.ne.s32.totalorder %s46, %s49
    %p58 = scmp.eq.s32.totalorder %s15, 1
    %p59 = por %p57, %p58
    %p60 = scmp.ne.s32.totalorder %s49, %s50
    %p61 = scmp.eq.s32.totalorder %s15, 0
    %p62 = por %p60, %p61
    %p63 = scmp.ne.s32.totalorder %s49, %s50
    %p64 = scmp.eq.s32.totalorder %s16, 1
    %p65 = por %p63, %p64
    %p67 = scmp.ne.s32.totalorder %s50, %s66
    %p68 = scmp.eq.s32.totalorder %s16, 0
    %p69 = por %p67, %p68
    %s71 = sadd.s32 %s70, 1
    %p74 = scmp.eq.s32.totalorder %s10, 1
    %p75 = scmp.ne.s32.totalorder %s70, %s72
    %p76 = scmp.eq.s32.totalorder %s10, 0
    %p77 = por %p75, %p76
    %p78 = scmp.ne.s32.totalorder %s70, %s72
    %p79 = scmp.eq.s32.totalorder %s15, 1
    %p80 = por %p78, %p79
    %p81 = scmp.ne.s32.totalorder %s72, %s73
    %p82 = scmp.eq.s32.totalorder %s15, 0
    %p83 = por %p81, %p82
    %p84 = scmp.ne.s32.totalorder %s72, %s73
    %p85 = scmp.eq.s32.totalorder %s16, 1
    %p86 = por %p84, %p85
    %p88 = scmp.ne.s32.totalorder %s73, %s87
    %p89 = scmp.eq.s32.totalorder %s16, 0
    %p90 = por %p88, %p89
    %s92 = sadd.s32 %s91, 1
    %p95 = scmp.eq.s32.totalorder %s10, 1
    %p96 = scmp.ne.s32.totalorder %s91, %s93
    %p97 = scmp.eq.s32.totalorder %s10, 0
    %p98 = por %p96, %p97
    %p99 = scmp.ne.s32.totalorder %s91, %s93
    %p100 = scmp.eq.s32.totalorder %s15, 1
    %p101 = por %p99, %p100
    %p102 = scmp.ne.s32.totalorder %s93, %s94
    %p103 = scmp.eq.s32.totalorder %s15, 0
    %p104 = por %p102, %p103
    %p105 = scmp.ne.s32.totalorder %s93, %s94
    %p106 = scmp.eq.s32.totalorder %s16, 1
    %p107 = por %p105, %p106
    %p109 = scmp.ne.s32.totalorder %s94, %s108
    %p110 = scmp.eq.s32.totalorder %s16, 0
    %p111 = por %p109, %p110
    %s112 = ssub.s32 %s10, %s17
    %p113 = scmp.eq.s32.totalorder %s112, 0
    %s115 = sadd.s32 %s114, 1
    %s116 = scalar_select %p113, %s114, %s115
    %p119 = pneg %p113
    %p120 = scmp.eq.s32.totalorder %s10, 1
    %p121 = por %p119, %p120
    %p122 = scmp.ne.s32.totalorder %s114, %s117
    %p123 = scmp.eq.s32.totalorder %s10, 0
    %p124 = por %p122, %p123
    %p125 = scmp.ne.s32.totalorder %s114, %s117
    %p126 = scmp.eq.s32.totalorder %s15, 1
    %p127 = por %p125, %p126
    %p128 = scmp.ne.s32.totalorder %s117, %s118
    %p129 = scmp.eq.s32.totalorder %s15, 0
    %p130 = por %p128, %p129
    %p131 = scmp.ne.s32.totalorder %s117, %s118
    %p132 = scmp.eq.s32.totalorder %s16, 1
    %p133 = por %p131, %p132
    %p135 = scmp.ne.s32.totalorder %s118, %s134
    %p136 = scmp.eq.s32.totalorder %s16, 0
    %p137 = por %p135, %p136
    %p138 = scmp.le.s32.totalorder 1, %s10
    %p139 = scmp.lt.s32.totalorder %s10, 3
    %p140 = pnand %p138, %p139
    %p141 = pneg %p140
    // Predicated region
    $region9: #{resblock_forward.5} parent=5 // pred_check
      _
    $region10: #{resblock_forward.5} parent=5 // pred_check_branch
      %143 = sbr.rel (%p140) target = $region12
    $region11: #{resblock_forward.5} parent=5 // pred_region
      %s144 = ssub.s32 %s10, 1
      // Predicated region
      $region13: #{resblock_forward.5} parent=11 // pred_check
        %p145 = pneg %p83
      $region14: #{resblock_forward.5} parent=11 // pred_check_branch
        %147 = sbr.rel (%p145) target = $region16
      $region15: #{resblock_forward.5} parent=11 // pred_region
        _
      $region16: #{resblock_forward.5} parent=11 // pred_fallthru
        _
      // Predicated region
      $region17: #{resblock_forward.5} parent=11 // pred_check
        %p148 = pneg %p104
      $region18: #{resblock_forward.5} parent=11 // pred_check_branch
        %150 = sbr.rel (%p148) target = $region20
      $region19: #{resblock_forward.5} parent=11 // pred_region
        _
      $region20: #{resblock_forward.5} parent=11 // pred_fallthru
        _
    $region12: #{resblock_forward.5} parent=5 // pred_fallthru
      _
    %p151 = scmp.lt.s32.totalorder %s10, 2
    // Predicated region
    $region21: #{resblock_forward.5} parent=5 // pred_check
      %p152 = pneg %p151
    $region22: #{resblock_forward.5} parent=5 // pred_check_branch
      %154 = sbr.rel (%p152) target = $region24
    $region23: #{resblock_forward.5} parent=5 // pred_region
      // Predicated region
      $region25: #{resblock_forward.5} parent=23 // pred_check
        %p155 = pneg %p30
      $region26: #{resblock_forward.5} parent=23 // pred_check_branch
        %157 = sbr.rel (%p155) target = $region28
      $region27: #{resblock_forward.5} parent=23 // pred_region
        %p158 = scmp.lt.s32.totalorder %s10, 1
        %s159 = scalar_select %p158, %s10, 1
        %s160 = smul.addr %s159, 32
        %s161 = smul.addr %s160, 4
        %s162 = scalar_lea.vmem %s0, %s161
      $region28: #{resblock_forward.5} parent=23 // pred_fallthru
        _
      // Predicated region
      $region29: #{resblock_forward.5} parent=23 // pred_check
        %p163 = pneg %p56
      $region30: #{resblock_forward.5} parent=23 // pred_check_branch
        %165 = sbr.rel (%p163) target = $region32
      $region31: #{resblock_forward.5} parent=23 // pred_region
        %p166 = scmp.lt.s32.totalorder %s10, 1
        %s167 = scalar_select %p166, %s10, 1
        %s168 = smul.addr %s167, 32
        %s169 = smul.addr %s168, 4
        %s170 = scalar_lea.vmem %s1, %s169
      $region32: #{resblock_forward.5} parent=23 // pred_fallthru
        _
    $region24: #{resblock_forward.5} parent=5 // pred_fallthru
      _
    %p171 = scmp.le.s32.totalorder 1, %s10
    %p172 = scmp.lt.s32.totalorder %s10, 3
    %p173 = pnand %p171, %p172
    %p174 = pneg %p173
    // Predicated region
    $region33: #{resblock_forward.5} parent=5 // pred_check
      _
    $region34: #{resblock_forward.5} parent=5 // pred_check_branch
      %176 = sbr.rel (%p173) target = $region36
    $region35: #{resblock_forward.5} parent=5 // pred_region
      %s177 = ssub.s32 %s10, 1
      %p178 = scmp.lt.s32.totalorder %s15, 1
      %s179 = scalar_select %p178, %s15, 1
      %s180 = smul.addr %s179, 32
      %s181 = smul.addr %s180, 4
      %s182 = scalar_lea.vmem %s0, %s181
      %p183 = pneg %p36
      %p184 = pneg %p33
      %p185 = scmp.lt.s32.totalorder %s15, 1
      %s186 = scalar_select %p185, %s15, 1
      %s187 = smul.addr %s186, 32
      %s188 = smul.addr %s187, 4
      %s189 = scalar_lea.vmem %s1, %s188
      %p190 = pneg %p62
      %p191 = pneg %p59
      %p192 = pneg %p83
      %p193 = pneg %p80
      %p194 = pneg %p104
      %p195 = pneg %p101
      %p196 = pneg %p130
      %p197 = pneg %p127
      %p198 = scmp.lt.s32.totalorder %s15, 1
      %s199 = scalar_select %p198, %s15, 1
      %s200 = smul.addr %s199, 32
      %s201 = smul.addr %s200, 8
      %s202 = scalar_lea.vmem %s4, %s201
      %p203 = scmp.lt.s32.totalorder %s15, 1
      %s204 = scalar_select %p203, %s15, 1
      %s205 = smul.addr %s204, 32
      %s206 = smul.addr %s205, 4
      %s207 = scalar_lea.vmem %s0, %s206
      %p208 = scmp.lt.s32.totalorder %s15, 1
      %s209 = scalar_select %p208, %s15, 1
      %s210 = smul.addr %s209, 32
      %s211 = smul.addr %s210, 4
      %s212 = scalar_lea.vmem %s1, %s211
      %p213 = scmp.lt.s32.totalorder %s15, 1
      %s214 = scalar_select %p213, %s15, 1
      %s215 = smul.addr %s214, 32
      %s216 = smul.addr %s215, 8
      %s217 = scalar_lea.vmem %s4, %s216
      %v219 = vld [vmem:[%s3] sm:$0x1]
      %v220 = vld [vmem:[%s3 + $0x1] sm:$0x1]
      %v221 = vld [vmem:[%s3 + $0x2] sm:$0x1]
      %v222 = vld [vmem:[%s3 + $0x3] sm:$0x1]
      %v223 = vld [vmem:[%s207] sm:$0xf]
      %v224 = vld [vmem:[%s207 + $0x4] sm:$0xf]
      %v225 = vld [vmem:[%s207 + $0x8] sm:$0xf]
      %v226 = vld [vmem:[%s207 + $0xc] sm:$0xf]
      %v227 = vld [vmem:[%s207 + $0x10] sm:$0xf]
      %v228 = vld [vmem:[%s207 + $0x14] sm:$0xf]
      %v229 = vld [vmem:[%s207 + $0x18] sm:$0xf]
      %v230 = vld [vmem:[%s207 + $0x1c] sm:$0xf]
      %v231 = vld [vmem:[%s207 + $0x20] sm:$0xf]
      %v232 = vld [vmem:[%s207 + $0x24] sm:$0xf]
      %v233 = vld [vmem:[%s207 + $0x28] sm:$0xf]
      %v234 = vld [vmem:[%s207 + $0x2c] sm:$0xf]
      %v235 = vld [vmem:[%s207 + $0x30] sm:$0xf]
      %v236 = vld [vmem:[%s207 + $0x34] sm:$0xf]
      %v237 = vld [vmem:[%s207 + $0x38] sm:$0xf]
      %v238 = vld [vmem:[%s207 + $0x3c] sm:$0xf]
      %v239 = vld [vmem:[%s207 + $0x40] sm:$0xf]
      %v240 = vld [vmem:[%s207 + $0x44] sm:$0xf]
      %v241 = vld [vmem:[%s207 + $0x48] sm:$0xf]
      %v242 = vld [vmem:[%s207 + $0x4c] sm:$0xf]
      %v243 = vld [vmem:[%s207 + $0x50] sm:$0xf]
      %v244 = vld [vmem:[%s207 + $0x54] sm:$0xf]
      %v245 = vld [vmem:[%s207 + $0x58] sm:$0xf]
      %v246 = vld [vmem:[%s207 + $0x5c] sm:$0xf]
      %v247 = vld [vmem:[%s207 + $0x60] sm:$0xf]
      %v248 = vld [vmem:[%s207 + $0x64] sm:$0xf]
      %v249 = vld [vmem:[%s207 + $0x68] sm:$0xf]
      %v250 = vld [vmem:[%s207 + $0x6c] sm:$0xf]
      %v251 = vld [vmem:[%s207 + $0x70] sm:$0xf]
      %v252 = vld [vmem:[%s207 + $0x74] sm:$0xf]
      %v253 = vld [vmem:[%s207 + $0x78] sm:$0xf]
      %v254 = vld [vmem:[%s207 + $0x7c] sm:$0xf]
      %v255 = vunpack.c.l.bf16 %v223
      %v256 = vunpack.c.l.bf16 %v224
      %v257 = vunpack.c.l.bf16 %v225
      %v258 = vunpack.c.l.bf16 %v226
      %v259 = vunpack.c.l.bf16 %v227
      %v260 = vunpack.c.l.bf16 %v228
      %v261 = vunpack.c.l.bf16 %v229
      %v262 = vunpack.c.l.bf16 %v230
      %v263 = vunpack.c.l.bf16 %v231
      %v264 = vunpack.c.l.bf16 %v232
      %v265 = vunpack.c.l.bf16 %v233
      %v266 = vunpack.c.l.bf16 %v234
      %v267 = vunpack.c.l.bf16 %v235
      %v268 = vunpack.c.l.bf16 %v236
      %v269 = vunpack.c.l.bf16 %v237
      %v270 = vunpack.c.l.bf16 %v238
      %v271 = vunpack.c.l.bf16 %v239
      %v272 = vunpack.c.l.bf16 %v240
      %v273 = vunpack.c.l.bf16 %v241
      %v274 = vunpack.c.l.bf16 %v242
      %v275 = vunpack.c.l.bf16 %v243
      %v276 = vunpack.c.l.bf16 %v244
      %v277 = vunpack.c.l.bf16 %v245
      %v278 = vunpack.c.l.bf16 %v246
      %v279 = vunpack.c.l.bf16 %v247
      %v280 = vunpack.c.l.bf16 %v248
      %v281 = vunpack.c.l.bf16 %v249
      %v282 = vunpack.c.l.bf16 %v250
      %v283 = vunpack.c.l.bf16 %v251
      %v284 = vunpack.c.l.bf16 %v252
      %v285 = vunpack.c.l.bf16 %v253
      %v286 = vunpack.c.l.bf16 %v254
      %v287 = vlaneseq
      %v288 = vshrl.u32 %v287, 7
      %v289 = vsub.s32 0, %v288
      %v290 = vrot.slane %v219, %v289
      %v291 = vmul.f32 %v255, %v290
      %v292 = vmul.f32 %v256, %v290
      %v293 = vmul.f32 %v257, %v290
      %v294 = vmul.f32 %v258, %v290
      %v295 = vmul.f32 %v259, %v290
      %v296 = vmul.f32 %v260, %v290
      %v297 = vmul.f32 %v261, %v290
      %v298 = vmul.f32 %v262, %v290
      %v299 = vmul.f32 %v263, %v290
      %v300 = vmul.f32 %v264, %v290
      %v301 = vmul.f32 %v265, %v290
      %v302 = vmul.f32 %v266, %v290
      %v303 = vmul.f32 %v267, %v290
      %v304 = vmul.f32 %v268, %v290
      %v305 = vmul.f32 %v269, %v290
      %v306 = vmul.f32 %v270, %v290
      %v307 = vmul.f32 %v271, %v290
      %v308 = vmul.f32 %v272, %v290
      %v309 = vmul.f32 %v273, %v290
      %v310 = vmul.f32 %v274, %v290
      %v311 = vmul.f32 %v275, %v290
      %v312 = vmul.f32 %v276, %v290
      %v313 = vmul.f32 %v277, %v290
      %v314 = vmul.f32 %v278, %v290
      %v315 = vmul.f32 %v279, %v290
      %v316 = vmul.f32 %v280, %v290
      %v317 = vmul.f32 %v281, %v290
      %v318 = vmul.f32 %v282, %v290
      %v319 = vmul.f32 %v283, %v290
      %v320 = vmul.f32 %v284, %v290
      %v321 = vmul.f32 %v285, %v290
      %v322 = vmul.f32 %v286, %v290
      %v323 = vlaneseq
      %v324 = vshrl.u32 %v323, 7
      %v325 = vsub.s32 0, %v324
      %v326 = vrot.slane %v220, %v325
      %v327 = vadd.f32 %v291, %v326
      %v328 = vadd.f32 %v292, %v326
      %v329 = vadd.f32 %v293, %v326
      %v330 = vadd.f32 %v294, %v326
      %v331 = vadd.f32 %v295, %v326
      %v332 = vadd.f32 %v296, %v326
      %v333 = vadd.f32 %v297, %v326
      %v334 = vadd.f32 %v298, %v326
      %v335 = vadd.f32 %v299, %v326
      %v336 = vadd.f32 %v300, %v326
      %v337 = vadd.f32 %v301, %v326
      %v338 = vadd.f32 %v302, %v326
      %v339 = vadd.f32 %v303, %v326
      %v340 = vadd.f32 %v304, %v326
      %v341 = vadd.f32 %v305, %v326
      %v342 = vadd.f32 %v306, %v326
      %v343 = vadd.f32 %v307, %v326
      %v344 = vadd.f32 %v308, %v326
      %v345 = vadd.f32 %v309, %v326
      %v346 = vadd.f32 %v310, %v326
      %v347 = vadd.f32 %v311, %v326
      %v348 = vadd.f32 %v312, %v326
      %v349 = vadd.f32 %v313, %v326
      %v350 = vadd.f32 %v314, %v326
      %v351 = vadd.f32 %v315, %v326
      %v352 = vadd.f32 %v316, %v326
      %v353 = vadd.f32 %v317, %v326
      %v354 = vadd.f32 %v318, %v326
      %v355 = vadd.f32 %v319, %v326
      %v356 = vadd.f32 %v320, %v326
      %v357 = vadd.f32 %v321, %v326
      %v358 = vadd.f32 %v322, %v326
      %v359 = vmax.f32 %v327, 0.0
      %v360 = vmax.f32 %v328, 0.0
      %v361 = vmax.f32 %v329, 0.0
      %v362 = vmax.f32 %v330, 0.0
      %v363 = vmax.f32 %v331, 0.0
      %v364 = vmax.f32 %v332, 0.0
      %v365 = vmax.f32 %v333, 0.0
      %v366 = vmax.f32 %v334, 0.0
      %v367 = vmax.f32 %v335, 0.0
      %v368 = vmax.f32 %v336, 0.0
      %v369 = vmax.f32 %v337, 0.0
      %v370 = vmax.f32 %v338, 0.0
      %v371 = vmax.f32 %v339, 0.0
      %v372 = vmax.f32 %v340, 0.0
      %v373 = vmax.f32 %v341, 0.0
      %v374 = vmax.f32 %v342, 0.0
      %v375 = vmax.f32 %v343, 0.0
      %v376 = vmax.f32 %v344, 0.0
      %v377 = vmax.f32 %v345, 0.0
      %v378 = vmax.f32 %v346, 0.0
      %v379 = vmax.f32 %v347, 0.0
      %v380 = vmax.f32 %v348, 0.0
      %v381 = vmax.f32 %v349, 0.0
      %v382 = vmax.f32 %v350, 0.0
      %v383 = vmax.f32 %v351, 0.0
      %v384 = vmax.f32 %v352, 0.0
      %v385 = vmax.f32 %v353, 0.0
      %v386 = vmax.f32 %v354, 0.0
      %v387 = vmax.f32 %v355, 0.0
      %v388 = vmax.f32 %v356, 0.0
      %v389 = vmax.f32 %v357, 0.0
      %v390 = vmax.f32 %v358, 0.0
      %v391 = vld [vmem:[%s212] sm:$0xf]
      %v392 = vld [vmem:[%s212 + $0x4] sm:$0xf]
      %v393 = vld [vmem:[%s212 + $0x8] sm:$0xf]
      %v394 = vld [vmem:[%s212 + $0xc] sm:$0xf]
      %v395 = vld [vmem:[%s212 + $0x10] sm:$0xf]
      %v396 = vld [vmem:[%s212 + $0x14] sm:$0xf]
      %v397 = vld [vmem:[%s212 + $0x18] sm:$0xf]
      %v398 = vld [vmem:[%s212 + $0x1c] sm:$0xf]
      %v399 = vld [vmem:[%s212 + $0x20] sm:$0xf]
      %v400 = vld [vmem:[%s212 + $0x24] sm:$0xf]
      %v401 = vld [vmem:[%s212 + $0x28] sm:$0xf]
      %v402 = vld [vmem:[%s212 + $0x2c] sm:$0xf]
      %v403 = vld [vmem:[%s212 + $0x30] sm:$0xf]
      %v404 = vld [vmem:[%s212 + $0x34] sm:$0xf]
      %v405 = vld [vmem:[%s212 + $0x38] sm:$0xf]
      %v406 = vld [vmem:[%s212 + $0x3c] sm:$0xf]
      %v407 = vld [vmem:[%s212 + $0x40] sm:$0xf]
      %v408 = vld [vmem:[%s212 + $0x44] sm:$0xf]
      %v409 = vld [vmem:[%s212 + $0x48] sm:$0xf]
      %v410 = vld [vmem:[%s212 + $0x4c] sm:$0xf]
      %v411 = vld [vmem:[%s212 + $0x50] sm:$0xf]
      %v412 = vld [vmem:[%s212 + $0x54] sm:$0xf]
      %v413 = vld [vmem:[%s212 + $0x58] sm:$0xf]
      %v414 = vld [vmem:[%s212 + $0x5c] sm:$0xf]
      %v415 = vld [vmem:[%s212 + $0x60] sm:$0xf]
      %v416 = vld [vmem:[%s212 + $0x64] sm:$0xf]
      %v417 = vld [vmem:[%s212 + $0x68] sm:$0xf]
      %v418 = vld [vmem:[%s212 + $0x6c] sm:$0xf]
      %v419 = vld [vmem:[%s212 + $0x70] sm:$0xf]
      %v420 = vld [vmem:[%s212 + $0x74] sm:$0xf]
      %v421 = vld [vmem:[%s212 + $0x78] sm:$0xf]
      %v422 = vld [vmem:[%s212 + $0x7c] sm:$0xf]
      %v423 = vld [vmem:[%s2] sm:$0xf]
      %v424 = vld [vmem:[%s2 + $0x4] sm:$0xf]
      %v425 = vld [vmem:[%s2 + $0x8] sm:$0xf]
      %v426 = vld [vmem:[%s2 + $0xc] sm:$0xf]
      %v427 = vld [vmem:[%s2 + $0x10] sm:$0xf]
      %v428 = vld [vmem:[%s2 + $0x14] sm:$0xf]
      %v429 = vld [vmem:[%s2 + $0x18] sm:$0xf]
      %v430 = vld [vmem:[%s2 + $0x1c] sm:$0xf]
      %v431 = vld [vmem:[%s2 + $0x20] sm:$0xf]
      %v432 = vld [vmem:[%s2 + $0x24] sm:$0xf]
      %v433 = vld [vmem:[%s2 + $0x28] sm:$0xf]
      %v434 = vld [vmem:[%s2 + $0x2c] sm:$0xf]
      %v435 = vld [vmem:[%s2 + $0x30] sm:$0xf]
      %v436 = vld [vmem:[%s2 + $0x34] sm:$0xf]
      %v437 = vld [vmem:[%s2 + $0x38] sm:$0xf]
      %v438 = vld [vmem:[%s2 + $0x3c] sm:$0xf]
      %v471 = vunpack.c.l.b16 %v391
      %v472 = vunpack.c.l.b16 %v392
      %v473 = vunpack.c.l.b16 %v393
      %v474 = vunpack.c.l.b16 %v394
      %v475 = vunpack.c.l.b16 %v395
      %v476 = vunpack.c.l.b16 %v396
      %v477 = vunpack.c.l.b16 %v397
      %v478 = vunpack.c.l.b16 %v398
      %v479 = vunpack.c.l.b16 %v399
      %v480 = vunpack.c.l.b16 %v400
      %v481 = vunpack.c.l.b16 %v401
      %v482 = vunpack.c.l.b16 %v402
      %v483 = vunpack.c.l.b16 %v403
      %v484 = vunpack.c.l.b16 %v404
      %v485 = vunpack.c.l.b16 %v405
      %v486 = vunpack.c.l.b16 %v406
      %v487 = vunpack.c.l.b16 %v407
      %v488 = vunpack.c.l.b16 %v408
      %v489 = vunpack.c.l.b16 %v409
      %v490 = vunpack.c.l.b16 %v410
      %v491 = vunpack.c.l.b16 %v411
      %v492 = vunpack.c.l.b16 %v412
      %v493 = vunpack.c.l.b16 %v413
      %v494 = vunpack.c.l.b16 %v414
      %v495 = vunpack.c.l.b16 %v415
      %v496 = vunpack.c.l.b16 %v416
      %v497 = vunpack.c.l.b16 %v417
      %v498 = vunpack.c.l.b16 %v418
      %v499 = vunpack.c.l.b16 %v419
      %v500 = vunpack.c.l.b16 %v420
      %v501 = vunpack.c.l.b16 %v421
      %v502 = vunpack.c.l.b16 %v422
      %v503 = vpack.c.b16 %v472, %v471
      %v504 = vpack.c.b16 %v474, %v473
      %v505 = vpack.c.b16 %v476, %v475
      %v506 = vpack.c.b16 %v478, %v477
      %v507 = vpack.c.b16 %v480, %v479
      %v508 = vpack.c.b16 %v482, %v481
      %v509 = vpack.c.b16 %v484, %v483
      %v510 = vpack.c.b16 %v486, %v485
      %v511 = vpack.c.b16 %v488, %v487
      %v512 = vpack.c.b16 %v490, %v489
      %v513 = vpack.c.b16 %v492, %v491
      %v514 = vpack.c.b16 %v494, %v493
      %v515 = vpack.c.b16 %v496, %v495
      %v516 = vpack.c.b16 %v498, %v497
      %v517 = vpack.c.b16 %v500, %v499
      %v518 = vpack.c.b16 %v502, %v501
      %v551 = vunpack.c.l.b16 %v423
      %v552 = vunpack.c.l.b16 %v424
      %v553 = vunpack.c.l.b16 %v425
      %v554 = vunpack.c.l.b16 %v426
      %v555 = vunpack.c.l.b16 %v427
      %v556 = vunpack.c.l.b16 %v428
      %v557 = vunpack.c.l.b16 %v429
      %v558 = vunpack.c.l.b16 %v430
      %v559 = vunpack.c.l.b16 %v431
      %v560 = vunpack.c.l.b16 %v432
      %v561 = vunpack.c.l.b16 %v433
      %v562 = vunpack.c.l.b16 %v434
      %v563 = vunpack.c.l.b16 %v435
      %v564 = vunpack.c.l.b16 %v436
      %v565 = vunpack.c.l.b16 %v437
      %v566 = vunpack.c.l.b16 %v438
      %v567 = vpack.c.b16 %v552, %v551
      %v568 = vpack.c.b16 %v554, %v553
      %v569 = vpack.c.b16 %v556, %v555
      %v570 = vpack.c.b16 %v558, %v557
      %v571 = vpack.c.b16 %v560, %v559
      %v572 = vpack.c.b16 %v562, %v561
      %v573 = vpack.c.b16 %v564, %v563
      %v574 = vpack.c.b16 %v566, %v565
      %583 = vmatprep.subr.bf16.mxu0 0
      %584 = vmatpush1.bf16.msra.mxu0 %v574
      %585 = vmatprep.subr.bf16.mxu0 0
      %586 = vmatpush1.bf16.msra.mxu0 %v573
      %587 = vmatprep.subr.bf16.mxu0 0
      %588 = vmatpush1.bf16.msra.mxu0 %v572
      %589 = vmatprep.subr.bf16.mxu0 0
      %590 = vmatpush1.bf16.msra.mxu0 %v571
      %591 = vmatprep.subr.bf16.mxu0 0
      %592 = vmatpush1.bf16.msra.mxu0 %v570
      %593 = vmatprep.subr.bf16.mxu0 0
      %594 = vmatpush1.bf16.msra.mxu0 %v569
      %595 = vmatprep.subr.bf16.mxu0 0
      %596 = vmatpush1.bf16.msra.mxu0 %v568
      %597 = vmatprep.subr.bf16.mxu0 0
      %598 = vmatpush1.bf16.msra.mxu0 %v567
      %599 = vmatprep.subr.bf16.mxu0 0
      %600 = vmatpush2.bf16.msra.mxu0 0
      %601 = vmatprep.subr.bf16.mxu0 0
      %602 = vmatpush2.bf16.msra.mxu0 0
      %603 = vmatprep.subr.bf16.mxu0 0
      %604 = vmatpush2.bf16.msra.mxu0 0
      %605 = vmatprep.subr.bf16.mxu0 0
      %606 = vmatpush2.bf16.msra.mxu0 0
      %607 = vmatprep.subr.bf16.mxu0 0
      %608 = vmatpush2.bf16.msra.mxu0 0
      %609 = vmatprep.subr.bf16.mxu0 0
      %610 = vmatpush2.bf16.msra.mxu0 0
      %611 = vmatprep.subr.bf16.mxu0 0
      %612 = vmatpush2.bf16.msra.mxu0 0
      %613 = vmatprep.subr.bf16.mxu0 0
      %614 = vmatpush2.bf16.msra.mxu0 0
      %615 = vmatprep.mubr.bf16.mxu0 0
      %616 = vmatmul.mubr.bf16.gmra.mxu0 %v503
      %v617 = vpop.f32.mrf.mxu0
      %v618 = vadd.f32 0.0, %v617
      %v619 = vpop.f32.mrf.mxu0
      %v620 = vpop.f32.mrf.mxu0
      %v621 = vadd.f32 0.0, %v620
      %v622 = vpop.f32.mrf.mxu0
      %623 = vmatprep.mubr.bf16.mxu0 0
      %624 = vmatmul.mubr.bf16.gmra.mxu0 %v504
      %v625 = vpop.f32.mrf.mxu0
      %v626 = vadd.f32 0.0, %v625
      %v627 = vpop.f32.mrf.mxu0
      %v628 = vpop.f32.mrf.mxu0
      %v629 = vadd.f32 0.0, %v628
      %v630 = vpop.f32.mrf.mxu0
      %631 = vmatprep.mubr.bf16.mxu0 0
      %632 = vmatmul.mubr.bf16.gmra.mxu0 %v505
      %v633 = vpop.f32.mrf.mxu0
      %v634 = vadd.f32 0.0, %v633
      %v635 = vpop.f32.mrf.mxu0
      %v636 = vpop.f32.mrf.mxu0
      %v637 = vadd.f32 0.0, %v636
      %v638 = vpop.f32.mrf.mxu0
      %639 = vmatprep.mubr.bf16.mxu0 0
      %640 = vmatmul.mubr.bf16.gmra.mxu0 %v506
      %v641 = vpop.f32.mrf.mxu0
      %v642 = vadd.f32 0.0, %v641
      %v643 = vpop.f32.mrf.mxu0
      %v644 = vpop.f32.mrf.mxu0
      %v645 = vadd.f32 0.0, %v644
      %v646 = vpop.f32.mrf.mxu0
      %647 = vmatprep.mubr.bf16.mxu0 0
      %648 = vmatmul.mubr.bf16.gmra.mxu0 %v507
      %v649 = vpop.f32.mrf.mxu0
      %v650 = vadd.f32 0.0, %v649
      %v651 = vpop.f32.mrf.mxu0
      %v652 = vpop.f32.mrf.mxu0
      %v653 = vadd.f32 0.0, %v652
      %v654 = vpop.f32.mrf.mxu0
      %655 = vmatprep.mubr.bf16.mxu0 0
      %656 = vmatmul.mubr.bf16.gmra.mxu0 %v508
      %v657 = vpop.f32.mrf.mxu0
      %v658 = vadd.f32 0.0, %v657
      %v659 = vpop.f32.mrf.mxu0
      %v660 = vpop.f32.mrf.mxu0
      %v661 = vadd.f32 0.0, %v660
      %v662 = vpop.f32.mrf.mxu0
      %663 = vmatprep.mubr.bf16.mxu0 0
      %664 = vmatmul.mubr.bf16.gmra.mxu0 %v509
      %v665 = vpop.f32.mrf.mxu0
      %v666 = vadd.f32 0.0, %v665
      %v667 = vpop.f32.mrf.mxu0
      %v668 = vpop.f32.mrf.mxu0
      %v669 = vadd.f32 0.0, %v668
      %v670 = vpop.f32.mrf.mxu0
      %671 = vmatprep.mubr.bf16.mxu0 0
      %672 = vmatmul.mubr.bf16.gmra.mxu0 %v510
      %v673 = vpop.f32.mrf.mxu0
      %v674 = vadd.f32 0.0, %v673
      %v675 = vpop.f32.mrf.mxu0
      %v676 = vpop.f32.mrf.mxu0
      %v677 = vadd.f32 0.0, %v676
      %v678 = vpop.f32.mrf.mxu0
      %679 = vmatprep.mubr.bf16.mxu0 0
      %680 = vmatmul.mubr.bf16.gmra.mxu0 %v511
      %v681 = vpop.f32.mrf.mxu0
      %v682 = vadd.f32 0.0, %v681
      %v683 = vpop.f32.mrf.mxu0
      %v684 = vpop.f32.mrf.mxu0
      %v685 = vadd.f32 0.0, %v684
      %v686 = vpop.f32.mrf.mxu0
      %687 = vmatprep.mubr.bf16.mxu0 0
      %688 = vmatmul.mubr.bf16.gmra.mxu0 %v512
      %v689 = vpop.f32.mrf.mxu0
      %v690 = vadd.f32 0.0, %v689
      %v691 = vpop.f32.mrf.mxu0
      %v692 = vpop.f32.mrf.mxu0
      %v693 = vadd.f32 0.0, %v692
      %v694 = vpop.f32.mrf.mxu0
      %695 = vmatprep.mubr.bf16.mxu0 0
      %696 = vmatmul.mubr.bf16.gmra.mxu0 %v513
      %v697 = vpop.f32.mrf.mxu0
      %v698 = vadd.f32 0.0, %v697
      %v699 = vpop.f32.mrf.mxu0
      %v700 = vpop.f32.mrf.mxu0
      %v701 = vadd.f32 0.0, %v700
      %v702 = vpop.f32.mrf.mxu0
      %703 = vmatprep.mubr.bf16.mxu0 0
      %704 = vmatmul.mubr.bf16.gmra.mxu0 %v514
      %v705 = vpop.f32.mrf.mxu0
      %v706 = vadd.f32 0.0, %v705
      %v707 = vpop.f32.mrf.mxu0
      %v708 = vpop.f32.mrf.mxu0
      %v709 = vadd.f32 0.0, %v708
      %v710 = vpop.f32.mrf.mxu0
      %711 = vmatprep.mubr.bf16.mxu0 0
      %712 = vmatmul.mubr.bf16.gmra.mxu0 %v515
      %v713 = vpop.f32.mrf.mxu0
      %v714 = vadd.f32 0.0, %v713
      %v715 = vpop.f32.mrf.mxu0
      %v716 = vpop.f32.mrf.mxu0
      %v717 = vadd.f32 0.0, %v716
      %v718 = vpop.f32.mrf.mxu0
      %719 = vmatprep.mubr.bf16.mxu0 0
      %720 = vmatmul.mubr.bf16.gmra.mxu0 %v516
      %v721 = vpop.f32.mrf.mxu0
      %v722 = vadd.f32 0.0, %v721
      %v723 = vpop.f32.mrf.mxu0
      %v724 = vpop.f32.mrf.mxu0
      %v725 = vadd.f32 0.0, %v724
      %v726 = vpop.f32.mrf.mxu0
      %727 = vmatprep.mubr.bf16.mxu0 0
      %728 = vmatmul.mubr.bf16.gmra.mxu0 %v517
      %v729 = vpop.f32.mrf.mxu0
      %v730 = vadd.f32 0.0, %v729
      %v731 = vpop.f32.mrf.mxu0
      %v732 = vpop.f32.mrf.mxu0
      %v733 = vadd.f32 0.0, %v732
      %v734 = vpop.f32.mrf.mxu0
      %735 = vmatprep.mubr.bf16.mxu0 0
      %736 = vmatmul.mubr.bf16.gmra.mxu0 %v518
      %v737 = vpop.f32.mrf.mxu0
      %v738 = vadd.f32 0.0, %v737
      %v739 = vpop.f32.mrf.mxu0
      %v740 = vpop.f32.mrf.mxu0
      %v741 = vadd.f32 0.0, %v740
      %v742 = vpop.f32.mrf.mxu0
      %743 = vdwg.mxu0
      %v744 = vlaneseq
      %v745 = vshrl.u32 %v744, 7
      %v746 = vsub.s32 0, %v745
      %v747 = vrot.slane %v221, %v746
      %v748 = vmul.f32 %v618, %v747
      %v749 = vmul.f32 %v621, %v747
      %v750 = vmul.f32 %v626, %v747
      %v751 = vmul.f32 %v629, %v747
      %v752 = vmul.f32 %v634, %v747
      %v753 = vmul.f32 %v637, %v747
      %v754 = vmul.f32 %v642, %v747
      %v755 = vmul.f32 %v645, %v747
      %v756 = vmul.f32 %v650, %v747
      %v757 = vmul.f32 %v653, %v747
      %v758 = vmul.f32 %v658, %v747
      %v759 = vmul.f32 %v661, %v747
      %v760 = vmul.f32 %v666, %v747
      %v761 = vmul.f32 %v669, %v747
      %v762 = vmul.f32 %v674, %v747
      %v763 = vmul.f32 %v677, %v747
      %v764 = vmul.f32 %v682, %v747
      %v765 = vmul.f32 %v685, %v747
      %v766 = vmul.f32 %v690, %v747
      %v767 = vmul.f32 %v693, %v747
      %v768 = vmul.f32 %v698, %v747
      %v769 = vmul.f32 %v701, %v747
      %v770 = vmul.f32 %v706, %v747
      %v771 = vmul.f32 %v709, %v747
      %v772 = vmul.f32 %v714, %v747
      %v773 = vmul.f32 %v717, %v747
      %v774 = vmul.f32 %v722, %v747
      %v775 = vmul.f32 %v725, %v747
      %v776 = vmul.f32 %v730, %v747
      %v777 = vmul.f32 %v733, %v747
      %v778 = vmul.f32 %v738, %v747
      %v779 = vmul.f32 %v741, %v747
      %v780 = vadd.f32 %v359, %v748
      %v781 = vadd.f32 %v360, %v749
      %v782 = vadd.f32 %v361, %v750
      %v783 = vadd.f32 %v362, %v751
      %v784 = vadd.f32 %v363, %v752
      %v785 = vadd.f32 %v364, %v753
      %v786 = vadd.f32 %v365, %v754
      %v787 = vadd.f32 %v366, %v755
      %v788 = vadd.f32 %v367, %v756
      %v789 = vadd.f32 %v368, %v757
      %v790 = vadd.f32 %v369, %v758
      %v791 = vadd.f32 %v370, %v759
      %v792 = vadd.f32 %v371, %v760
      %v793 = vadd.f32 %v372, %v761
      %v794 = vadd.f32 %v373, %v762
      %v795 = vadd.f32 %v374, %v763
      %v796 = vadd.f32 %v375, %v764
      %v797 = vadd.f32 %v376, %v765
      %v798 = vadd.f32 %v377, %v766
      %v799 = vadd.f32 %v378, %v767
      %v800 = vadd.f32 %v379, %v768
      %v801 = vadd.f32 %v380, %v769
      %v802 = vadd.f32 %v381, %v770
      %v803 = vadd.f32 %v382, %v771
      %v804 = vadd.f32 %v383, %v772
      %v805 = vadd.f32 %v384, %v773
      %v806 = vadd.f32 %v385, %v774
      %v807 = vadd.f32 %v386, %v775
      %v808 = vadd.f32 %v387, %v776
      %v809 = vadd.f32 %v388, %v777
      %v810 = vadd.f32 %v389, %v778
      %v811 = vadd.f32 %v390, %v779
      %v812 = vlaneseq
      %v813 = vshrl.u32 %v812, 7
      %v814 = vsub.s32 0, %v813
      %v815 = vrot.slane %v222, %v814
      %v816 = vadd.f32 %v780, %v815
      %v817 = vadd.f32 %v781, %v815
      %v818 = vadd.f32 %v782, %v815
      %v819 = vadd.f32 %v783, %v815
      %v820 = vadd.f32 %v784, %v815
      %v821 = vadd.f32 %v785, %v815
      %v822 = vadd.f32 %v786, %v815
      %v823 = vadd.f32 %v787, %v815
      %v824 = vadd.f32 %v788, %v815
      %v825 = vadd.f32 %v789, %v815
      %v826 = vadd.f32 %v790, %v815
      %v827 = vadd.f32 %v791, %v815
      %v828 = vadd.f32 %v792, %v815
      %v829 = vadd.f32 %v793, %v815
      %v830 = vadd.f32 %v794, %v815
      %v831 = vadd.f32 %v795, %v815
      %v832 = vadd.f32 %v796, %v815
      %v833 = vadd.f32 %v797, %v815
      %v834 = vadd.f32 %v798, %v815
      %v835 = vadd.f32 %v799, %v815
      %v836 = vadd.f32 %v800, %v815
      %v837 = vadd.f32 %v801, %v815
      %v838 = vadd.f32 %v802, %v815
      %v839 = vadd.f32 %v803, %v815
      %v840 = vadd.f32 %v804, %v815
      %v841 = vadd.f32 %v805, %v815
      %v842 = vadd.f32 %v806, %v815
      %v843 = vadd.f32 %v807, %v815
      %v844 = vadd.f32 %v808, %v815
      %v845 = vadd.f32 %v809, %v815
      %v846 = vadd.f32 %v810, %v815
      %v847 = vadd.f32 %v811, %v815
      %848 = vst [vmem:[%s217] sm:$0xff] %v816
      %849 = vst [vmem:[%s217 + $0x8] sm:$0xff] %v817
      %850 = vst [vmem:[%s217 + $0x10] sm:$0xff] %v818
      %851 = vst [vmem:[%s217 + $0x18] sm:$0xff] %v819
      %852 = vst [vmem:[%s217 + $0x20] sm:$0xff] %v820
      %853 = vst [vmem:[%s217 + $0x28] sm:$0xff] %v821
      %854 = vst [vmem:[%s217 + $0x30] sm:$0xff] %v822
      %855 = vst [vmem:[%s217 + $0x38] sm:$0xff] %v823
      %856 = vst [vmem:[%s217 + $0x40] sm:$0xff] %v824
      %857 = vst [vmem:[%s217 + $0x48] sm:$0xff] %v825
      %858 = vst [vmem:[%s217 + $0x50] sm:$0xff] %v826
      %859 = vst [vmem:[%s217 + $0x58] sm:$0xff] %v827
      %860 = vst [vmem:[%s217 + $0x60] sm:$0xff] %v828
      %861 = vst [vmem:[%s217 + $0x68] sm:$0xff] %v829
      %862 = vst [vmem:[%s217 + $0x70] sm:$0xff] %v830
      %863 = vst [vmem:[%s217 + $0x78] sm:$0xff] %v831
      %864 = vst [vmem:[%s217 + $0x80] sm:$0xff] %v832
      %865 = vst [vmem:[%s217 + $0x88] sm:$0xff] %v833
      %866 = vst [vmem:[%s217 + $0x90] sm:$0xff] %v834
      %867 = vst [vmem:[%s217 + $0x98] sm:$0xff] %v835
      %868 = vst [vmem:[%s217 + $0xa0] sm:$0xff] %v836
      %869 = vst [vmem:[%s217 + $0xa8] sm:$0xff] %v837
      %870 = vst [vmem:[%s217 + $0xb0] sm:$0xff] %v838
      %871 = vst [vmem:[%s217 + $0xb8] sm:$0xff] %v839
      %872 = vst [vmem:[%s217 + $0xc0] sm:$0xff] %v840
      %873 = vst [vmem:[%s217 + $0xc8] sm:$0xff] %v841
      %874 = vst [vmem:[%s217 + $0xd0] sm:$0xff] %v842
      %875 = vst [vmem:[%s217 + $0xd8] sm:$0xff] %v843
      %876 = vst [vmem:[%s217 + $0xe0] sm:$0xff] %v844
      %877 = vst [vmem:[%s217 + $0xe8] sm:$0xff] %v845
      %878 = vst [vmem:[%s217 + $0xf0] sm:$0xff] %v846
      %879 = vst [vmem:[%s217 + $0xf8] sm:$0xff] %v847
      %p880 = scmp.lt.s32.totalorder %s15, 1
      %s881 = scalar_select %p880, %s15, 1
      %s882 = smul.addr %s881, 32
      %s883 = smul.addr %s882, 8
      %s884 = scalar_lea.vmem %s4, %s883
      // Predicated region
      $region37: #{resblock_forward.5} parent=35 // pred_check
        %p885 = pneg %p127
      $region38: #{resblock_forward.5} parent=35 // pred_check_branch
        %887 = sbr.rel (%p885) target = $region40
      $region39: #{resblock_forward.5} parent=35 // pred_region
        _
      $region40: #{resblock_forward.5} parent=35 // pred_fallthru
        _
    $region36: #{resblock_forward.5} parent=5 // pred_fallthru
      _
    %p888 = scmp.le.s32.totalorder 2, %s10
    // Predicated region
    $region41: #{resblock_forward.5} parent=5 // pred_check
      %p889 = pneg %p888
    $region42: #{resblock_forward.5} parent=5 // pred_check_branch
      %891 = sbr.rel (%p889) target = $region44
    $region43: #{resblock_forward.5} parent=5 // pred_region
      %s892 = ssub.s32 %s10, 2
      // Predicated region
      $region45: #{resblock_forward.5} parent=43 // pred_check
        %p893 = pneg %p133
      $region46: #{resblock_forward.5} parent=43 // pred_check_branch
        %895 = sbr.rel (%p893) target = $region48
      $region47: #{resblock_forward.5} parent=43 // pred_region
        %p896 = scmp.lt.s32.totalorder %s16, 1
        %s897 = scalar_select %p896, %s16, 1
        %s898 = smul.addr %s897, 32
        %s899 = smul.addr %s898, 8
        %s900 = scalar_lea.vmem %s4, %s899
      $region48: #{resblock_forward.5} parent=43 // pred_fallthru
        _
    $region44: #{resblock_forward.5} parent=5 // pred_fallthru
      _
  $region6: #{resblock_forward.5} parent=0 // loop_footer
    %s14 = sadd.s32 1, %s10
  $region7: #{resblock_forward.5} parent=0 // loop_footer_branch
    %9 = sbr.rel target = $region3
  $region8: #{resblock_forward.5} parent=0 // loop_exit
    _

// kernel: resblock_forward.3
$region0: #{resblock_forward.3}
  #allocation0 [shape = 'u32[]', space=smem, size = 0x4, offset = 0x4, fixed_abs, tag = 'smem constant byte address 0x4 - core index']
  #allocation1 [shape = 'u32[144,128]{1,0:T(1,128)}', space=vmem, size = 0x12000, scoped, tag = 'internal scratch']
  #allocation2 [shape = 'bf16[18,18,128]{2,1,0:T(8,128)(2,1)}', space=vmem, size = 0x1b000, scoped, tag = 'scratch operand']
  %s0 = inlined_call_operand.vmem [shape: bf16[2,16,16,128], index: 0, kind: input, shape index: {}]
  %s1 = inlined_call_operand.vmem [shape: bf16[1152,128], index: 1, kind: input, shape index: {}]
  %s2 = inlined_call_operand.vmem [shape: bf16[128,128], index: 2, kind: input, shape index: {}]
  %s3 = inlined_call_operand.vmem [shape: bf16[2,16,16,128], index: 3, kind: output, shape index: {0}]
  %s4 = inlined_call_operand.vmem [shape: f32[2,2,128], index: 4, kind: output, shape index: {1}]
  %s5 = inlined_call_operand.vmem [shape: f32[2,2,128], index: 5, kind: output, shape index: {2}]
  %6 = xla_tuple %s3, %s4, %s5
  %s7 = sld [smem:[#allocation0]]
  $region61: #{resblock_forward.3} parent=0
    _
  %s9 = ssub.s32 1, %s7
  %s10 = scalar_select 0, %s9, %s7
  loop: start=0, step=1, limit=4
  $region2: #{resblock_forward.3} parent=0 // loop_pre_header
    _
  $region3: #{resblock_forward.3} parent=0 // loop_header
    %s12 = sphi 0, %s16
    %p13 = scmp.ge.s32.totalorder %s12, 4
    %s22 = sphi 0, %s24
    %s25 = sphi 0, %s22
    %s26 = sphi 0, %s25
    %s42 = sphi 0, %s26
    %s46 = sphi 0, %s46
    %s48 = sphi 0, %s46
    %s49 = sphi 0, %s48
    %s63 = sphi 0, %s49
    %s67 = sphi 0, %s67
    %s69 = sphi 0, %s67
    %s70 = sphi 0, %s69
    %s84 = sphi 0, %s70
    %s90 = sphi 0, %s92
    %s93 = sphi 0, %s90
    %s94 = sphi 0, %s93
    %s110 = sphi 0, %s94
    %s116 = sphi 0, %s118
    %s119 = sphi 0, %s116
    %s120 = sphi 0, %s119
    %s136 = sphi 0, %s120
    %s142 = sphi 0, %s144
    %s145 = sphi 0, %s142
    %s146 = sphi 0, %s145
    %s162 = sphi 0, %s146
  $region4: #{resblock_forward.3} parent=0 // loop_header_branch
    %15 = sbr.rel (%p13) target = $region8
  $region5: #{resblock_forward.3} parent=0 // loop_body
    %s17 = ssub.s32 %s12, 1
    %s18 = ssub.s32 %s12, 2
    %s19 = sadd.s32 %s12, 1
    %s20 = ssub.s32 %s12, %s19
    %p21 = scmp.eq.s32.totalorder %s20, 0
    %s23 = sadd.s32 %s22, 1
    %s24 = scalar_select %p21, %s22, %s23
    %p27 = pneg %p21
    %p28 = scmp.eq.s32.totalorder %s12, 1
    %p29 = por %p27, %p28
    %p30 = scmp.ne.s32.totalorder %s22, %s25
    %p31 = scmp.eq.s32.totalorder %s12, 0
    %p32 = por %p30, %p31
    %p33 = scmp.ne.s32.totalorder %s22, %s25
    %p34 = scmp.eq.s32.totalorder %s17, 1
    %p35 = por %p33, %p34
    %p36 = scmp.ne.s32.totalorder %s25, %s26
    %p37 = scmp.eq.s32.totalorder %s17, 0
    %p38 = por %p36, %p37
    %p39 = scmp.ne.s32.totalorder %s25, %s26
    %p40 = scmp.eq.s32.totalorder %s18, 1
    %p41 = por %p39, %p40
    %p43 = scmp.ne.s32.totalorder %s26, %s42
    %p44 = scmp.eq.s32.totalorder %s18, 0
    %p45 = por %p43, %p44
    %s47 = sadd.s32 %s46, 1
    %p50 = scmp.eq.s32.totalorder %s12, 1
    %p51 = scmp.ne.s32.totalorder %s46, %s48
    %p52 = scmp.eq.s32.totalorder %s12, 0
    %p53 = por %p51, %p52
    %p54 = scmp.ne.s32.totalorder %s46, %s48
    %p55 = scmp.eq.s32.totalorder %s17, 1
    %p56 = por %p54, %p55
    %p57 = scmp.ne.s32.totalorder %s48, %s49
    %p58 = scmp.eq.s32.totalorder %s17, 0
    %p59 = por %p57, %p58
    %p60 = scmp.ne.s32.totalorder %s48, %s49
    %p61 = scmp.eq.s32.totalorder %s18, 1
    %p62 = por %p60, %p61
    %p64 = scmp.ne.s32.totalorder %s49, %s63
    %p65 = scmp.eq.s32.totalorder %s18, 0
    %p66 = por %p64, %p65
    %s68 = sadd.s32 %s67, 1
    %p71 = scmp.eq.s32.totalorder %s12, 1
    %p72 = scmp.ne.s32.totalorder %s67, %s69
    %p73 = scmp.eq.s32.totalorder %s12, 0
    %p74 = por %p72, %p73
    %p75 = scmp.ne.s32.totalorder %s67, %s69
    %p76 = scmp.eq.s32.totalorder %s17, 1
    %p77 = por %p75, %p76
    %p78 = scmp.ne.s32.totalorder %s69, %s70
    %p79 = scmp.eq.s32.totalorder %s17, 0
    %p80 = por %p78, %p79
    %p81 = scmp.ne.s32.totalorder %s69, %s70
    %p82 = scmp.eq.s32.totalorder %s18, 1
    %p83 = por %p81, %p82
    %p85 = scmp.ne.s32.totalorder %s70, %s84
    %p86 = scmp.eq.s32.totalorder %s18, 0
    %p87 = por %p85, %p86
    %s88 = ssub.s32 %s12, %s19
    %p89 = scmp.eq.s32.totalorder %s88, 0
    %s91 = sadd.s32 %s90, 1
    %s92 = scalar_select %p89, %s90, %s91
    %p95 = pneg %p89
    %p96 = scmp.eq.s32.totalorder %s12, 1
    %p97 = por %p95, %p96
    %p98 = scmp.ne.s32.totalorder %s90, %s93
    %p99 = scmp.eq.s32.totalorder %s12, 0
    %p100 = por %p98, %p99
    %p101 = scmp.ne.s32.totalorder %s90, %s93
    %p102 = scmp.eq.s32.totalorder %s17, 1
    %p103 = por %p101, %p102
    %p104 = scmp.ne.s32.totalorder %s93, %s94
    %p105 = scmp.eq.s32.totalorder %s17, 0
    %p106 = por %p104, %p105
    %p107 = scmp.ne.s32.totalorder %s93, %s94
    %p108 = scmp.eq.s32.totalorder %s18, 1
    %p109 = por %p107, %p108
    %p111 = scmp.ne.s32.totalorder %s94, %s110
    %p112 = scmp.eq.s32.totalorder %s18, 0
    %p113 = por %p111, %p112
    %s114 = ssub.s32 %s12, %s19
    %p115 = scmp.eq.s32.totalorder %s114, 0
    %s117 = sadd.s32 %s116, 1
    %s118 = scalar_select %p115, %s116, %s117
    %p121 = pneg %p115
    %p122 = scmp.eq.s32.totalorder %s12, 1
    %p123 = por %p121, %p122
    %p124 = scmp.ne.s32.totalorder %s116, %s119
    %p125 = scmp.eq.s32.totalorder %s12, 0
    %p126 = por %p124, %p125
    %p127 = scmp.ne.s32.totalorder %s116, %s119
    %p128 = scmp.eq.s32.totalorder %s17, 1
    %p129 = por %p127, %p128
    %p130 = scmp.ne.s32.totalorder %s119, %s120
    %p131 = scmp.eq.s32.totalorder %s17, 0
    %p132 = por %p130, %p131
    %p133 = scmp.ne.s32.totalorder %s119, %s120
    %p134 = scmp.eq.s32.totalorder %s18, 1
    %p135 = por %p133, %p134
    %p137 = scmp.ne.s32.totalorder %s120, %s136
    %p138 = scmp.eq.s32.totalorder %s18, 0
    %p139 = por %p137, %p138
    %s140 = ssub.s32 %s12, %s19
    %p141 = scmp.eq.s32.totalorder %s140, 0
    %s143 = sadd.s32 %s142, 1
    %s144 = scalar_select %p141, %s142, %s143
    %p147 = pneg %p141
    %p148 = scmp.eq.s32.totalorder %s12, 1
    %p149 = por %p147, %p148
    %p150 = scmp.ne.s32.totalorder %s142, %s145
    %p151 = scmp.eq.s32.totalorder %s12, 0
    %p152 = por %p150, %p151
    %p153 = scmp.ne.s32.totalorder %s142, %s145
    %p154 = scmp.eq.s32.totalorder %s17, 1
    %p155 = por %p153, %p154
    %p156 = scmp.ne.s32.totalorder %s145, %s146
    %p157 = scmp.eq.s32.totalorder %s17, 0
    %p158 = por %p156, %p157
    %p159 = scmp.ne.s32.totalorder %s145, %s146
    %p160 = scmp.eq.s32.totalorder %s18, 1
    %p161 = por %p159, %p160
    %p163 = scmp.ne.s32.totalorder %s146, %s162
    %p164 = scmp.eq.s32.totalorder %s18, 0
    %p165 = por %p163, %p164
    %p166 = scmp.le.s32.totalorder 1, %s12
    %p167 = scmp.lt.s32.totalorder %s12, 3
    %p168 = pnand %p166, %p167
    %p169 = pneg %p168
    // Predicated region
    $region9: #{resblock_forward.3} parent=5 // pred_check
      _
    $region10: #{resblock_forward.3} parent=5 // pred_check_branch
      %171 = sbr.rel (%p168) target = $region12
    $region11: #{resblock_forward.3} parent=5 // pred_region
      %s172 = ssub.s32 %s12, 1
      // Predicated region
      $region13: #{resblock_forward.3} parent=11 // pred_check
        %p173 = pneg %p59
      $region14: #{resblock_forward.3} parent=11 // pred_check_branch
        %175 = sbr.rel (%p173) target = $region16
      $region15: #{resblock_forward.3} parent=11 // pred_region
        _
      $region16: #{resblock_forward.3} parent=11 // pred_fallthru
        _
      // Predicated region
      $region17: #{resblock_forward.3} parent=11 // pred_check
        %p176 = pneg %p80
      $region18: #{resblock_forward.3} parent=11 // pred_check_branch
        %178 = sbr.rel (%p176) target = $region20
      $region19: #{resblock_forward.3} parent=11 // pred_region
        _
      $region20: #{resblock_forward.3} parent=11 // pred_fallthru
        _
    $region12: #{resblock_forward.3} parent=5 // pred_fallthru
      _
    %p179 = scmp.lt.s32.totalorder %s12, 2
    // Predicated region
    $region21: #{resblock_forward.3} parent=5 // pred_check
      %p180 = pneg %p179
    $region22: #{resblock_forward.3} parent=5 // pred_check_branch
      %182 = sbr.rel (%p180) target = $region24
    $region23: #{resblock_forward.3} parent=5 // pred_region
      // Predicated region
      $region25: #{resblock_forward.3} parent=23 // pred_check
        %p183 = pneg %p32
      $region26: #{resblock_forward.3} parent=23 // pred_check_branch
        %185 = sbr.rel (%p183) target = $region28
      $region27: #{resblock_forward.3} parent=23 // pred_region
        %p186 = scmp.lt.s32.totalorder %s12, 1
        %s187 = scalar_select %p186, %s12, 1
        %s188 = smul.addr %s187, 32
        %s189 = smul.addr %s188, 4
        %s190 = scalar_lea.vmem %s0, %s189
      $region28: #{resblock_forward.3} parent=23 // pred_fallthru
        _
    $region24: #{resblock_forward.3} parent=5 // pred_fallthru
      _
    %p191 = scmp.le.s32.totalorder 1, %s12
    %p192 = scmp.lt.s32.totalorder %s12, 3
    %p193 = pnand %p191, %p192
    %p194 = pneg %p193
    // Predicated region
    $region29: #{resblock_forward.3} parent=5 // pred_check
      _
    $region30: #{resblock_forward.3} parent=5 // pred_check_branch
      %196 = sbr.rel (%p193) target = $region32
    $region31: #{resblock_forward.3} parent=5 // pred_region
      %s197 = ssub.s32 %s12, 1
      %p198 = scmp.lt.s32.totalorder %s17, 1
      %s199 = scalar_select %p198, %s17, 1
      %s200 = smul.addr %s199, 32
      %s201 = smul.addr %s200, 4
      %s202 = scalar_lea.vmem %s0, %s201
      %p203 = pneg %p38
      %p204 = pneg %p35
      %p205 = pneg %p59
      %p206 = pneg %p56
      %p207 = pneg %p80
      %p208 = pneg %p77
      %p209 = pneg %p106
      %p210 = pneg %p103
      %p211 = scmp.lt.s32.totalorder %s17, 1
      %s212 = scalar_select %p211, %s17, 1
      %s213 = smul.addr %s212, 32
      %s214 = smul.addr %s213, 4
      %s215 = scalar_lea.vmem %s3, %s214
      %p216 = pneg %p132
      %p217 = pneg %p129
      %p218 = scmp.lt.s32.totalorder %s17, 1
      %s219 = scalar_select %p218, %s17, 1
      %s220 = smul.addr %s219, 2
      %s221 = scalar_lea.vmem %s4, %s220
      %p222 = pneg %p158
      %p223 = pneg %p155
      %p224 = scmp.lt.s32.totalorder %s17, 1
      %s225 = scalar_select %p224, %s17, 1
      %s226 = smul.addr %s225, 2
      %s227 = scalar_lea.vmem %s5, %s226
      %p228 = scmp.lt.s32.totalorder %s17, 1
      %s229 = scalar_select %p228, %s17, 1
      %s230 = smul.addr %s229, 32
      %s231 = smul.addr %s230, 4
      %s232 = scalar_lea.vmem %s0, %s231
      %p233 = scmp.lt.s32.totalorder %s17, 1
      %s234 = scalar_select %p233, %s17, 1
      %s235 = smul.addr %s234, 32
      %s236 = smul.addr %s235, 4
      %s237 = scalar_lea.vmem %s3, %s236
      %p238 = scmp.lt.s32.totalorder %s17, 1
      %s239 = scalar_select %p238, %s17, 1
      %s240 = smul.addr %s239, 2
      %s241 = scalar_lea.vmem %s4, %s240
      %p242 = scmp.lt.s32.totalorder %s17, 1
      %s243 = scalar_select %p242, %s17, 1
      %s244 = smul.addr %s243, 2
      %s245 = scalar_lea.vmem %s5, %s244
      %v247 = vld [vmem:[%s232] sm:$0xf]
      %v248 = vld [vmem:[%s232 + $0x4] sm:$0xf]
      %v249 = vld [vmem:[%s232 + $0x8] sm:$0xf]
      %v250 = vld [vmem:[%s232 + $0xc] sm:$0xf]
      %v251 = vld [vmem:[%s232 + $0x10] sm:$0xf]
      %v252 = vld [vmem:[%s232 + $0x14] sm:$0xf]
      %v253 = vld [vmem:[%s232 + $0x18] sm:$0xf]
      %v254 = vld [vmem:[%s232 + $0x1c] sm:$0xf]
      %v255 = vld [vmem:[%s232 + $0x20] sm:$0xf]
      %v256 = vld [vmem:[%s232 + $0x24] sm:$0xf]
      %v257 = vld [vmem:[%s232 + $0x28] sm:$0xf]
      %v258 = vld [vmem:[%s232 + $0x2c] sm:$0xf]
      %v259 = vld [vmem:[%s232 + $0x30] sm:$0xf]
      %v260 = vld [vmem:[%s232 + $0x34] sm:$0xf]
      %v261 = vld [vmem:[%s232 + $0x38] sm:$0xf]
      %v262 = vld [vmem:[%s232 + $0x3c] sm:$0xf]
      %v263 = vld [vmem:[%s232 + $0x40] sm:$0xf]
      %v264 = vld [vmem:[%s232 + $0x44] sm:$0xf]
      %v265 = vld [vmem:[%s232 + $0x48] sm:$0xf]
      %v266 = vld [vmem:[%s232 + $0x4c] sm:$0xf]
      %v267 = vld [vmem:[%s232 + $0x50] sm:$0xf]
      %v268 = vld [vmem:[%s232 + $0x54] sm:$0xf]
      %v269 = vld [vmem:[%s232 + $0x58] sm:$0xf]
      %v270 = vld [vmem:[%s232 + $0x5c] sm:$0xf]
      %v271 = vld [vmem:[%s232 + $0x60] sm:$0xf]
      %v272 = vld [vmem:[%s232 + $0x64] sm:$0xf]
      %v273 = vld [vmem:[%s232 + $0x68] sm:$0xf]
      %v274 = vld [vmem:[%s232 + $0x6c] sm:$0xf]
      %v275 = vld [vmem:[%s232 + $0x70] sm:$0xf]
      %v276 = vld [vmem:[%s232 + $0x74] sm:$0xf]
      %v277 = vld [vmem:[%s232 + $0x78] sm:$0xf]
      %v278 = vld [vmem:[%s232 + $0x7c] sm:$0xf]
      %279 = vst [vmem:[#allocation2] sm:$0xf] 0
      %280 = vst [vmem:[#allocation2 + $0x4] sm:$0xf] 0
      %281 = vst [vmem:[#allocation2 + $0x8] sm:$0x1] 0
      %s282 = scalar_lea.vmem [#allocation2], 204
      %283 = vst [vmem:[%s282] sm:$0xf] 0
      %284 = vst [vmem:[%s282 + $0x4] sm:$0xf] 0
      %285 = vst [vmem:[%s282 + $0x8] sm:$0x1] 0
      %s286 = scalar_lea.vmem [#allocation2], 12
      %vm287 = vcmask 1040384
      %vm288 = vsmask.f32 256
      %vm289 = vmand %vm287, %vm288
      %v290 = vld [vmem:[%s286] sm:$0x1]
      %v291 = vsel %vm289, 0, %v290
      %292 = vst [vmem:[%s286] sm:$0x1] %v291
      %v293 = vld [vmem:[%s286 + $0xc] sm:$0x1]
      %v294 = vsel %vm289, 0, %v293
      %295 = vst [vmem:[%s286 + $0xc] sm:$0x1] %v294
      %v296 = vld [vmem:[%s286 + $0x18] sm:$0x1]
      %v297 = vsel %vm289, 0, %v296
      %298 = vst [vmem:[%s286 + $0x18] sm:$0x1] %v297
      %v299 = vld [vmem:[%s286 + $0x24] sm:$0x1]
      %v300 = vsel %vm289, 0, %v299
      %301 = vst [vmem:[%s286 + $0x24] sm:$0x1] %v300
      %v302 = vld [vmem:[%s286 + $0x30] sm:$0x1]
      %v303 = vsel %vm289, 0, %v302
      %304 = vst [vmem:[%s286 + $0x30] sm:$0x1] %v303
      %v305 = vld [vmem:[%s286 + $0x3c] sm:$0x1]
      %v306 = vsel %vm289, 0, %v305
      %307 = vst [vmem:[%s286 + $0x3c] sm:$0x1] %v306
      %v308 = vld [vmem:[%s286 + $0x48] sm:$0x1]
      %v309 = vsel %vm289, 0, %v308
      %310 = vst [vmem:[%s286 + $0x48] sm:$0x1] %v309
      %v311 = vld [vmem:[%s286 + $0x54] sm:$0x1]
      %v312 = vsel %vm289, 0, %v311
      %313 = vst [vmem:[%s286 + $0x54] sm:$0x1] %v312
      %v314 = vld [vmem:[%s286 + $0x60] sm:$0x1]
      %v315 = vsel %vm289, 0, %v314
      %316 = vst [vmem:[%s286 + $0x60] sm:$0x1] %v315
      %v317 = vld [vmem:[%s286 + $0x6c] sm:$0x1]
      %v318 = vsel %vm289, 0, %v317
      %319 = vst [vmem:[%s286 + $0x6c] sm:$0x1] %v318
      %v320 = vld [vmem:[%s286 + $0x78] sm:$0x1]
      %v321 = vsel %vm289, 0, %v320
      %322 = vst [vmem:[%s286 + $0x78] sm:$0x1] %v321
      %v323 = vld [vmem:[%s286 + $0x84] sm:$0x1]
      %v324 = vsel %vm289, 0, %v323
      %325 = vst [vmem:[%s286 + $0x84] sm:$0x1] %v324
      %v326 = vld [vmem:[%s286 + $0x90] sm:$0x1]
      %v327 = vsel %vm289, 0, %v326
      %328 = vst [vmem:[%s286 + $0x90] sm:$0x1] %v327
      %v329 = vld [vmem:[%s286 + $0x9c] sm:$0x1]
      %v330 = vsel %vm289, 0, %v329
      %331 = vst [vmem:[%s286 + $0x9c] sm:$0x1] %v330
      %v332 = vld [vmem:[%s286 + $0xa8] sm:$0x1]
      %v333 = vsel %vm289, 0, %v332
      %334 = vst [vmem:[%s286 + $0xa8] sm:$0x1] %v333
      %v335 = vld [vmem:[%s286 + $0xb4] sm:$0x1]
      %v336 = vsel %vm289, 0, %v335
      %337 = vst [vmem:[%s286 + $0xb4] sm:$0x1] %v336
      %vm338 = vsmask.f32 7938
      %vm339 = vmand %vm287, %vm338
      %v340 = vld [vmem:[%s286 + $0x8] sm:$0x1]
      %v341 = vsel %vm339, 0, %v340
      %342 = vst [vmem:[%s286 + $0x8] sm:$0x1] %v341
      %v343 = vld [vmem:[%s286 + $0x14] sm:$0x1]
      %v344 = vsel %vm339, 0, %v343
      %345 = vst [vmem:[%s286 + $0x14] sm:$0x1] %v344
      %v346 = vld [vmem:[%s286 + $0x20] sm:$0x1]
      %v347 = vsel %vm339, 0, %v346
      %348 = vst [vmem:[%s286 + $0x20] sm:$0x1] %v347
      %v349 = vld [vmem:[%s286 + $0x2c] sm:$0x1]
      %v350 = vsel %vm339, 0, %v349
      %351 = vst [vmem:[%s286 + $0x2c] sm:$0x1] %v350
      %v352 = vld [vmem:[%s286 + $0x38] sm:$0x1]
      %v353 = vsel %vm339, 0, %v352
      %354 = vst [vmem:[%s286 + $0x38] sm:$0x1] %v353
      %v355 = vld [vmem:[%s286 + $0x44] sm:$0x1]
      %v356 = vsel %vm339, 0, %v355
      %357 = vst [vmem:[%s286 + $0x44] sm:$0x1] %v356
      %v358 = vld [vmem:[%s286 + $0x50] sm:$0x1]
      %v359 = vsel %vm339, 0, %v358
      %360 = vst [vmem:[%s286 + $0x50] sm:$0x1] %v359
      %v361 = vld [vmem:[%s286 + $0x5c] sm:$0x1]
      %v362 = vsel %vm339, 0, %v361
      %363 = vst [vmem:[%s286 + $0x5c] sm:$0x1] %v362
      %v364 = vld [vmem:[%s286 + $0x68] sm:$0x1]
      %v365 = vsel %vm339, 0, %v364
      %366 = vst [vmem:[%s286 + $0x68] sm:$0x1] %v365
      %v367 = vld [vmem:[%s286 + $0x74] sm:$0x1]
      %v368 = vsel %vm339, 0, %v367
      %369 = vst [vmem:[%s286 + $0x74] sm:$0x1] %v368
      %v370 = vld [vmem:[%s286 + $0x80] sm:$0x1]
      %v371 = vsel %vm339, 0, %v370
      %372 = vst [vmem:[%s286 + $0x80] sm:$0x1] %v371
      %v373 = vld [vmem:[%s286 + $0x8c] sm:$0x1]
      %v374 = vsel %vm339, 0, %v373
      %375 = vst [vmem:[%s286 + $0x8c] sm:$0x1] %v374
      %v376 = vld [vmem:[%s286 + $0x98] sm:$0x1]
      %v377 = vsel %vm339, 0, %v376
      %378 = vst [vmem:[%s286 + $0x98] sm:$0x1] %v377
      %v379 = vld [vmem:[%s286 + $0xa4] sm:$0x1]
      %v380 = vsel %vm339, 0, %v379
      %381 = vst [vmem:[%s286 + $0xa4] sm:$0x1] %v380
      %v382 = vld [vmem:[%s286 + $0xb0] sm:$0x1]
      %v383 = vsel %vm339, 0, %v382
      %384 = vst [vmem:[%s286 + $0xb0] sm:$0x1] %v383
      %v385 = vld [vmem:[%s286 + $0xbc] sm:$0x1]
      %v386 = vsel %vm339, 0, %v385
      %387 = vst [vmem:[%s286 + $0xbc] sm:$0x1] %v386
      %vm388 = vsmask.f32 4368
      %vm389 = vmor %vm288, %vm388
      %v391 = vshrl.u32 %v247, 16
      %v393 = vrot.slane %v391, 7
      %v394 = vshll.u32 %v247, 16
      %v396 = vor.u32 %v393, %v394
      %v397 = vrot.slane %v393, 4
      %v399 = vshrl.u32 %v248, 16
      %v401 = vrot.slane %v399, 7
      %v402 = vshll.u32 %v248, 16
      %v404 = vor.u32 %v401, %v402
      %v405 = vsel %vm389, %v397, %v404
      %v406 = vrot.slane %v401, 4
      %v408 = vshrl.u32 %v249, 16
      %v410 = vrot.slane %v408, 7
      %v411 = vshll.u32 %v249, 16
      %v413 = vor.u32 %v410, %v411
      %v414 = vrot.slane %v410, 4
      %v416 = vshrl.u32 %v250, 16
      %v418 = vrot.slane %v416, 7
      %v419 = vshll.u32 %v250, 16
      %v421 = vor.u32 %v418, %v419
      %v422 = vsel %vm389, %v414, %v421
      %v423 = vrot.slane %v418, 4
      %v425 = vshrl.u32 %v251, 16
      %v427 = vrot.slane %v425, 7
      %v428 = vshll.u32 %v251, 16
      %v430 = vor.u32 %v427, %v428
      %v431 = vrot.slane %v427, 4
      %v433 = vshrl.u32 %v252, 16
      %v435 = vrot.slane %v433, 7
      %v436 = vshll.u32 %v252, 16
      %v438 = vor.u32 %v435, %v436
      %v439 = vsel %vm389, %v431, %v438
      %v440 = vrot.slane %v435, 4
      %v442 = vshrl.u32 %v253, 16
      %v444 = vrot.slane %v442, 7
      %v445 = vshll.u32 %v253, 16
      %v447 = vor.u32 %v444, %v445
      %v448 = vrot.slane %v444, 4
      %v450 = vshrl.u32 %v254, 16
      %v452 = vrot.slane %v450, 7
      %v453 = vshll.u32 %v254, 16
      %v455 = vor.u32 %v452, %v453
      %v456 = vsel %vm389, %v448, %v455
      %v457 = vrot.slane %v452, 4
      %v459 = vshrl.u32 %v255, 16
      %v461 = vrot.slane %v459, 7
      %v462 = vshll.u32 %v255, 16
      %v464 = vor.u32 %v461, %v462
      %v465 = vrot.slane %v461, 4
      %v467 = vshrl.u32 %v256, 16
      %v469 = vrot.slane %v467, 7
      %v470 = vshll.u32 %v256, 16
      %v472 = vor.u32 %v469, %v470
      %v473 = vsel %vm389, %v465, %v472
      %v474 = vrot.slane %v469, 4
      %v476 = vshrl.u32 %v257, 16
      %v478 = vrot.slane %v476, 7
      %v479 = vshll.u32 %v257, 16
      %v481 = vor.u32 %v478, %v479
      %v482 = vrot.slane %v478, 4
      %v484 = vshrl.u32 %v258, 16
      %v486 = vrot.slane %v484, 7
      %v487 = vshll.u32 %v258, 16
      %v489 = vor.u32 %v486, %v487
      %v490 = vsel %vm389, %v482, %v489
      %v491 = vrot.slane %v486, 4
      %v493 = vshrl.u32 %v259, 16
      %v495 = vrot.slane %v493, 7
      %v496 = vshll.u32 %v259, 16
      %v498 = vor.u32 %v495, %v496
      %v499 = vrot.slane %v495, 4
      %v501 = vshrl.u32 %v260, 16
      %v503 = vrot.slane %v501, 7
      %v504 = vshll.u32 %v260, 16
      %v506 = vor.u32 %v503, %v504
      %v507 = vsel %vm389, %v499, %v506
      %v508 = vrot.slane %v503, 4
      %v510 = vshrl.u32 %v261, 16
      %v512 = vrot.slane %v510, 7
      %v513 = vshll.u32 %v261, 16
      %v515 = vor.u32 %v512, %v513
      %v516 = vrot.slane %v512, 4
      %v518 = vshrl.u32 %v262, 16
      %v520 = vrot.slane %v518, 7
      %v521 = vshll.u32 %v262, 16
      %v523 = vor.u32 %v520, %v521
      %v524 = vsel %vm389, %v516, %v523
      %v525 = vrot.slane %v520, 4
      %v527 = vshrl.u32 %v263, 16
      %v529 = vrot.slane %v527, 7
      %v530 = vshll.u32 %v263, 16
      %v532 = vor.u32 %v529, %v530
      %v533 = vrot.slane %v529, 4
      %v535 = vshrl.u32 %v264, 16
      %v537 = vrot.slane %v535, 7
      %v538 = vshll.u32 %v264, 16
      %v540 = vor.u32 %v537, %v538
      %v541 = vsel %vm389, %v533, %v540
      %v542 = vrot.slane %v537, 4
      %v544 = vshrl.u32 %v265, 16
      %v546 = vrot.slane %v544, 7
      %v547 = vshll.u32 %v265, 16
      %v549 = vor.u32 %v546, %v547
      %v550 = vrot.slane %v546, 4
      %v552 = vshrl.u32 %v266, 16
      %v554 = vrot.slane %v552, 7
      %v555 = vshll.u32 %v266, 16
      %v557 = vor.u32 %v554, %v555
      %v558 = vsel %vm389, %v550, %v557
      %v559 = vrot.slane %v554, 4
      %v561 = vshrl.u32 %v267, 16
      %v563 = vrot.slane %v561, 7
      %v564 = vshll.u32 %v267, 16
      %v566 = vor.u32 %v563, %v564
      %v567 = vrot.slane %v563, 4
      %v569 = vshrl.u32 %v268, 16
      %v571 = vrot.slane %v569, 7
      %v572 = vshll.u32 %v268, 16
      %v574 = vor.u32 %v571, %v572
      %v575 = vsel %vm389, %v567, %v574
      %v576 = vrot.slane %v571, 4
      %v578 = vshrl.u32 %v269, 16
      %v580 = vrot.slane %v578, 7
      %v581 = vshll.u32 %v269, 16
      %v583 = vor.u32 %v580, %v581
      %v584 = vrot.slane %v580, 4
      %v586 = vshrl.u32 %v270, 16
      %v588 = vrot.slane %v586, 7
      %v589 = vshll.u32 %v270, 16
      %v591 = vor.u32 %v588, %v589
      %v592 = vsel %vm389, %v584, %v591
      %v593 = vrot.slane %v588, 4
      %v595 = vshrl.u32 %v271, 16
      %v597 = vrot.slane %v595, 7
      %v598 = vshll.u32 %v271, 16
      %v600 = vor.u32 %v597, %v598
      %v601 = vrot.slane %v597, 4
      %v603 = vshrl.u32 %v272, 16
      %v605 = vrot.slane %v603, 7
      %v606 = vshll.u32 %v272, 16
      %v608 = vor.u32 %v605, %v606
      %v609 = vsel %vm389, %v601, %v608
      %v610 = vrot.slane %v605, 4
      %v612 = vshrl.u32 %v273, 16
      %v614 = vrot.slane %v612, 7
      %v615 = vshll.u32 %v273, 16
      %v617 = vor.u32 %v614, %v615
      %v618 = vrot.slane %v614, 4
      %v620 = vshrl.u32 %v274, 16
      %v622 = vrot.slane %v620, 7
      %v623 = vshll.u32 %v274, 16
      %v625 = vor.u32 %v622, %v623
      %v626 = vsel %vm389, %v618, %v625
      %v627 = vrot.slane %v622, 4
      %v629 = vshrl.u32 %v275, 16
      %v631 = vrot.slane %v629, 7
      %v632 = vshll.u32 %v275, 16
      %v634 = vor.u32 %v631, %v632
      %v635 = vrot.slane %v631, 4
      %v637 = vshrl.u32 %v276, 16
      %v639 = vrot.slane %v637, 7
      %v640 = vshll.u32 %v276, 16
      %v642 = vor.u32 %v639, %v640
      %v643 = vsel %vm389, %v635, %v642
      %v644 = vrot.slane %v639, 4
      %v646 = vshrl.u32 %v277, 16
      %v648 = vrot.slane %v646, 7
      %v649 = vshll.u32 %v277, 16
      %v651 = vor.u32 %v648, %v649
      %v652 = vrot.slane %v648, 4
      %v654 = vshrl.u32 %v278, 16
      %v656 = vrot.slane %v654, 7
      %v657 = vshll.u32 %v278, 16
      %v659 = vor.u32 %v656, %v657
      %v660 = vsel %vm389, %v652, %v659
      %v661 = vrot.slane %v656, 4
      %vm710 = vcmask 1043456
      %vm711 = vmand %vm710, %vm338
      %v712 = vld [vmem:[%s286] sm:$0xf]
      %v713 = vsel %vm711, %v396, %v712
      %714 = vst [vmem:[%s286] sm:$0xf] %v713
      %715 = vst [vmem:[%s286 + $0x4] sm:$0xf] %v405
      %v716 = vld [vmem:[%s286 + $0x8] sm:$0x1]
      %v717 = vsel %vm289, %v406, %v716
      %718 = vst [vmem:[%s286 + $0x8] sm:$0x1] %v717
      %v719 = vld [vmem:[%s286 + $0xc] sm:$0xf]
      %v720 = vsel %vm711, %v413, %v719
      %721 = vst [vmem:[%s286 + $0xc] sm:$0xf] %v720
      %722 = vst [vmem:[%s286 + $0x10] sm:$0xf] %v422
      %v723 = vld [vmem:[%s286 + $0x14] sm:$0x1]
      %v724 = vsel %vm289, %v423, %v723
      %725 = vst [vmem:[%s286 + $0x14] sm:$0x1] %v724
      %v726 = vld [vmem:[%s286 + $0x18] sm:$0xf]
      %v727 = vsel %vm711, %v430, %v726
      %728 = vst [vmem:[%s286 + $0x18] sm:$0xf] %v727
      %729 = vst [vmem:[%s286 + $0x1c] sm:$0xf] %v439
      %v730 = vld [vmem:[%s286 + $0x20] sm:$0x1]
      %v731 = vsel %vm289, %v440, %v730
      %732 = vst [vmem:[%s286 + $0x20] sm:$0x1] %v731
      %v733 = vld [vmem:[%s286 + $0x24] sm:$0xf]
      %v734 = vsel %vm711, %v447, %v733
      %735 = vst [vmem:[%s286 + $0x24] sm:$0xf] %v734
      %736 = vst [vmem:[%s286 + $0x28] sm:$0xf] %v456
      %v737 = vld [vmem:[%s286 + $0x2c] sm:$0x1]
      %v738 = vsel %vm289, %v457, %v737
      %739 = vst [vmem:[%s286 + $0x2c] sm:$0x1] %v738
      %v740 = vld [vmem:[%s286 + $0x30] sm:$0xf]
      %v741 = vsel %vm711, %v464, %v740
      %742 = vst [vmem:[%s286 + $0x30] sm:$0xf] %v741
      %743 = vst [vmem:[%s286 + $0x34] sm:$0xf] %v473
      %v744 = vld [vmem:[%s286 + $0x38] sm:$0x1]
      %v745 = vsel %vm289, %v474, %v744
      %746 = vst [vmem:[%s286 + $0x38] sm:$0x1] %v745
      %v747 = vld [vmem:[%s286 + $0x3c] sm:$0xf]
      %v748 = vsel %vm711, %v481, %v747
      %749 = vst [vmem:[%s286 + $0x3c] sm:$0xf] %v748
      %750 = vst [vmem:[%s286 + $0x40] sm:$0xf] %v490
      %v751 = vld [vmem:[%s286 + $0x44] sm:$0x1]
      %v752 = vsel %vm289, %v491, %v751
      %753 = vst [vmem:[%s286 + $0x44] sm:$0x1] %v752
      %v754 = vld [vmem:[%s286 + $0x48] sm:$0xf]
      %v755 = vsel %vm711, %v498, %v754
      %756 = vst [vmem:[%s286 + $0x48] sm:$0xf] %v755
      %757 = vst [vmem:[%s286 + $0x4c] sm:$0xf] %v507
      %v758 = vld [vmem:[%s286 + $0x50] sm:$0x1]
      %v759 = vsel %vm289, %v508, %v758
      %760 = vst [vmem:[%s286 + $0x50] sm:$0x1] %v759
      %v761 = vld [vmem:[%s286 + $0x54] sm:$0xf]
      %v762 = vsel %vm711, %v515, %v761
      %763 = vst [vmem:[%s286 + $0x54] sm:$0xf] %v762
      %764 = vst [vmem:[%s286 + $0x58] sm:$0xf] %v524
      %v765 = vld [vmem:[%s286 + $0x5c] sm:$0x1]
      %v766 = vsel %vm289, %v525, %v765
      %767 = vst [vmem:[%s286 + $0x5c] sm:$0x1] %v766
      %v768 = vld [vmem:[%s286 + $0x60] sm:$0xf]
      %v769 = vsel %vm711, %v532, %v768
      %770 = vst [vmem:[%s286 + $0x60] sm:$0xf] %v769
      %771 = vst [vmem:[%s286 + $0x64] sm:$0xf] %v541
      %v772 = vld [vmem:[%s286 + $0x68] sm:$0x1]
      %v773 = vsel %vm289, %v542, %v772
      %774 = vst [vmem:[%s286 + $0x68] sm:$0x1] %v773
      %v775 = vld [vmem:[%s286 + $0x6c] sm:$0xf]
      %v776 = vsel %vm711, %v549, %v775
      %777 = vst [vmem:[%s286 + $0x6c] sm:$0xf] %v776
      %778 = vst [vmem:[%s286 + $0x70] sm:$0xf] %v558
      %v779 = vld [vmem:[%s286 + $0x74] sm:$0x1]
      %v780 = vsel %vm289, %v559, %v779
      %781 = vst [vmem:[%s286 + $0x74] sm:$0x1] %v780
      %v782 = vld [vmem:[%s286 + $0x78] sm:$0xf]
      %v783 = vsel %vm711, %v566, %v782
      %784 = vst [vmem:[%s286 + $0x78] sm:$0xf] %v783
      %785 = vst [vmem:[%s286 + $0x7c] sm:$0xf] %v575
      %v786 = vld [vmem:[%s286 + $0x80] sm:$0x1]
      %v787 = vsel %vm289, %v576, %v786
      %788 = vst [vmem:[%s286 + $0x80] sm:$0x1] %v787
      %v789 = vld [vmem:[%s286 + $0x84] sm:$0xf]
      %v790 = vsel %vm711, %v583, %v789
      %791 = vst [vmem:[%s286 + $0x84] sm:$0xf] %v790
      %792 = vst [vmem:[%s286 + $0x88] sm:$0xf] %v592
      %v793 = vld [vmem:[%s286 + $0x8c] sm:$0x1]
      %v794 = vsel %vm289, %v593, %v793
      %795 = vst [vmem:[%s286 + $0x8c] sm:$0x1] %v794
      %v796 = vld [vmem:[%s286 + $0x90] sm:$0xf]
      %v797 = vsel %vm711, %v600, %v796
      %798 = vst [vmem:[%s286 + $0x90] sm:$0xf] %v797
      %799 = vst [vmem:[%s286 + $0x94] sm:$0xf] %v609
      %v800 = vld [vmem:[%s286 + $0x98] sm:$0x1]
      %v801 = vsel %vm289, %v610, %v800
      %802 = vst [vmem:[%s286 + $0x98] sm:$0x1] %v801
      %v803 = vld [vmem:[%s286 + $0x9c] sm:$0xf]
      %v804 = vsel %vm711, %v617, %v803
      %805 = vst [vmem:[%s286 + $0x9c] sm:$0xf] %v804
      %806 = vst [vmem:[%s286 + $0xa0] sm:$0xf] %v626
      %v807 = vld [vmem:[%s286 + $0xa4] sm:$0x1]
      %v808 = vsel %vm289, %v627, %v807
      %809 = vst [vmem:[%s286 + $0xa4] sm:$0x1] %v808
      %v810 = vld [vmem:[%s286 + $0xa8] sm:$0xf]
      %v811 = vsel %vm711, %v634, %v810
      %812 = vst [vmem:[%s286 + $0xa8] sm:$0xf] %v811
      %813 = vst [vmem:[%s286 + $0xac] sm:$0xf] %v643
      %v814 = vld [vmem:[%s286 + $0xb0] sm:$0x1]
      %v815 = vsel %vm289, %v644, %v814
      %816 = vst [vmem:[%s286 + $0xb0] sm:$0x1] %v815
      %v817 = vld [vmem:[%s286 + $0xb4] sm:$0xf]
      %v818 = vsel %vm711, %v651, %v817
      %819 = vst [vmem:[%s286 + $0xb4] sm:$0xf] %v818
      %820 = vst [vmem:[%s286 + $0xb8] sm:$0xf] %v660
      %v821 = vld [vmem:[%s286 + $0xbc] sm:$0x1]
      %v822 = vsel %vm289, %v661, %v821
      %823 = vst [vmem:[%s286 + $0xbc] sm:$0x1] %v822
      %v824 = vld [vmem:[#allocation2] sm:$0xf]
      %v825 = vld [vmem:[#allocation2 + $0x4] sm:$0xf]
      %v826 = vld [vmem:[#allocation2 + $0xc] sm:$0xf]
      %v827 = vld [vmem:[#allocation2 + $0x10] sm:$0xf]
      %v828 = vld [vmem:[#allocation2 + $0x18] sm:$0xf]
      %v829 = vld [vmem:[#allocation2 + $0x1c] sm:$0xf]
      %v830 = vld [vmem:[#allocation2 + $0x24] sm:$0xf]
      %v831 = vld [vmem:[#allocation2 + $0x28] sm:$0xf]
      %v832 = vld [vmem:[#allocation2 + $0x30] sm:$0xf]
      %v833 = vld [vmem:[#allocation2 + $0x34] sm:$0xf]
      %v834 = vld [vmem:[#allocation2 + $0x3c] sm:$0xf]
      %v835 = vld [vmem:[#allocation2 + $0x40] sm:$0xf]
      %v836 = vld [vmem:[#allocation2 + $0x48] sm:$0xf]
      %v837 = vld [vmem:[#allocation2 + $0x4c] sm:$0xf]
      %v838 = vld [vmem:[#allocation2 + $0x54] sm:$0xf]
      %v839 = vld [vmem:[#allocation2 + $0x58] sm:$0xf]
      %v840 = vld [vmem:[#allocation2 + $0x60] sm:$0xf]
      %v841 = vld [vmem:[#allocation2 + $0x64] sm:$0xf]
      %v842 = vld [vmem:[#allocation2 + $0x6c] sm:$0xf]
      %v843 = vld [vmem:[#allocation2 + $0x70] sm:$0xf]
      %v844 = vld [vmem:[#allocation2 + $0x78] sm:$0xf]
      %v845 = vld [vmem:[#allocation2 + $0x7c] sm:$0xf]
      %v846 = vld [vmem:[#allocation2 + $0x84] sm:$0xf]
      %v847 = vld [vmem:[#allocation2 + $0x88] sm:$0xf]
      %v848 = vld [vmem:[#allocation2 + $0x90] sm:$0xf]
      %v849 = vld [vmem:[#allocation2 + $0x94] sm:$0xf]
      %v850 = vld [vmem:[#allocation2 + $0x9c] sm:$0xf]
      %v851 = vld [vmem:[#allocation2 + $0xa0] sm:$0xf]
      %v852 = vld [vmem:[#allocation2 + $0xa8] sm:$0xf]
      %v853 = vld [vmem:[#allocation2 + $0xac] sm:$0xf]
      %v854 = vld [vmem:[#allocation2 + $0xb4] sm:$0xf]
      %v855 = vld [vmem:[#allocation2 + $0xb8] sm:$0xf]
      %v856 = vld [vmem:[%s1] sm:$0xf]
      %v857 = vld [vmem:[%s1 + $0x4] sm:$0xf]
      %v858 = vld [vmem:[%s1 + $0x8] sm:$0xf]
      %v859 = vld [vmem:[%s1 + $0xc] sm:$0xf]
      %v860 = vld [vmem:[%s1 + $0x10] sm:$0xf]
      %v861 = vld [vmem:[%s1 + $0x14] sm:$0xf]
      %v862 = vld [vmem:[%s1 + $0x18] sm:$0xf]
      %v863 = vld [vmem:[%s1 + $0x1c] sm:$0xf]
      %v864 = vld [vmem:[%s1 + $0x20] sm:$0xf]
      %v865 = vld [vmem:[%s1 + $0x24] sm:$0xf]
      %v866 = vld [vmem:[%s1 + $0x28] sm:$0xf]
      %v867 = vld [vmem:[%s1 + $0x2c] sm:$0xf]
      %v868 = vld [vmem:[%s1 + $0x30] sm:$0xf]
      %v869 = vld [vmem:[%s1 + $0x34] sm:$0xf]
      %v870 = vld [vmem:[%s1 + $0x38] sm:$0xf]
      %v871 = vld [vmem:[%s1 + $0x3c] sm:$0xf]
      %v872 = vld [vmem:[#allocation2 + $0x8] sm:$0x1]
      %v873 = vld [vmem:[#allocation2 + $0x14] sm:$0x1]
      %v874 = vld [vmem:[#allocation2 + $0x20] sm:$0x1]
      %v875 = vld [vmem:[#allocation2 + $0x2c] sm:$0x1]
      %v876 = vld [vmem:[#allocation2 + $0x38] sm:$0x1]
      %v877 = vld [vmem:[#allocation2 + $0x44] sm:$0x1]
      %v878 = vld [vmem:[#allocation2 + $0x50] sm:$0x1]
      %v879 = vld [vmem:[#allocation2 + $0x5c] sm:$0x1]
      %v880 = vld [vmem:[#allocation2 + $0x68] sm:$0x1]
      %v881 = vld [vmem:[#allocation2 + $0x74] sm:$0x1]
      %v882 = vld [vmem:[#allocation2 + $0x80] sm:$0x1]
      %v883 = vld [vmem:[#allocation2 + $0x8c] sm:$0x1]
      %v884 = vld [vmem:[#allocation2 + $0x98] sm:$0x1]
      %v885 = vld [vmem:[#allocation2 + $0xa4] sm:$0x1]
      %v886 = vld [vmem:[#allocation2 + $0xb0] sm:$0x1]
      %v887 = vld [vmem:[#allocation2 + $0xbc] sm:$0x1]
      %vm888 = vsmask.f32 3328
      %vm889 = vsmask.f32 7440
      %vm890 = vmor %vm888, %vm889
      %v892 = vshrl.u32 %v824, 16
      %v894 = vrot.slane %v892, 4
      %v895 = vshll.u32 %v824, 16
      %v897 = vrot.slane %v895, 5
      %v898 = vor.u32 %v894, %v897
      %v899 = vrot.slane %v898, 4
      %v901 = vshll.u32 %v825, 16
      %v903 = vrot.slane %v901, 5
      %v904 = vsel %vm890, %v899, %v903
      %v905 = vshrl.u32 %v825, 16
      %v907 = vrot.slane %v905, 4
      %v908 = vor.u32 %v907, %v903
      %v909 = vrot.slane %v908, 4
      %v911 = vshll.u32 %v872, 16
      %v913 = vrot.slane %v911, 5
      %v914 = vsel %vm890, %v909, %v913
      %v916 = vshrl.u32 %v826, 16
      %v918 = vrot.slane %v916, 4
      %v919 = vshll.u32 %v826, 16
      %v921 = vrot.slane %v919, 5
      %v922 = vor.u32 %v918, %v921
      %v923 = vrot.slane %v922, 4
      %v925 = vshll.u32 %v827, 16
      %v927 = vrot.slane %v925, 5
      %v928 = vsel %vm890, %v923, %v927
      %v929 = vshrl.u32 %v827, 16
      %v931 = vrot.slane %v929, 4
      %v932 = vor.u32 %v931, %v927
      %v933 = vrot.slane %v932, 4
      %v935 = vshll.u32 %v873, 16
      %v937 = vrot.slane %v935, 5
      %v938 = vsel %vm890, %v933, %v937
      %v940 = vshrl.u32 %v828, 16
      %v942 = vrot.slane %v940, 4
      %v943 = vshll.u32 %v828, 16
      %v945 = vrot.slane %v943, 5
      %v946 = vor.u32 %v942, %v945
      %v947 = vrot.slane %v946, 4
      %v949 = vshll.u32 %v829, 16
      %v951 = vrot.slane %v949, 5
      %v952 = vsel %vm890, %v947, %v951
      %v953 = vshrl.u32 %v829, 16
      %v955 = vrot.slane %v953, 4
      %v956 = vor.u32 %v955, %v951
      %v957 = vrot.slane %v956, 4
      %v959 = vshll.u32 %v874, 16
      %v961 = vrot.slane %v959, 5
      %v962 = vsel %vm890, %v957, %v961
      %v964 = vshrl.u32 %v830, 16
      %v966 = vrot.slane %v964, 4
      %v967 = vshll.u32 %v830, 16
      %v969 = vrot.slane %v967, 5
      %v970 = vor.u32 %v966, %v969
      %v971 = vrot.slane %v970, 4
      %v973 = vshll.u32 %v831, 16
      %v975 = vrot.slane %v973, 5
      %v976 = vsel %vm890, %v971, %v975
      %v977 = vshrl.u32 %v831, 16
      %v979 = vrot.slane %v977, 4
      %v980 = vor.u32 %v979, %v975
      %v981 = vrot.slane %v980, 4
      %v983 = vshll.u32 %v875, 16
      %v985 = vrot.slane %v983, 5
      %v986 = vsel %vm890, %v981, %v985
      %v988 = vshrl.u32 %v832, 16
      %v990 = vrot.slane %v988, 4
      %v991 = vshll.u32 %v832, 16
      %v993 = vrot.slane %v991, 5
      %v994 = vor.u32 %v990, %v993
      %v995 = vrot.slane %v994, 4
      %v997 = vshll.u32 %v833, 16
      %v999 = vrot.slane %v997, 5
      %v1000 = vsel %vm890, %v995, %v999
      %v1001 = vshrl.u32 %v833, 16
      %v1003 = vrot.slane %v1001, 4
      %v1004 = vor.u32 %v1003, %v999
      %v1005 = vrot.slane %v1004, 4
      %v1007 = vshll.u32 %v876, 16
      %v1009 = vrot.slane %v1007, 5
      %v1010 = vsel %vm890, %v1005, %v1009
      %v1012 = vshrl.u32 %v834, 16
      %v1014 = vrot.slane %v1012, 4
      %v1015 = vshll.u32 %v834, 16
      %v1017 = vrot.slane %v1015, 5
      %v1018 = vor.u32 %v1014, %v1017
      %v1019 = vrot.slane %v1018, 4
      %v1021 = vshll.u32 %v835, 16
      %v1023 = vrot.slane %v1021, 5
      %v1024 = vsel %vm890, %v1019, %v1023
      %v1025 = vshrl.u32 %v835, 16
      %v1027 = vrot.slane %v1025, 4
      %v1028 = vor.u32 %v1027, %v1023
      %v1029 = vrot.slane %v1028, 4
      %v1031 = vshll.u32 %v877, 16
      %v1033 = vrot.slane %v1031, 5
      %v1034 = vsel %vm890, %v1029, %v1033
      %v1036 = vshrl.u32 %v836, 16
      %v1038 = vrot.slane %v1036, 4
      %v1039 = vshll.u32 %v836, 16
      %v1041 = vrot.slane %v1039, 5
      %v1042 = vor.u32 %v1038, %v1041
      %v1043 = vrot.slane %v1042, 4
      %v1045 = vshll.u32 %v837, 16
      %v1047 = vrot.slane %v1045, 5
      %v1048 = vsel %vm890, %v1043, %v1047
      %v1049 = vshrl.u32 %v837, 16
      %v1051 = vrot.slane %v1049, 4
      %v1052 = vor.u32 %v1051, %v1047
      %v1053 = vrot.slane %v1052, 4
      %v1055 = vshll.u32 %v878, 16
      %v1057 = vrot.slane %v1055, 5
      %v1058 = vsel %vm890, %v1053, %v1057
      %v1060 = vshrl.u32 %v838, 16
      %v1062 = vrot.slane %v1060, 4
      %v1063 = vshll.u32 %v838, 16
      %v1065 = vrot.slane %v1063, 5
      %v1066 = vor.u32 %v1062, %v1065
      %v1067 = vrot.slane %v1066, 4
      %v1069 = vshll.u32 %v839, 16
      %v1071 = vrot.slane %v1069, 5
      %v1072 = vsel %vm890, %v1067, %v1071
      %v1073 = vshrl.u32 %v839, 16
      %v1075 = vrot.slane %v1073, 4
      %v1076 = vor.u32 %v1075, %v1071
      %v1077 = vrot.slane %v1076, 4
      %v1079 = vshll.u32 %v879, 16
      %v1081 = vrot.slane %v1079, 5
      %v1082 = vsel %vm890, %v1077, %v1081
      %v1084 = vshrl.u32 %v840, 16
      %v1086 = vrot.slane %v1084, 4
      %v1087 = vshll.u32 %v840, 16
      %v1089 = vrot.slane %v1087, 5
      %v1090 = vor.u32 %v1086, %v1089
      %v1091 = vrot.slane %v1090, 4
      %v1093 = vshll.u32 %v841, 16
      %v1095 = vrot.slane %v1093, 5
      %v1096 = vsel %vm890, %v1091, %v1095
      %v1097 = vshrl.u32 %v841, 16
      %v1099 = vrot.slane %v1097, 4
      %v1100 = vor.u32 %v1099, %v1095
      %v1101 = vrot.slane %v1100, 4
      %v1103 = vshll.u32 %v880, 16
      %v1105 = vrot.slane %v1103, 5
      %v1106 = vsel %vm890, %v1101, %v1105
      %v1108 = vshrl.u32 %v842, 16
      %v1110 = vrot.slane %v1108, 4
      %v1111 = vshll.u32 %v842, 16
      %v1113 = vrot.slane %v1111, 5
      %v1114 = vor.u32 %v1110, %v1113
      %v1115 = vrot.slane %v1114, 4
      %v1117 = vshll.u32 %v843, 16
      %v1119 = vrot.slane %v1117, 5
      %v1120 = vsel %vm890, %v1115, %v1119
      %v1121 = vshrl.u32 %v843, 16
      %v1123 = vrot.slane %v1121, 4
      %v1124 = vor.u32 %v1123, %v1119
      %v1125 = vrot.slane %v1124, 4
      %v1127 = vshll.u32 %v881, 16
      %v1129 = vrot.slane %v1127, 5
      %v1130 = vsel %vm890, %v1125, %v1129
      %v1132 = vshrl.u32 %v844, 16
      %v1134 = vrot.slane %v1132, 4
      %v1135 = vshll.u32 %v844, 16
      %v1137 = vrot.slane %v1135, 5
      %v1138 = vor.u32 %v1134, %v1137
      %v1139 = vrot.slane %v1138, 4
      %v1141 = vshll.u32 %v845, 16
      %v1143 = vrot.slane %v1141, 5
      %v1144 = vsel %vm890, %v1139, %v1143
      %v1145 = vshrl.u32 %v845, 16
      %v1147 = vrot.slane %v1145, 4
      %v1148 = vor.u32 %v1147, %v1143
      %v1149 = vrot.slane %v1148, 4
      %v1151 = vshll.u32 %v882, 16
      %v1153 = vrot.slane %v1151, 5
      %v1154 = vsel %vm890, %v1149, %v1153
      %v1156 = vshrl.u32 %v846, 16
      %v1158 = vrot.slane %v1156, 4
      %v1159 = vshll.u32 %v846, 16
      %v1161 = vrot.slane %v1159, 5
      %v1162 = vor.u32 %v1158, %v1161
      %v1163 = vrot.slane %v1162, 4
      %v1165 = vshll.u32 %v847, 16
      %v1167 = vrot.slane %v1165, 5
      %v1168 = vsel %vm890, %v1163, %v1167
      %v1169 = vshrl.u32 %v847, 16
      %v1171 = vrot.slane %v1169, 4
      %v1172 = vor.u32 %v1171, %v1167
      %v1173 = vrot.slane %v1172, 4
      %v1175 = vshll.u32 %v883, 16
      %v1177 = vrot.slane %v1175, 5
      %v1178 = vsel %vm890, %v1173, %v1177
      %v1180 = vshrl.u32 %v848, 16
      %v1182 = vrot.slane %v1180, 4
      %v1183 = vshll.u32 %v848, 16
      %v1185 = vrot.slane %v1183, 5
      %v1186 = vor.u32 %v1182, %v1185
      %v1187 = vrot.slane %v1186, 4
      %v1189 = vshll.u32 %v849, 16
      %v1191 = vrot.slane %v1189, 5
      %v1192 = vsel %vm890, %v1187, %v1191
      %v1193 = vshrl.u32 %v849, 16
      %v1195 = vrot.slane %v1193, 4
      %v1196 = vor.u32 %v1195, %v1191
      %v1197 = vrot.slane %v1196, 4
      %v1199 = vshll.u32 %v884, 16
      %v1201 = vrot.slane %v1199, 5
      %v1202 = vsel %vm890, %v1197, %v1201
      %v1204 = vshrl.u32 %v850, 16
      %v1206 = vrot.slane %v1204, 4
      %v1207 = vshll.u32 %v850, 16
      %v1209 = vrot.slane %v1207, 5
      %v1210 = vor.u32 %v1206, %v1209
      %v1211 = vrot.slane %v1210, 4
      %v1213 = vshll.u32 %v851, 16
      %v1215 = vrot.slane %v1213, 5
      %v1216 = vsel %vm890, %v1211, %v1215
      %v1217 = vshrl.u32 %v851, 16
      %v1219 = vrot.slane %v1217, 4
      %v1220 = vor.u32 %v1219, %v1215
      %v1221 = vrot.slane %v1220, 4
      %v1223 = vshll.u32 %v885, 16
      %v1225 = vrot.slane %v1223, 5
      %v1226 = vsel %vm890, %v1221, %v1225
      %v1228 = vshrl.u32 %v852, 16
      %v1230 = vrot.slane %v1228, 4
      %v1231 = vshll.u32 %v852, 16
      %v1233 = vrot.slane %v1231, 5
      %v1234 = vor.u32 %v1230, %v1233
      %v1235 = vrot.slane %v1234, 4
      %v1237 = vshll.u32 %v853, 16
      %v1239 = vrot.slane %v1237, 5
      %v1240 = vsel %vm890, %v1235, %v1239
      %v1241 = vshrl.u32 %v853, 16
      %v1243 = vrot.slane %v1241, 4
      %v1244 = vor.u32 %v1243, %v1239
      %v1245 = vrot.slane %v1244, 4
      %v1247 = vshll.u32 %v886, 16
      %v1249 = vrot.slane %v1247, 5
      %v1250 = vsel %vm890, %v1245, %v1249
      %v1252 = vshrl.u32 %v854, 16
      %v1254 = vrot.slane %v1252, 4
      %v1255 = vshll.u32 %v854, 16
      %v1257 = vrot.slane %v1255, 5
      %v1258 = vor.u32 %v1254, %v1257
      %v1259 = vrot.slane %v1258, 4
      %v1261 = vshll.u32 %v855, 16
      %v1263 = vrot.slane %v1261, 5
      %v1264 = vsel %vm890, %v1259, %v1263
      %v1265 = vshrl.u32 %v855, 16
      %v1267 = vrot.slane %v1265, 4
      %v1268 = vor.u32 %v1267, %v1263
      %v1269 = vrot.slane %v1268, 4
      %v1271 = vshll.u32 %v887, 16
      %v1273 = vrot.slane %v1271, 5
      %v1274 = vsel %vm890, %v1269, %v1273
      %v1275 = vld [vmem:[%s1 + $0x40] sm:$0xf]
      %v1276 = vld [vmem:[%s1 + $0x44] sm:$0xf]
      %v1277 = vld [vmem:[%s1 + $0x48] sm:$0xf]
      %v1278 = vld [vmem:[%s1 + $0x4c] sm:$0xf]
      %v1279 = vld [vmem:[%s1 + $0x50] sm:$0xf]
      %v1280 = vld [vmem:[%s1 + $0x54] sm:$0xf]
      %v1281 = vld [vmem:[%s1 + $0x58] sm:$0xf]
      %v1282 = vld [vmem:[%s1 + $0x5c] sm:$0xf]
      %v1283 = vld [vmem:[%s1 + $0x60] sm:$0xf]
      %v1284 = vld [vmem:[%s1 + $0x64] sm:$0xf]
      %v1285 = vld [vmem:[%s1 + $0x68] sm:$0xf]
      %v1286 = vld [vmem:[%s1 + $0x6c] sm:$0xf]
      %v1287 = vld [vmem:[%s1 + $0x70] sm:$0xf]
      %v1288 = vld [vmem:[%s1 + $0x74] sm:$0xf]
      %v1289 = vld [vmem:[%s1 + $0x78] sm:$0xf]
      %v1290 = vld [vmem:[%s1 + $0x7c] sm:$0xf]
      %v1291 = vunpack.c.l.b16 %v904
      %v1292 = vunpack.c.l.b16 %v914
      %v1293 = vunpack.c.l.b16 %v928
      %v1294 = vunpack.c.l.b16 %v938
      %v1295 = vunpack.c.l.b16 %v952
      %v1296 = vunpack.c.l.b16 %v962
      %v1297 = vunpack.c.l.b16 %v976
      %v1298 = vunpack.c.l.b16 %v986
      %v1299 = vunpack.c.l.b16 %v1000
      %v1300 = vunpack.c.l.b16 %v1010
      %v1301 = vunpack.c.l.b16 %v1024
      %v1302 = vunpack.c.l.b16 %v1034
      %v1303 = vunpack.c.l.b16 %v1048
      %v1304 = vunpack.c.l.b16 %v1058
      %v1305 = vunpack.c.l.b16 %v1072
      %v1306 = vunpack.c.l.b16 %v1082
      %v1307 = vunpack.c.l.b16 %v1096
      %v1308 = vunpack.c.l.b16 %v1106
      %v1309 = vunpack.c.l.b16 %v1120
      %v1310 = vunpack.c.l.b16 %v1130
      %v1311 = vunpack.c.l.b16 %v1144
      %v1312 = vunpack.c.l.b16 %v1154
      %v1313 = vunpack.c.l.b16 %v1168
      %v1314 = vunpack.c.l.b16 %v1178
      %v1315 = vunpack.c.l.b16 %v1192
      %v1316 = vunpack.c.l.b16 %v1202
      %v1317 = vunpack.c.l.b16 %v1216
      %v1318 = vunpack.c.l.b16 %v1226
      %v1319 = vunpack.c.l.b16 %v1240
      %v1320 = vunpack.c.l.b16 %v1250
      %v1321 = vunpack.c.l.b16 %v1264
      %v1322 = vunpack.c.l.b16 %v1274
      %v1323 = vpack.c.b16 %v1292, %v1291
      %v1324 = vpack.c.b16 %v1294, %v1293
      %v1325 = vpack.c.b16 %v1296, %v1295
      %v1326 = vpack.c.b16 %v1298, %v1297
      %v1327 = vpack.c.b16 %v1300, %v1299
      %v1328 = vpack.c.b16 %v1302, %v1301
      %v1329 = vpack.c.b16 %v1304, %v1303
      %v1330 = vpack.c.b16 %v1306, %v1305
      %v1331 = vpack.c.b16 %v1308, %v1307
      %v1332 = vpack.c.b16 %v1310, %v1309
      %v1333 = vpack.c.b16 %v1312, %v1311
      %v1334 = vpack.c.b16 %v1314, %v1313
      %v1335 = vpack.c.b16 %v1316, %v1315
      %v1336 = vpack.c.b16 %v1318, %v1317
      %v1337 = vpack.c.b16 %v1320, %v1319
      %v1338 = vpack.c.b16 %v1322, %v1321
      %v1371 = vunpack.c.l.b16 %v1275
      %v1372 = vunpack.c.l.b16 %v1276
      %v1373 = vunpack.c.l.b16 %v1277
      %v1374 = vunpack.c.l.b16 %v1278
      %v1375 = vunpack.c.l.b16 %v1279
      %v1376 = vunpack.c.l.b16 %v1280
      %v1377 = vunpack.c.l.b16 %v1281
      %v1378 = vunpack.c.l.b16 %v1282
      %v1379 = vunpack.c.l.b16 %v1283
      %v1380 = vunpack.c.l.b16 %v1284
      %v1381 = vunpack.c.l.b16 %v1285
      %v1382 = vunpack.c.l.b16 %v1286
      %v1383 = vunpack.c.l.b16 %v1287
      %v1384 = vunpack.c.l.b16 %v1288
      %v1385 = vunpack.c.l.b16 %v1289
      %v1386 = vunpack.c.l.b16 %v1290
      %v1387 = vpack.c.b16 %v1372, %v1371
      %v1388 = vpack.c.b16 %v1374, %v1373
      %v1389 = vpack.c.b16 %v1376, %v1375
      %v1390 = vpack.c.b16 %v1378, %v1377
      %v1391 = vpack.c.b16 %v1380, %v1379
      %v1392 = vpack.c.b16 %v1382, %v1381
      %v1393 = vpack.c.b16 %v1384, %v1383
      %v1394 = vpack.c.b16 %v1386, %v1385
      %1403 = vmatprep.subr.bf16.mxu0 0
      %1404 = vmatpush1.bf16.msra.mxu0 %v1394
      %1405 = vmatprep.subr.bf16.mxu0 0
      %1406 = vmatpush1.bf16.msra.mxu0 %v1393
      %1407 = vmatprep.subr.bf16.mxu0 0
      %1408 = vmatpush1.bf16.msra.mxu0 %v1392
      %1409 = vmatprep.subr.bf16.mxu0 0
      %1410 = vmatpush1.bf16.msra.mxu0 %v1391
      %1411 = vmatprep.subr.bf16.mxu0 0
      %1412 = vmatpush1.bf16.msra.mxu0 %v1390
      %1413 = vmatprep.subr.bf16.mxu0 0
      %1414 = vmatpush1.bf16.msra.mxu0 %v1389
      %1415 = vmatprep.subr.bf16.mxu0 0
      %1416 = vmatpush1.bf16.msra.mxu0 %v1388
      %1417 = vmatprep.subr.bf16.mxu0 0
      %1418 = vmatpush1.bf16.msra.mxu0 %v1387
      %1419 = vmatprep.subr.bf16.mxu0 0
      %1420 = vmatpush2.bf16.msra.mxu0 0
      %1421 = vmatprep.subr.bf16.mxu0 0
      %1422 = vmatpush2.bf16.msra.mxu0 0
      %1423 = vmatprep.subr.bf16.mxu0 0
      %1424 = vmatpush2.bf16.msra.mxu0 0
      %1425 = vmatprep.subr.bf16.mxu0 0
      %1426 = vmatpush2.bf16.msra.mxu0 0
      %1427 = vmatprep.subr.bf16.mxu0 0
      %1428 = vmatpush2.bf16.msra.mxu0 0
      %1429 = vmatprep.subr.bf16.mxu0 0
      %1430 = vmatpush2.bf16.msra.mxu0 0
      %1431 = vmatprep.subr.bf16.mxu0 0
      %1432 = vmatpush2.bf16.msra.mxu0 0
      %1433 = vmatprep.subr.bf16.mxu0 0
      %1434 = vmatpush2.bf16.msra.mxu0 0
      %1435 = vmatprep.mubr.bf16.mxu0 0
      %1436 = vmatmul.mubr.bf16.gmra.mxu0 %v1323
      %v1437 = vpop.f32.mrf.mxu0
      %v1438 = vadd.f32 0.0, %v1437
      %v1439 = vpop.f32.mrf.mxu0
      %v1440 = vpop.f32.mrf.mxu0
      %v1441 = vadd.f32 0.0, %v1440
      %v1442 = vpop.f32.mrf.mxu0
      %1443 = vmatprep.mubr.bf16.mxu0 0
      %1444 = vmatmul.mubr.bf16.gmra.mxu0 %v1324
      %v1445 = vpop.f32.mrf.mxu0
      %v1446 = vadd.f32 0.0, %v1445
      %v1447 = vpop.f32.mrf.mxu0
      %v1448 = vpop.f32.mrf.mxu0
      %v1449 = vadd.f32 0.0, %v1448
      %v1450 = vpop.f32.mrf.mxu0
      %1451 = vmatprep.mubr.bf16.mxu0 0
      %1452 = vmatmul.mubr.bf16.gmra.mxu0 %v1325
      %v1453 = vpop.f32.mrf.mxu0
      %v1454 = vadd.f32 0.0, %v1453
      %v1455 = vpop.f32.mrf.mxu0
      %v1456 = vpop.f32.mrf.mxu0
      %v1457 = vadd.f32 0.0, %v1456
      %v1458 = vpop.f32.mrf.mxu0
      %1459 = vmatprep.mubr.bf16.mxu0 0
      %1460 = vmatmul.mubr.bf16.gmra.mxu0 %v1326
      %v1461 = vpop.f32.mrf.mxu0
      %v1462 = vadd.f32 0.0, %v1461
      %v1463 = vpop.f32.mrf.mxu0
      %v1464 = vpop.f32.mrf.mxu0
      %v1465 = vadd.f32 0.0, %v1464
      %v1466 = vpop.f32.mrf.mxu0
      %1467 = vmatprep.mubr.bf16.mxu0 0
      %1468 = vmatmul.mubr.bf16.gmra.mxu0 %v1327
      %v1469 = vpop.f32.mrf.mxu0
      %v1470 = vadd.f32 0.0, %v1469
      %v1471 = vpop.f32.mrf.mxu0
      %v1472 = vpop.f32.mrf.mxu0
      %v1473 = vadd.f32 0.0, %v1472
      %v1474 = vpop.f32.mrf.mxu0
      %1475 = vmatprep.mubr.bf16.mxu0 0
      %1476 = vmatmul.mubr.bf16.gmra.mxu0 %v1328
      %v1477 = vpop.f32.mrf.mxu0
      %v1478 = vadd.f32 0.0, %v1477
      %v1479 = vpop.f32.mrf.mxu0
      %v1480 = vpop.f32.mrf.mxu0
      %v1481 = vadd.f32 0.0, %v1480
      %v1482 = vpop.f32.mrf.mxu0
      %1483 = vmatprep.mubr.bf16.mxu0 0
      %1484 = vmatmul.mubr.bf16.gmra.mxu0 %v1329
      %v1485 = vpop.f32.mrf.mxu0
      %v1486 = vadd.f32 0.0, %v1485
      %v1487 = vpop.f32.mrf.mxu0
      %v1488 = vpop.f32.mrf.mxu0
      %v1489 = vadd.f32 0.0, %v1488
      %v1490 = vpop.f32.mrf.mxu0
      %1491 = vmatprep.mubr.bf16.mxu0 0
      %1492 = vmatmul.mubr.bf16.gmra.mxu0 %v1330
      %v1493 = vpop.f32.mrf.mxu0
      %v1494 = vadd.f32 0.0, %v1493
      %v1495 = vpop.f32.mrf.mxu0
      %v1496 = vpop.f32.mrf.mxu0
      %v1497 = vadd.f32 0.0, %v1496
      %v1498 = vpop.f32.mrf.mxu0
      %1499 = vmatprep.mubr.bf16.mxu0 0
      %1500 = vmatmul.mubr.bf16.gmra.mxu0 %v1331
      %v1501 = vpop.f32.mrf.mxu0
      %v1502 = vadd.f32 0.0, %v1501
      %v1503 = vpop.f32.mrf.mxu0
      %v1504 = vpop.f32.mrf.mxu0
      %v1505 = vadd.f32 0.0, %v1504
      %v1506 = vpop.f32.mrf.mxu0
      %1507 = vmatprep.mubr.bf16.mxu0 0
      %1508 = vmatmul.mubr.bf16.gmra.mxu0 %v1332
      %v1509 = vpop.f32.mrf.mxu0
      %v1510 = vadd.f32 0.0, %v1509
      %v1511 = vpop.f32.mrf.mxu0
      %v1512 = vpop.f32.mrf.mxu0
      %v1513 = vadd.f32 0.0, %v1512
      %v1514 = vpop.f32.mrf.mxu0
      %1515 = vmatprep.mubr.bf16.mxu0 0
      %1516 = vmatmul.mubr.bf16.gmra.mxu0 %v1333
      %v1517 = vpop.f32.mrf.mxu0
      %v1518 = vadd.f32 0.0, %v1517
      %v1519 = vpop.f32.mrf.mxu0
      %v1520 = vpop.f32.mrf.mxu0
      %v1521 = vadd.f32 0.0, %v1520
      %v1522 = vpop.f32.mrf.mxu0
      %1523 = vmatprep.mubr.bf16.mxu0 0
      %1524 = vmatmul.mubr.bf16.gmra.mxu0 %v1334
      %v1525 = vpop.f32.mrf.mxu0
      %v1526 = vadd.f32 0.0, %v1525
      %v1527 = vpop.f32.mrf.mxu0
      %v1528 = vpop.f32.mrf.mxu0
      %v1529 = vadd.f32 0.0, %v1528
      %v1530 = vpop.f32.mrf.mxu0
      %1531 = vmatprep.mubr.bf16.mxu0 0
      %1532 = vmatmul.mubr.bf16.gmra.mxu0 %v1335
      %v1533 = vpop.f32.mrf.mxu0
      %v1534 = vadd.f32 0.0, %v1533
      %v1535 = vpop.f32.mrf.mxu0
      %v1536 = vpop.f32.mrf.mxu0
      %v1537 = vadd.f32 0.0, %v1536
      %v1538 = vpop.f32.mrf.mxu0
      %1539 = vmatprep.mubr.bf16.mxu0 0
      %1540 = vmatmul.mubr.bf16.gmra.mxu0 %v1336
      %v1541 = vpop.f32.mrf.mxu0
      %v1542 = vadd.f32 0.0, %v1541
      %v1543 = vpop.f32.mrf.mxu0
      %v1544 = vpop.f32.mrf.mxu0
      %v1545 = vadd.f32 0.0, %v1544
      %v1546 = vpop.f32.mrf.mxu0
      %1547 = vmatprep.mubr.bf16.mxu0 0
      %1548 = vmatmul.mubr.bf16.gmra.mxu0 %v1337
      %v1549 = vpop.f32.mrf.mxu0
      %v1550 = vadd.f32 0.0, %v1549
      %v1551 = vpop.f32.mrf.mxu0
      %v1552 = vpop.f32.mrf.mxu0
      %v1553 = vadd.f32 0.0, %v1552
      %v1554 = vpop.f32.mrf.mxu0
      %1555 = vmatprep.mubr.bf16.mxu0 0
      %1556 = vmatmul.mubr.bf16.gmra.mxu0 %v1338
      %v1557 = vpop.f32.mrf.mxu0
      %v1558 = vadd.f32 0.0, %v1557
      %v1559 = vpop.f32.mrf.mxu0
      %v1560 = vpop.f32.mrf.mxu0
      %v1561 = vadd.f32 0.0, %v1560
      %v1562 = vpop.f32.mrf.mxu0
      %1563 = vdwg.mxu0
      %v1596 = vunpack.c.l.b16 %v824
      %v1597 = vunpack.c.l.b16 %v825
      %v1598 = vunpack.c.l.b16 %v826
      %v1599 = vunpack.c.l.b16 %v827
      %v1600 = vunpack.c.l.b16 %v828
      %v1601 = vunpack.c.l.b16 %v829
      %v1602 = vunpack.c.l.b16 %v830
      %v1603 = vunpack.c.l.b16 %v831
      %v1604 = vunpack.c.l.b16 %v832
      %v1605 = vunpack.c.l.b16 %v833
      %v1606 = vunpack.c.l.b16 %v834
      %v1607 = vunpack.c.l.b16 %v835
      %v1608 = vunpack.c.l.b16 %v836
      %v1609 = vunpack.c.l.b16 %v837
      %v1610 = vunpack.c.l.b16 %v838
      %v1611 = vunpack.c.l.b16 %v839
      %v1612 = vunpack.c.l.b16 %v840
      %v1613 = vunpack.c.l.b16 %v841
      %v1614 = vunpack.c.l.b16 %v842
      %v1615 = vunpack.c.l.b16 %v843
      %v1616 = vunpack.c.l.b16 %v844
      %v1617 = vunpack.c.l.b16 %v845
      %v1618 = vunpack.c.l.b16 %v846
      %v1619 = vunpack.c.l.b16 %v847
      %v1620 = vunpack.c.l.b16 %v848
      %v1621 = vunpack.c.l.b16 %v849
      %v1622 = vunpack.c.l.b16 %v850
      %v1623 = vunpack.c.l.b16 %v851
      %v1624 = vunpack.c.l.b16 %v852
      %v1625 = vunpack.c.l.b16 %v853
      %v1626 = vunpack.c.l.b16 %v854
      %v1627 = vunpack.c.l.b16 %v855
      %v1628 = vpack.c.b16 %v1597, %v1596
      %v1629 = vpack.c.b16 %v1599, %v1598
      %v1630 = vpack.c.b16 %v1601, %v1600
      %v1631 = vpack.c.b16 %v1603, %v1602
      %v1632 = vpack.c.b16 %v1605, %v1604
      %v1633 = vpack.c.b16 %v1607, %v1606
      %v1634 = vpack.c.b16 %v1609, %v1608
      %v1635 = vpack.c.b16 %v1611, %v1610
      %v1636 = vpack.c.b16 %v1613, %v1612
      %v1637 = vpack.c.b16 %v1615, %v1614
      %v1638 = vpack.c.b16 %v1617, %v1616
      %v1639 = vpack.c.b16 %v1619, %v1618
      %v1640 = vpack.c.b16 %v1621, %v1620
      %v1641 = vpack.c.b16 %v1623, %v1622
      %v1642 = vpack.c.b16 %v1625, %v1624
      %v1643 = vpack.c.b16 %v1627, %v1626
      %v1676 = vunpack.c.l.b16 %v856
      %v1677 = vunpack.c.l.b16 %v857
      %v1678 = vunpack.c.l.b16 %v858
      %v1679 = vunpack.c.l.b16 %v859
      %v1680 = vunpack.c.l.b16 %v860
      %v1681 = vunpack.c.l.b16 %v861
      %v1682 = vunpack.c.l.b16 %v862
      %v1683 = vunpack.c.l.b16 %v863
      %v1684 = vunpack.c.l.b16 %v864
      %v1685 = vunpack.c.l.b16 %v865
      %v1686 = vunpack.c.l.b16 %v866
      %v1687 = vunpack.c.l.b16 %v867
      %v1688 = vunpack.c.l.b16 %v868
      %v1689 = vunpack.c.l.b16 %v869
      %v1690 = vunpack.c.l.b16 %v870
      %v1691 = vunpack.c.l.b16 %v871
      %v1692 = vpack.c.b16 %v1677, %v1676
      %v1693 = vpack.c.b16 %v1679, %v1678
      %v1694 = vpack.c.b16 %v1681, %v1680
      %v1695 = vpack.c.b16 %v1683, %v1682
      %v1696 = vpack.c.b16 %v1685, %v1684
      %v1697 = vpack.c.b16 %v1687, %v1686
      %v1698 = vpack.c.b16 %v1689, %v1688
      %v1699 = vpack.c.b16 %v1691, %v1690
      %1708 = vmatprep.subr.bf16.mxu0 0
      %1709 = vmatpush1.bf16.msra.mxu0 %v1699
      %1710 = vmatprep.subr.bf16.mxu0 0
      %1711 = vmatpush1.bf16.msra.mxu0 %v1698
      %1712 = vmatprep.subr.bf16.mxu0 0
      %1713 = vmatpush1.bf16.msra.mxu0 %v1697
      %1714 = vmatprep.subr.bf16.mxu0 0
      %1715 = vmatpush1.bf16.msra.mxu0 %v1696
      %1716 = vmatprep.subr.bf16.mxu0 0
      %1717 = vmatpush1.bf16.msra.mxu0 %v1695
      %1718 = vmatprep.subr.bf16.mxu0 0
      %1719 = vmatpush1.bf16.msra.mxu0 %v1694
      %1720 = vmatprep.subr.bf16.mxu0 0
      %1721 = vmatpush1.bf16.msra.mxu0 %v1693
      %1722 = vmatprep.subr.bf16.mxu0 0
      %1723 = vmatpush1.bf16.msra.mxu0 %v1692
      %1724 = vmatprep.subr.bf16.mxu0 0
      %1725 = vmatpush2.bf16.msra.mxu0 0
      %1726 = vmatprep.subr.bf16.mxu0 0
      %1727 = vmatpush2.bf16.msra.mxu0 0
      %1728 = vmatprep.subr.bf16.mxu0 0
      %1729 = vmatpush2.bf16.msra.mxu0 0
      %1730 = vmatprep.subr.bf16.mxu0 0
      %1731 = vmatpush2.bf16.msra.mxu0 0
      %1732 = vmatprep.subr.bf16.mxu0 0
      %1733 = vmatpush2.bf16.msra.mxu0 0
      %1734 = vmatprep.subr.bf16.mxu0 0
      %1735 = vmatpush2.bf16.msra.mxu0 0
      %1736 = vmatprep.subr.bf16.mxu0 0
      %1737 = vmatpush2.bf16.msra.mxu0 0
      %1738 = vmatprep.subr.bf16.mxu0 0
      %1739 = vmatpush2.bf16.msra.mxu0 0
      %1740 = vmatprep.mubr.bf16.mxu0 0
      %1741 = vmatmul.mubr.bf16.gmra.mxu0 %v1628
      %v1742 = vpop.f32.mrf.mxu0
      %v1743 = vadd.f32 %v1438, %v1742
      %v1744 = vpop.f32.mrf.mxu0
      %v1745 = vpop.f32.mrf.mxu0
      %v1746 = vadd.f32 %v1441, %v1745
      %v1747 = vpop.f32.mrf.mxu0
      %1748 = vmatprep.mubr.bf16.mxu0 0
      %1749 = vmatmul.mubr.bf16.gmra.mxu0 %v1629
      %v1750 = vpop.f32.mrf.mxu0
      %v1751 = vadd.f32 %v1446, %v1750
      %v1752 = vpop.f32.mrf.mxu0
      %v1753 = vpop.f32.mrf.mxu0
      %v1754 = vadd.f32 %v1449, %v1753
      %v1755 = vpop.f32.mrf.mxu0
      %1756 = vmatprep.mubr.bf16.mxu0 0
      %1757 = vmatmul.mubr.bf16.gmra.mxu0 %v1630
      %v1758 = vpop.f32.mrf.mxu0
      %v1759 = vadd.f32 %v1454, %v1758
      %v1760 = vpop.f32.mrf.mxu0
      %v1761 = vpop.f32.mrf.mxu0
      %v1762 = vadd.f32 %v1457, %v1761
      %v1763 = vpop.f32.mrf.mxu0
      %1764 = vmatprep.mubr.bf16.mxu0 0
      %1765 = vmatmul.mubr.bf16.gmra.mxu0 %v1631
      %v1766 = vpop.f32.mrf.mxu0
      %v1767 = vadd.f32 %v1462, %v1766
      %v1768 = vpop.f32.mrf.mxu0
      %v1769 = vpop.f32.mrf.mxu0
      %v1770 = vadd.f32 %v1465, %v1769
      %v1771 = vpop.f32.mrf.mxu0
      %1772 = vmatprep.mubr.bf16.mxu0 0
      %1773 = vmatmul.mubr.bf16.gmra.mxu0 %v1632
      %v1774 = vpop.f32.mrf.mxu0
      %v1775 = vadd.f32 %v1470, %v1774
      %v1776 = vpop.f32.mrf.mxu0
      %v1777 = vpop.f32.mrf.mxu0
      %v1778 = vadd.f32 %v1473, %v1777
      %v1779 = vpop.f32.mrf.mxu0
      %1780 = vmatprep.mubr.bf16.mxu0 0
      %1781 = vmatmul.mubr.bf16.gmra.mxu0 %v1633
      %v1782 = vpop.f32.mrf.mxu0
      %v1783 = vadd.f32 %v1478, %v1782
      %v1784 = vpop.f32.mrf.mxu0
      %v1785 = vpop.f32.mrf.mxu0
      %v1786 = vadd.f32 %v1481, %v1785
      %v1787 = vpop.f32.mrf.mxu0
      %1788 = vmatprep.mubr.bf16.mxu0 0
      %1789 = vmatmul.mubr.bf16.gmra.mxu0 %v1634
      %v1790 = vpop.f32.mrf.mxu0
      %v1791 = vadd.f32 %v1486, %v1790
      %v1792 = vpop.f32.mrf.mxu0
      %v1793 = vpop.f32.mrf.mxu0
      %v1794 = vadd.f32 %v1489, %v1793
      %v1795 = vpop.f32.mrf.mxu0
      %1796 = vmatprep.mubr.bf16.mxu0 0
      %1797 = vmatmul.mubr.bf16.gmra.mxu0 %v1635
      %v1798 = vpop.f32.mrf.mxu0
      %v1799 = vadd.f32 %v1494, %v1798
      %v1800 = vpop.f32.mrf.mxu0
      %v1801 = vpop.f32.mrf.mxu0
      %v1802 = vadd.f32 %v1497, %v1801
      %v1803 = vpop.f32.mrf.mxu0
      %1804 = vmatprep.mubr.bf16.mxu0 0
      %1805 = vmatmul.mubr.bf16.gmra.mxu0 %v1636
      %v1806 = vpop.f32.mrf.mxu0
      %v1807 = vadd.f32 %v1502, %v1806
      %v1808 = vpop.f32.mrf.mxu0
      %v1809 = vpop.f32.mrf.mxu0
      %v1810 = vadd.f32 %v1505, %v1809
      %v1811 = vpop.f32.mrf.mxu0
      %1812 = vmatprep.mubr.bf16.mxu0 0
      %1813 = vmatmul.mubr.bf16.gmra.mxu0 %v1637
      %v1814 = vpop.f32.mrf.mxu0
      %v1815 = vadd.f32 %v1510, %v1814
      %v1816 = vpop.f32.mrf.mxu0
      %v1817 = vpop.f32.mrf.mxu0
      %v1818 = vadd.f32 %v1513, %v1817
      %v1819 = vpop.f32.mrf.mxu0
      %1820 = vmatprep.mubr.bf16.mxu0 0
      %1821 = vmatmul.mubr.bf16.gmra.mxu0 %v1638
      %v1822 = vpop.f32.mrf.mxu0
      %v1823 = vadd.f32 %v1518, %v1822
      %v1824 = vpop.f32.mrf.mxu0
      %v1825 = vpop.f32.mrf.mxu0
      %v1826 = vadd.f32 %v1521, %v1825
      %v1827 = vpop.f32.mrf.mxu0
      %1828 = vmatprep.mubr.bf16.mxu0 0
      %1829 = vmatmul.mubr.bf16.gmra.mxu0 %v1639
      %v1830 = vpop.f32.mrf.mxu0
      %v1831 = vadd.f32 %v1526, %v1830
      %v1832 = vpop.f32.mrf.mxu0
      %v1833 = vpop.f32.mrf.mxu0
      %v1834 = vadd.f32 %v1529, %v1833
      %v1835 = vpop.f32.mrf.mxu0
      %1836 = vmatprep.mubr.bf16.mxu0 0
      %1837 = vmatmul.mubr.bf16.gmra.mxu0 %v1640
      %v1838 = vpop.f32.mrf.mxu0
      %v1839 = vadd.f32 %v1534, %v1838
      %v1840 = vpop.f32.mrf.mxu0
      %v1841 = vpop.f32.mrf.mxu0
      %v1842 = vadd.f32 %v1537, %v1841
      %v1843 = vpop.f32.mrf.mxu0
      %1844 = vmatprep.mubr.bf16.mxu0 0
      %1845 = vmatmul.mubr.bf16.gmra.mxu0 %v1641
      %v1846 = vpop.f32.mrf.mxu0
      %v1847 = vadd.f32 %v1542, %v1846
      %v1848 = vpop.f32.mrf.mxu0
      %v1849 = vpop.f32.mrf.mxu0
      %v1850 = vadd.f32 %v1545, %v1849
      %v1851 = vpop.f32.mrf.mxu0
      %1852 = vmatprep.mubr.bf16.mxu0 0
      %1853 = vmatmul.mubr.bf16.gmra.mxu0 %v1642
      %v1854 = vpop.f32.mrf.mxu0
      %v1855 = vadd.f32 %v1550, %v1854
      %v1856 = vpop.f32.mrf.mxu0
      %v1857 = vpop.f32.mrf.mxu0
      %v1858 = vadd.f32 %v1553, %v1857
      %v1859 = vpop.f32.mrf.mxu0
      %1860 = vmatprep.mubr.bf16.mxu0 0
      %1861 = vmatmul.mubr.bf16.gmra.mxu0 %v1643
      %v1862 = vpop.f32.mrf.mxu0
      %v1863 = vadd.f32 %v1558, %v1862
      %v1864 = vpop.f32.mrf.mxu0
      %v1865 = vpop.f32.mrf.mxu0
      %v1866 = vadd.f32 %v1561, %v1865
      %v1867 = vpop.f32.mrf.mxu0
      %1868 = vdwg.mxu0
      %v1869 = vld [vmem:[#allocation2] sm:$0xe]
      %v1870 = vld [vmem:[#allocation2 + $0xc] sm:$0xe]
      %v1871 = vld [vmem:[#allocation2 + $0x18] sm:$0xe]
      %v1872 = vld [vmem:[#allocation2 + $0x24] sm:$0xe]
      %v1873 = vld [vmem:[#allocation2 + $0x30] sm:$0xe]
      %v1874 = vld [vmem:[#allocation2 + $0x3c] sm:$0xe]
      %v1875 = vld [vmem:[#allocation2 + $0x48] sm:$0xe]
      %v1876 = vld [vmem:[#allocation2 + $0x54] sm:$0xe]
      %v1877 = vld [vmem:[#allocation2 + $0x60] sm:$0xe]
      %v1878 = vld [vmem:[#allocation2 + $0x6c] sm:$0xe]
      %v1879 = vld [vmem:[#allocation2 + $0x78] sm:$0xe]
      %v1880 = vld [vmem:[#allocation2 + $0x84] sm:$0xe]
      %v1881 = vld [vmem:[#allocation2 + $0x90] sm:$0xe]
      %v1882 = vld [vmem:[#allocation2 + $0x9c] sm:$0xe]
      %v1883 = vld [vmem:[#allocation2 + $0xa8] sm:$0xe]
      %v1884 = vld [vmem:[#allocation2 + $0xb4] sm:$0xe]
      %vm1917 = vcmask 1042432
      %vm1918 = vcmask 1046532
      %vm1919 = vmor %vm1917, %vm1918
      %v1920 = vrot.slane %v1869, 5
      %v1921 = vrot.slane %v1920, 4
      %v1922 = vrot.slane %v825, 5
      %v1923 = vsel %vm1919, %v1921, %v1922
      %v1924 = vrot.slane %v1922, 4
      %v1925 = vrot.slane %v872, 5
      %v1926 = vsel %vm1919, %v1924, %v1925
      %v1927 = vrot.slane %v1870, 5
      %v1928 = vrot.slane %v1927, 4
      %v1929 = vrot.slane %v827, 5
      %v1930 = vsel %vm1919, %v1928, %v1929
      %v1931 = vrot.slane %v1929, 4
      %v1932 = vrot.slane %v873, 5
      %v1933 = vsel %vm1919, %v1931, %v1932
      %v1934 = vrot.slane %v1871, 5
      %v1935 = vrot.slane %v1934, 4
      %v1936 = vrot.slane %v829, 5
      %v1937 = vsel %vm1919, %v1935, %v1936
      %v1938 = vrot.slane %v1936, 4
      %v1939 = vrot.slane %v874, 5
      %v1940 = vsel %vm1919, %v1938, %v1939
      %v1941 = vrot.slane %v1872, 5
      %v1942 = vrot.slane %v1941, 4
      %v1943 = vrot.slane %v831, 5
      %v1944 = vsel %vm1919, %v1942, %v1943
      %v1945 = vrot.slane %v1943, 4
      %v1946 = vrot.slane %v875, 5
      %v1947 = vsel %vm1919, %v1945, %v1946
      %v1948 = vrot.slane %v1873, 5
      %v1949 = vrot.slane %v1948, 4
      %v1950 = vrot.slane %v833, 5
      %v1951 = vsel %vm1919, %v1949, %v1950
      %v1952 = vrot.slane %v1950, 4
      %v1953 = vrot.slane %v876, 5
      %v1954 = vsel %vm1919, %v1952, %v1953
      %v1955 = vrot.slane %v1874, 5
      %v1956 = vrot.slane %v1955, 4
      %v1957 = vrot.slane %v835, 5
      %v1958 = vsel %vm1919, %v1956, %v1957
      %v1959 = vrot.slane %v1957, 4
      %v1960 = vrot.slane %v877, 5
      %v1961 = vsel %vm1919, %v1959, %v1960
      %v1962 = vrot.slane %v1875, 5
      %v1963 = vrot.slane %v1962, 4
      %v1964 = vrot.slane %v837, 5
      %v1965 = vsel %vm1919, %v1963, %v1964
      %v1966 = vrot.slane %v1964, 4
      %v1967 = vrot.slane %v878, 5
      %v1968 = vsel %vm1919, %v1966, %v1967
      %v1969 = vrot.slane %v1876, 5
      %v1970 = vrot.slane %v1969, 4
      %v1971 = vrot.slane %v839, 5
      %v1972 = vsel %vm1919, %v1970, %v1971
      %v1973 = vrot.slane %v1971, 4
      %v1974 = vrot.slane %v879, 5
      %v1975 = vsel %vm1919, %v1973, %v1974
      %v1976 = vrot.slane %v1877, 5
      %v1977 = vrot.slane %v1976, 4
      %v1978 = vrot.slane %v841, 5
      %v1979 = vsel %vm1919, %v1977, %v1978
      %v1980 = vrot.slane %v1978, 4
      %v1981 = vrot.slane %v880, 5
      %v1982 = vsel %vm1919, %v1980, %v1981
      %v1983 = vrot.slane %v1878, 5
      %v1984 = vrot.slane %v1983, 4
      %v1985 = vrot.slane %v843, 5
      %v1986 = vsel %vm1919, %v1984, %v1985
      %v1987 = vrot.slane %v1985, 4
      %v1988 = vrot.slane %v881, 5
      %v1989 = vsel %vm1919, %v1987, %v1988
      %v1990 = vrot.slane %v1879, 5
      %v1991 = vrot.slane %v1990, 4
      %v1992 = vrot.slane %v845, 5
      %v1993 = vsel %vm1919, %v1991, %v1992
      %v1994 = vrot.slane %v1992, 4
      %v1995 = vrot.slane %v882, 5
      %v1996 = vsel %vm1919, %v1994, %v1995
      %v1997 = vrot.slane %v1880, 5
      %v1998 = vrot.slane %v1997, 4
      %v1999 = vrot.slane %v847, 5
      %v2000 = vsel %vm1919, %v1998, %v1999
      %v2001 = vrot.slane %v1999, 4
      %v2002 = vrot.slane %v883, 5
      %v2003 = vsel %vm1919, %v2001, %v2002
      %v2004 = vrot.slane %v1881, 5
      %v2005 = vrot.slane %v2004, 4
      %v2006 = vrot.slane %v849, 5
      %v2007 = vsel %vm1919, %v2005, %v2006
      %v2008 = vrot.slane %v2006, 4
      %v2009 = vrot.slane %v884, 5
      %v2010 = vsel %vm1919, %v2008, %v2009
      %v2011 = vrot.slane %v1882, 5
      %v2012 = vrot.slane %v2011, 4
      %v2013 = vrot.slane %v851, 5
      %v2014 = vsel %vm1919, %v2012, %v2013
      %v2015 = vrot.slane %v2013, 4
      %v2016 = vrot.slane %v885, 5
      %v2017 = vsel %vm1919, %v2015, %v2016
      %v2018 = vrot.slane %v1883, 5
      %v2019 = vrot.slane %v2018, 4
      %v2020 = vrot.slane %v853, 5
      %v2021 = vsel %vm1919, %v2019, %v2020
      %v2022 = vrot.slane %v2020, 4
      %v2023 = vrot.slane %v886, 5
      %v2024 = vsel %vm1919, %v2022, %v2023
      %v2025 = vrot.slane %v1884, 5
      %v2026 = vrot.slane %v2025, 4
      %v2027 = vrot.slane %v855, 5
      %v2028 = vsel %vm1919, %v2026, %v2027
      %v2029 = vrot.slane %v2027, 4
      %v2030 = vrot.slane %v887, 5
      %v2031 = vsel %vm1919, %v2029, %v2030
      %v2032 = vld [vmem:[%s1 + $0x80] sm:$0xf]
      %v2033 = vld [vmem:[%s1 + $0x84] sm:$0xf]
      %v2034 = vld [vmem:[%s1 + $0x88] sm:$0xf]
      %v2035 = vld [vmem:[%s1 + $0x8c] sm:$0xf]
      %v2036 = vld [vmem:[%s1 + $0x90] sm:$0xf]
      %v2037 = vld [vmem:[%s1 + $0x94] sm:$0xf]
      %v2038 = vld [vmem:[%s1 + $0x98] sm:$0xf]
      %v2039 = vld [vmem:[%s1 + $0x9c] sm:$0xf]
      %v2040 = vld [vmem:[%s1 + $0xa0] sm:$0xf]
      %v2041 = vld [vmem:[%s1 + $0xa4] sm:$0xf]
      %v2042 = vld [vmem:[%s1 + $0xa8] sm:$0xf]
      %v2043 = vld [vmem:[%s1 + $0xac] sm:$0xf]
      %v2044 = vld [vmem:[%s1 + $0xb0] sm:$0xf]
      %v2045 = vld [vmem:[%s1 + $0xb4] sm:$0xf]
      %v2046 = vld [vmem:[%s1 + $0xb8] sm:$0xf]
      %v2047 = vld [vmem:[%s1 + $0xbc] sm:$0xf]
      %v2048 = vunpack.c.l.b16 %v1923
      %v2049 = vunpack.c.l.b16 %v1926
      %v2050 = vunpack.c.l.b16 %v1930
      %v2051 = vunpack.c.l.b16 %v1933
      %v2052 = vunpack.c.l.b16 %v1937
      %v2053 = vunpack.c.l.b16 %v1940
      %v2054 = vunpack.c.l.b16 %v1944
      %v2055 = vunpack.c.l.b16 %v1947
      %v2056 = vunpack.c.l.b16 %v1951
      %v2057 = vunpack.c.l.b16 %v1954
      %v2058 = vunpack.c.l.b16 %v1958
      %v2059 = vunpack.c.l.b16 %v1961
      %v2060 = vunpack.c.l.b16 %v1965
      %v2061 = vunpack.c.l.b16 %v1968
      %v2062 = vunpack.c.l.b16 %v1972
      %v2063 = vunpack.c.l.b16 %v1975
      %v2064 = vunpack.c.l.b16 %v1979
      %v2065 = vunpack.c.l.b16 %v1982
      %v2066 = vunpack.c.l.b16 %v1986
      %v2067 = vunpack.c.l.b16 %v1989
      %v2068 = vunpack.c.l.b16 %v1993
      %v2069 = vunpack.c.l.b16 %v1996
      %v2070 = vunpack.c.l.b16 %v2000
      %v2071 = vunpack.c.l.b16 %v2003
      %v2072 = vunpack.c.l.b16 %v2007
      %v2073 = vunpack.c.l.b16 %v2010
      %v2074 = vunpack.c.l.b16 %v2014
      %v2075 = vunpack.c.l.b16 %v2017
      %v2076 = vunpack.c.l.b16 %v2021
      %v2077 = vunpack.c.l.b16 %v2024
      %v2078 = vunpack.c.l.b16 %v2028
      %v2079 = vunpack.c.l.b16 %v2031
      %v2080 = vpack.c.b16 %v2049, %v2048
      %v2081 = vpack.c.b16 %v2051, %v2050
      %v2082 = vpack.c.b16 %v2053, %v2052
      %v2083 = vpack.c.b16 %v2055, %v2054
      %v2084 = vpack.c.b16 %v2057, %v2056
      %v2085 = vpack.c.b16 %v2059, %v2058
      %v2086 = vpack.c.b16 %v2061, %v2060
      %v2087 = vpack.c.b16 %v2063, %v2062
      %v2088 = vpack.c.b16 %v2065, %v2064
      %v2089 = vpack.c.b16 %v2067, %v2066
      %v2090 = vpack.c.b16 %v2069, %v2068
      %v2091 = vpack.c.b16 %v2071, %v2070
      %v2092 = vpack.c.b16 %v2073, %v2072
      %v2093 = vpack.c.b16 %v2075, %v2074
      %v2094 = vpack.c.b16 %v2077, %v2076
      %v2095 = vpack.c.b16 %v2079, %v2078
      %v2128 = vunpack.c.l.b16 %v2032
      %v2129 = vunpack.c.l.b16 %v2033
      %v2130 = vunpack.c.l.b16 %v2034
      %v2131 = vunpack.c.l.b16 %v2035
      %v2132 = vunpack.c.l.b16 %v2036
      %v2133 = vunpack.c.l.b16 %v2037
      %v2134 = vunpack.c.l.b16 %v2038
      %v2135 = vunpack.c.l.b16 %v2039
      %v2136 = vunpack.c.l.b16 %v2040
      %v2137 = vunpack.c.l.b16 %v2041
      %v2138 = vunpack.c.l.b16 %v2042
      %v2139 = vunpack.c.l.b16 %v2043
      %v2140 = vunpack.c.l.b16 %v2044
      %v2141 = vunpack.c.l.b16 %v2045
      %v2142 = vunpack.c.l.b16 %v2046
      %v2143 = vunpack.c.l.b16 %v2047
      %v2144 = vpack.c.b16 %v2129, %v2128
      %v2145 = vpack.c.b16 %v2131, %v2130
      %v2146 = vpack.c.b16 %v2133, %v2132
      %v2147 = vpack.c.b16 %v2135, %v2134
      %v2148 = vpack.c.b16 %v2137, %v2136
      %v2149 = vpack.c.b16 %v2139, %v2138
      %v2150 = vpack.c.b16 %v2141, %v2140
      %v2151 = vpack.c.b16 %v2143, %v2142
      %2160 = vmatprep.subr.bf16.mxu0 0
      %2161 = vmatpush1.bf16.msra.mxu0 %v2151
      %2162 = vmatprep.subr.bf16.mxu0 0
      %2163 = vmatpush1.bf16.msra.mxu0 %v2150
      %2164 = vmatprep.subr.bf16.mxu0 0
      %2165 = vmatpush1.bf16.msra.mxu0 %v2149
      %2166 = vmatprep.subr.bf16.mxu0 0
      %2167 = vmatpush1.bf16.msra.mxu0 %v2148
      %2168 = vmatprep.subr.bf16.mxu0 0
      %2169 = vmatpush1.bf16.msra.mxu0 %v2147
      %2170 = vmatprep.subr.bf16.mxu0 0
      %2171 = vmatpush1.bf16.msra.mxu0 %v2146
      %2172 = vmatprep.subr.bf16.mxu0 0
      %2173 = vmatpush1.bf16.msra.mxu0 %v2145
      %2174 = vmatprep.subr.bf16.mxu0 0
      %2175 = vmatpush1.bf16.msra.mxu0 %v2144
      %2176 = vmatprep.subr.bf16.mxu0 0
      %2177 = vmatpush2.bf16.msra.mxu0 0
      %2178 = vmatprep.subr.bf16.mxu0 0
      %2179 = vmatpush2.bf16.msra.mxu0 0
      %2180 = vmatprep.subr.bf16.mxu0 0
      %2181 = vmatpush2.bf16.msra.mxu0 0
      %2182 = vmatprep.subr.bf16.mxu0 0
      %2183 = vmatpush2.bf16.msra.mxu0 0
      %2184 = vmatprep.subr.bf16.mxu0 0
      %2185 = vmatpush2.bf16.msra.mxu0 0
      %2186 = vmatprep.subr.bf16.mxu0 0
      %2187 = vmatpush2.bf16.msra.mxu0 0
      %2188 = vmatprep.subr.bf16.mxu0 0
      %2189 = vmatpush2.bf16.msra.mxu0 0
      %2190 = vmatprep.subr.bf16.mxu0 0
      %2191 = vmatpush2.bf16.msra.mxu0 0
      %2192 = vmatprep.mubr.bf16.mxu0 0
      %2193 = vmatmul.mubr.bf16.gmra.mxu0 %v2080
      %v2194 = vpop.f32.mrf.mxu0
      %v2195 = vadd.f32 0.0, %v2194
      %v2196 = vpop.f32.mrf.mxu0
      %v2197 = vpop.f32.mrf.mxu0
      %v2198 = vadd.f32 0.0, %v2197
      %v2199 = vpop.f32.mrf.mxu0
      %2200 = vmatprep.mubr.bf16.mxu0 0
      %2201 = vmatmul.mubr.bf16.gmra.mxu0 %v2081
      %v2202 = vpop.f32.mrf.mxu0
      %v2203 = vadd.f32 0.0, %v2202
      %v2204 = vpop.f32.mrf.mxu0
      %v2205 = vpop.f32.mrf.mxu0
      %v2206 = vadd.f32 0.0, %v2205
      %v2207 = vpop.f32.mrf.mxu0
      %2208 = vmatprep.mubr.bf16.mxu0 0
      %2209 = vmatmul.mubr.bf16.gmra.mxu0 %v2082
      %v2210 = vpop.f32.mrf.mxu0
      %v2211 = vadd.f32 0.0, %v2210
      %v2212 = vpop.f32.mrf.mxu0
      %v2213 = vpop.f32.mrf.mxu0
      %v2214 = vadd.f32 0.0, %v2213
      %v2215 = vpop.f32.mrf.mxu0
      %2216 = vmatprep.mubr.bf16.mxu0 0
      %2217 = vmatmul.mubr.bf16.gmra.mxu0 %v2083
      %v2218 = vpop.f32.mrf.mxu0
      %v2219 = vadd.f32 0.0, %v2218
      %v2220 = vpop.f32.mrf.mxu0
      %v2221 = vpop.f32.mrf.mxu0
      %v2222 = vadd.f32 0.0, %v2221
      %v2223 = vpop.f32.mrf.mxu0
      %2224 = vmatprep.mubr.bf16.mxu0 0
      %2225 = vmatmul.mubr.bf16.gmra.mxu0 %v2084
      %v2226 = vpop.f32.mrf.mxu0
      %v2227 = vadd.f32 0.0, %v2226
      %v2228 = vpop.f32.mrf.mxu0
      %v2229 = vpop.f32.mrf.mxu0
      %v2230 = vadd.f32 0.0, %v2229
      %v2231 = vpop.f32.mrf.mxu0
      %2232 = vmatprep.mubr.bf16.mxu0 0
      %2233 = vmatmul.mubr.bf16.gmra.mxu0 %v2085
      %v2234 = vpop.f32.mrf.mxu0
      %v2235 = vadd.f32 0.0, %v2234
      %v2236 = vpop.f32.mrf.mxu0
      %v2237 = vpop.f32.mrf.mxu0
      %v2238 = vadd.f32 0.0, %v2237
      %v2239 = vpop.f32.mrf.mxu0
      %2240 = vmatprep.mubr.bf16.mxu0 0
      %2241 = vmatmul.mubr.bf16.gmra.mxu0 %v2086
      %v2242 = vpop.f32.mrf.mxu0
      %v2243 = vadd.f32 0.0, %v2242
      %v2244 = vpop.f32.mrf.mxu0
      %v2245 = vpop.f32.mrf.mxu0
      %v2246 = vadd.f32 0.0, %v2245
      %v2247 = vpop.f32.mrf.mxu0
      %2248 = vmatprep.mubr.bf16.mxu0 0
      %2249 = vmatmul.mubr.bf16.gmra.mxu0 %v2087
      %v2250 = vpop.f32.mrf.mxu0
      %v2251 = vadd.f32 0.0, %v2250
      %v2252 = vpop.f32.mrf.mxu0
      %v2253 = vpop.f32.mrf.mxu0
      %v2254 = vadd.f32 0.0, %v2253
      %v2255 = vpop.f32.mrf.mxu0
      %2256 = vmatprep.mubr.bf16.mxu0 0
      %2257 = vmatmul.mubr.bf16.gmra.mxu0 %v2088
      %v2258 = vpop.f32.mrf.mxu0
      %v2259 = vadd.f32 0.0, %v2258
      %v2260 = vpop.f32.mrf.mxu0
      %v2261 = vpop.f32.mrf.mxu0
      %v2262 = vadd.f32 0.0, %v2261
      %v2263 = vpop.f32.mrf.mxu0
      %2264 = vmatprep.mubr.bf16.mxu0 0
      %2265 = vmatmul.mubr.bf16.gmra.mxu0 %v2089
      %v2266 = vpop.f32.mrf.mxu0
      %v2267 = vadd.f32 0.0, %v2266
      %v2268 = vpop.f32.mrf.mxu0
      %v2269 = vpop.f32.mrf.mxu0
      %v2270 = vadd.f32 0.0, %v2269
      %v2271 = vpop.f32.mrf.mxu0
      %2272 = vmatprep.mubr.bf16.mxu0 0
      %2273 = vmatmul.mubr.bf16.gmra.mxu0 %v2090
      %v2274 = vpop.f32.mrf.mxu0
      %v2275 = vadd.f32 0.0, %v2274
      %v2276 = vpop.f32.mrf.mxu0
      %v2277 = vpop.f32.mrf.mxu0
      %v2278 = vadd.f32 0.0, %v2277
      %v2279 = vpop.f32.mrf.mxu0
      %2280 = vmatprep.mubr.bf16.mxu0 0
      %2281 = vmatmul.mubr.bf16.gmra.mxu0 %v2091
      %v2282 = vpop.f32.mrf.mxu0
      %v2283 = vadd.f32 0.0, %v2282
      %v2284 = vpop.f32.mrf.mxu0
      %v2285 = vpop.f32.mrf.mxu0
      %v2286 = vadd.f32 0.0, %v2285
      %v2287 = vpop.f32.mrf.mxu0
      %2288 = vmatprep.mubr.bf16.mxu0 0
      %2289 = vmatmul.mubr.bf16.gmra.mxu0 %v2092
      %v2290 = vpop.f32.mrf.mxu0
      %v2291 = vadd.f32 0.0, %v2290
      %v2292 = vpop.f32.mrf.mxu0
      %v2293 = vpop.f32.mrf.mxu0
      %v2294 = vadd.f32 0.0, %v2293
      %v2295 = vpop.f32.mrf.mxu0
      %2296 = vmatprep.mubr.bf16.mxu0 0
      %2297 = vmatmul.mubr.bf16.gmra.mxu0 %v2093
      %v2298 = vpop.f32.mrf.mxu0
      %v2299 = vadd.f32 0.0, %v2298
      %v2300 = vpop.f32.mrf.mxu0
      %v2301 = vpop.f32.mrf.mxu0
      %v2302 = vadd.f32 0.0, %v2301
      %v2303 = vpop.f32.mrf.mxu0
      %2304 = vmatprep.mubr.bf16.mxu0 0
      %2305 = vmatmul.mubr.bf16.gmra.mxu0 %v2094
      %v2306 = vpop.f32.mrf.mxu0
      %v2307 = vadd.f32 0.0, %v2306
      %v2308 = vpop.f32.mrf.mxu0
      %v2309 = vpop.f32.mrf.mxu0
      %v2310 = vadd.f32 0.0, %v2309
      %v2311 = vpop.f32.mrf.mxu0
      %2312 = vmatprep.mubr.bf16.mxu0 0
      %2313 = vmatmul.mubr.bf16.gmra.mxu0 %v2095
      %v2314 = vpop.f32.mrf.mxu0
      %v2315 = vadd.f32 0.0, %v2314
      %v2316 = vpop.f32.mrf.mxu0
      %v2317 = vpop.f32.mrf.mxu0
      %v2318 = vadd.f32 0.0, %v2317
      %v2319 = vpop.f32.mrf.mxu0
      %2320 = vdwg.mxu0
      %v2321 = vadd.f32 %v1743, %v2195
      %v2322 = vadd.f32 %v1746, %v2198
      %v2323 = vadd.f32 %v1751, %v2203
      %v2324 = vadd.f32 %v1754, %v2206
      %v2325 = vadd.f32 %v1759, %v2211
      %v2326 = vadd.f32 %v1762, %v2214
      %v2327 = vadd.f32 %v1767, %v2219
      %v2328 = vadd.f32 %v1770, %v2222
      %v2329 = vadd.f32 %v1775, %v2227
      %v2330 = vadd.f32 %v1778, %v2230
      %v2331 = vadd.f32 %v1783, %v2235
      %v2332 = vadd.f32 %v1786, %v2238
      %v2333 = vadd.f32 %v1791, %v2243
      %v2334 = vadd.f32 %v1794, %v2246
      %v2335 = vadd.f32 %v1799, %v2251
      %v2336 = vadd.f32 %v1802, %v2254
      %v2337 = vadd.f32 %v1807, %v2259
      %v2338 = vadd.f32 %v1810, %v2262
      %v2339 = vadd.f32 %v1815, %v2267
      %v2340 = vadd.f32 %v1818, %v2270
      %v2341 = vadd.f32 %v1823, %v2275
      %v2342 = vadd.f32 %v1826, %v2278
      %v2343 = vadd.f32 %v1831, %v2283
      %v2344 = vadd.f32 %v1834, %v2286
      %v2345 = vadd.f32 %v1839, %v2291
      %v2346 = vadd.f32 %v1842, %v2294
      %v2347 = vadd.f32 %v1847, %v2299
      %v2348 = vadd.f32 %v1850, %v2302
      %v2349 = vadd.f32 %v1855, %v2307
      %v2350 = vadd.f32 %v1858, %v2310
      %v2351 = vadd.f32 %v1863, %v2315
      %v2352 = vadd.f32 %v1866, %v2318
      %v2353 = vld [vmem:[%s286] sm:$0xf]
      %v2354 = vld [vmem:[%s286 + $0x4] sm:$0xf]
      %v2355 = vld [vmem:[%s286 + $0xc] sm:$0xf]
      %v2356 = vld [vmem:[%s286 + $0x10] sm:$0xf]
      %v2357 = vld [vmem:[%s286 + $0x18] sm:$0xf]
      %v2358 = vld [vmem:[%s286 + $0x1c] sm:$0xf]
      %v2359 = vld [vmem:[%s286 + $0x24] sm:$0xf]
      %v2360 = vld [vmem:[%s286 + $0x28] sm:$0xf]
      %v2361 = vld [vmem:[%s286 + $0x30] sm:$0xf]
      %v2362 = vld [vmem:[%s286 + $0x34] sm:$0xf]
      %v2363 = vld [vmem:[%s286 + $0x3c] sm:$0xf]
      %v2364 = vld [vmem:[%s286 + $0x40] sm:$0xf]
      %v2365 = vld [vmem:[%s286 + $0x48] sm:$0xf]
      %v2366 = vld [vmem:[%s286 + $0x4c] sm:$0xf]
      %v2367 = vld [vmem:[%s286 + $0x54] sm:$0xf]
      %v2368 = vld [vmem:[%s286 + $0x58] sm:$0xf]
      %v2369 = vld [vmem:[%s286 + $0x60] sm:$0xf]
      %v2370 = vld [vmem:[%s286 + $0x64] sm:$0xf]
      %v2371 = vld [vmem:[%s286 + $0x6c] sm:$0xf]
      %v2372 = vld [vmem:[%s286 + $0x70] sm:$0xf]
      %v2373 = vld [vmem:[%s286 + $0x78] sm:$0xf]
      %v2374 = vld [vmem:[%s286 + $0x7c] sm:$0xf]
      %v2375 = vld [vmem:[%s286 + $0x84] sm:$0xf]
      %v2376 = vld [vmem:[%s286 + $0x88] sm:$0xf]
      %v2377 = vld [vmem:[%s286 + $0x90] sm:$0xf]
      %v2378 = vld [vmem:[%s286 + $0x94] sm:$0xf]
      %v2379 = vld [vmem:[%s286 + $0x9c] sm:$0xf]
      %v2380 = vld [vmem:[%s286 + $0xa0] sm:$0xf]
      %v2381 = vld [vmem:[%s286 + $0xa8] sm:$0xf]
      %v2382 = vld [vmem:[%s286 + $0xac] sm:$0xf]
      %v2383 = vld [vmem:[%s286 + $0xb4] sm:$0xf]
      %v2384 = vld [vmem:[%s286 + $0xb8] sm:$0xf]
      %v2385 = vld [vmem:[%s1 + $0xc0] sm:$0xf]
      %v2386 = vld [vmem:[%s1 + $0xc4] sm:$0xf]
      %v2387 = vld [vmem:[%s1 + $0xc8] sm:$0xf]
      %v2388 = vld [vmem:[%s1 + $0xcc] sm:$0xf]
      %v2389 = vld [vmem:[%s1 + $0xd0] sm:$0xf]
      %v2390 = vld [vmem:[%s1 + $0xd4] sm:$0xf]
      %v2391 = vld [vmem:[%s1 + $0xd8] sm:$0xf]
      %v2392 = vld [vmem:[%s1 + $0xdc] sm:$0xf]
      %v2393 = vld [vmem:[%s1 + $0xe0] sm:$0xf]
      %v2394 = vld [vmem:[%s1 + $0xe4] sm:$0xf]
      %v2395 = vld [vmem:[%s1 + $0xe8] sm:$0xf]
      %v2396 = vld [vmem:[%s1 + $0xec] sm:$0xf]
      %v2397 = vld [vmem:[%s1 + $0xf0] sm:$0xf]
      %v2398 = vld [vmem:[%s1 + $0xf4] sm:$0xf]
      %v2399 = vld [vmem:[%s1 + $0xf8] sm:$0xf]
      %v2400 = vld [vmem:[%s1 + $0xfc] sm:$0xf]
      %v2433 = vunpack.c.l.b16 %v2353
      %v2434 = vunpack.c.l.b16 %v2354
      %v2435 = vunpack.c.l.b16 %v2355
      %v2436 = vunpack.c.l.b16 %v2356
      %v2437 = vunpack.c.l.b16 %v2357
      %v2438 = vunpack.c.l.b16 %v2358
      %v2439 = vunpack.c.l.b16 %v2359
      %v2440 = vunpack.c.l.b16 %v2360
      %v2441 = vunpack.c.l.b16 %v2361
      %v2442 = vunpack.c.l.b16 %v2362
      %v2443 = vunpack.c.l.b16 %v2363
      %v2444 = vunpack.c.l.b16 %v2364
      %v2445 = vunpack.c.l.b16 %v2365
      %v2446 = vunpack.c.l.b16 %v2366
      %v2447 = vunpack.c.l.b16 %v2367
      %v2448 = vunpack.c.l.b16 %v2368
      %v2449 = vunpack.c.l.b16 %v2369
      %v2450 = vunpack.c.l.b16 %v2370
      %v2451 = vunpack.c.l.b16 %v2371
      %v2452 = vunpack.c.l.b16 %v2372
      %v2453 = vunpack.c.l.b16 %v2373
      %v2454 = vunpack.c.l.b16 %v2374
      %v2455 = vunpack.c.l.b16 %v2375
      %v2456 = vunpack.c.l.b16 %v2376
      %v2457 = vunpack.c.l.b16 %v2377
      %v2458 = vunpack.c.l.b16 %v2378
      %v2459 = vunpack.c.l.b16 %v2379
      %v2460 = vunpack.c.l.b16 %v2380
      %v2461 = vunpack.c.l.b16 %v2381
      %v2462 = vunpack.c.l.b16 %v2382
      %v2463 = vunpack.c.l.b16 %v2383
      %v2464 = vunpack.c.l.b16 %v2384
      %v2465 = vpack.c.b16 %v2434, %v2433
      %v2466 = vpack.c.b16 %v2436, %v2435
      %v2467 = vpack.c.b16 %v2438, %v2437
      %v2468 = vpack.c.b16 %v2440, %v2439
      %v2469 = vpack.c.b16 %v2442, %v2441
      %v2470 = vpack.c.b16 %v2444, %v2443
      %v2471 = vpack.c.b16 %v2446, %v2445
      %v2472 = vpack.c.b16 %v2448, %v2447
      %v2473 = vpack.c.b16 %v2450, %v2449
      %v2474 = vpack.c.b16 %v2452, %v2451
      %v2475 = vpack.c.b16 %v2454, %v2453
      %v2476 = vpack.c.b16 %v2456, %v2455
      %v2477 = vpack.c.b16 %v2458, %v2457
      %v2478 = vpack.c.b16 %v2460, %v2459
      %v2479 = vpack.c.b16 %v2462, %v2461
      %v2480 = vpack.c.b16 %v2464, %v2463
      %v2513 = vunpack.c.l.b16 %v2385
      %v2514 = vunpack.c.l.b16 %v2386
      %v2515 = vunpack.c.l.b16 %v2387
      %v2516 = vunpack.c.l.b16 %v2388
      %v2517 = vunpack.c.l.b16 %v2389
      %v2518 = vunpack.c.l.b16 %v2390
      %v2519 = vunpack.c.l.b16 %v2391
      %v2520 = vunpack.c.l.b16 %v2392
      %v2521 = vunpack.c.l.b16 %v2393
      %v2522 = vunpack.c.l.b16 %v2394
      %v2523 = vunpack.c.l.b16 %v2395
      %v2524 = vunpack.c.l.b16 %v2396
      %v2525 = vunpack.c.l.b16 %v2397
      %v2526 = vunpack.c.l.b16 %v2398
      %v2527 = vunpack.c.l.b16 %v2399
      %v2528 = vunpack.c.l.b16 %v2400
      %v2529 = vpack.c.b16 %v2514, %v2513
      %v2530 = vpack.c.b16 %v2516, %v2515
      %v2531 = vpack.c.b16 %v2518, %v2517
      %v2532 = vpack.c.b16 %v2520, %v2519
      %v2533 = vpack.c.b16 %v2522, %v2521
      %v2534 = vpack.c.b16 %v2524, %v2523
      %v2535 = vpack.c.b16 %v2526, %v2525
      %v2536 = vpack.c.b16 %v2528, %v2527
      %2545 = vmatprep.subr.bf16.mxu0 0
      %2546 = vmatpush1.bf16.msra.mxu0 %v2536
      %2547 = vmatprep.subr.bf16.mxu0 0
      %2548 = vmatpush1.bf16.msra.mxu0 %v2535
      %2549 = vmatprep.subr.bf16.mxu0 0
      %2550 = vmatpush1.bf16.msra.mxu0 %v2534
      %2551 = vmatprep.subr.bf16.mxu0 0
      %2552 = vmatpush1.bf16.msra.mxu0 %v2533
      %2553 = vmatprep.subr.bf16.mxu0 0
      %2554 = vmatpush1.bf16.msra.mxu0 %v2532
      %2555 = vmatprep.subr.bf16.mxu0 0
      %2556 = vmatpush1.bf16.msra.mxu0 %v2531
      %2557 = vmatprep.subr.bf16.mxu0 0
      %2558 = vmatpush1.bf16.msra.mxu0 %v2530
      %2559 = vmatprep.subr.bf16.mxu0 0
      %2560 = vmatpush1.bf16.msra.mxu0 %v2529
      %2561 = vmatprep.subr.bf16.mxu0 0
      %2562 = vmatpush2.bf16.msra.mxu0 0
      %2563 = vmatprep.subr.bf16.mxu0 0
      %2564 = vmatpush2.bf16.msra.mxu0 0
      %2565 = vmatprep.subr.bf16.mxu0 0
      %2566 = vmatpush2.bf16.msra.mxu0 0
      %2567 = vmatprep.subr.bf16.mxu0 0
      %2568 = vmatpush2.bf16.msra.mxu0 0
      %2569 = vmatprep.subr.bf16.mxu0 0
      %2570 = vmatpush2.bf16.msra.mxu0 0
      %2571 = vmatprep.subr.bf16.mxu0 0
      %2572 = vmatpush2.bf16.msra.mxu0 0
      %2573 = vmatprep.subr.bf16.mxu0 0
      %2574 = vmatpush2.bf16.msra.mxu0 0
      %2575 = vmatprep.subr.bf16.mxu0 0
      %2576 = vmatpush2.bf16.msra.mxu0 0
      %2577 = vmatprep.mubr.bf16.mxu0 0
      %2578 = vmatmul.mubr.bf16.gmra.mxu0 %v2465
      %v2579 = vpop.f32.mrf.mxu0
      %v2580 = vadd.f32 0.0, %v2579
      %v2581 = vpop.f32.mrf.mxu0
      %v2582 = vpop.f32.mrf.mxu0
      %v2583 = vadd.f32 0.0, %v2582
      %v2584 = vpop.f32.mrf.mxu0
      %2585 = vmatprep.mubr.bf16.mxu0 0
      %2586 = vmatmul.mubr.bf16.gmra.mxu0 %v2466
      %v2587 = vpop.f32.mrf.mxu0
      %v2588 = vadd.f32 0.0, %v2587
      %v2589 = vpop.f32.mrf.mxu0
      %v2590 = vpop.f32.mrf.mxu0
      %v2591 = vadd.f32 0.0, %v2590
      %v2592 = vpop.f32.mrf.mxu0
      %2593 = vmatprep.mubr.bf16.mxu0 0
      %2594 = vmatmul.mubr.bf16.gmra.mxu0 %v2467
      %v2595 = vpop.f32.mrf.mxu0
      %v2596 = vadd.f32 0.0, %v2595
      %v2597 = vpop.f32.mrf.mxu0
      %v2598 = vpop.f32.mrf.mxu0
      %v2599 = vadd.f32 0.0, %v2598
      %v2600 = vpop.f32.mrf.mxu0
      %2601 = vmatprep.mubr.bf16.mxu0 0
      %2602 = vmatmul.mubr.bf16.gmra.mxu0 %v2468
      %v2603 = vpop.f32.mrf.mxu0
      %v2604 = vadd.f32 0.0, %v2603
      %v2605 = vpop.f32.mrf.mxu0
      %v2606 = vpop.f32.mrf.mxu0
      %v2607 = vadd.f32 0.0, %v2606
      %v2608 = vpop.f32.mrf.mxu0
      %2609 = vmatprep.mubr.bf16.mxu0 0
      %2610 = vmatmul.mubr.bf16.gmra.mxu0 %v2469
      %v2611 = vpop.f32.mrf.mxu0
      %v2612 = vadd.f32 0.0, %v2611
      %v2613 = vpop.f32.mrf.mxu0
      %v2614 = vpop.f32.mrf.mxu0
      %v2615 = vadd.f32 0.0, %v2614
      %v2616 = vpop.f32.mrf.mxu0
      %2617 = vmatprep.mubr.bf16.mxu0 0
      %2618 = vmatmul.mubr.bf16.gmra.mxu0 %v2470
      %v2619 = vpop.f32.mrf.mxu0
      %v2620 = vadd.f32 0.0, %v2619
      %v2621 = vpop.f32.mrf.mxu0
      %v2622 = vpop.f32.mrf.mxu0
      %v2623 = vadd.f32 0.0, %v2622
      %v2624 = vpop.f32.mrf.mxu0
      %2625 = vmatprep.mubr.bf16.mxu0 0
      %2626 = vmatmul.mubr.bf16.gmra.mxu0 %v2471
      %v2627 = vpop.f32.mrf.mxu0
      %v2628 = vadd.f32 0.0, %v2627
      %v2629 = vpop.f32.mrf.mxu0
      %v2630 = vpop.f32.mrf.mxu0
      %v2631 = vadd.f32 0.0, %v2630
      %v2632 = vpop.f32.mrf.mxu0
      %2633 = vmatprep.mubr.bf16.mxu0 0
      %2634 = vmatmul.mubr.bf16.gmra.mxu0 %v2472
      %v2635 = vpop.f32.mrf.mxu0
      %v2636 = vadd.f32 0.0, %v2635
      %v2637 = vpop.f32.mrf.mxu0
      %v2638 = vpop.f32.mrf.mxu0
      %v2639 = vadd.f32 0.0, %v2638
      %v2640 = vpop.f32.mrf.mxu0
      %2641 = vmatprep.mubr.bf16.mxu0 0
      %2642 = vmatmul.mubr.bf16.gmra.mxu0 %v2473
      %v2643 = vpop.f32.mrf.mxu0
      %v2644 = vadd.f32 0.0, %v2643
      %v2645 = vpop.f32.mrf.mxu0
      %v2646 = vpop.f32.mrf.mxu0
      %v2647 = vadd.f32 0.0, %v2646
      %v2648 = vpop.f32.mrf.mxu0
      %2649 = vmatprep.mubr.bf16.mxu0 0
      %2650 = vmatmul.mubr.bf16.gmra.mxu0 %v2474
      %v2651 = vpop.f32.mrf.mxu0
      %v2652 = vadd.f32 0.0, %v2651
      %v2653 = vpop.f32.mrf.mxu0
      %v2654 = vpop.f32.mrf.mxu0
      %v2655 = vadd.f32 0.0, %v2654
      %v2656 = vpop.f32.mrf.mxu0
      %2657 = vmatprep.mubr.bf16.mxu0 0
      %2658 = vmatmul.mubr.bf16.gmra.mxu0 %v2475
      %v2659 = vpop.f32.mrf.mxu0
      %v2660 = vadd.f32 0.0, %v2659
      %v2661 = vpop.f32.mrf.mxu0
      %v2662 = vpop.f32.mrf.mxu0
      %v2663 = vadd.f32 0.0, %v2662
      %v2664 = vpop.f32.mrf.mxu0
      %2665 = vmatprep.mubr.bf16.mxu0 0
      %2666 = vmatmul.mubr.bf16.gmra.mxu0 %v2476
      %v2667 = vpop.f32.mrf.mxu0
      %v2668 = vadd.f32 0.0, %v2667
      %v2669 = vpop.f32.mrf.mxu0
      %v2670 = vpop.f32.mrf.mxu0
      %v2671 = vadd.f32 0.0, %v2670
      %v2672 = vpop.f32.mrf.mxu0
      %2673 = vmatprep.mubr.bf16.mxu0 0
      %2674 = vmatmul.mubr.bf16.gmra.mxu0 %v2477
      %v2675 = vpop.f32.mrf.mxu0
      %v2676 = vadd.f32 0.0, %v2675
      %v2677 = vpop.f32.mrf.mxu0
      %v2678 = vpop.f32.mrf.mxu0
      %v2679 = vadd.f32 0.0, %v2678
      %v2680 = vpop.f32.mrf.mxu0
      %2681 = vmatprep.mubr.bf16.mxu0 0
      %2682 = vmatmul.mubr.bf16.gmra.mxu0 %v2478
      %v2683 = vpop.f32.mrf.mxu0
      %v2684 = vadd.f32 0.0, %v2683
      %v2685 = vpop.f32.mrf.mxu0
      %v2686 = vpop.f32.mrf.mxu0
      %v2687 = vadd.f32 0.0, %v2686
      %v2688 = vpop.f32.mrf.mxu0
      %2689 = vmatprep.mubr.bf16.mxu0 0
      %2690 = vmatmul.mubr.bf16.gmra.mxu0 %v2479
      %v2691 = vpop.f32.mrf.mxu0
      %v2692 = vadd.f32 0.0, %v2691
      %v2693 = vpop.f32.mrf.mxu0
      %v2694 = vpop.f32.mrf.mxu0
      %v2695 = vadd.f32 0.0, %v2694
      %v2696 = vpop.f32.mrf.mxu0
      %2697 = vmatprep.mubr.bf16.mxu0 0
      %2698 = vmatmul.mubr.bf16.gmra.mxu0 %v2480
      %v2699 = vpop.f32.mrf.mxu0
      %v2700 = vadd.f32 0.0, %v2699
      %v2701 = vpop.f32.mrf.mxu0
      %v2702 = vpop.f32.mrf.mxu0
      %v2703 = vadd.f32 0.0, %v2702
      %v2704 = vpop.f32.mrf.mxu0
      %2705 = vdwg.mxu0
      %v2706 = vadd.f32 %v2321, %v2580
      %v2707 = vadd.f32 %v2322, %v2583
      %v2708 = vadd.f32 %v2323, %v2588
      %v2709 = vadd.f32 %v2324, %v2591
      %v2710 = vadd.f32 %v2325, %v2596
      %v2711 = vadd.f32 %v2326, %v2599
      %v2712 = vadd.f32 %v2327, %v2604
      %v2713 = vadd.f32 %v2328, %v2607
      %v2714 = vadd.f32 %v2329, %v2612
      %v2715 = vadd.f32 %v2330, %v2615
      %v2716 = vadd.f32 %v2331, %v2620
      %v2717 = vadd.f32 %v2332, %v2623
      %v2718 = vadd.f32 %v2333, %v2628
      %v2719 = vadd.f32 %v2334, %v2631
      %v2720 = vadd.f32 %v2335, %v2636
      %v2721 = vadd.f32 %v2336, %v2639
      %v2722 = vadd.f32 %v2337, %v2644
      %v2723 = vadd.f32 %v2338, %v2647
      %v2724 = vadd.f32 %v2339, %v2652
      %v2725 = vadd.f32 %v2340, %v2655
      %v2726 = vadd.f32 %v2341, %v2660
      %v2727 = vadd.f32 %v2342, %v2663
      %v2728 = vadd.f32 %v2343, %v2668
      %v2729 = vadd.f32 %v2344, %v2671
      %v2730 = vadd.f32 %v2345, %v2676
      %v2731 = vadd.f32 %v2346, %v2679
      %v2732 = vadd.f32 %v2347, %v2684
      %v2733 = vadd.f32 %v2348, %v2687
      %v2734 = vadd.f32 %v2349, %v2692
      %v2735 = vadd.f32 %v2350, %v2695
      %v2736 = vadd.f32 %v2351, %v2700
      %v2737 = vadd.f32 %v2352, %v2703
      %v2738 = vld [vmem:[%s286] sm:$0xf]
      %v2739 = vld [vmem:[%s286 + $0x4] sm:$0xf]
      %v2740 = vld [vmem:[%s286 + $0x8] sm:$0x1]
      %v2741 = vld [vmem:[%s286 + $0xc] sm:$0xf]
      %v2742 = vld [vmem:[%s286 + $0x10] sm:$0xf]
      %v2743 = vld [vmem:[%s286 + $0x14] sm:$0x1]
      %v2744 = vld [vmem:[%s286 + $0x18] sm:$0xf]
      %v2745 = vld [vmem:[%s286 + $0x1c] sm:$0xf]
      %v2746 = vld [vmem:[%s286 + $0x20] sm:$0x1]
      %v2747 = vld [vmem:[%s286 + $0x24] sm:$0xf]
      %v2748 = vld [vmem:[%s286 + $0x28] sm:$0xf]
      %v2749 = vld [vmem:[%s286 + $0x2c] sm:$0x1]
      %v2750 = vld [vmem:[%s286 + $0x30] sm:$0xf]
      %v2751 = vld [vmem:[%s286 + $0x34] sm:$0xf]
      %v2752 = vld [vmem:[%s286 + $0x38] sm:$0x1]
      %v2753 = vld [vmem:[%s286 + $0x3c] sm:$0xf]
      %v2754 = vld [vmem:[%s286 + $0x40] sm:$0xf]
      %v2755 = vld [vmem:[%s286 + $0x44] sm:$0x1]
      %v2756 = vld [vmem:[%s286 + $0x48] sm:$0xf]
      %v2757 = vld [vmem:[%s286 + $0x4c] sm:$0xf]
      %v2758 = vld [vmem:[%s286 + $0x50] sm:$0x1]
      %v2759 = vld [vmem:[%s286 + $0x54] sm:$0xf]
      %v2760 = vld [vmem:[%s286 + $0x58] sm:$0xf]
      %v2761 = vld [vmem:[%s286 + $0x5c] sm:$0x1]
      %v2762 = vld [vmem:[%s286 + $0x60] sm:$0xf]
      %v2763 = vld [vmem:[%s286 + $0x64] sm:$0xf]
      %v2764 = vld [vmem:[%s286 + $0x68] sm:$0x1]
      %v2765 = vld [vmem:[%s286 + $0x6c] sm:$0xf]
      %v2766 = vld [vmem:[%s286 + $0x70] sm:$0xf]
      %v2767 = vld [vmem:[%s286 + $0x74] sm:$0x1]
      %v2768 = vld [vmem:[%s286 + $0x78] sm:$0xf]
      %v2769 = vld [vmem:[%s286 + $0x7c] sm:$0xf]
      %v2770 = vld [vmem:[%s286 + $0x80] sm:$0x1]
      %v2771 = vld [vmem:[%s286 + $0x84] sm:$0xf]
      %v2772 = vld [vmem:[%s286 + $0x88] sm:$0xf]
      %v2773 = vld [vmem:[%s286 + $0x8c] sm:$0x1]
      %v2774 = vld [vmem:[%s286 + $0x90] sm:$0xf]
      %v2775 = vld [vmem:[%s286 + $0x94] sm:$0xf]
      %v2776 = vld [vmem:[%s286 + $0x98] sm:$0x1]
      %v2777 = vld [vmem:[%s286 + $0x9c] sm:$0xf]
      %v2778 = vld [vmem:[%s286 + $0xa0] sm:$0xf]
      %v2779 = vld [vmem:[%s286 + $0xa4] sm:$0x1]
      %v2780 = vld [vmem:[%s286 + $0xa8] sm:$0xf]
      %v2781 = vld [vmem:[%s286 + $0xac] sm:$0xf]
      %v2782 = vld [vmem:[%s286 + $0xb0] sm:$0x1]
      %v2783 = vld [vmem:[%s286 + $0xb4] sm:$0xf]
      %v2784 = vld [vmem:[%s286 + $0xb8] sm:$0xf]
      %v2785 = vld [vmem:[%s286 + $0xbc] sm:$0x1]
      %v2787 = vshrl.u32 %v2738, 16
      %v2789 = vrot.slane %v2787, 4
      %v2790 = vshll.u32 %v2738, 16
      %v2792 = vrot.slane %v2790, 5
      %v2793 = vor.u32 %v2789, %v2792
      %v2794 = vrot.slane %v2793, 4
      %v2796 = vshll.u32 %v2739, 16
      %v2798 = vrot.slane %v2796, 5
      %v2799 = vsel %vm890, %v2794, %v2798
      %v2800 = vshrl.u32 %v2739, 16
      %v2802 = vrot.slane %v2800, 4
      %v2803 = vor.u32 %v2802, %v2798
      %v2804 = vrot.slane %v2803, 4
      %v2806 = vshll.u32 %v2740, 16
      %v2808 = vrot.slane %v2806, 5
      %v2809 = vsel %vm890, %v2804, %v2808
      %v2811 = vshrl.u32 %v2741, 16
      %v2813 = vrot.slane %v2811, 4
      %v2814 = vshll.u32 %v2741, 16
      %v2816 = vrot.slane %v2814, 5
      %v2817 = vor.u32 %v2813, %v2816
      %v2818 = vrot.slane %v2817, 4
      %v2820 = vshll.u32 %v2742, 16
      %v2822 = vrot.slane %v2820, 5
      %v2823 = vsel %vm890, %v2818, %v2822
      %v2824 = vshrl.u32 %v2742, 16
      %v2826 = vrot.slane %v2824, 4
      %v2827 = vor.u32 %v2826, %v2822
      %v2828 = vrot.slane %v2827, 4
      %v2830 = vshll.u32 %v2743, 16
      %v2832 = vrot.slane %v2830, 5
      %v2833 = vsel %vm890, %v2828, %v2832
      %v2835 = vshrl.u32 %v2744, 16
      %v2837 = vrot.slane %v2835, 4
      %v2838 = vshll.u32 %v2744, 16
      %v2840 = vrot.slane %v2838, 5
      %v2841 = vor.u32 %v2837, %v2840
      %v2842 = vrot.slane %v2841, 4
      %v2844 = vshll.u32 %v2745, 16
      %v2846 = vrot.slane %v2844, 5
      %v2847 = vsel %vm890, %v2842, %v2846
      %v2848 = vshrl.u32 %v2745, 16
      %v2850 = vrot.slane %v2848, 4
      %v2851 = vor.u32 %v2850, %v2846
      %v2852 = vrot.slane %v2851, 4
      %v2854 = vshll.u32 %v2746, 16
      %v2856 = vrot.slane %v2854, 5
      %v2857 = vsel %vm890, %v2852, %v2856
      %v2859 = vshrl.u32 %v2747, 16
      %v2861 = vrot.slane %v2859, 4
      %v2862 = vshll.u32 %v2747, 16
      %v2864 = vrot.slane %v2862, 5
      %v2865 = vor.u32 %v2861, %v2864
      %v2866 = vrot.slane %v2865, 4
      %v2868 = vshll.u32 %v2748, 16
      %v2870 = vrot.slane %v2868, 5
      %v2871 = vsel %vm890, %v2866, %v2870
      %v2872 = vshrl.u32 %v2748, 16
      %v2874 = vrot.slane %v2872, 4
      %v2875 = vor.u32 %v2874, %v2870
      %v2876 = vrot.slane %v2875, 4
      %v2878 = vshll.u32 %v2749, 16
      %v2880 = vrot.slane %v2878, 5
      %v2881 = vsel %vm890, %v2876, %v2880
      %v2883 = vshrl.u32 %v2750, 16
      %v2885 = vrot.slane %v2883, 4
      %v2886 = vshll.u32 %v2750, 16
      %v2888 = vrot.slane %v2886, 5
      %v2889 = vor.u32 %v2885, %v2888
      %v2890 = vrot.slane %v2889, 4
      %v2892 = vshll.u32 %v2751, 16
      %v2894 = vrot.slane %v2892, 5
      %v2895 = vsel %vm890, %v2890, %v2894
      %v2896 = vshrl.u32 %v2751, 16
      %v2898 = vrot.slane %v2896, 4
      %v2899 = vor.u32 %v2898, %v2894
      %v2900 = vrot.slane %v2899, 4
      %v2902 = vshll.u32 %v2752, 16
      %v2904 = vrot.slane %v2902, 5
      %v2905 = vsel %vm890, %v2900, %v2904
      %v2907 = vshrl.u32 %v2753, 16
      %v2909 = vrot.slane %v2907, 4
      %v2910 = vshll.u32 %v2753, 16
      %v2912 = vrot.slane %v2910, 5
      %v2913 = vor.u32 %v2909, %v2912
      %v2914 = vrot.slane %v2913, 4
      %v2916 = vshll.u32 %v2754, 16
      %v2918 = vrot.slane %v2916, 5
      %v2919 = vsel %vm890, %v2914, %v2918
      %v2920 = vshrl.u32 %v2754, 16
      %v2922 = vrot.slane %v2920, 4
      %v2923 = vor.u32 %v2922, %v2918
      %v2924 = vrot.slane %v2923, 4
      %v2926 = vshll.u32 %v2755, 16
      %v2928 = vrot.slane %v2926, 5
      %v2929 = vsel %vm890, %v2924, %v2928
      %v2931 = vshrl.u32 %v2756, 16
      %v2933 = vrot.slane %v2931, 4
      %v2934 = vshll.u32 %v2756, 16
      %v2936 = vrot.slane %v2934, 5
      %v2937 = vor.u32 %v2933, %v2936
      %v2938 = vrot.slane %v2937, 4
      %v2940 = vshll.u32 %v2757, 16
      %v2942 = vrot.slane %v2940, 5
      %v2943 = vsel %vm890, %v2938, %v2942
      %v2944 = vshrl.u32 %v2757, 16
      %v2946 = vrot.slane %v2944, 4
      %v2947 = vor.u32 %v2946, %v2942
      %v2948 = vrot.slane %v2947, 4
      %v2950 = vshll.u32 %v2758, 16
      %v2952 = vrot.slane %v2950, 5
      %v2953 = vsel %vm890, %v2948, %v2952
      %v2955 = vshrl.u32 %v2759, 16
      %v2957 = vrot.slane %v2955, 4
      %v2958 = vshll.u32 %v2759, 16
      %v2960 = vrot.slane %v2958, 5
      %v2961 = vor.u32 %v2957, %v2960
      %v2962 = vrot.slane %v2961, 4
      %v2964 = vshll.u32 %v2760, 16
      %v2966 = vrot.slane %v2964, 5
      %v2967 = vsel %vm890, %v2962, %v2966
      %v2968 = vshrl.u32 %v2760, 16
      %v2970 = vrot.slane %v2968, 4
      %v2971 = vor.u32 %v2970, %v2966
      %v2972 = vrot.slane %v2971, 4
      %v2974 = vshll.u32 %v2761, 16
      %v2976 = vrot.slane %v2974, 5
      %v2977 = vsel %vm890, %v2972, %v2976
      %v2979 = vshrl.u32 %v2762, 16
      %v2981 = vrot.slane %v2979, 4
      %v2982 = vshll.u32 %v2762, 16
      %v2984 = vrot.slane %v2982, 5
      %v2985 = vor.u32 %v2981, %v2984
      %v2986 = vrot.slane %v2985, 4
      %v2988 = vshll.u32 %v2763, 16
      %v2990 = vrot.slane %v2988, 5
      %v2991 = vsel %vm890, %v2986, %v2990
      %v2992 = vshrl.u32 %v2763, 16
      %v2994 = vrot.slane %v2992, 4
      %v2995 = vor.u32 %v2994, %v2990
      %v2996 = vrot.slane %v2995, 4
      %v2998 = vshll.u32 %v2764, 16
      %v3000 = vrot.slane %v2998, 5
      %v3001 = vsel %vm890, %v2996, %v3000
      %v3003 = vshrl.u32 %v2765, 16
      %v3005 = vrot.slane %v3003, 4
      %v3006 = vshll.u32 %v2765, 16
      %v3008 = vrot.slane %v3006, 5
      %v3009 = vor.u32 %v3005, %v3008
      %v3010 = vrot.slane %v3009, 4
      %v3012 = vshll.u32 %v2766, 16
      %v3014 = vrot.slane %v3012, 5
      %v3015 = vsel %vm890, %v3010, %v3014
      %v3016 = vshrl.u32 %v2766, 16
      %v3018 = vrot.slane %v3016, 4
      %v3019 = vor.u32 %v3018, %v3014
      %v3020 = vrot.slane %v3019, 4
      %v3022 = vshll.u32 %v2767, 16
      %v3024 = vrot.slane %v3022, 5
      %v3025 = vsel %vm890, %v3020, %v3024
      %v3027 = vshrl.u32 %v2768, 16
      %v3029 = vrot.slane %v3027, 4
      %v3030 = vshll.u32 %v2768, 16
      %v3032 = vrot.slane %v3030, 5
      %v3033 = vor.u32 %v3029, %v3032
      %v3034 = vrot.slane %v3033, 4
      %v3036 = vshll.u32 %v2769, 16
      %v3038 = vrot.slane %v3036, 5
      %v3039 = vsel %vm890, %v3034, %v3038
      %v3040 = vshrl.u32 %v2769, 16
      %v3042 = vrot.slane %v3040, 4
      %v3043 = vor.u32 %v3042, %v3038
      %v3044 = vrot.slane %v3043, 4
      %v3046 = vshll.u32 %v2770, 16
      %v3048 = vrot.slane %v3046, 5
      %v3049 = vsel %vm890, %v3044, %v3048
      %v3051 = vshrl.u32 %v2771, 16
      %v3053 = vrot.slane %v3051, 4
      %v3054 = vshll.u32 %v2771, 16
      %v3056 = vrot.slane %v3054, 5
      %v3057 = vor.u32 %v3053, %v3056
      %v3058 = vrot.slane %v3057, 4
      %v3060 = vshll.u32 %v2772, 16
      %v3062 = vrot.slane %v3060, 5
      %v3063 = vsel %vm890, %v3058, %v3062
      %v3064 = vshrl.u32 %v2772, 16
      %v3066 = vrot.slane %v3064, 4
      %v3067 = vor.u32 %v3066, %v3062
      %v3068 = vrot.slane %v3067, 4
      %v3070 = vshll.u32 %v2773, 16
      %v3072 = vrot.slane %v3070, 5
      %v3073 = vsel %vm890, %v3068, %v3072
      %v3075 = vshrl.u32 %v2774, 16
      %v3077 = vrot.slane %v3075, 4
      %v3078 = vshll.u32 %v2774, 16
      %v3080 = vrot.slane %v3078, 5
      %v3081 = vor.u32 %v3077, %v3080
      %v3082 = vrot.slane %v3081, 4
      %v3084 = vshll.u32 %v2775, 16
      %v3086 = vrot.slane %v3084, 5
      %v3087 = vsel %vm890, %v3082, %v3086
      %v3088 = vshrl.u32 %v2775, 16
      %v3090 = vrot.slane %v3088, 4
      %v3091 = vor.u32 %v3090, %v3086
      %v3092 = vrot.slane %v3091, 4
      %v3094 = vshll.u32 %v2776, 16
      %v3096 = vrot.slane %v3094, 5
      %v3097 = vsel %vm890, %v3092, %v3096
      %v3099 = vshrl.u32 %v2777, 16
      %v3101 = vrot.slane %v3099, 4
      %v3102 = vshll.u32 %v2777, 16
      %v3104 = vrot.slane %v3102, 5
      %v3105 = vor.u32 %v3101, %v3104
      %v3106 = vrot.slane %v3105, 4
      %v3108 = vshll.u32 %v2778, 16
      %v3110 = vrot.slane %v3108, 5
      %v3111 = vsel %vm890, %v3106, %v3110
      %v3112 = vshrl.u32 %v2778, 16
      %v3114 = vrot.slane %v3112, 4
      %v3115 = vor.u32 %v3114, %v3110
      %v3116 = vrot.slane %v3115, 4
      %v3118 = vshll.u32 %v2779, 16
      %v3120 = vrot.slane %v3118, 5
      %v3121 = vsel %vm890, %v3116, %v3120
      %v3123 = vshrl.u32 %v2780, 16
      %v3125 = vrot.slane %v3123, 4
      %v3126 = vshll.u32 %v2780, 16
      %v3128 = vrot.slane %v3126, 5
      %v3129 = vor.u32 %v3125, %v3128
      %v3130 = vrot.slane %v3129, 4
      %v3132 = vshll.u32 %v2781, 16
      %v3134 = vrot.slane %v3132, 5
      %v3135 = vsel %vm890, %v3130, %v3134
      %v3136 = vshrl.u32 %v2781, 16
      %v3138 = vrot.slane %v3136, 4
      %v3139 = vor.u32 %v3138, %v3134
      %v3140 = vrot.slane %v3139, 4
      %v3142 = vshll.u32 %v2782, 16
      %v3144 = vrot.slane %v3142, 5
      %v3145 = vsel %vm890, %v3140, %v3144
      %v3147 = vshrl.u32 %v2783, 16
      %v3149 = vrot.slane %v3147, 4
      %v3150 = vshll.u32 %v2783, 16
      %v3152 = vrot.slane %v3150, 5
      %v3153 = vor.u32 %v3149, %v3152
      %v3154 = vrot.slane %v3153, 4
      %v3156 = vshll.u32 %v2784, 16
      %v3158 = vrot.slane %v3156, 5
      %v3159 = vsel %vm890, %v3154, %v3158
      %v3160 = vshrl.u32 %v2784, 16
      %v3162 = vrot.slane %v3160, 4
      %v3163 = vor.u32 %v3162, %v3158
      %v3164 = vrot.slane %v3163, 4
      %v3166 = vshll.u32 %v2785, 16
      %v3168 = vrot.slane %v3166, 5
      %v3169 = vsel %vm890, %v3164, %v3168
      %v3170 = vld [vmem:[%s1 + $0x100] sm:$0xf]
      %v3171 = vld [vmem:[%s1 + $0x104] sm:$0xf]
      %v3172 = vld [vmem:[%s1 + $0x108] sm:$0xf]
      %v3173 = vld [vmem:[%s1 + $0x10c] sm:$0xf]
      %v3174 = vld [vmem:[%s1 + $0x110] sm:$0xf]
      %v3175 = vld [vmem:[%s1 + $0x114] sm:$0xf]
      %v3176 = vld [vmem:[%s1 + $0x118] sm:$0xf]
      %v3177 = vld [vmem:[%s1 + $0x11c] sm:$0xf]
      %v3178 = vld [vmem:[%s1 + $0x120] sm:$0xf]
      %v3179 = vld [vmem:[%s1 + $0x124] sm:$0xf]
      %v3180 = vld [vmem:[%s1 + $0x128] sm:$0xf]
      %v3181 = vld [vmem:[%s1 + $0x12c] sm:$0xf]
      %v3182 = vld [vmem:[%s1 + $0x130] sm:$0xf]
      %v3183 = vld [vmem:[%s1 + $0x134] sm:$0xf]
      %v3184 = vld [vmem:[%s1 + $0x138] sm:$0xf]
      %v3185 = vld [vmem:[%s1 + $0x13c] sm:$0xf]
      %v3186 = vunpack.c.l.b16 %v2799
      %v3187 = vunpack.c.l.b16 %v2809
      %v3188 = vunpack.c.l.b16 %v2823
      %v3189 = vunpack.c.l.b16 %v2833
      %v3190 = vunpack.c.l.b16 %v2847
      %v3191 = vunpack.c.l.b16 %v2857
      %v3192 = vunpack.c.l.b16 %v2871
      %v3193 = vunpack.c.l.b16 %v2881
      %v3194 = vunpack.c.l.b16 %v2895
      %v3195 = vunpack.c.l.b16 %v2905
      %v3196 = vunpack.c.l.b16 %v2919
      %v3197 = vunpack.c.l.b16 %v2929
      %v3198 = vunpack.c.l.b16 %v2943
      %v3199 = vunpack.c.l.b16 %v2953
      %v3200 = vunpack.c.l.b16 %v2967
      %v3201 = vunpack.c.l.b16 %v2977
      %v3202 = vunpack.c.l.b16 %v2991
      %v3203 = vunpack.c.l.b16 %v3001
      %v3204 = vunpack.c.l.b16 %v3015
      %v3205 = vunpack.c.l.b16 %v3025
      %v3206 = vunpack.c.l.b16 %v3039
      %v3207 = vunpack.c.l.b16 %v3049
      %v3208 = vunpack.c.l.b16 %v3063
      %v3209 = vunpack.c.l.b16 %v3073
      %v3210 = vunpack.c.l.b16 %v3087
      %v3211 = vunpack.c.l.b16 %v3097
      %v3212 = vunpack.c.l.b16 %v3111
      %v3213 = vunpack.c.l.b16 %v3121
      %v3214 = vunpack.c.l.b16 %v3135
      %v3215 = vunpack.c.l.b16 %v3145
      %v3216 = vunpack.c.l.b16 %v3159
      %v3217 = vunpack.c.l.b16 %v3169
      %v3218 = vpack.c.b16 %v3187, %v3186
      %v3219 = vpack.c.b16 %v3189, %v3188
      %v3220 = vpack.c.b16 %v3191, %v3190
      %v3221 = vpack.c.b16 %v3193, %v3192
      %v3222 = vpack.c.b16 %v3195, %v3194
      %v3223 = vpack.c.b16 %v3197, %v3196
      %v3224 = vpack.c.b16 %v3199, %v3198
      %v3225 = vpack.c.b16 %v3201, %v3200
      %v3226 = vpack.c.b16 %v3203, %v3202
      %v3227 = vpack.c.b16 %v3205, %v3204
      %v3228 = vpack.c.b16 %v3207, %v3206
      %v3229 = vpack.c.b16 %v3209, %v3208
      %v3230 = vpack.c.b16 %v3211, %v3210
      %v3231 = vpack.c.b16 %v3213, %v3212
      %v3232 = vpack.c.b16 %v3215, %v3214
      %v3233 = vpack.c.b16 %v3217, %v3216
      %v3266 = vunpack.c.l.b16 %v3170
      %v3267 = vunpack.c.l.b16 %v3171
      %v3268 = vunpack.c.l.b16 %v3172
      %v3269 = vunpack.c.l.b16 %v3173
      %v3270 = vunpack.c.l.b16 %v3174
      %v3271 = vunpack.c.l.b16 %v3175
      %v3272 = vunpack.c.l.b16 %v3176
      %v3273 = vunpack.c.l.b16 %v3177
      %v3274 = vunpack.c.l.b16 %v3178
      %v3275 = vunpack.c.l.b16 %v3179
      %v3276 = vunpack.c.l.b16 %v3180
      %v3277 = vunpack.c.l.b16 %v3181
      %v3278 = vunpack.c.l.b16 %v3182
      %v3279 = vunpack.c.l.b16 %v3183
      %v3280 = vunpack.c.l.b16 %v3184
      %v3281 = vunpack.c.l.b16 %v3185
      %v3282 = vpack.c.b16 %v3267, %v3266
      %v3283 = vpack.c.b16 %v3269, %v3268
      %v3284 = vpack.c.b16 %v3271, %v3270
      %v3285 = vpack.c.b16 %v3273, %v3272
      %v3286 = vpack.c.b16 %v3275, %v3274
      %v3287 = vpack.c.b16 %v3277, %v3276
      %v3288 = vpack.c.b16 %v3279, %v3278
      %v3289 = vpack.c.b16 %v3281, %v3280
      %3298 = vmatprep.subr.bf16.mxu0 0
      %3299 = vmatpush1.bf16.msra.mxu0 %v3289
      %3300 = vmatprep.subr.bf16.mxu0 0
      %3301 = vmatpush1.bf16.msra.mxu0 %v3288
      %3302 = vmatprep.subr.bf16.mxu0 0
      %3303 = vmatpush1.bf16.msra.mxu0 %v3287
      %3304 = vmatprep.subr.bf16.mxu0 0
      %3305 = vmatpush1.bf16.msra.mxu0 %v3286
      %3306 = vmatprep.subr.bf16.mxu0 0
      %3307 = vmatpush1.bf16.msra.mxu0 %v3285
      %3308 = vmatprep.subr.bf16.mxu0 0
      %3309 = vmatpush1.bf16.msra.mxu0 %v3284
      %3310 = vmatprep.subr.bf16.mxu0 0
      %3311 = vmatpush1.bf16.msra.mxu0 %v3283
      %3312 = vmatprep.subr.bf16.mxu0 0
      %3313 = vmatpush1.bf16.msra.mxu0 %v3282
      %3314 = vmatprep.subr.bf16.mxu0 0
      %3315 = vmatpush2.bf16.msra.mxu0 0
      %3316 = vmatprep.subr.bf16.mxu0 0
      %3317 = vmatpush2.bf16.msra.mxu0 0
      %3318 = vmatprep.subr.bf16.mxu0 0
      %3319 = vmatpush2.bf16.msra.mxu0 0
      %3320 = vmatprep.subr.bf16.mxu0 0
      %3321 = vmatpush2.bf16.msra.mxu0 0
      %3322 = vmatprep.subr.bf16.mxu0 0
      %3323 = vmatpush2.bf16.msra.mxu0 0
      %3324 = vmatprep.subr.bf16.mxu0 0
      %3325 = vmatpush2.bf16.msra.mxu0 0
      %3326 = vmatprep.subr.bf16.mxu0 0
      %3327 = vmatpush2.bf16.msra.mxu0 0
      %3328 = vmatprep.subr.bf16.mxu0 0
      %3329 = vmatpush2.bf16.msra.mxu0 0
      %3330 = vmatprep.mubr.bf16.mxu0 0
      %3331 = vmatmul.mubr.bf16.gmra.mxu0 %v3218
      %v3332 = vpop.f32.mrf.mxu0
      %v3333 = vadd.f32 0.0, %v3332
      %v3334 = vpop.f32.mrf.mxu0
      %v3335 = vpop.f32.mrf.mxu0
      %v3336 = vadd.f32 0.0, %v3335
      %v3337 = vpop.f32.mrf.mxu0
      %3338 = vmatprep.mubr.bf16.mxu0 0
      %3339 = vmatmul.mubr.bf16.gmra.mxu0 %v3219
      %v3340 = vpop.f32.mrf.mxu0
      %v3341 = vadd.f32 0.0, %v3340
      %v3342 = vpop.f32.mrf.mxu0
      %v3343 = vpop.f32.mrf.mxu0
      %v3344 = vadd.f32 0.0, %v3343
      %v3345 = vpop.f32.mrf.mxu0
      %3346 = vmatprep.mubr.bf16.mxu0 0
      %3347 = vmatmul.mubr.bf16.gmra.mxu0 %v3220
      %v3348 = vpop.f32.mrf.mxu0
      %v3349 = vadd.f32 0.0, %v3348
      %v3350 = vpop.f32.mrf.mxu0
      %v3351 = vpop.f32.mrf.mxu0
      %v3352 = vadd.f32 0.0, %v3351
      %v3353 = vpop.f32.mrf.mxu0
      %3354 = vmatprep.mubr.bf16.mxu0 0
      %3355 = vmatmul.mubr.bf16.gmra.mxu0 %v3221
      %v3356 = vpop.f32.mrf.mxu0
      %v3357 = vadd.f32 0.0, %v3356
      %v3358 = vpop.f32.mrf.mxu0
      %v3359 = vpop.f32.mrf.mxu0
      %v3360 = vadd.f32 0.0, %v3359
      %v3361 = vpop.f32.mrf.mxu0
      %3362 = vmatprep.mubr.bf16.mxu0 0
      %3363 = vmatmul.mubr.bf16.gmra.mxu0 %v3222
      %v3364 = vpop.f32.mrf.mxu0
      %v3365 = vadd.f32 0.0, %v3364
      %v3366 = vpop.f32.mrf.mxu0
      %v3367 = vpop.f32.mrf.mxu0
      %v3368 = vadd.f32 0.0, %v3367
      %v3369 = vpop.f32.mrf.mxu0
      %3370 = vmatprep.mubr.bf16.mxu0 0
      %3371 = vmatmul.mubr.bf16.gmra.mxu0 %v3223
      %v3372 = vpop.f32.mrf.mxu0
      %v3373 = vadd.f32 0.0, %v3372
      %v3374 = vpop.f32.mrf.mxu0
      %v3375 = vpop.f32.mrf.mxu0
      %v3376 = vadd.f32 0.0, %v3375
      %v3377 = vpop.f32.mrf.mxu0
      %3378 = vmatprep.mubr.bf16.mxu0 0
      %3379 = vmatmul.mubr.bf16.gmra.mxu0 %v3224
      %v3380 = vpop.f32.mrf.mxu0
      %v3381 = vadd.f32 0.0, %v3380
      %v3382 = vpop.f32.mrf.mxu0
      %v3383 = vpop.f32.mrf.mxu0
      %v3384 = vadd.f32 0.0, %v3383
      %v3385 = vpop.f32.mrf.mxu0
      %3386 = vmatprep.mubr.bf16.mxu0 0
      %3387 = vmatmul.mubr.bf16.gmra.mxu0 %v3225
      %v3388 = vpop.f32.mrf.mxu0
      %v3389 = vadd.f32 0.0, %v3388
      %v3390 = vpop.f32.mrf.mxu0
      %v3391 = vpop.f32.mrf.mxu0
      %v3392 = vadd.f32 0.0, %v3391
      %v3393 = vpop.f32.mrf.mxu0
      %3394 = vmatprep.mubr.bf16.mxu0 0
      %3395 = vmatmul.mubr.bf16.gmra.mxu0 %v3226
      %v3396 = vpop.f32.mrf.mxu0
      %v3397 = vadd.f32 0.0, %v3396
      %v3398 = vpop.f32.mrf.mxu0
      %v3399 = vpop.f32.mrf.mxu0
      %v3400 = vadd.f32 0.0, %v3399
      %v3401 = vpop.f32.mrf.mxu0
      %3402 = vmatprep.mubr.bf16.mxu0 0
      %3403 = vmatmul.mubr.bf16.gmra.mxu0 %v3227
      %v3404 = vpop.f32.mrf.mxu0
      %v3405 = vadd.f32 0.0, %v3404
      %v3406 = vpop.f32.mrf.mxu0
      %v3407 = vpop.f32.mrf.mxu0
      %v3408 = vadd.f32 0.0, %v3407
      %v3409 = vpop.f32.mrf.mxu0
      %3410 = vmatprep.mubr.bf16.mxu0 0
      %3411 = vmatmul.mubr.bf16.gmra.mxu0 %v3228
      %v3412 = vpop.f32.mrf.mxu0
      %v3413 = vadd.f32 0.0, %v3412
      %v3414 = vpop.f32.mrf.mxu0
      %v3415 = vpop.f32.mrf.mxu0
      %v3416 = vadd.f32 0.0, %v3415
      %v3417 = vpop.f32.mrf.mxu0
      %3418 = vmatprep.mubr.bf16.mxu0 0
      %3419 = vmatmul.mubr.bf16.gmra.mxu0 %v3229
      %v3420 = vpop.f32.mrf.mxu0
      %v3421 = vadd.f32 0.0, %v3420
      %v3422 = vpop.f32.mrf.mxu0
      %v3423 = vpop.f32.mrf.mxu0
      %v3424 = vadd.f32 0.0, %v3423
      %v3425 = vpop.f32.mrf.mxu0
      %3426 = vmatprep.mubr.bf16.mxu0 0
      %3427 = vmatmul.mubr.bf16.gmra.mxu0 %v3230
      %v3428 = vpop.f32.mrf.mxu0
      %v3429 = vadd.f32 0.0, %v3428
      %v3430 = vpop.f32.mrf.mxu0
      %v3431 = vpop.f32.mrf.mxu0
      %v3432 = vadd.f32 0.0, %v3431
      %v3433 = vpop.f32.mrf.mxu0
      %3434 = vmatprep.mubr.bf16.mxu0 0
      %3435 = vmatmul.mubr.bf16.gmra.mxu0 %v3231
      %v3436 = vpop.f32.mrf.mxu0
      %v3437 = vadd.f32 0.0, %v3436
      %v3438 = vpop.f32.mrf.mxu0
      %v3439 = vpop.f32.mrf.mxu0
      %v3440 = vadd.f32 0.0, %v3439
      %v3441 = vpop.f32.mrf.mxu0
      %3442 = vmatprep.mubr.bf16.mxu0 0
      %3443 = vmatmul.mubr.bf16.gmra.mxu0 %v3232
      %v3444 = vpop.f32.mrf.mxu0
      %v3445 = vadd.f32 0.0, %v3444
      %v3446 = vpop.f32.mrf.mxu0
      %v3447 = vpop.f32.mrf.mxu0
      %v3448 = vadd.f32 0.0, %v3447
      %v3449 = vpop.f32.mrf.mxu0
      %3450 = vmatprep.mubr.bf16.mxu0 0
      %3451 = vmatmul.mubr.bf16.gmra.mxu0 %v3233
      %v3452 = vpop.f32.mrf.mxu0
      %v3453 = vadd.f32 0.0, %v3452
      %v3454 = vpop.f32.mrf.mxu0
      %v3455 = vpop.f32.mrf.mxu0
      %v3456 = vadd.f32 0.0, %v3455
      %v3457 = vpop.f32.mrf.mxu0
      %3458 = vdwg.mxu0
      %v3459 = vadd.f32 %v2706, %v3333
      %v3460 = vadd.f32 %v2707, %v3336
      %v3461 = vadd.f32 %v2708, %v3341
      %v3462 = vadd.f32 %v2709, %v3344
      %v3463 = vadd.f32 %v2710, %v3349
      %v3464 = vadd.f32 %v2711, %v3352
      %v3465 = vadd.f32 %v2712, %v3357
      %v3466 = vadd.f32 %v2713, %v3360
      %v3467 = vadd.f32 %v2714, %v3365
      %v3468 = vadd.f32 %v2715, %v3368
      %v3469 = vadd.f32 %v2716, %v3373
      %v3470 = vadd.f32 %v2717, %v3376
      %v3471 = vadd.f32 %v2718, %v3381
      %v3472 = vadd.f32 %v2719, %v3384
      %v3473 = vadd.f32 %v2720, %v3389
      %v3474 = vadd.f32 %v2721, %v3392
      %v3475 = vadd.f32 %v2722, %v3397
      %v3476 = vadd.f32 %v2723, %v3400
      %v3477 = vadd.f32 %v2724, %v3405
      %v3478 = vadd.f32 %v2725, %v3408
      %v3479 = vadd.f32 %v2726, %v3413
      %v3480 = vadd.f32 %v2727, %v3416
      %v3481 = vadd.f32 %v2728, %v3421
      %v3482 = vadd.f32 %v2729, %v3424
      %v3483 = vadd.f32 %v2730, %v3429
      %v3484 = vadd.f32 %v2731, %v3432
      %v3485 = vadd.f32 %v2732, %v3437
      %v3486 = vadd.f32 %v2733, %v3440
      %v3487 = vadd.f32 %v2734, %v3445
      %v3488 = vadd.f32 %v2735, %v3448
      %v3489 = vadd.f32 %v2736, %v3453
      %v3490 = vadd.f32 %v2737, %v3456
      %v3491 = vld [vmem:[%s286] sm:$0xe]
      %v3492 = vld [vmem:[%s286 + $0xc] sm:$0xe]
      %v3493 = vld [vmem:[%s286 + $0x18] sm:$0xe]
      %v3494 = vld [vmem:[%s286 + $0x24] sm:$0xe]
      %v3495 = vld [vmem:[%s286 + $0x30] sm:$0xe]
      %v3496 = vld [vmem:[%s286 + $0x3c] sm:$0xe]
      %v3497 = vld [vmem:[%s286 + $0x48] sm:$0xe]
      %v3498 = vld [vmem:[%s286 + $0x54] sm:$0xe]
      %v3499 = vld [vmem:[%s286 + $0x60] sm:$0xe]
      %v3500 = vld [vmem:[%s286 + $0x6c] sm:$0xe]
      %v3501 = vld [vmem:[%s286 + $0x78] sm:$0xe]
      %v3502 = vld [vmem:[%s286 + $0x84] sm:$0xe]
      %v3503 = vld [vmem:[%s286 + $0x90] sm:$0xe]
      %v3504 = vld [vmem:[%s286 + $0x9c] sm:$0xe]
      %v3505 = vld [vmem:[%s286 + $0xa8] sm:$0xe]
      %v3506 = vld [vmem:[%s286 + $0xb4] sm:$0xe]
      %v3555 = vrot.slane %v3491, 5
      %v3556 = vrot.slane %v3555, 4
      %v3557 = vrot.slane %v2739, 5
      %v3558 = vsel %vm1919, %v3556, %v3557
      %v3559 = vrot.slane %v3557, 4
      %v3560 = vrot.slane %v2740, 5
      %v3561 = vsel %vm1919, %v3559, %v3560
      %v3562 = vrot.slane %v3492, 5
      %v3563 = vrot.slane %v3562, 4
      %v3564 = vrot.slane %v2742, 5
      %v3565 = vsel %vm1919, %v3563, %v3564
      %v3566 = vrot.slane %v3564, 4
      %v3567 = vrot.slane %v2743, 5
      %v3568 = vsel %vm1919, %v3566, %v3567
      %v3569 = vrot.slane %v3493, 5
      %v3570 = vrot.slane %v3569, 4
      %v3571 = vrot.slane %v2745, 5
      %v3572 = vsel %vm1919, %v3570, %v3571
      %v3573 = vrot.slane %v3571, 4
      %v3574 = vrot.slane %v2746, 5
      %v3575 = vsel %vm1919, %v3573, %v3574
      %v3576 = vrot.slane %v3494, 5
      %v3577 = vrot.slane %v3576, 4
      %v3578 = vrot.slane %v2748, 5
      %v3579 = vsel %vm1919, %v3577, %v3578
      %v3580 = vrot.slane %v3578, 4
      %v3581 = vrot.slane %v2749, 5
      %v3582 = vsel %vm1919, %v3580, %v3581
      %v3583 = vrot.slane %v3495, 5
      %v3584 = vrot.slane %v3583, 4
      %v3585 = vrot.slane %v2751, 5
      %v3586 = vsel %vm1919, %v3584, %v3585
      %v3587 = vrot.slane %v3585, 4
      %v3588 = vrot.slane %v2752, 5
      %v3589 = vsel %vm1919, %v3587, %v3588
      %v3590 = vrot.slane %v3496, 5
      %v3591 = vrot.slane %v3590, 4
      %v3592 = vrot.slane %v2754, 5
      %v3593 = vsel %vm1919, %v3591, %v3592
      %v3594 = vrot.slane %v3592, 4
      %v3595 = vrot.slane %v2755, 5
      %v3596 = vsel %vm1919, %v3594, %v3595
      %v3597 = vrot.slane %v3497, 5
      %v3598 = vrot.slane %v3597, 4
      %v3599 = vrot.slane %v2757, 5
      %v3600 = vsel %vm1919, %v3598, %v3599
      %v3601 = vrot.slane %v3599, 4
      %v3602 = vrot.slane %v2758, 5
      %v3603 = vsel %vm1919, %v3601, %v3602
      %v3604 = vrot.slane %v3498, 5
      %v3605 = vrot.slane %v3604, 4
      %v3606 = vrot.slane %v2760, 5
      %v3607 = vsel %vm1919, %v3605, %v3606
      %v3608 = vrot.slane %v3606, 4
      %v3609 = vrot.slane %v2761, 5
      %v3610 = vsel %vm1919, %v3608, %v3609
      %v3611 = vrot.slane %v3499, 5
      %v3612 = vrot.slane %v3611, 4
      %v3613 = vrot.slane %v2763, 5
      %v3614 = vsel %vm1919, %v3612, %v3613
      %v3615 = vrot.slane %v3613, 4
      %v3616 = vrot.slane %v2764, 5
      %v3617 = vsel %vm1919, %v3615, %v3616
      %v3618 = vrot.slane %v3500, 5
      %v3619 = vrot.slane %v3618, 4
      %v3620 = vrot.slane %v2766, 5
      %v3621 = vsel %vm1919, %v3619, %v3620
      %v3622 = vrot.slane %v3620, 4
      %v3623 = vrot.slane %v2767, 5
      %v3624 = vsel %vm1919, %v3622, %v3623
      %v3625 = vrot.slane %v3501, 5
      %v3626 = vrot.slane %v3625, 4
      %v3627 = vrot.slane %v2769, 5
      %v3628 = vsel %vm1919, %v3626, %v3627
      %v3629 = vrot.slane %v3627, 4
      %v3630 = vrot.slane %v2770, 5
      %v3631 = vsel %vm1919, %v3629, %v3630
      %v3632 = vrot.slane %v3502, 5
      %v3633 = vrot.slane %v3632, 4
      %v3634 = vrot.slane %v2772, 5
      %v3635 = vsel %vm1919, %v3633, %v3634
      %v3636 = vrot.slane %v3634, 4
      %v3637 = vrot.slane %v2773, 5
      %v3638 = vsel %vm1919, %v3636, %v3637
      %v3639 = vrot.slane %v3503, 5
      %v3640 = vrot.slane %v3639, 4
      %v3641 = vrot.slane %v2775, 5
      %v3642 = vsel %vm1919, %v3640, %v3641
      %v3643 = vrot.slane %v3641, 4
      %v3644 = vrot.slane %v2776, 5
      %v3645 = vsel %vm1919, %v3643, %v3644
      %v3646 = vrot.slane %v3504, 5
      %v3647 = vrot.slane %v3646, 4
      %v3648 = vrot.slane %v2778, 5
      %v3649 = vsel %vm1919, %v3647, %v3648
      %v3650 = vrot.slane %v3648, 4
      %v3651 = vrot.slane %v2779, 5
      %v3652 = vsel %vm1919, %v3650, %v3651
      %v3653 = vrot.slane %v3505, 5
      %v3654 = vrot.slane %v3653, 4
      %v3655 = vrot.slane %v2781, 5
      %v3656 = vsel %vm1919, %v3654, %v3655
      %v3657 = vrot.slane %v3655, 4
      %v3658 = vrot.slane %v2782, 5
      %v3659 = vsel %vm1919, %v3657, %v3658
      %v3660 = vrot.slane %v3506, 5
      %v3661 = vrot.slane %v3660, 4
      %v3662 = vrot.slane %v2784, 5
      %v3663 = vsel %vm1919, %v3661, %v3662
      %v3664 = vrot.slane %v3662, 4
      %v3665 = vrot.slane %v2785, 5
      %v3666 = vsel %vm1919, %v3664, %v3665
      %v3667 = vld [vmem:[%s1 + $0x140] sm:$0xf]
      %v3668 = vld [vmem:[%s1 + $0x144] sm:$0xf]
      %v3669 = vld [vmem:[%s1 + $0x148] sm:$0xf]
      %v3670 = vld [vmem:[%s1 + $0x14c] sm:$0xf]
      %v3671 = vld [vmem:[%s1 + $0x150] sm:$0xf]
      %v3672 = vld [vmem:[%s1 + $0x154] sm:$0xf]
      %v3673 = vld [vmem:[%s1 + $0x158] sm:$0xf]
      %v3674 = vld [vmem:[%s1 + $0x15c] sm:$0xf]
      %v3675 = vld [vmem:[%s1 + $0x160] sm:$0xf]
      %v3676 = vld [vmem:[%s1 + $0x164] sm:$0xf]
      %v3677 = vld [vmem:[%s1 + $0x168] sm:$0xf]
      %v3678 = vld [vmem:[%s1 + $0x16c] sm:$0xf]
      %v3679 = vld [vmem:[%s1 + $0x170] sm:$0xf]
      %v3680 = vld [vmem:[%s1 + $0x174] sm:$0xf]
      %v3681 = vld [vmem:[%s1 + $0x178] sm:$0xf]
      %v3682 = vld [vmem:[%s1 + $0x17c] sm:$0xf]
      %v3683 = vunpack.c.l.b16 %v3558
      %v3684 = vunpack.c.l.b16 %v3561
      %v3685 = vunpack.c.l.b16 %v3565
      %v3686 = vunpack.c.l.b16 %v3568
      %v3687 = vunpack.c.l.b16 %v3572
      %v3688 = vunpack.c.l.b16 %v3575
      %v3689 = vunpack.c.l.b16 %v3579
      %v3690 = vunpack.c.l.b16 %v3582
      %v3691 = vunpack.c.l.b16 %v3586
      %v3692 = vunpack.c.l.b16 %v3589
      %v3693 = vunpack.c.l.b16 %v3593
      %v3694 = vunpack.c.l.b16 %v3596
      %v3695 = vunpack.c.l.b16 %v3600
      %v3696 = vunpack.c.l.b16 %v3603
      %v3697 = vunpack.c.l.b16 %v3607
      %v3698 = vunpack.c.l.b16 %v3610
      %v3699 = vunpack.c.l.b16 %v3614
      %v3700 = vunpack.c.l.b16 %v3617
      %v3701 = vunpack.c.l.b16 %v3621
      %v3702 = vunpack.c.l.b16 %v3624
      %v3703 = vunpack.c.l.b16 %v3628
      %v3704 = vunpack.c.l.b16 %v3631
      %v3705 = vunpack.c.l.b16 %v3635
      %v3706 = vunpack.c.l.b16 %v3638
      %v3707 = vunpack.c.l.b16 %v3642
      %v3708 = vunpack.c.l.b16 %v3645
      %v3709 = vunpack.c.l.b16 %v3649
      %v3710 = vunpack.c.l.b16 %v3652
      %v3711 = vunpack.c.l.b16 %v3656
      %v3712 = vunpack.c.l.b16 %v3659
      %v3713 = vunpack.c.l.b16 %v3663
      %v3714 = vunpack.c.l.b16 %v3666
      %v3715 = vpack.c.b16 %v3684, %v3683
      %v3716 = vpack.c.b16 %v3686, %v3685
      %v3717 = vpack.c.b16 %v3688, %v3687
      %v3718 = vpack.c.b16 %v3690, %v3689
      %v3719 = vpack.c.b16 %v3692, %v3691
      %v3720 = vpack.c.b16 %v3694, %v3693
      %v3721 = vpack.c.b16 %v3696, %v3695
      %v3722 = vpack.c.b16 %v3698, %v3697
      %v3723 = vpack.c.b16 %v3700, %v3699
      %v3724 = vpack.c.b16 %v3702, %v3701
      %v3725 = vpack.c.b16 %v3704, %v3703
      %v3726 = vpack.c.b16 %v3706, %v3705
      %v3727 = vpack.c.b16 %v3708, %v3707
      %v3728 = vpack.c.b16 %v3710, %v3709
      %v3729 = vpack.c.b16 %v3712, %v3711
      %v3730 = vpack.c.b16 %v3714, %v3713
      %v3763 = vunpack.c.l.b16 %v3667
      %v3764 = vunpack.c.l.b16 %v3668
      %v3765 = vunpack.c.l.b16 %v3669
      %v3766 = vunpack.c.l.b16 %v3670
      %v3767 = vunpack.c.l.b16 %v3671
      %v3768 = vunpack.c.l.b16 %v3672
      %v3769 = vunpack.c.l.b16 %v3673
      %v3770 = vunpack.c.l.b16 %v3674
      %v3771 = vunpack.c.l.b16 %v3675
      %v3772 = vunpack.c.l.b16 %v3676
      %v3773 = vunpack.c.l.b16 %v3677
      %v3774 = vunpack.c.l.b16 %v3678
      %v3775 = vunpack.c.l.b16 %v3679
      %v3776 = vunpack.c.l.b16 %v3680
      %v3777 = vunpack.c.l.b16 %v3681
      %v3778 = vunpack.c.l.b16 %v3682
      %v3779 = vpack.c.b16 %v3764, %v3763
      %v3780 = vpack.c.b16 %v3766, %v3765
      %v3781 = vpack.c.b16 %v3768, %v3767
      %v3782 = vpack.c.b16 %v3770, %v3769
      %v3783 = vpack.c.b16 %v3772, %v3771
      %v3784 = vpack.c.b16 %v3774, %v3773
      %v3785 = vpack.c.b16 %v3776, %v3775
      %v3786 = vpack.c.b16 %v3778, %v3777
      %3795 = vmatprep.subr.bf16.mxu0 0
      %3796 = vmatpush1.bf16.msra.mxu0 %v3786
      %3797 = vmatprep.subr.bf16.mxu0 0
      %3798 = vmatpush1.bf16.msra.mxu0 %v3785
      %3799 = vmatprep.subr.bf16.mxu0 0
      %3800 = vmatpush1.bf16.msra.mxu0 %v3784
      %3801 = vmatprep.subr.bf16.mxu0 0
      %3802 = vmatpush1.bf16.msra.mxu0 %v3783
      %3803 = vmatprep.subr.bf16.mxu0 0
      %3804 = vmatpush1.bf16.msra.mxu0 %v3782
      %3805 = vmatprep.subr.bf16.mxu0 0
      %3806 = vmatpush1.bf16.msra.mxu0 %v3781
      %3807 = vmatprep.subr.bf16.mxu0 0
      %3808 = vmatpush1.bf16.msra.mxu0 %v3780
      %3809 = vmatprep.subr.bf16.mxu0 0
      %3810 = vmatpush1.bf16.msra.mxu0 %v3779
      %3811 = vmatprep.subr.bf16.mxu0 0
      %3812 = vmatpush2.bf16.msra.mxu0 0
      %3813 = vmatprep.subr.bf16.mxu0 0
      %3814 = vmatpush2.bf16.msra.mxu0 0
      %3815 = vmatprep.subr.bf16.mxu0 0
      %3816 = vmatpush2.bf16.msra.mxu0 0
      %3817 = vmatprep.subr.bf16.mxu0 0
      %3818 = vmatpush2.bf16.msra.mxu0 0
      %3819 = vmatprep.subr.bf16.mxu0 0
      %3820 = vmatpush2.bf16.msra.mxu0 0
      %3821 = vmatprep.subr.bf16.mxu0 0
      %3822 = vmatpush2.bf16.msra.mxu0 0
      %3823 = vmatprep.subr.bf16.mxu0 0
      %3824 = vmatpush2.bf16.msra.mxu0 0
      %3825 = vmatprep.subr.bf16.mxu0 0
      %3826 = vmatpush2.bf16.msra.mxu0 0
      %3827 = vmatprep.mubr.bf16.mxu0 0
      %3828 = vmatmul.mubr.bf16.gmra.mxu0 %v3715
      %v3829 = vpop.f32.mrf.mxu0
      %v3830 = vadd.f32 0.0, %v3829
      %v3831 = vpop.f32.mrf.mxu0
      %v3832 = vpop.f32.mrf.mxu0
      %v3833 = vadd.f32 0.0, %v3832
      %v3834 = vpop.f32.mrf.mxu0
      %3835 = vmatprep.mubr.bf16.mxu0 0
      %3836 = vmatmul.mubr.bf16.gmra.mxu0 %v3716
      %v3837 = vpop.f32.mrf.mxu0
      %v3838 = vadd.f32 0.0, %v3837
      %v3839 = vpop.f32.mrf.mxu0
      %v3840 = vpop.f32.mrf.mxu0
      %v3841 = vadd.f32 0.0, %v3840
      %v3842 = vpop.f32.mrf.mxu0
      %3843 = vmatprep.mubr.bf16.mxu0 0
      %3844 = vmatmul.mubr.bf16.gmra.mxu0 %v3717
      %v3845 = vpop.f32.mrf.mxu0
      %v3846 = vadd.f32 0.0, %v3845
      %v3847 = vpop.f32.mrf.mxu0
      %v3848 = vpop.f32.mrf.mxu0
      %v3849 = vadd.f32 0.0, %v3848
      %v3850 = vpop.f32.mrf.mxu0
      %3851 = vmatprep.mubr.bf16.mxu0 0
      %3852 = vmatmul.mubr.bf16.gmra.mxu0 %v3718
      %v3853 = vpop.f32.mrf.mxu0
      %v3854 = vadd.f32 0.0, %v3853
      %v3855 = vpop.f32.mrf.mxu0
      %v3856 = vpop.f32.mrf.mxu0
      %v3857 = vadd.f32 0.0, %v3856
      %v3858 = vpop.f32.mrf.mxu0
      %3859 = vmatprep.mubr.bf16.mxu0 0
      %3860 = vmatmul.mubr.bf16.gmra.mxu0 %v3719
      %v3861 = vpop.f32.mrf.mxu0
      %v3862 = vadd.f32 0.0, %v3861
      %v3863 = vpop.f32.mrf.mxu0
      %v3864 = vpop.f32.mrf.mxu0
      %v3865 = vadd.f32 0.0, %v3864
      %v3866 = vpop.f32.mrf.mxu0
      %3867 = vmatprep.mubr.bf16.mxu0 0
      %3868 = vmatmul.mubr.bf16.gmra.mxu0 %v3720
      %v3869 = vpop.f32.mrf.mxu0
      %v3870 = vadd.f32 0.0, %v3869
      %v3871 = vpop.f32.mrf.mxu0
      %v3872 = vpop.f32.mrf.mxu0
      %v3873 = vadd.f32 0.0, %v3872
      %v3874 = vpop.f32.mrf.mxu0
      %3875 = vmatprep.mubr.bf16.mxu0 0
      %3876 = vmatmul.mubr.bf16.gmra.mxu0 %v3721
      %v3877 = vpop.f32.mrf.mxu0
      %v3878 = vadd.f32 0.0, %v3877
      %v3879 = vpop.f32.mrf.mxu0
      %v3880 = vpop.f32.mrf.mxu0
      %v3881 = vadd.f32 0.0, %v3880
      %v3882 = vpop.f32.mrf.mxu0
      %3883 = vmatprep.mubr.bf16.mxu0 0
      %3884 = vmatmul.mubr.bf16.gmra.mxu0 %v3722
      %v3885 = vpop.f32.mrf.mxu0
      %v3886 = vadd.f32 0.0, %v3885
      %v3887 = vpop.f32.mrf.mxu0
      %v3888 = vpop.f32.mrf.mxu0
      %v3889 = vadd.f32 0.0, %v3888
      %v3890 = vpop.f32.mrf.mxu0
      %3891 = vmatprep.mubr.bf16.mxu0 0
      %3892 = vmatmul.mubr.bf16.gmra.mxu0 %v3723
      %v3893 = vpop.f32.mrf.mxu0
      %v3894 = vadd.f32 0.0, %v3893
      %v3895 = vpop.f32.mrf.mxu0
      %v3896 = vpop.f32.mrf.mxu0
      %v3897 = vadd.f32 0.0, %v3896
      %v3898 = vpop.f32.mrf.mxu0
      %3899 = vmatprep.mubr.bf16.mxu0 0
      %3900 = vmatmul.mubr.bf16.gmra.mxu0 %v3724
      %v3901 = vpop.f32.mrf.mxu0
      %v3902 = vadd.f32 0.0, %v3901
      %v3903 = vpop.f32.mrf.mxu0
      %v3904 = vpop.f32.mrf.mxu0
      %v3905 = vadd.f32 0.0, %v3904
      %v3906 = vpop.f32.mrf.mxu0
      %3907 = vmatprep.mubr.bf16.mxu0 0
      %3908 = vmatmul.mubr.bf16.gmra.mxu0 %v3725
      %v3909 = vpop.f32.mrf.mxu0
      %v3910 = vadd.f32 0.0, %v3909
      %v3911 = vpop.f32.mrf.mxu0
      %v3912 = vpop.f32.mrf.mxu0
      %v3913 = vadd.f32 0.0, %v3912
      %v3914 = vpop.f32.mrf.mxu0
      %3915 = vmatprep.mubr.bf16.mxu0 0
      %3916 = vmatmul.mubr.bf16.gmra.mxu0 %v3726
      %v3917 = vpop.f32.mrf.mxu0
      %v3918 = vadd.f32 0.0, %v3917
      %v3919 = vpop.f32.mrf.mxu0
      %v3920 = vpop.f32.mrf.mxu0
      %v3921 = vadd.f32 0.0, %v3920
      %v3922 = vpop.f32.mrf.mxu0
      %3923 = vmatprep.mubr.bf16.mxu0 0
      %3924 = vmatmul.mubr.bf16.gmra.mxu0 %v3727
      %v3925 = vpop.f32.mrf.mxu0
      %v3926 = vadd.f32 0.0, %v3925
      %v3927 = vpop.f32.mrf.mxu0
      %v3928 = vpop.f32.mrf.mxu0
      %v3929 = vadd.f32 0.0, %v3928
      %v3930 = vpop.f32.mrf.mxu0
      %3931 = vmatprep.mubr.bf16.mxu0 0
      %3932 = vmatmul.mubr.bf16.gmra.mxu0 %v3728
      %v3933 = vpop.f32.mrf.mxu0
      %v3934 = vadd.f32 0.0, %v3933
      %v3935 = vpop.f32.mrf.mxu0
      %v3936 = vpop.f32.mrf.mxu0
      %v3937 = vadd.f32 0.0, %v3936
      %v3938 = vpop.f32.mrf.mxu0
      %3939 = vmatprep.mubr.bf16.mxu0 0
      %3940 = vmatmul.mubr.bf16.gmra.mxu0 %v3729
      %v3941 = vpop.f32.mrf.mxu0
      %v3942 = vadd.f32 0.0, %v3941
      %v3943 = vpop.f32.mrf.mxu0
      %v3944 = vpop.f32.mrf.mxu0
      %v3945 = vadd.f32 0.0, %v3944
      %v3946 = vpop.f32.mrf.mxu0
      %3947 = vmatprep.mubr.bf16.mxu0 0
      %3948 = vmatmul.mubr.bf16.gmra.mxu0 %v3730
      %v3949 = vpop.f32.mrf.mxu0
      %v3950 = vadd.f32 0.0, %v3949
      %v3951 = vpop.f32.mrf.mxu0
      %v3952 = vpop.f32.mrf.mxu0
      %v3953 = vadd.f32 0.0, %v3952
      %v3954 = vpop.f32.mrf.mxu0
      %3955 = vdwg.mxu0
      %v3956 = vadd.f32 %v3459, %v3830
      %v3957 = vadd.f32 %v3460, %v3833
      %v3958 = vadd.f32 %v3461, %v3838
      %v3959 = vadd.f32 %v3462, %v3841
      %v3960 = vadd.f32 %v3463, %v3846
      %v3961 = vadd.f32 %v3464, %v3849
      %v3962 = vadd.f32 %v3465, %v3854
      %v3963 = vadd.f32 %v3466, %v3857
      %v3964 = vadd.f32 %v3467, %v3862
      %v3965 = vadd.f32 %v3468, %v3865
      %v3966 = vadd.f32 %v3469, %v3870
      %v3967 = vadd.f32 %v3470, %v3873
      %v3968 = vadd.f32 %v3471, %v3878
      %v3969 = vadd.f32 %v3472, %v3881
      %v3970 = vadd.f32 %v3473, %v3886
      %v3971 = vadd.f32 %v3474, %v3889
      %v3972 = vadd.f32 %v3475, %v3894
      %v3973 = vadd.f32 %v3476, %v3897
      %v3974 = vadd.f32 %v3477, %v3902
      %v3975 = vadd.f32 %v3478, %v3905
      %v3976 = vadd.f32 %v3479, %v3910
      %v3977 = vadd.f32 %v3480, %v3913
      %v3978 = vadd.f32 %v3481, %v3918
      %v3979 = vadd.f32 %v3482, %v3921
      %v3980 = vadd.f32 %v3483, %v3926
      %v3981 = vadd.f32 %v3484, %v3929
      %v3982 = vadd.f32 %v3485, %v3934
      %v3983 = vadd.f32 %v3486, %v3937
      %v3984 = vadd.f32 %v3487, %v3942
      %v3985 = vadd.f32 %v3488, %v3945
      %v3986 = vadd.f32 %v3489, %v3950
      %v3987 = vadd.f32 %v3490, %v3953
      %s3988 = scalar_lea.vmem [#allocation2], 24
      %v3989 = vld [vmem:[%s3988] sm:$0xf]
      %v3990 = vld [vmem:[%s3988 + $0x4] sm:$0xf]
      %v3991 = vld [vmem:[%s3988 + $0xc] sm:$0xf]
      %v3992 = vld [vmem:[%s3988 + $0x10] sm:$0xf]
      %v3993 = vld [vmem:[%s3988 + $0x18] sm:$0xf]
      %v3994 = vld [vmem:[%s3988 + $0x1c] sm:$0xf]
      %v3995 = vld [vmem:[%s3988 + $0x24] sm:$0xf]
      %v3996 = vld [vmem:[%s3988 + $0x28] sm:$0xf]
      %v3997 = vld [vmem:[%s3988 + $0x30] sm:$0xf]
      %v3998 = vld [vmem:[%s3988 + $0x34] sm:$0xf]
      %v3999 = vld [vmem:[%s3988 + $0x3c] sm:$0xf]
      %v4000 = vld [vmem:[%s3988 + $0x40] sm:$0xf]
      %v4001 = vld [vmem:[%s3988 + $0x48] sm:$0xf]
      %v4002 = vld [vmem:[%s3988 + $0x4c] sm:$0xf]
      %v4003 = vld [vmem:[%s3988 + $0x54] sm:$0xf]
      %v4004 = vld [vmem:[%s3988 + $0x58] sm:$0xf]
      %v4005 = vld [vmem:[%s3988 + $0x60] sm:$0xf]
      %v4006 = vld [vmem:[%s3988 + $0x64] sm:$0xf]
      %v4007 = vld [vmem:[%s3988 + $0x6c] sm:$0xf]
      %v4008 = vld [vmem:[%s3988 + $0x70] sm:$0xf]
      %v4009 = vld [vmem:[%s3988 + $0x78] sm:$0xf]
      %v4010 = vld [vmem:[%s3988 + $0x7c] sm:$0xf]
      %v4011 = vld [vmem:[%s3988 + $0x84] sm:$0xf]
      %v4012 = vld [vmem:[%s3988 + $0x88] sm:$0xf]
      %v4013 = vld [vmem:[%s3988 + $0x90] sm:$0xf]
      %v4014 = vld [vmem:[%s3988 + $0x94] sm:$0xf]
      %v4015 = vld [vmem:[%s3988 + $0x9c] sm:$0xf]
      %v4016 = vld [vmem:[%s3988 + $0xa0] sm:$0xf]
      %v4017 = vld [vmem:[%s3988 + $0xa8] sm:$0xf]
      %v4018 = vld [vmem:[%s3988 + $0xac] sm:$0xf]
      %v4019 = vld [vmem:[%s3988 + $0xb4] sm:$0xf]
      %v4020 = vld [vmem:[%s3988 + $0xb8] sm:$0xf]
      %v4021 = vld [vmem:[%s1 + $0x180] sm:$0xf]
      %v4022 = vld [vmem:[%s1 + $0x184] sm:$0xf]
      %v4023 = vld [vmem:[%s1 + $0x188] sm:$0xf]
      %v4024 = vld [vmem:[%s1 + $0x18c] sm:$0xf]
      %v4025 = vld [vmem:[%s1 + $0x190] sm:$0xf]
      %v4026 = vld [vmem:[%s1 + $0x194] sm:$0xf]
      %v4027 = vld [vmem:[%s1 + $0x198] sm:$0xf]
      %v4028 = vld [vmem:[%s1 + $0x19c] sm:$0xf]
      %v4029 = vld [vmem:[%s1 + $0x1a0] sm:$0xf]
      %v4030 = vld [vmem:[%s1 + $0x1a4] sm:$0xf]
      %v4031 = vld [vmem:[%s1 + $0x1a8] sm:$0xf]
      %v4032 = vld [vmem:[%s1 + $0x1ac] sm:$0xf]
      %v4033 = vld [vmem:[%s1 + $0x1b0] sm:$0xf]
      %v4034 = vld [vmem:[%s1 + $0x1b4] sm:$0xf]
      %v4035 = vld [vmem:[%s1 + $0x1b8] sm:$0xf]
      %v4036 = vld [vmem:[%s1 + $0x1bc] sm:$0xf]
      %v4069 = vunpack.c.l.b16 %v3989
      %v4070 = vunpack.c.l.b16 %v3990
      %v4071 = vunpack.c.l.b16 %v3991
      %v4072 = vunpack.c.l.b16 %v3992
      %v4073 = vunpack.c.l.b16 %v3993
      %v4074 = vunpack.c.l.b16 %v3994
      %v4075 = vunpack.c.l.b16 %v3995
      %v4076 = vunpack.c.l.b16 %v3996
      %v4077 = vunpack.c.l.b16 %v3997
      %v4078 = vunpack.c.l.b16 %v3998
      %v4079 = vunpack.c.l.b16 %v3999
      %v4080 = vunpack.c.l.b16 %v4000
      %v4081 = vunpack.c.l.b16 %v4001
      %v4082 = vunpack.c.l.b16 %v4002
      %v4083 = vunpack.c.l.b16 %v4003
      %v4084 = vunpack.c.l.b16 %v4004
      %v4085 = vunpack.c.l.b16 %v4005
      %v4086 = vunpack.c.l.b16 %v4006
      %v4087 = vunpack.c.l.b16 %v4007
      %v4088 = vunpack.c.l.b16 %v4008
      %v4089 = vunpack.c.l.b16 %v4009
      %v4090 = vunpack.c.l.b16 %v4010
      %v4091 = vunpack.c.l.b16 %v4011
      %v4092 = vunpack.c.l.b16 %v4012
      %v4093 = vunpack.c.l.b16 %v4013
      %v4094 = vunpack.c.l.b16 %v4014
      %v4095 = vunpack.c.l.b16 %v4015
      %v4096 = vunpack.c.l.b16 %v4016
      %v4097 = vunpack.c.l.b16 %v4017
      %v4098 = vunpack.c.l.b16 %v4018
      %v4099 = vunpack.c.l.b16 %v4019
      %v4100 = vunpack.c.l.b16 %v4020
      %v4101 = vpack.c.b16 %v4070, %v4069
      %v4102 = vpack.c.b16 %v4072, %v4071
      %v4103 = vpack.c.b16 %v4074, %v4073
      %v4104 = vpack.c.b16 %v4076, %v4075
      %v4105 = vpack.c.b16 %v4078, %v4077
      %v4106 = vpack.c.b16 %v4080, %v4079
      %v4107 = vpack.c.b16 %v4082, %v4081
      %v4108 = vpack.c.b16 %v4084, %v4083
      %v4109 = vpack.c.b16 %v4086, %v4085
      %v4110 = vpack.c.b16 %v4088, %v4087
      %v4111 = vpack.c.b16 %v4090, %v4089
      %v4112 = vpack.c.b16 %v4092, %v4091
      %v4113 = vpack.c.b16 %v4094, %v4093
      %v4114 = vpack.c.b16 %v4096, %v4095
      %v4115 = vpack.c.b16 %v4098, %v4097
      %v4116 = vpack.c.b16 %v4100, %v4099
      %v4149 = vunpack.c.l.b16 %v4021
      %v4150 = vunpack.c.l.b16 %v4022
      %v4151 = vunpack.c.l.b16 %v4023
      %v4152 = vunpack.c.l.b16 %v4024
      %v4153 = vunpack.c.l.b16 %v4025
      %v4154 = vunpack.c.l.b16 %v4026
      %v4155 = vunpack.c.l.b16 %v4027
      %v4156 = vunpack.c.l.b16 %v4028
      %v4157 = vunpack.c.l.b16 %v4029
      %v4158 = vunpack.c.l.b16 %v4030
      %v4159 = vunpack.c.l.b16 %v4031
      %v4160 = vunpack.c.l.b16 %v4032
      %v4161 = vunpack.c.l.b16 %v4033
      %v4162 = vunpack.c.l.b16 %v4034
      %v4163 = vunpack.c.l.b16 %v4035
      %v4164 = vunpack.c.l.b16 %v4036
      %v4165 = vpack.c.b16 %v4150, %v4149
      %v4166 = vpack.c.b16 %v4152, %v4151
      %v4167 = vpack.c.b16 %v4154, %v4153
      %v4168 = vpack.c.b16 %v4156, %v4155
      %v4169 = vpack.c.b16 %v4158, %v4157
      %v4170 = vpack.c.b16 %v4160, %v4159
      %v4171 = vpack.c.b16 %v4162, %v4161
      %v4172 = vpack.c.b16 %v4164, %v4163
      %4181 = vmatprep.subr.bf16.mxu0 0
      %4182 = vmatpush1.bf16.msra.mxu0 %v4172
      %4183 = vmatprep.subr.bf16.mxu0 0
      %4184 = vmatpush1.bf16.msra.mxu0 %v4171
      %4185 = vmatprep.subr.bf16.mxu0 0
      %4186 = vmatpush1.bf16.msra.mxu0 %v4170
      %4187 = vmatprep.subr.bf16.mxu0 0
      %4188 = vmatpush1.bf16.msra.mxu0 %v4169
      %4189 = vmatprep.subr.bf16.mxu0 0
      %4190 = vmatpush1.bf16.msra.mxu0 %v4168
      %4191 = vmatprep.subr.bf16.mxu0 0
      %4192 = vmatpush1.bf16.msra.mxu0 %v4167
      %4193 = vmatprep.subr.bf16.mxu0 0
      %4194 = vmatpush1.bf16.msra.mxu0 %v4166
      %4195 = vmatprep.subr.bf16.mxu0 0
      %4196 = vmatpush1.bf16.msra.mxu0 %v4165
      %4197 = vmatprep.subr.bf16.mxu0 0
      %4198 = vmatpush2.bf16.msra.mxu0 0
      %4199 = vmatprep.subr.bf16.mxu0 0
      %4200 = vmatpush2.bf16.msra.mxu0 0
      %4201 = vmatprep.subr.bf16.mxu0 0
      %4202 = vmatpush2.bf16.msra.mxu0 0
      %4203 = vmatprep.subr.bf16.mxu0 0
      %4204 = vmatpush2.bf16.msra.mxu0 0
      %4205 = vmatprep.subr.bf16.mxu0 0
      %4206 = vmatpush2.bf16.msra.mxu0 0
      %4207 = vmatprep.subr.bf16.mxu0 0
      %4208 = vmatpush2.bf16.msra.mxu0 0
      %4209 = vmatprep.subr.bf16.mxu0 0
      %4210 = vmatpush2.bf16.msra.mxu0 0
      %4211 = vmatprep.subr.bf16.mxu0 0
      %4212 = vmatpush2.bf16.msra.mxu0 0
      %4213 = vmatprep.mubr.bf16.mxu0 0
      %4214 = vmatmul.mubr.bf16.gmra.mxu0 %v4101
      %v4215 = vpop.f32.mrf.mxu0
      %v4216 = vadd.f32 0.0, %v4215
      %v4217 = vpop.f32.mrf.mxu0
      %v4218 = vpop.f32.mrf.mxu0
      %v4219 = vadd.f32 0.0, %v4218
      %v4220 = vpop.f32.mrf.mxu0
      %4221 = vmatprep.mubr.bf16.mxu0 0
      %4222 = vmatmul.mubr.bf16.gmra.mxu0 %v4102
      %v4223 = vpop.f32.mrf.mxu0
      %v4224 = vadd.f32 0.0, %v4223
      %v4225 = vpop.f32.mrf.mxu0
      %v4226 = vpop.f32.mrf.mxu0
      %v4227 = vadd.f32 0.0, %v4226
      %v4228 = vpop.f32.mrf.mxu0
      %4229 = vmatprep.mubr.bf16.mxu0 0
      %4230 = vmatmul.mubr.bf16.gmra.mxu0 %v4103
      %v4231 = vpop.f32.mrf.mxu0
      %v4232 = vadd.f32 0.0, %v4231
      %v4233 = vpop.f32.mrf.mxu0
      %v4234 = vpop.f32.mrf.mxu0
      %v4235 = vadd.f32 0.0, %v4234
      %v4236 = vpop.f32.mrf.mxu0
      %4237 = vmatprep.mubr.bf16.mxu0 0
      %4238 = vmatmul.mubr.bf16.gmra.mxu0 %v4104
      %v4239 = vpop.f32.mrf.mxu0
      %v4240 = vadd.f32 0.0, %v4239
      %v4241 = vpop.f32.mrf.mxu0
      %v4242 = vpop.f32.mrf.mxu0
      %v4243 = vadd.f32 0.0, %v4242
      %v4244 = vpop.f32.mrf.mxu0
      %4245 = vmatprep.mubr.bf16.mxu0 0
      %4246 = vmatmul.mubr.bf16.gmra.mxu0 %v4105
      %v4247 = vpop.f32.mrf.mxu0
      %v4248 = vadd.f32 0.0, %v4247
      %v4249 = vpop.f32.mrf.mxu0
      %v4250 = vpop.f32.mrf.mxu0
      %v4251 = vadd.f32 0.0, %v4250
      %v4252 = vpop.f32.mrf.mxu0
      %4253 = vmatprep.mubr.bf16.mxu0 0
      %4254 = vmatmul.mubr.bf16.gmra.mxu0 %v4106
      %v4255 = vpop.f32.mrf.mxu0
      %v4256 = vadd.f32 0.0, %v4255
      %v4257 = vpop.f32.mrf.mxu0
      %v4258 = vpop.f32.mrf.mxu0
      %v4259 = vadd.f32 0.0, %v4258
      %v4260 = vpop.f32.mrf.mxu0
      %4261 = vmatprep.mubr.bf16.mxu0 0
      %4262 = vmatmul.mubr.bf16.gmra.mxu0 %v4107
      %v4263 = vpop.f32.mrf.mxu0
      %v4264 = vadd.f32 0.0, %v4263
      %v4265 = vpop.f32.mrf.mxu0
      %v4266 = vpop.f32.mrf.mxu0
      %v4267 = vadd.f32 0.0, %v4266
      %v4268 = vpop.f32.mrf.mxu0
      %4269 = vmatprep.mubr.bf16.mxu0 0
      %4270 = vmatmul.mubr.bf16.gmra.mxu0 %v4108
      %v4271 = vpop.f32.mrf.mxu0
      %v4272 = vadd.f32 0.0, %v4271
      %v4273 = vpop.f32.mrf.mxu0
      %v4274 = vpop.f32.mrf.mxu0
      %v4275 = vadd.f32 0.0, %v4274
      %v4276 = vpop.f32.mrf.mxu0
      %4277 = vmatprep.mubr.bf16.mxu0 0
      %4278 = vmatmul.mubr.bf16.gmra.mxu0 %v4109
      %v4279 = vpop.f32.mrf.mxu0
      %v4280 = vadd.f32 0.0, %v4279
      %v4281 = vpop.f32.mrf.mxu0
      %v4282 = vpop.f32.mrf.mxu0
      %v4283 = vadd.f32 0.0, %v4282
      %v4284 = vpop.f32.mrf.mxu0
      %4285 = vmatprep.mubr.bf16.mxu0 0
      %4286 = vmatmul.mubr.bf16.gmra.mxu0 %v4110
      %v4287 = vpop.f32.mrf.mxu0
      %v4288 = vadd.f32 0.0, %v4287
      %v4289 = vpop.f32.mrf.mxu0
      %v4290 = vpop.f32.mrf.mxu0
      %v4291 = vadd.f32 0.0, %v4290
      %v4292 = vpop.f32.mrf.mxu0
      %4293 = vmatprep.mubr.bf16.mxu0 0
      %4294 = vmatmul.mubr.bf16.gmra.mxu0 %v4111
      %v4295 = vpop.f32.mrf.mxu0
      %v4296 = vadd.f32 0.0, %v4295
      %v4297 = vpop.f32.mrf.mxu0
      %v4298 = vpop.f32.mrf.mxu0
      %v4299 = vadd.f32 0.0, %v4298
      %v4300 = vpop.f32.mrf.mxu0
      %4301 = vmatprep.mubr.bf16.mxu0 0
      %4302 = vmatmul.mubr.bf16.gmra.mxu0 %v4112
      %v4303 = vpop.f32.mrf.mxu0
      %v4304 = vadd.f32 0.0, %v4303
      %v4305 = vpop.f32.mrf.mxu0
      %v4306 = vpop.f32.mrf.mxu0
      %v4307 = vadd.f32 0.0, %v4306
      %v4308 = vpop.f32.mrf.mxu0
      %4309 = vmatprep.mubr.bf16.mxu0 0
      %4310 = vmatmul.mubr.bf16.gmra.mxu0 %v4113
      %v4311 = vpop.f32.mrf.mxu0
      %v4312 = vadd.f32 0.0, %v4311
      %v4313 = vpop.f32.mrf.mxu0
      %v4314 = vpop.f32.mrf.mxu0
      %v4315 = vadd.f32 0.0, %v4314
      %v4316 = vpop.f32.mrf.mxu0
      %4317 = vmatprep.mubr.bf16.mxu0 0
      %4318 = vmatmul.mubr.bf16.gmra.mxu0 %v4114
      %v4319 = vpop.f32.mrf.mxu0
      %v4320 = vadd.f32 0.0, %v4319
      %v4321 = vpop.f32.mrf.mxu0
      %v4322 = vpop.f32.mrf.mxu0
      %v4323 = vadd.f32 0.0, %v4322
      %v4324 = vpop.f32.mrf.mxu0
      %4325 = vmatprep.mubr.bf16.mxu0 0
      %4326 = vmatmul.mubr.bf16.gmra.mxu0 %v4115
      %v4327 = vpop.f32.mrf.mxu0
      %v4328 = vadd.f32 0.0, %v4327
      %v4329 = vpop.f32.mrf.mxu0
      %v4330 = vpop.f32.mrf.mxu0
      %v4331 = vadd.f32 0.0, %v4330
      %v4332 = vpop.f32.mrf.mxu0
      %4333 = vmatprep.mubr.bf16.mxu0 0
      %4334 = vmatmul.mubr.bf16.gmra.mxu0 %v4116
      %v4335 = vpop.f32.mrf.mxu0
      %v4336 = vadd.f32 0.0, %v4335
      %v4337 = vpop.f32.mrf.mxu0
      %v4338 = vpop.f32.mrf.mxu0
      %v4339 = vadd.f32 0.0, %v4338
      %v4340 = vpop.f32.mrf.mxu0
      %4341 = vdwg.mxu0
      %v4342 = vadd.f32 %v3956, %v4216
      %v4343 = vadd.f32 %v3957, %v4219
      %v4344 = vadd.f32 %v3958, %v4224
      %v4345 = vadd.f32 %v3959, %v4227
      %v4346 = vadd.f32 %v3960, %v4232
      %v4347 = vadd.f32 %v3961, %v4235
      %v4348 = vadd.f32 %v3962, %v4240
      %v4349 = vadd.f32 %v3963, %v4243
      %v4350 = vadd.f32 %v3964, %v4248
      %v4351 = vadd.f32 %v3965, %v4251
      %v4352 = vadd.f32 %v3966, %v4256
      %v4353 = vadd.f32 %v3967, %v4259
      %v4354 = vadd.f32 %v3968, %v4264
      %v4355 = vadd.f32 %v3969, %v4267
      %v4356 = vadd.f32 %v3970, %v4272
      %v4357 = vadd.f32 %v3971, %v4275
      %v4358 = vadd.f32 %v3972, %v4280
      %v4359 = vadd.f32 %v3973, %v4283
      %v4360 = vadd.f32 %v3974, %v4288
      %v4361 = vadd.f32 %v3975, %v4291
      %v4362 = vadd.f32 %v3976, %v4296
      %v4363 = vadd.f32 %v3977, %v4299
      %v4364 = vadd.f32 %v3978, %v4304
      %v4365 = vadd.f32 %v3979, %v4307
      %v4366 = vadd.f32 %v3980, %v4312
      %v4367 = vadd.f32 %v3981, %v4315
      %v4368 = vadd.f32 %v3982, %v4320
      %v4369 = vadd.f32 %v3983, %v4323
      %v4370 = vadd.f32 %v3984, %v4328
      %v4371 = vadd.f32 %v3985, %v4331
      %v4372 = vadd.f32 %v3986, %v4336
      %v4373 = vadd.f32 %v3987, %v4339
      %v4374 = vld [vmem:[%s3988] sm:$0xf]
      %v4375 = vld [vmem:[%s3988 + $0x4] sm:$0xf]
      %v4376 = vld [vmem:[%s3988 + $0x8] sm:$0x1]
      %v4377 = vld [vmem:[%s3988 + $0xc] sm:$0xf]
      %v4378 = vld [vmem:[%s3988 + $0x10] sm:$0xf]
      %v4379 = vld [vmem:[%s3988 + $0x14] sm:$0x1]
      %v4380 = vld [vmem:[%s3988 + $0x18] sm:$0xf]
      %v4381 = vld [vmem:[%s3988 + $0x1c] sm:$0xf]
      %v4382 = vld [vmem:[%s3988 + $0x20] sm:$0x1]
      %v4383 = vld [vmem:[%s3988 + $0x24] sm:$0xf]
      %v4384 = vld [vmem:[%s3988 + $0x28] sm:$0xf]
      %v4385 = vld [vmem:[%s3988 + $0x2c] sm:$0x1]
      %v4386 = vld [vmem:[%s3988 + $0x30] sm:$0xf]
      %v4387 = vld [vmem:[%s3988 + $0x34] sm:$0xf]
      %v4388 = vld [vmem:[%s3988 + $0x38] sm:$0x1]
      %v4389 = vld [vmem:[%s3988 + $0x3c] sm:$0xf]
      %v4390 = vld [vmem:[%s3988 + $0x40] sm:$0xf]
      %v4391 = vld [vmem:[%s3988 + $0x44] sm:$0x1]
      %v4392 = vld [vmem:[%s3988 + $0x48] sm:$0xf]
      %v4393 = vld [vmem:[%s3988 + $0x4c] sm:$0xf]
      %v4394 = vld [vmem:[%s3988 + $0x50] sm:$0x1]
      %v4395 = vld [vmem:[%s3988 + $0x54] sm:$0xf]
      %v4396 = vld [vmem:[%s3988 + $0x58] sm:$0xf]
      %v4397 = vld [vmem:[%s3988 + $0x5c] sm:$0x1]
      %v4398 = vld [vmem:[%s3988 + $0x60] sm:$0xf]
      %v4399 = vld [vmem:[%s3988 + $0x64] sm:$0xf]
      %v4400 = vld [vmem:[%s3988 + $0x68] sm:$0x1]
      %v4401 = vld [vmem:[%s3988 + $0x6c] sm:$0xf]
      %v4402 = vld [vmem:[%s3988 + $0x70] sm:$0xf]
      %v4403 = vld [vmem:[%s3988 + $0x74] sm:$0x1]
      %v4404 = vld [vmem:[%s3988 + $0x78] sm:$0xf]
      %v4405 = vld [vmem:[%s3988 + $0x7c] sm:$0xf]
      %v4406 = vld [vmem:[%s3988 + $0x80] sm:$0x1]
      %v4407 = vld [vmem:[%s3988 + $0x84] sm:$0xf]
      %v4408 = vld [vmem:[%s3988 + $0x88] sm:$0xf]
      %v4409 = vld [vmem:[%s3988 + $0x8c] sm:$0x1]
      %v4410 = vld [vmem:[%s3988 + $0x90] sm:$0xf]
      %v4411 = vld [vmem:[%s3988 + $0x94] sm:$0xf]
      %v4412 = vld [vmem:[%s3988 + $0x98] sm:$0x1]
      %v4413 = vld [vmem:[%s3988 + $0x9c] sm:$0xf]
      %v4414 = vld [vmem:[%s3988 + $0xa0] sm:$0xf]
      %v4415 = vld [vmem:[%s3988 + $0xa4] sm:$0x1]
      %v4416 = vld [vmem:[%s3988 + $0xa8] sm:$0xf]
      %v4417 = vld [vmem:[%s3988 + $0xac] sm:$0xf]
      %v4418 = vld [vmem:[%s3988 + $0xb0] sm:$0x1]
      %v4419 = vld [vmem:[%s3988 + $0xb4] sm:$0xf]
      %v4420 = vld [vmem:[%s3988 + $0xb8] sm:$0xf]
      %v4421 = vld [vmem:[%s3988 + $0xbc] sm:$0x1]
      %v4423 = vshrl.u32 %v4374, 16
      %v4425 = vrot.slane %v4423, 4
      %v4426 = vshll.u32 %v4374, 16
      %v4428 = vrot.slane %v4426, 5
      %v4429 = vor.u32 %v4425, %v4428
      %v4430 = vrot.slane %v4429, 4
      %v4432 = vshll.u32 %v4375, 16
      %v4434 = vrot.slane %v4432, 5
      %v4435 = vsel %vm890, %v4430, %v4434
      %v4436 = vshrl.u32 %v4375, 16
      %v4438 = vrot.slane %v4436, 4
      %v4439 = vor.u32 %v4438, %v4434
      %v4440 = vrot.slane %v4439, 4
      %v4442 = vshll.u32 %v4376, 16
      %v4444 = vrot.slane %v4442, 5
      %v4445 = vsel %vm890, %v4440, %v4444
      %v4447 = vshrl.u32 %v4377, 16
      %v4449 = vrot.slane %v4447, 4
      %v4450 = vshll.u32 %v4377, 16
      %v4452 = vrot.slane %v4450, 5
      %v4453 = vor.u32 %v4449, %v4452
      %v4454 = vrot.slane %v4453, 4
      %v4456 = vshll.u32 %v4378, 16
      %v4458 = vrot.slane %v4456, 5
      %v4459 = vsel %vm890, %v4454, %v4458
      %v4460 = vshrl.u32 %v4378, 16
      %v4462 = vrot.slane %v4460, 4
      %v4463 = vor.u32 %v4462, %v4458
      %v4464 = vrot.slane %v4463, 4
      %v4466 = vshll.u32 %v4379, 16
      %v4468 = vrot.slane %v4466, 5
      %v4469 = vsel %vm890, %v4464, %v4468
      %v4471 = vshrl.u32 %v4380, 16
      %v4473 = vrot.slane %v4471, 4
      %v4474 = vshll.u32 %v4380, 16
      %v4476 = vrot.slane %v4474, 5
      %v4477 = vor.u32 %v4473, %v4476
      %v4478 = vrot.slane %v4477, 4
      %v4480 = vshll.u32 %v4381, 16
      %v4482 = vrot.slane %v4480, 5
      %v4483 = vsel %vm890, %v4478, %v4482
      %v4484 = vshrl.u32 %v4381, 16
      %v4486 = vrot.slane %v4484, 4
      %v4487 = vor.u32 %v4486, %v4482
      %v4488 = vrot.slane %v4487, 4
      %v4490 = vshll.u32 %v4382, 16
      %v4492 = vrot.slane %v4490, 5
      %v4493 = vsel %vm890, %v4488, %v4492
      %v4495 = vshrl.u32 %v4383, 16
      %v4497 = vrot.slane %v4495, 4
      %v4498 = vshll.u32 %v4383, 16
      %v4500 = vrot.slane %v4498, 5
      %v4501 = vor.u32 %v4497, %v4500
      %v4502 = vrot.slane %v4501, 4
      %v4504 = vshll.u32 %v4384, 16
      %v4506 = vrot.slane %v4504, 5
      %v4507 = vsel %vm890, %v4502, %v4506
      %v4508 = vshrl.u32 %v4384, 16
      %v4510 = vrot.slane %v4508, 4
      %v4511 = vor.u32 %v4510, %v4506
      %v4512 = vrot.slane %v4511, 4
      %v4514 = vshll.u32 %v4385, 16
      %v4516 = vrot.slane %v4514, 5
      %v4517 = vsel %vm890, %v4512, %v4516
      %v4519 = vshrl.u32 %v4386, 16
      %v4521 = vrot.slane %v4519, 4
      %v4522 = vshll.u32 %v4386, 16
      %v4524 = vrot.slane %v4522, 5
      %v4525 = vor.u32 %v4521, %v4524
      %v4526 = vrot.slane %v4525, 4
      %v4528 = vshll.u32 %v4387, 16
      %v4530 = vrot.slane %v4528, 5
      %v4531 = vsel %vm890, %v4526, %v4530
      %v4532 = vshrl.u32 %v4387, 16
      %v4534 = vrot.slane %v4532, 4
      %v4535 = vor.u32 %v4534, %v4530
      %v4536 = vrot.slane %v4535, 4
      %v4538 = vshll.u32 %v4388, 16
      %v4540 = vrot.slane %v4538, 5
      %v4541 = vsel %vm890, %v4536, %v4540
      %v4543 = vshrl.u32 %v4389, 16
      %v4545 = vrot.slane %v4543, 4
      %v4546 = vshll.u32 %v4389, 16
      %v4548 = vrot.slane %v4546, 5
      %v4549 = vor.u32 %v4545, %v4548
      %v4550 = vrot.slane %v4549, 4
      %v4552 = vshll.u32 %v4390, 16
      %v4554 = vrot.slane %v4552, 5
      %v4555 = vsel %vm890, %v4550, %v4554
      %v4556 = vshrl.u32 %v4390, 16
      %v4558 = vrot.slane %v4556, 4
      %v4559 = vor.u32 %v4558, %v4554
      %v4560 = vrot.slane %v4559, 4
      %v4562 = vshll.u32 %v4391, 16
      %v4564 = vrot.slane %v4562, 5
      %v4565 = vsel %vm890, %v4560, %v4564
      %v4567 = vshrl.u32 %v4392, 16
      %v4569 = vrot.slane %v4567, 4
      %v4570 = vshll.u32 %v4392, 16
      %v4572 = vrot.slane %v4570, 5
      %v4573 = vor.u32 %v4569, %v4572
      %v4574 = vrot.slane %v4573, 4
      %v4576 = vshll.u32 %v4393, 16
      %v4578 = vrot.slane %v4576, 5
      %v4579 = vsel %vm890, %v4574, %v4578
      %v4580 = vshrl.u32 %v4393, 16
      %v4582 = vrot.slane %v4580, 4
      %v4583 = vor.u32 %v4582, %v4578
      %v4584 = vrot.slane %v4583, 4
      %v4586 = vshll.u32 %v4394, 16
      %v4588 = vrot.slane %v4586, 5
      %v4589 = vsel %vm890, %v4584, %v4588
      %v4591 = vshrl.u32 %v4395, 16
      %v4593 = vrot.slane %v4591, 4
      %v4594 = vshll.u32 %v4395, 16
      %v4596 = vrot.slane %v4594, 5
      %v4597 = vor.u32 %v4593, %v4596
      %v4598 = vrot.slane %v4597, 4
      %v4600 = vshll.u32 %v4396, 16
      %v4602 = vrot.slane %v4600, 5
      %v4603 = vsel %vm890, %v4598, %v4602
      %v4604 = vshrl.u32 %v4396, 16
      %v4606 = vrot.slane %v4604, 4
      %v4607 = vor.u32 %v4606, %v4602
      %v4608 = vrot.slane %v4607, 4
      %v4610 = vshll.u32 %v4397, 16
      %v4612 = vrot.slane %v4610, 5
      %v4613 = vsel %vm890, %v4608, %v4612
      %v4615 = vshrl.u32 %v4398, 16
      %v4617 = vrot.slane %v4615, 4
      %v4618 = vshll.u32 %v4398, 16
      %v4620 = vrot.slane %v4618, 5
      %v4621 = vor.u32 %v4617, %v4620
      %v4622 = vrot.slane %v4621, 4
      %v4624 = vshll.u32 %v4399, 16
      %v4626 = vrot.slane %v4624, 5
      %v4627 = vsel %vm890, %v4622, %v4626
      %v4628 = vshrl.u32 %v4399, 16
      %v4630 = vrot.slane %v4628, 4
      %v4631 = vor.u32 %v4630, %v4626
      %v4632 = vrot.slane %v4631, 4
      %v4634 = vshll.u32 %v4400, 16
      %v4636 = vrot.slane %v4634, 5
      %v4637 = vsel %vm890, %v4632, %v4636
      %v4639 = vshrl.u32 %v4401, 16
      %v4641 = vrot.slane %v4639, 4
      %v4642 = vshll.u32 %v4401, 16
      %v4644 = vrot.slane %v4642, 5
      %v4645 = vor.u32 %v4641, %v4644
      %v4646 = vrot.slane %v4645, 4
      %v4648 = vshll.u32 %v4402, 16
      %v4650 = vrot.slane %v4648, 5
      %v4651 = vsel %vm890, %v4646, %v4650
      %v4652 = vshrl.u32 %v4402, 16
      %v4654 = vrot.slane %v4652, 4
      %v4655 = vor.u32 %v4654, %v4650
      %v4656 = vrot.slane %v4655, 4
      %v4658 = vshll.u32 %v4403, 16
      %v4660 = vrot.slane %v4658, 5
      %v4661 = vsel %vm890, %v4656, %v4660
      %v4663 = vshrl.u32 %v4404, 16
      %v4665 = vrot.slane %v4663, 4
      %v4666 = vshll.u32 %v4404, 16
      %v4668 = vrot.slane %v4666, 5
      %v4669 = vor.u32 %v4665, %v4668
      %v4670 = vrot.slane %v4669, 4
      %v4672 = vshll.u32 %v4405, 16
      %v4674 = vrot.slane %v4672, 5
      %v4675 = vsel %vm890, %v4670, %v4674
      %v4676 = vshrl.u32 %v4405, 16
      %v4678 = vrot.slane %v4676, 4
      %v4679 = vor.u32 %v4678, %v4674
      %v4680 = vrot.slane %v4679, 4
      %v4682 = vshll.u32 %v4406, 16
      %v4684 = vrot.slane %v4682, 5
      %v4685 = vsel %vm890, %v4680, %v4684
      %v4687 = vshrl.u32 %v4407, 16
      %v4689 = vrot.slane %v4687, 4
      %v4690 = vshll.u32 %v4407, 16
      %v4692 = vrot.slane %v4690, 5
      %v4693 = vor.u32 %v4689, %v4692
      %v4694 = vrot.slane %v4693, 4
      %v4696 = vshll.u32 %v4408, 16
      %v4698 = vrot.slane %v4696, 5
      %v4699 = vsel %vm890, %v4694, %v4698
      %v4700 = vshrl.u32 %v4408, 16
      %v4702 = vrot.slane %v4700, 4
      %v4703 = vor.u32 %v4702, %v4698
      %v4704 = vrot.slane %v4703, 4
      %v4706 = vshll.u32 %v4409, 16
      %v4708 = vrot.slane %v4706, 5
      %v4709 = vsel %vm890, %v4704, %v4708
      %v4711 = vshrl.u32 %v4410, 16
      %v4713 = vrot.slane %v4711, 4
      %v4714 = vshll.u32 %v4410, 16
      %v4716 = vrot.slane %v4714, 5
      %v4717 = vor.u32 %v4713, %v4716
      %v4718 = vrot.slane %v4717, 4
      %v4720 = vshll.u32 %v4411, 16
      %v4722 = vrot.slane %v4720, 5
      %v4723 = vsel %vm890, %v4718, %v4722
      %v4724 = vshrl.u32 %v4411, 16
      %v4726 = vrot.slane %v4724, 4
      %v4727 = vor.u32 %v4726, %v4722
      %v4728 = vrot.slane %v4727, 4
      %v4730 = vshll.u32 %v4412, 16
      %v4732 = vrot.slane %v4730, 5
      %v4733 = vsel %vm890, %v4728, %v4732
      %v4735 = vshrl.u32 %v4413, 16
      %v4737 = vrot.slane %v4735, 4
      %v4738 = vshll.u32 %v4413, 16
      %v4740 = vrot.slane %v4738, 5
      %v4741 = vor.u32 %v4737, %v4740
      %v4742 = vrot.slane %v4741, 4
      %v4744 = vshll.u32 %v4414, 16
      %v4746 = vrot.slane %v4744, 5
      %v4747 = vsel %vm890, %v4742, %v4746
      %v4748 = vshrl.u32 %v4414, 16
      %v4750 = vrot.slane %v4748, 4
      %v4751 = vor.u32 %v4750, %v4746
      %v4752 = vrot.slane %v4751, 4
      %v4754 = vshll.u32 %v4415, 16
      %v4756 = vrot.slane %v4754, 5
      %v4757 = vsel %vm890, %v4752, %v4756
      %v4759 = vshrl.u32 %v4416, 16
      %v4761 = vrot.slane %v4759, 4
      %v4762 = vshll.u32 %v4416, 16
      %v4764 = vrot.slane %v4762, 5
      %v4765 = vor.u32 %v4761, %v4764
      %v4766 = vrot.slane %v4765, 4
      %v4768 = vshll.u32 %v4417, 16
      %v4770 = vrot.slane %v4768, 5
      %v4771 = vsel %vm890, %v4766, %v4770
      %v4772 = vshrl.u32 %v4417, 16
      %v4774 = vrot.slane %v4772, 4
      %v4775 = vor.u32 %v4774, %v4770
      %v4776 = vrot.slane %v4775, 4
      %v4778 = vshll.u32 %v4418, 16
      %v4780 = vrot.slane %v4778, 5
      %v4781 = vsel %vm890, %v4776, %v4780
      %v4783 = vshrl.u32 %v4419, 16
      %v4785 = vrot.slane %v4783, 4
      %v4786 = vshll.u32 %v4419, 16
      %v4788 = vrot.slane %v4786, 5
      %v4789 = vor.u32 %v4785, %v4788
      %v4790 = vrot.slane %v4789, 4
      %v4792 = vshll.u32 %v4420, 16
      %v4794 = vrot.slane %v4792, 5
      %v4795 = vsel %vm890, %v4790, %v4794
      %v4796 = vshrl.u32 %v4420, 16
      %v4798 = vrot.slane %v4796, 4
      %v4799 = vor.u32 %v4798, %v4794
      %v4800 = vrot.slane %v4799, 4
      %v4802 = vshll.u32 %v4421, 16
      %v4804 = vrot.slane %v4802, 5
      %v4805 = vsel %vm890, %v4800, %v4804
      %v4806 = vld [vmem:[%s1 + $0x1c0] sm:$0xf]
      %v4807 = vld [vmem:[%s1 + $0x1c4] sm:$0xf]
      %v4808 = vld [vmem:[%s1 + $0x1c8] sm:$0xf]
      %v4809 = vld [vmem:[%s1 + $0x1cc] sm:$0xf]
      %v4810 = vld [vmem:[%s1 + $0x1d0] sm:$0xf]
      %v4811 = vld [vmem:[%s1 + $0x1d4] sm:$0xf]
      %v4812 = vld [vmem:[%s1 + $0x1d8] sm:$0xf]
      %v4813 = vld [vmem:[%s1 + $0x1dc] sm:$0xf]
      %v4814 = vld [vmem:[%s1 + $0x1e0] sm:$0xf]
      %v4815 = vld [vmem:[%s1 + $0x1e4] sm:$0xf]
      %v4816 = vld [vmem:[%s1 + $0x1e8] sm:$0xf]
      %v4817 = vld [vmem:[%s1 + $0x1ec] sm:$0xf]
      %v4818 = vld [vmem:[%s1 + $0x1f0] sm:$0xf]
      %v4819 = vld [vmem:[%s1 + $0x1f4] sm:$0xf]
      %v4820 = vld [vmem:[%s1 + $0x1f8] sm:$0xf]
      %v4821 = vld [vmem:[%s1 + $0x1fc] sm:$0xf]
      %v4822 = vunpack.c.l.b16 %v4435
      %v4823 = vunpack.c.l.b16 %v4445
      %v4824 = vunpack.c.l.b16 %v4459
      %v4825 = vunpack.c.l.b16 %v4469
      %v4826 = vunpack.c.l.b16 %v4483
      %v4827 = vunpack.c.l.b16 %v4493
      %v4828 = vunpack.c.l.b16 %v4507
      %v4829 = vunpack.c.l.b16 %v4517
      %v4830 = vunpack.c.l.b16 %v4531
      %v4831 = vunpack.c.l.b16 %v4541
      %v4832 = vunpack.c.l.b16 %v4555
      %v4833 = vunpack.c.l.b16 %v4565
      %v4834 = vunpack.c.l.b16 %v4579
      %v4835 = vunpack.c.l.b16 %v4589
      %v4836 = vunpack.c.l.b16 %v4603
      %v4837 = vunpack.c.l.b16 %v4613
      %v4838 = vunpack.c.l.b16 %v4627
      %v4839 = vunpack.c.l.b16 %v4637
      %v4840 = vunpack.c.l.b16 %v4651
      %v4841 = vunpack.c.l.b16 %v4661
      %v4842 = vunpack.c.l.b16 %v4675
      %v4843 = vunpack.c.l.b16 %v4685
      %v4844 = vunpack.c.l.b16 %v4699
      %v4845 = vunpack.c.l.b16 %v4709
      %v4846 = vunpack.c.l.b16 %v4723
      %v4847 = vunpack.c.l.b16 %v4733
      %v4848 = vunpack.c.l.b16 %v4747
      %v4849 = vunpack.c.l.b16 %v4757
      %v4850 = vunpack.c.l.b16 %v4771
      %v4851 = vunpack.c.l.b16 %v4781
      %v4852 = vunpack.c.l.b16 %v4795
      %v4853 = vunpack.c.l.b16 %v4805
      %v4854 = vpack.c.b16 %v4823, %v4822
      %v4855 = vpack.c.b16 %v4825, %v4824
      %v4856 = vpack.c.b16 %v4827, %v4826
      %v4857 = vpack.c.b16 %v4829, %v4828
      %v4858 = vpack.c.b16 %v4831, %v4830
      %v4859 = vpack.c.b16 %v4833, %v4832
      %v4860 = vpack.c.b16 %v4835, %v4834
      %v4861 = vpack.c.b16 %v4837, %v4836
      %v4862 = vpack.c.b16 %v4839, %v4838
      %v4863 = vpack.c.b16 %v4841, %v4840
      %v4864 = vpack.c.b16 %v4843, %v4842
      %v4865 = vpack.c.b16 %v4845, %v4844
      %v4866 = vpack.c.b16 %v4847, %v4846
      %v4867 = vpack.c.b16 %v4849, %v4848
      %v4868 = vpack.c.b16 %v4851, %v4850
      %v4869 = vpack.c.b16 %v4853, %v4852
      %v4902 = vunpack.c.l.b16 %v4806
      %v4903 = vunpack.c.l.b16 %v4807
      %v4904 = vunpack.c.l.b16 %v4808
      %v4905 = vunpack.c.l.b16 %v4809
      %v4906 = vunpack.c.l.b16 %v4810
      %v4907 = vunpack.c.l.b16 %v4811
      %v4908 = vunpack.c.l.b16 %v4812
      %v4909 = vunpack.c.l.b16 %v4813
      %v4910 = vunpack.c.l.b16 %v4814
      %v4911 = vunpack.c.l.b16 %v4815
      %v4912 = vunpack.c.l.b16 %v4816
      %v4913 = vunpack.c.l.b16 %v4817
      %v4914 = vunpack.c.l.b16 %v4818
      %v4915 = vunpack.c.l.b16 %v4819
      %v4916 = vunpack.c.l.b16 %v4820
      %v4917 = vunpack.c.l.b16 %v4821
      %v4918 = vpack.c.b16 %v4903, %v4902
      %v4919 = vpack.c.b16 %v4905, %v4904
      %v4920 = vpack.c.b16 %v4907, %v4906
      %v4921 = vpack.c.b16 %v4909, %v4908
      %v4922 = vpack.c.b16 %v4911, %v4910
      %v4923 = vpack.c.b16 %v4913, %v4912
      %v4924 = vpack.c.b16 %v4915, %v4914
      %v4925 = vpack.c.b16 %v4917, %v4916
      %4934 = vmatprep.subr.bf16.mxu0 0
      %4935 = vmatpush1.bf16.msra.mxu0 %v4925
      %4936 = vmatprep.subr.bf16.mxu0 0
      %4937 = vmatpush1.bf16.msra.mxu0 %v4924
      %4938 = vmatprep.subr.bf16.mxu0 0
      %4939 = vmatpush1.bf16.msra.mxu0 %v4923
      %4940 = vmatprep.subr.bf16.mxu0 0
      %4941 = vmatpush1.bf16.msra.mxu0 %v4922
      %4942 = vmatprep.subr.bf16.mxu0 0
      %4943 = vmatpush1.bf16.msra.mxu0 %v4921
      %4944 = vmatprep.subr.bf16.mxu0 0
      %4945 = vmatpush1.bf16.msra.mxu0 %v4920
      %4946 = vmatprep.subr.bf16.mxu0 0
      %4947 = vmatpush1.bf16.msra.mxu0 %v4919
      %4948 = vmatprep.subr.bf16.mxu0 0
      %4949 = vmatpush1.bf16.msra.mxu0 %v4918
      %4950 = vmatprep.subr.bf16.mxu0 0
      %4951 = vmatpush2.bf16.msra.mxu0 0
      %4952 = vmatprep.subr.bf16.mxu0 0
      %4953 = vmatpush2.bf16.msra.mxu0 0
      %4954 = vmatprep.subr.bf16.mxu0 0
      %4955 = vmatpush2.bf16.msra.mxu0 0
      %4956 = vmatprep.subr.bf16.mxu0 0
      %4957 = vmatpush2.bf16.msra.mxu0 0
      %4958 = vmatprep.subr.bf16.mxu0 0
      %4959 = vmatpush2.bf16.msra.mxu0 0
      %4960 = vmatprep.subr.bf16.mxu0 0
      %4961 = vmatpush2.bf16.msra.mxu0 0
      %4962 = vmatprep.subr.bf16.mxu0 0
      %4963 = vmatpush2.bf16.msra.mxu0 0
      %4964 = vmatprep.subr.bf16.mxu0 0
      %4965 = vmatpush2.bf16.msra.mxu0 0
      %4966 = vmatprep.mubr.bf16.mxu0 0
      %4967 = vmatmul.mubr.bf16.gmra.mxu0 %v4854
      %v4968 = vpop.f32.mrf.mxu0
      %v4969 = vadd.f32 0.0, %v4968
      %v4970 = vpop.f32.mrf.mxu0
      %v4971 = vpop.f32.mrf.mxu0
      %v4972 = vadd.f32 0.0, %v4971
      %v4973 = vpop.f32.mrf.mxu0
      %4974 = vmatprep.mubr.bf16.mxu0 0
      %4975 = vmatmul.mubr.bf16.gmra.mxu0 %v4855
      %v4976 = vpop.f32.mrf.mxu0
      %v4977 = vadd.f32 0.0, %v4976
      %v4978 = vpop.f32.mrf.mxu0
      %v4979 = vpop.f32.mrf.mxu0
      %v4980 = vadd.f32 0.0, %v4979
      %v4981 = vpop.f32.mrf.mxu0
      %4982 = vmatprep.mubr.bf16.mxu0 0
      %4983 = vmatmul.mubr.bf16.gmra.mxu0 %v4856
      %v4984 = vpop.f32.mrf.mxu0
      %v4985 = vadd.f32 0.0, %v4984
      %v4986 = vpop.f32.mrf.mxu0
      %v4987 = vpop.f32.mrf.mxu0
      %v4988 = vadd.f32 0.0, %v4987
      %v4989 = vpop.f32.mrf.mxu0
      %4990 = vmatprep.mubr.bf16.mxu0 0
      %4991 = vmatmul.mubr.bf16.gmra.mxu0 %v4857
      %v4992 = vpop.f32.mrf.mxu0
      %v4993 = vadd.f32 0.0, %v4992
      %v4994 = vpop.f32.mrf.mxu0
      %v4995 = vpop.f32.mrf.mxu0
      %v4996 = vadd.f32 0.0, %v4995
      %v4997 = vpop.f32.mrf.mxu0
      %4998 = vmatprep.mubr.bf16.mxu0 0
      %4999 = vmatmul.mubr.bf16.gmra.mxu0 %v4858
      %v5000 = vpop.f32.mrf.mxu0
      %v5001 = vadd.f32 0.0, %v5000
      %v5002 = vpop.f32.mrf.mxu0
      %v5003 = vpop.f32.mrf.mxu0
      %v5004 = vadd.f32 0.0, %v5003
      %v5005 = vpop.f32.mrf.mxu0
      %5006 = vmatprep.mubr.bf16.mxu0 0
      %5007 = vmatmul.mubr.bf16.gmra.mxu0 %v4859
      %v5008 = vpop.f32.mrf.mxu0
      %v5009 = vadd.f32 0.0, %v5008
      %v5010 = vpop.f32.mrf.mxu0
      %v5011 = vpop.f32.mrf.mxu0
      %v5012 = vadd.f32 0.0, %v5011
      %v5013 = vpop.f32.mrf.mxu0
      %5014 = vmatprep.mubr.bf16.mxu0 0
      %5015 = vmatmul.mubr.bf16.gmra.mxu0 %v4860
      %v5016 = vpop.f32.mrf.mxu0
      %v5017 = vadd.f32 0.0, %v5016
      %v5018 = vpop.f32.mrf.mxu0
      %v5019 = vpop.f32.mrf.mxu0
      %v5020 = vadd.f32 0.0, %v5019
      %v5021 = vpop.f32.mrf.mxu0
      %5022 = vmatprep.mubr.bf16.mxu0 0
      %5023 = vmatmul.mubr.bf16.gmra.mxu0 %v4861
      %v5024 = vpop.f32.mrf.mxu0
      %v5025 = vadd.f32 0.0, %v5024
      %v5026 = vpop.f32.mrf.mxu0
      %v5027 = vpop.f32.mrf.mxu0
      %v5028 = vadd.f32 0.0, %v5027
      %v5029 = vpop.f32.mrf.mxu0
      %5030 = vmatprep.mubr.bf16.mxu0 0
      %5031 = vmatmul.mubr.bf16.gmra.mxu0 %v4862
      %v5032 = vpop.f32.mrf.mxu0
      %v5033 = vadd.f32 0.0, %v5032
      %v5034 = vpop.f32.mrf.mxu0
      %v5035 = vpop.f32.mrf.mxu0
      %v5036 = vadd.f32 0.0, %v5035
      %v5037 = vpop.f32.mrf.mxu0
      %5038 = vmatprep.mubr.bf16.mxu0 0
      %5039 = vmatmul.mubr.bf16.gmra.mxu0 %v4863
      %v5040 = vpop.f32.mrf.mxu0
      %v5041 = vadd.f32 0.0, %v5040
      %v5042 = vpop.f32.mrf.mxu0
      %v5043 = vpop.f32.mrf.mxu0
      %v5044 = vadd.f32 0.0, %v5043
      %v5045 = vpop.f32.mrf.mxu0
      %5046 = vmatprep.mubr.bf16.mxu0 0
      %5047 = vmatmul.mubr.bf16.gmra.mxu0 %v4864
      %v5048 = vpop.f32.mrf.mxu0
      %v5049 = vadd.f32 0.0, %v5048
      %v5050 = vpop.f32.mrf.mxu0
      %v5051 = vpop.f32.mrf.mxu0
      %v5052 = vadd.f32 0.0, %v5051
      %v5053 = vpop.f32.mrf.mxu0
      %5054 = vmatprep.mubr.bf16.mxu0 0
      %5055 = vmatmul.mubr.bf16.gmra.mxu0 %v4865
      %v5056 = vpop.f32.mrf.mxu0
      %v5057 = vadd.f32 0.0, %v5056
      %v5058 = vpop.f32.mrf.mxu0
      %v5059 = vpop.f32.mrf.mxu0
      %v5060 = vadd.f32 0.0, %v5059
      %v5061 = vpop.f32.mrf.mxu0
      %5062 = vmatprep.mubr.bf16.mxu0 0
      %5063 = vmatmul.mubr.bf16.gmra.mxu0 %v4866
      %v5064 = vpop.f32.mrf.mxu0
      %v5065 = vadd.f32 0.0, %v5064
      %v5066 = vpop.f32.mrf.mxu0
      %v5067 = vpop.f32.mrf.mxu0
      %v5068 = vadd.f32 0.0, %v5067
      %v5069 = vpop.f32.mrf.mxu0
      %5070 = vmatprep.mubr.bf16.mxu0 0
      %5071 = vmatmul.mubr.bf16.gmra.mxu0 %v4867
      %v5072 = vpop.f32.mrf.mxu0
      %v5073 = vadd.f32 0.0, %v5072
      %v5074 = vpop.f32.mrf.mxu0
      %v5075 = vpop.f32.mrf.mxu0
      %v5076 = vadd.f32 0.0, %v5075
      %v5077 = vpop.f32.mrf.mxu0
      %5078 = vmatprep.mubr.bf16.mxu0 0
      %5079 = vmatmul.mubr.bf16.gmra.mxu0 %v4868
      %v5080 = vpop.f32.mrf.mxu0
      %v5081 = vadd.f32 0.0, %v5080
      %v5082 = vpop.f32.mrf.mxu0
      %v5083 = vpop.f32.mrf.mxu0
      %v5084 = vadd.f32 0.0, %v5083
      %v5085 = vpop.f32.mrf.mxu0
      %5086 = vmatprep.mubr.bf16.mxu0 0
      %5087 = vmatmul.mubr.bf16.gmra.mxu0 %v4869
      %v5088 = vpop.f32.mrf.mxu0
      %v5089 = vadd.f32 0.0, %v5088
      %v5090 = vpop.f32.mrf.mxu0
      %v5091 = vpop.f32.mrf.mxu0
      %v5092 = vadd.f32 0.0, %v5091
      %v5093 = vpop.f32.mrf.mxu0
      %5094 = vdwg.mxu0
      %v5095 = vadd.f32 %v4342, %v4969
      %v5096 = vadd.f32 %v4343, %v4972
      %v5097 = vadd.f32 %v4344, %v4977
      %v5098 = vadd.f32 %v4345, %v4980
      %v5099 = vadd.f32 %v4346, %v4985
      %v5100 = vadd.f32 %v4347, %v4988
      %v5101 = vadd.f32 %v4348, %v4993
      %v5102 = vadd.f32 %v4349, %v4996
      %v5103 = vadd.f32 %v4350, %v5001
      %v5104 = vadd.f32 %v4351, %v5004
      %v5105 = vadd.f32 %v4352, %v5009
      %v5106 = vadd.f32 %v4353, %v5012
      %v5107 = vadd.f32 %v4354, %v5017
      %v5108 = vadd.f32 %v4355, %v5020
      %v5109 = vadd.f32 %v4356, %v5025
      %v5110 = vadd.f32 %v4357, %v5028
      %v5111 = vadd.f32 %v4358, %v5033
      %v5112 = vadd.f32 %v4359, %v5036
      %v5113 = vadd.f32 %v4360, %v5041
      %v5114 = vadd.f32 %v4361, %v5044
      %v5115 = vadd.f32 %v4362, %v5049
      %v5116 = vadd.f32 %v4363, %v5052
      %v5117 = vadd.f32 %v4364, %v5057
      %v5118 = vadd.f32 %v4365, %v5060
      %v5119 = vadd.f32 %v4366, %v5065
      %v5120 = vadd.f32 %v4367, %v5068
      %v5121 = vadd.f32 %v4368, %v5073
      %v5122 = vadd.f32 %v4369, %v5076
      %v5123 = vadd.f32 %v4370, %v5081
      %v5124 = vadd.f32 %v4371, %v5084
      %v5125 = vadd.f32 %v4372, %v5089
      %v5126 = vadd.f32 %v4373, %v5092
      %v5127 = vld [vmem:[%s3988] sm:$0xe]
      %v5128 = vld [vmem:[%s3988 + $0xc] sm:$0xe]
      %v5129 = vld [vmem:[%s3988 + $0x18] sm:$0xe]
      %v5130 = vld [vmem:[%s3988 + $0x24] sm:$0xe]
      %v5131 = vld [vmem:[%s3988 + $0x30] sm:$0xe]
      %v5132 = vld [vmem:[%s3988 + $0x3c] sm:$0xe]
      %v5133 = vld [vmem:[%s3988 + $0x48] sm:$0xe]
      %v5134 = vld [vmem:[%s3988 + $0x54] sm:$0xe]
      %v5135 = vld [vmem:[%s3988 + $0x60] sm:$0xe]
      %v5136 = vld [vmem:[%s3988 + $0x6c] sm:$0xe]
      %v5137 = vld [vmem:[%s3988 + $0x78] sm:$0xe]
      %v5138 = vld [vmem:[%s3988 + $0x84] sm:$0xe]
      %v5139 = vld [vmem:[%s3988 + $0x90] sm:$0xe]
      %v5140 = vld [vmem:[%s3988 + $0x9c] sm:$0xe]
      %v5141 = vld [vmem:[%s3988 + $0xa8] sm:$0xe]
      %v5142 = vld [vmem:[%s3988 + $0xb4] sm:$0xe]
      %v5191 = vrot.slane %v5127, 5
      %v5192 = vrot.slane %v5191, 4
      %v5193 = vrot.slane %v4375, 5
      %v5194 = vsel %vm1919, %v5192, %v5193
      %v5195 = vrot.slane %v5193, 4
      %v5196 = vrot.slane %v4376, 5
      %v5197 = vsel %vm1919, %v5195, %v5196
      %v5198 = vrot.slane %v5128, 5
      %v5199 = vrot.slane %v5198, 4
      %v5200 = vrot.slane %v4378, 5
      %v5201 = vsel %vm1919, %v5199, %v5200
      %v5202 = vrot.slane %v5200, 4
      %v5203 = vrot.slane %v4379, 5
      %v5204 = vsel %vm1919, %v5202, %v5203
      %v5205 = vrot.slane %v5129, 5
      %v5206 = vrot.slane %v5205, 4
      %v5207 = vrot.slane %v4381, 5
      %v5208 = vsel %vm1919, %v5206, %v5207
      %v5209 = vrot.slane %v5207, 4
      %v5210 = vrot.slane %v4382, 5
      %v5211 = vsel %vm1919, %v5209, %v5210
      %v5212 = vrot.slane %v5130, 5
      %v5213 = vrot.slane %v5212, 4
      %v5214 = vrot.slane %v4384, 5
      %v5215 = vsel %vm1919, %v5213, %v5214
      %v5216 = vrot.slane %v5214, 4
      %v5217 = vrot.slane %v4385, 5
      %v5218 = vsel %vm1919, %v5216, %v5217
      %v5219 = vrot.slane %v5131, 5
      %v5220 = vrot.slane %v5219, 4
      %v5221 = vrot.slane %v4387, 5
      %v5222 = vsel %vm1919, %v5220, %v5221
      %v5223 = vrot.slane %v5221, 4
      %v5224 = vrot.slane %v4388, 5
      %v5225 = vsel %vm1919, %v5223, %v5224
      %v5226 = vrot.slane %v5132, 5
      %v5227 = vrot.slane %v5226, 4
      %v5228 = vrot.slane %v4390, 5
      %v5229 = vsel %vm1919, %v5227, %v5228
      %v5230 = vrot.slane %v5228, 4
      %v5231 = vrot.slane %v4391, 5
      %v5232 = vsel %vm1919, %v5230, %v5231
      %v5233 = vrot.slane %v5133, 5
      %v5234 = vrot.slane %v5233, 4
      %v5235 = vrot.slane %v4393, 5
      %v5236 = vsel %vm1919, %v5234, %v5235
      %v5237 = vrot.slane %v5235, 4
      %v5238 = vrot.slane %v4394, 5
      %v5239 = vsel %vm1919, %v5237, %v5238
      %v5240 = vrot.slane %v5134, 5
      %v5241 = vrot.slane %v5240, 4
      %v5242 = vrot.slane %v4396, 5
      %v5243 = vsel %vm1919, %v5241, %v5242
      %v5244 = vrot.slane %v5242, 4
      %v5245 = vrot.slane %v4397, 5
      %v5246 = vsel %vm1919, %v5244, %v5245
      %v5247 = vrot.slane %v5135, 5
      %v5248 = vrot.slane %v5247, 4
      %v5249 = vrot.slane %v4399, 5
      %v5250 = vsel %vm1919, %v5248, %v5249
      %v5251 = vrot.slane %v5249, 4
      %v5252 = vrot.slane %v4400, 5
      %v5253 = vsel %vm1919, %v5251, %v5252
      %v5254 = vrot.slane %v5136, 5
      %v5255 = vrot.slane %v5254, 4
      %v5256 = vrot.slane %v4402, 5
      %v5257 = vsel %vm1919, %v5255, %v5256
      %v5258 = vrot.slane %v5256, 4
      %v5259 = vrot.slane %v4403, 5
      %v5260 = vsel %vm1919, %v5258, %v5259
      %v5261 = vrot.slane %v5137, 5
      %v5262 = vrot.slane %v5261, 4
      %v5263 = vrot.slane %v4405, 5
      %v5264 = vsel %vm1919, %v5262, %v5263
      %v5265 = vrot.slane %v5263, 4
      %v5266 = vrot.slane %v4406, 5
      %v5267 = vsel %vm1919, %v5265, %v5266
      %v5268 = vrot.slane %v5138, 5
      %v5269 = vrot.slane %v5268, 4
      %v5270 = vrot.slane %v4408, 5
      %v5271 = vsel %vm1919, %v5269, %v5270
      %v5272 = vrot.slane %v5270, 4
      %v5273 = vrot.slane %v4409, 5
      %v5274 = vsel %vm1919, %v5272, %v5273
      %v5275 = vrot.slane %v5139, 5
      %v5276 = vrot.slane %v5275, 4
      %v5277 = vrot.slane %v4411, 5
      %v5278 = vsel %vm1919, %v5276, %v5277
      %v5279 = vrot.slane %v5277, 4
      %v5280 = vrot.slane %v4412, 5
      %v5281 = vsel %vm1919, %v5279, %v5280
      %v5282 = vrot.slane %v5140, 5
      %v5283 = vrot.slane %v5282, 4
      %v5284 = vrot.slane %v4414, 5
      %v5285 = vsel %vm1919, %v5283, %v5284
      %v5286 = vrot.slane %v5284, 4
      %v5287 = vrot.slane %v4415, 5
      %v5288 = vsel %vm1919, %v5286, %v5287
      %v5289 = vrot.slane %v5141, 5
      %v5290 = vrot.slane %v5289, 4
      %v5291 = vrot.slane %v4417, 5
      %v5292 = vsel %vm1919, %v5290, %v5291
      %v5293 = vrot.slane %v5291, 4
      %v5294 = vrot.slane %v4418, 5
      %v5295 = vsel %vm1919, %v5293, %v5294
      %v5296 = vrot.slane %v5142, 5
      %v5297 = vrot.slane %v5296, 4
      %v5298 = vrot.slane %v4420, 5
      %v5299 = vsel %vm1919, %v5297, %v5298
      %v5300 = vrot.slane %v5298, 4
      %v5301 = vrot.slane %v4421, 5
      %v5302 = vsel %vm1919, %v5300, %v5301
      %v5303 = vld [vmem:[%s1 + $0x200] sm:$0xf]
      %v5304 = vld [vmem:[%s1 + $0x204] sm:$0xf]
      %v5305 = vld [vmem:[%s1 + $0x208] sm:$0xf]
      %v5306 = vld [vmem:[%s1 + $0x20c] sm:$0xf]
      %v5307 = vld [vmem:[%s1 + $0x210] sm:$0xf]
      %v5308 = vld [vmem:[%s1 + $0x214] sm:$0xf]
      %v5309 = vld [vmem:[%s1 + $0x218] sm:$0xf]
      %v5310 = vld [vmem:[%s1 + $0x21c] sm:$0xf]
      %v5311 = vld [vmem:[%s1 + $0x220] sm:$0xf]
      %v5312 = vld [vmem:[%s1 + $0x224] sm:$0xf]
      %v5313 = vld [vmem:[%s1 + $0x228] sm:$0xf]
      %v5314 = vld [vmem:[%s1 + $0x22c] sm:$0xf]
      %v5315 = vld [vmem:[%s1 + $0x230] sm:$0xf]
      %v5316 = vld [vmem:[%s1 + $0x234] sm:$0xf]
      %v5317 = vld [vmem:[%s1 + $0x238] sm:$0xf]
      %v5318 = vld [vmem:[%s1 + $0x23c] sm:$0xf]
      %v5319 = vunpack.c.l.b16 %v5194
      %v5320 = vunpack.c.l.b16 %v5197
      %v5321 = vunpack.c.l.b16 %v5201
      %v5322 = vunpack.c.l.b16 %v5204
      %v5323 = vunpack.c.l.b16 %v5208
      %v5324 = vunpack.c.l.b16 %v5211
      %v5325 = vunpack.c.l.b16 %v5215
      %v5326 = vunpack.c.l.b16 %v5218
      %v5327 = vunpack.c.l.b16 %v5222
      %v5328 = vunpack.c.l.b16 %v5225
      %v5329 = vunpack.c.l.b16 %v5229
      %v5330 = vunpack.c.l.b16 %v5232
      %v5331 = vunpack.c.l.b16 %v5236
      %v5332 = vunpack.c.l.b16 %v5239
      %v5333 = vunpack.c.l.b16 %v5243
      %v5334 = vunpack.c.l.b16 %v5246
      %v5335 = vunpack.c.l.b16 %v5250
      %v5336 = vunpack.c.l.b16 %v5253
      %v5337 = vunpack.c.l.b16 %v5257
      %v5338 = vunpack.c.l.b16 %v5260
      %v5339 = vunpack.c.l.b16 %v5264
      %v5340 = vunpack.c.l.b16 %v5267
      %v5341 = vunpack.c.l.b16 %v5271
      %v5342 = vunpack.c.l.b16 %v5274
      %v5343 = vunpack.c.l.b16 %v5278
      %v5344 = vunpack.c.l.b16 %v5281
      %v5345 = vunpack.c.l.b16 %v5285
      %v5346 = vunpack.c.l.b16 %v5288
      %v5347 = vunpack.c.l.b16 %v5292
      %v5348 = vunpack.c.l.b16 %v5295
      %v5349 = vunpack.c.l.b16 %v5299
      %v5350 = vunpack.c.l.b16 %v5302
      %v5351 = vpack.c.b16 %v5320, %v5319
      %v5352 = vpack.c.b16 %v5322, %v5321
      %v5353 = vpack.c.b16 %v5324, %v5323
      %v5354 = vpack.c.b16 %v5326, %v5325
      %v5355 = vpack.c.b16 %v5328, %v5327
      %v5356 = vpack.c.b16 %v5330, %v5329
      %v5357 = vpack.c.b16 %v5332, %v5331
      %v5358 = vpack.c.b16 %v5334, %v5333
      %v5359 = vpack.c.b16 %v5336, %v5335
      %v5360 = vpack.c.b16 %v5338, %v5337
      %v5361 = vpack.c.b16 %v5340, %v5339
      %v5362 = vpack.c.b16 %v5342, %v5341
      %v5363 = vpack.c.b16 %v5344, %v5343
      %v5364 = vpack.c.b16 %v5346, %v5345
      %v5365 = vpack.c.b16 %v5348, %v5347
      %v5366 = vpack.c.b16 %v5350, %v5349
      %v5399 = vunpack.c.l.b16 %v5303
      %v5400 = vunpack.c.l.b16 %v5304
      %v5401 = vunpack.c.l.b16 %v5305
      %v5402 = vunpack.c.l.b16 %v5306
      %v5403 = vunpack.c.l.b16 %v5307
      %v5404 = vunpack.c.l.b16 %v5308
      %v5405 = vunpack.c.l.b16 %v5309
      %v5406 = vunpack.c.l.b16 %v5310
      %v5407 = vunpack.c.l.b16 %v5311
      %v5408 = vunpack.c.l.b16 %v5312
      %v5409 = vunpack.c.l.b16 %v5313
      %v5410 = vunpack.c.l.b16 %v5314
      %v5411 = vunpack.c.l.b16 %v5315
      %v5412 = vunpack.c.l.b16 %v5316
      %v5413 = vunpack.c.l.b16 %v5317
      %v5414 = vunpack.c.l.b16 %v5318
      %v5415 = vpack.c.b16 %v5400, %v5399
      %v5416 = vpack.c.b16 %v5402, %v5401
      %v5417 = vpack.c.b16 %v5404, %v5403
      %v5418 = vpack.c.b16 %v5406, %v5405
      %v5419 = vpack.c.b16 %v5408, %v5407
      %v5420 = vpack.c.b16 %v5410, %v5409
      %v5421 = vpack.c.b16 %v5412, %v5411
      %v5422 = vpack.c.b16 %v5414, %v5413
      %5431 = vmatprep.subr.bf16.mxu0 0
      %5432 = vmatpush1.bf16.msra.mxu0 %v5422
      %5433 = vmatprep.subr.bf16.mxu0 0
      %5434 = vmatpush1.bf16.msra.mxu0 %v5421
      %5435 = vmatprep.subr.bf16.mxu0 0
      %5436 = vmatpush1.bf16.msra.mxu0 %v5420
      %5437 = vmatprep.subr.bf16.mxu0 0
      %5438 = vmatpush1.bf16.msra.mxu0 %v5419
      %5439 = vmatprep.subr.bf16.mxu0 0
      %5440 = vmatpush1.bf16.msra.mxu0 %v5418
      %5441 = vmatprep.subr.bf16.mxu0 0
      %5442 = vmatpush1.bf16.msra.mxu0 %v5417
      %5443 = vmatprep.subr.bf16.mxu0 0
      %5444 = vmatpush1.bf16.msra.mxu0 %v5416
      %5445 = vmatprep.subr.bf16.mxu0 0
      %5446 = vmatpush1.bf16.msra.mxu0 %v5415
      %5447 = vmatprep.subr.bf16.mxu0 0
      %5448 = vmatpush2.bf16.msra.mxu0 0
      %5449 = vmatprep.subr.bf16.mxu0 0
      %5450 = vmatpush2.bf16.msra.mxu0 0
      %5451 = vmatprep.subr.bf16.mxu0 0
      %5452 = vmatpush2.bf16.msra.mxu0 0
      %5453 = vmatprep.subr.bf16.mxu0 0
      %5454 = vmatpush2.bf16.msra.mxu0 0
      %5455 = vmatprep.subr.bf16.mxu0 0
      %5456 = vmatpush2.bf16.msra.mxu0 0
      %5457 = vmatprep.subr.bf16.mxu0 0
      %5458 = vmatpush2.bf16.msra.mxu0 0
      %5459 = vmatprep.subr.bf16.mxu0 0
      %5460 = vmatpush2.bf16.msra.mxu0 0
      %5461 = vmatprep.subr.bf16.mxu0 0
      %5462 = vmatpush2.bf16.msra.mxu0 0
      %5463 = vmatprep.mubr.bf16.mxu0 0
      %5464 = vmatmul.mubr.bf16.gmra.mxu0 %v5351
      %v5465 = vpop.f32.mrf.mxu0
      %v5466 = vadd.f32 0.0, %v5465
      %v5467 = vpop.f32.mrf.mxu0
      %v5468 = vpop.f32.mrf.mxu0
      %v5469 = vadd.f32 0.0, %v5468
      %v5470 = vpop.f32.mrf.mxu0
      %5471 = vmatprep.mubr.bf16.mxu0 0
      %5472 = vmatmul.mubr.bf16.gmra.mxu0 %v5352
      %v5473 = vpop.f32.mrf.mxu0
      %v5474 = vadd.f32 0.0, %v5473
      %v5475 = vpop.f32.mrf.mxu0
      %v5476 = vpop.f32.mrf.mxu0
      %v5477 = vadd.f32 0.0, %v5476
      %v5478 = vpop.f32.mrf.mxu0
      %5479 = vmatprep.mubr.bf16.mxu0 0
      %5480 = vmatmul.mubr.bf16.gmra.mxu0 %v5353
      %v5481 = vpop.f32.mrf.mxu0
      %v5482 = vadd.f32 0.0, %v5481
      %v5483 = vpop.f32.mrf.mxu0
      %v5484 = vpop.f32.mrf.mxu0
      %v5485 = vadd.f32 0.0, %v5484
      %v5486 = vpop.f32.mrf.mxu0
      %5487 = vmatprep.mubr.bf16.mxu0 0
      %5488 = vmatmul.mubr.bf16.gmra.mxu0 %v5354
      %v5489 = vpop.f32.mrf.mxu0
      %v5490 = vadd.f32 0.0, %v5489
      %v5491 = vpop.f32.mrf.mxu0
      %v5492 = vpop.f32.mrf.mxu0
      %v5493 = vadd.f32 0.0, %v5492
      %v5494 = vpop.f32.mrf.mxu0
      %5495 = vmatprep.mubr.bf16.mxu0 0
      %5496 = vmatmul.mubr.bf16.gmra.mxu0 %v5355
      %v5497 = vpop.f32.mrf.mxu0
      %v5498 = vadd.f32 0.0, %v5497
      %v5499 = vpop.f32.mrf.mxu0
      %v5500 = vpop.f32.mrf.mxu0
      %v5501 = vadd.f32 0.0, %v5500
      %v5502 = vpop.f32.mrf.mxu0
      %5503 = vmatprep.mubr.bf16.mxu0 0
      %5504 = vmatmul.mubr.bf16.gmra.mxu0 %v5356
      %v5505 = vpop.f32.mrf.mxu0
      %v5506 = vadd.f32 0.0, %v5505
      %v5507 = vpop.f32.mrf.mxu0
      %v5508 = vpop.f32.mrf.mxu0
      %v5509 = vadd.f32 0.0, %v5508
      %v5510 = vpop.f32.mrf.mxu0
      %5511 = vmatprep.mubr.bf16.mxu0 0
      %5512 = vmatmul.mubr.bf16.gmra.mxu0 %v5357
      %v5513 = vpop.f32.mrf.mxu0
      %v5514 = vadd.f32 0.0, %v5513
      %v5515 = vpop.f32.mrf.mxu0
      %v5516 = vpop.f32.mrf.mxu0
      %v5517 = vadd.f32 0.0, %v5516
      %v5518 = vpop.f32.mrf.mxu0
      %5519 = vmatprep.mubr.bf16.mxu0 0
      %5520 = vmatmul.mubr.bf16.gmra.mxu0 %v5358
      %v5521 = vpop.f32.mrf.mxu0
      %v5522 = vadd.f32 0.0, %v5521
      %v5523 = vpop.f32.mrf.mxu0
      %v5524 = vpop.f32.mrf.mxu0
      %v5525 = vadd.f32 0.0, %v5524
      %v5526 = vpop.f32.mrf.mxu0
      %5527 = vmatprep.mubr.bf16.mxu0 0
      %5528 = vmatmul.mubr.bf16.gmra.mxu0 %v5359
      %v5529 = vpop.f32.mrf.mxu0
      %v5530 = vadd.f32 0.0, %v5529
      %v5531 = vpop.f32.mrf.mxu0
      %v5532 = vpop.f32.mrf.mxu0
      %v5533 = vadd.f32 0.0, %v5532
      %v5534 = vpop.f32.mrf.mxu0
      %5535 = vmatprep.mubr.bf16.mxu0 0
      %5536 = vmatmul.mubr.bf16.gmra.mxu0 %v5360
      %v5537 = vpop.f32.mrf.mxu0
      %v5538 = vadd.f32 0.0, %v5537
      %v5539 = vpop.f32.mrf.mxu0
      %v5540 = vpop.f32.mrf.mxu0
      %v5541 = vadd.f32 0.0, %v5540
      %v5542 = vpop.f32.mrf.mxu0
      %5543 = vmatprep.mubr.bf16.mxu0 0
      %5544 = vmatmul.mubr.bf16.gmra.mxu0 %v5361
      %v5545 = vpop.f32.mrf.mxu0
      %v5546 = vadd.f32 0.0, %v5545
      %v5547 = vpop.f32.mrf.mxu0
      %v5548 = vpop.f32.mrf.mxu0
      %v5549 = vadd.f32 0.0, %v5548
      %v5550 = vpop.f32.mrf.mxu0
      %5551 = vmatprep.mubr.bf16.mxu0 0
      %5552 = vmatmul.mubr.bf16.gmra.mxu0 %v5362
      %v5553 = vpop.f32.mrf.mxu0
      %v5554 = vadd.f32 0.0, %v5553
      %v5555 = vpop.f32.mrf.mxu0
      %v5556 = vpop.f32.mrf.mxu0
      %v5557 = vadd.f32 0.0, %v5556
      %v5558 = vpop.f32.mrf.mxu0
      %5559 = vmatprep.mubr.bf16.mxu0 0
      %5560 = vmatmul.mubr.bf16.gmra.mxu0 %v5363
      %v5561 = vpop.f32.mrf.mxu0
      %v5562 = vadd.f32 0.0, %v5561
      %v5563 = vpop.f32.mrf.mxu0
      %v5564 = vpop.f32.mrf.mxu0
      %v5565 = vadd.f32 0.0, %v5564
      %v5566 = vpop.f32.mrf.mxu0
      %5567 = vmatprep.mubr.bf16.mxu0 0
      %5568 = vmatmul.mubr.bf16.gmra.mxu0 %v5364
      %v5569 = vpop.f32.mrf.mxu0
      %v5570 = vadd.f32 0.0, %v5569
      %v5571 = vpop.f32.mrf.mxu0
      %v5572 = vpop.f32.mrf.mxu0
      %v5573 = vadd.f32 0.0, %v5572
      %v5574 = vpop.f32.mrf.mxu0
      %5575 = vmatprep.mubr.bf16.mxu0 0
      %5576 = vmatmul.mubr.bf16.gmra.mxu0 %v5365
      %v5577 = vpop.f32.mrf.mxu0
      %v5578 = vadd.f32 0.0, %v5577
      %v5579 = vpop.f32.mrf.mxu0
      %v5580 = vpop.f32.mrf.mxu0
      %v5581 = vadd.f32 0.0, %v5580
      %v5582 = vpop.f32.mrf.mxu0
      %5583 = vmatprep.mubr.bf16.mxu0 0
      %5584 = vmatmul.mubr.bf16.gmra.mxu0 %v5366
      %v5585 = vpop.f32.mrf.mxu0
      %v5586 = vadd.f32 0.0, %v5585
      %v5587 = vpop.f32.mrf.mxu0
      %v5588 = vpop.f32.mrf.mxu0
      %v5589 = vadd.f32 0.0, %v5588
      %v5590 = vpop.f32.mrf.mxu0
      %5591 = vdwg.mxu0
      %v5592 = vadd.f32 %v5095, %v5466
      %v5593 = vadd.f32 %v5096, %v5469
      %v5594 = vadd.f32 %v5097, %v5474
      %v5595 = vadd.f32 %v5098, %v5477
      %v5596 = vadd.f32 %v5099, %v5482
      %v5597 = vadd.f32 %v5100, %v5485
      %v5598 = vadd.f32 %v5101, %v5490
      %v5599 = vadd.f32 %v5102, %v5493
      %v5600 = vadd.f32 %v5103, %v5498
      %v5601 = vadd.f32 %v5104, %v5501
      %v5602 = vadd.f32 %v5105, %v5506
      %v5603 = vadd.f32 %v5106, %v5509
      %v5604 = vadd.f32 %v5107, %v5514
      %v5605 = vadd.f32 %v5108, %v5517
      %v5606 = vadd.f32 %v5109, %v5522
      %v5607 = vadd.f32 %v5110, %v5525
      %v5608 = vadd.f32 %v5111, %v5530
      %v5609 = vadd.f32 %v5112, %v5533
      %v5610 = vadd.f32 %v5113, %v5538
      %v5611 = vadd.f32 %v5114, %v5541
      %v5612 = vadd.f32 %v5115, %v5546
      %v5613 = vadd.f32 %v5116, %v5549
      %v5614 = vadd.f32 %v5117, %v5554
      %v5615 = vadd.f32 %v5118, %v5557
      %v5616 = vadd.f32 %v5119, %v5562
      %v5617 = vadd.f32 %v5120, %v5565
      %v5618 = vadd.f32 %v5121, %v5570
      %v5619 = vadd.f32 %v5122, %v5573
      %v5620 = vadd.f32 %v5123, %v5578
      %v5621 = vadd.f32 %v5124, %v5581
      %v5622 = vadd.f32 %v5125, %v5586
      %v5623 = vadd.f32 %v5126, %v5589
      %v5624 = vld [vmem:[%s2] sm:$0xf]
      %v5625 = vld [vmem:[%s2 + $0x4] sm:$0xf]
      %v5626 = vld [vmem:[%s2 + $0x8] sm:$0xf]
      %v5627 = vld [vmem:[%s2 + $0xc] sm:$0xf]
      %v5628 = vld [vmem:[%s2 + $0x10] sm:$0xf]
      %v5629 = vld [vmem:[%s2 + $0x14] sm:$0xf]
      %v5630 = vld [vmem:[%s2 + $0x18] sm:$0xf]
      %v5631 = vld [vmem:[%s2 + $0x1c] sm:$0xf]
      %v5632 = vld [vmem:[%s2 + $0x20] sm:$0xf]
      %v5633 = vld [vmem:[%s2 + $0x24] sm:$0xf]
      %v5634 = vld [vmem:[%s2 + $0x28] sm:$0xf]
      %v5635 = vld [vmem:[%s2 + $0x2c] sm:$0xf]
      %v5636 = vld [vmem:[%s2 + $0x30] sm:$0xf]
      %v5637 = vld [vmem:[%s2 + $0x34] sm:$0xf]
      %v5638 = vld [vmem:[%s2 + $0x38] sm:$0xf]
      %v5639 = vld [vmem:[%s2 + $0x3c] sm:$0xf]
      %v5672 = vunpack.c.l.b16 %v247
      %v5673 = vunpack.c.l.b16 %v248
      %v5674 = vunpack.c.l.b16 %v249
      %v5675 = vunpack.c.l.b16 %v250
      %v5676 = vunpack.c.l.b16 %v251
      %v5677 = vunpack.c.l.b16 %v252
      %v5678 = vunpack.c.l.b16 %v253
      %v5679 = vunpack.c.l.b16 %v254
      %v5680 = vunpack.c.l.b16 %v255
      %v5681 = vunpack.c.l.b16 %v256
      %v5682 = vunpack.c.l.b16 %v257
      %v5683 = vunpack.c.l.b16 %v258
      %v5684 = vunpack.c.l.b16 %v259
      %v5685 = vunpack.c.l.b16 %v260
      %v5686 = vunpack.c.l.b16 %v261
      %v5687 = vunpack.c.l.b16 %v262
      %v5688 = vunpack.c.l.b16 %v263
      %v5689 = vunpack.c.l.b16 %v264
      %v5690 = vunpack.c.l.b16 %v265
      %v5691 = vunpack.c.l.b16 %v266
      %v5692 = vunpack.c.l.b16 %v267
      %v5693 = vunpack.c.l.b16 %v268
      %v5694 = vunpack.c.l.b16 %v269
      %v5695 = vunpack.c.l.b16 %v270
      %v5696 = vunpack.c.l.b16 %v271
      %v5697 = vunpack.c.l.b16 %v272
      %v5698 = vunpack.c.l.b16 %v273
      %v5699 = vunpack.c.l.b16 %v274
      %v5700 = vunpack.c.l.b16 %v275
      %v5701 = vunpack.c.l.b16 %v276
      %v5702 = vunpack.c.l.b16 %v277
      %v5703 = vunpack.c.l.b16 %v278
      %v5704 = vpack.c.b16 %v5673, %v5672
      %v5705 = vpack.c.b16 %v5675, %v5674
      %v5706 = vpack.c.b16 %v5677, %v5676
      %v5707 = vpack.c.b16 %v5679, %v5678
      %v5708 = vpack.c.b16 %v5681, %v5680
      %v5709 = vpack.c.b16 %v5683, %v5682
      %v5710 = vpack.c.b16 %v5685, %v5684
      %v5711 = vpack.c.b16 %v5687, %v5686
      %v5712 = vpack.c.b16 %v5689, %v5688
      %v5713 = vpack.c.b16 %v5691, %v5690
      %v5714 = vpack.c.b16 %v5693, %v5692
      %v5715 = vpack.c.b16 %v5695, %v5694
      %v5716 = vpack.c.b16 %v5697, %v5696
      %v5717 = vpack.c.b16 %v5699, %v5698
      %v5718 = vpack.c.b16 %v5701, %v5700
      %v5719 = vpack.c.b16 %v5703, %v5702
      %v5752 = vunpack.c.l.b16 %v5624
      %v5753 = vunpack.c.l.b16 %v5625
      %v5754 = vunpack.c.l.b16 %v5626
      %v5755 = vunpack.c.l.b16 %v5627
      %v5756 = vunpack.c.l.b16 %v5628
      %v5757 = vunpack.c.l.b16 %v5629
      %v5758 = vunpack.c.l.b16 %v5630
      %v5759 = vunpack.c.l.b16 %v5631
      %v5760 = vunpack.c.l.b16 %v5632
      %v5761 = vunpack.c.l.b16 %v5633
      %v5762 = vunpack.c.l.b16 %v5634
      %v5763 = vunpack.c.l.b16 %v5635
      %v5764 = vunpack.c.l.b16 %v5636
      %v5765 = vunpack.c.l.b16 %v5637
      %v5766 = vunpack.c.l.b16 %v5638
      %v5767 = vunpack.c.l.b16 %v5639
      %v5768 = vpack.c.b16 %v5753, %v5752
      %v5769 = vpack.c.b16 %v5755, %v5754
      %v5770 = vpack.c.b16 %v5757, %v5756
      %v5771 = vpack.c.b16 %v5759, %v5758
      %v5772 = vpack.c.b16 %v5761, %v5760
      %v5773 = vpack.c.b16 %v5763, %v5762
      %v5774 = vpack.c.b16 %v5765, %v5764
      %v5775 = vpack.c.b16 %v5767, %v5766
      %5784 = vmatprep.subr.bf16.mxu0 0
      %5785 = vmatpush1.bf16.msra.mxu0 %v5775
      %5786 = vmatprep.subr.bf16.mxu0 0
      %5787 = vmatpush1.bf16.msra.mxu0 %v5774
      %5788 = vmatprep.subr.bf16.mxu0 0
      %5789 = vmatpush1.bf16.msra.mxu0 %v5773
      %5790 = vmatprep.subr.bf16.mxu0 0
      %5791 = vmatpush1.bf16.msra.mxu0 %v5772
      %5792 = vmatprep.subr.bf16.mxu0 0
      %5793 = vmatpush1.bf16.msra.mxu0 %v5771
      %5794 = vmatprep.subr.bf16.mxu0 0
      %5795 = vmatpush1.bf16.msra.mxu0 %v5770
      %5796 = vmatprep.subr.bf16.mxu0 0
      %5797 = vmatpush1.bf16.msra.mxu0 %v5769
      %5798 = vmatprep.subr.bf16.mxu0 0
      %5799 = vmatpush1.bf16.msra.mxu0 %v5768
      %5800 = vmatprep.subr.bf16.mxu0 0
      %5801 = vmatpush2.bf16.msra.mxu0 0
      %5802 = vmatprep.subr.bf16.mxu0 0
      %5803 = vmatpush2.bf16.msra.mxu0 0
      %5804 = vmatprep.subr.bf16.mxu0 0
      %5805 = vmatpush2.bf16.msra.mxu0 0
      %5806 = vmatprep.subr.bf16.mxu0 0
      %5807 = vmatpush2.bf16.msra.mxu0 0
      %5808 = vmatprep.subr.bf16.mxu0 0
      %5809 = vmatpush2.bf16.msra.mxu0 0
      %5810 = vmatprep.subr.bf16.mxu0 0
      %5811 = vmatpush2.bf16.msra.mxu0 0
      %5812 = vmatprep.subr.bf16.mxu0 0
      %5813 = vmatpush2.bf16.msra.mxu0 0
      %5814 = vmatprep.subr.bf16.mxu0 0
      %5815 = vmatpush2.bf16.msra.mxu0 0
      %5816 = vmatprep.mubr.bf16.mxu0 0
      %5817 = vmatmul.mubr.bf16.gmra.mxu0 %v5704
      %v5818 = vpop.f32.mrf.mxu0
      %v5819 = vadd.f32 0.0, %v5818
      %v5820 = vpop.f32.mrf.mxu0
      %v5821 = vpop.f32.mrf.mxu0
      %v5822 = vadd.f32 0.0, %v5821
      %v5823 = vpop.f32.mrf.mxu0
      %5824 = vmatprep.mubr.bf16.mxu0 0
      %5825 = vmatmul.mubr.bf16.gmra.mxu0 %v5705
      %v5826 = vpop.f32.mrf.mxu0
      %v5827 = vadd.f32 0.0, %v5826
      %v5828 = vpop.f32.mrf.mxu0
      %v5829 = vpop.f32.mrf.mxu0
      %v5830 = vadd.f32 0.0, %v5829
      %v5831 = vpop.f32.mrf.mxu0
      %5832 = vmatprep.mubr.bf16.mxu0 0
      %5833 = vmatmul.mubr.bf16.gmra.mxu0 %v5706
      %v5834 = vpop.f32.mrf.mxu0
      %v5835 = vadd.f32 0.0, %v5834
      %v5836 = vpop.f32.mrf.mxu0
      %v5837 = vpop.f32.mrf.mxu0
      %v5838 = vadd.f32 0.0, %v5837
      %v5839 = vpop.f32.mrf.mxu0
      %5840 = vmatprep.mubr.bf16.mxu0 0
      %5841 = vmatmul.mubr.bf16.gmra.mxu0 %v5707
      %v5842 = vpop.f32.mrf.mxu0
      %v5843 = vadd.f32 0.0, %v5842
      %v5844 = vpop.f32.mrf.mxu0
      %v5845 = vpop.f32.mrf.mxu0
      %v5846 = vadd.f32 0.0, %v5845
      %v5847 = vpop.f32.mrf.mxu0
      %5848 = vmatprep.mubr.bf16.mxu0 0
      %5849 = vmatmul.mubr.bf16.gmra.mxu0 %v5708
      %v5850 = vpop.f32.mrf.mxu0
      %v5851 = vadd.f32 0.0, %v5850
      %v5852 = vpop.f32.mrf.mxu0
      %v5853 = vpop.f32.mrf.mxu0
      %v5854 = vadd.f32 0.0, %v5853
      %v5855 = vpop.f32.mrf.mxu0
      %5856 = vmatprep.mubr.bf16.mxu0 0
      %5857 = vmatmul.mubr.bf16.gmra.mxu0 %v5709
      %v5858 = vpop.f32.mrf.mxu0
      %v5859 = vadd.f32 0.0, %v5858
      %v5860 = vpop.f32.mrf.mxu0
      %v5861 = vpop.f32.mrf.mxu0
      %v5862 = vadd.f32 0.0, %v5861
      %v5863 = vpop.f32.mrf.mxu0
      %5864 = vmatprep.mubr.bf16.mxu0 0
      %5865 = vmatmul.mubr.bf16.gmra.mxu0 %v5710
      %v5866 = vpop.f32.mrf.mxu0
      %v5867 = vadd.f32 0.0, %v5866
      %v5868 = vpop.f32.mrf.mxu0
      %v5869 = vpop.f32.mrf.mxu0
      %v5870 = vadd.f32 0.0, %v5869
      %v5871 = vpop.f32.mrf.mxu0
      %5872 = vmatprep.mubr.bf16.mxu0 0
      %5873 = vmatmul.mubr.bf16.gmra.mxu0 %v5711
      %v5874 = vpop.f32.mrf.mxu0
      %v5875 = vadd.f32 0.0, %v5874
      %v5876 = vpop.f32.mrf.mxu0
      %v5877 = vpop.f32.mrf.mxu0
      %v5878 = vadd.f32 0.0, %v5877
      %v5879 = vpop.f32.mrf.mxu0
      %5880 = vmatprep.mubr.bf16.mxu0 0
      %5881 = vmatmul.mubr.bf16.gmra.mxu0 %v5712
      %v5882 = vpop.f32.mrf.mxu0
      %v5883 = vadd.f32 0.0, %v5882
      %v5884 = vpop.f32.mrf.mxu0
      %v5885 = vpop.f32.mrf.mxu0
      %v5886 = vadd.f32 0.0, %v5885
      %v5887 = vpop.f32.mrf.mxu0
      %5888 = vmatprep.mubr.bf16.mxu0 0
      %5889 = vmatmul.mubr.bf16.gmra.mxu0 %v5713
      %v5890 = vpop.f32.mrf.mxu0
      %v5891 = vadd.f32 0.0, %v5890
      %v5892 = vpop.f32.mrf.mxu0
      %v5893 = vpop.f32.mrf.mxu0
      %v5894 = vadd.f32 0.0, %v5893
      %v5895 = vpop.f32.mrf.mxu0
      %5896 = vmatprep.mubr.bf16.mxu0 0
      %5897 = vmatmul.mubr.bf16.gmra.mxu0 %v5714
      %v5898 = vpop.f32.mrf.mxu0
      %v5899 = vadd.f32 0.0, %v5898
      %v5900 = vpop.f32.mrf.mxu0
      %v5901 = vpop.f32.mrf.mxu0
      %v5902 = vadd.f32 0.0, %v5901
      %v5903 = vpop.f32.mrf.mxu0
      %5904 = vmatprep.mubr.bf16.mxu0 0
      %5905 = vmatmul.mubr.bf16.gmra.mxu0 %v5715
      %v5906 = vpop.f32.mrf.mxu0
      %v5907 = vadd.f32 0.0, %v5906
      %v5908 = vpop.f32.mrf.mxu0
      %v5909 = vpop.f32.mrf.mxu0
      %v5910 = vadd.f32 0.0, %v5909
      %v5911 = vpop.f32.mrf.mxu0
      %5912 = vmatprep.mubr.bf16.mxu0 0
      %5913 = vmatmul.mubr.bf16.gmra.mxu0 %v5716
      %v5914 = vpop.f32.mrf.mxu0
      %v5915 = vadd.f32 0.0, %v5914
      %v5916 = vpop.f32.mrf.mxu0
      %v5917 = vpop.f32.mrf.mxu0
      %v5918 = vadd.f32 0.0, %v5917
      %v5919 = vpop.f32.mrf.mxu0
      %5920 = vmatprep.mubr.bf16.mxu0 0
      %5921 = vmatmul.mubr.bf16.gmra.mxu0 %v5717
      %v5922 = vpop.f32.mrf.mxu0
      %v5923 = vadd.f32 0.0, %v5922
      %v5924 = vpop.f32.mrf.mxu0
      %v5925 = vpop.f32.mrf.mxu0
      %v5926 = vadd.f32 0.0, %v5925
      %v5927 = vpop.f32.mrf.mxu0
      %5928 = vmatprep.mubr.bf16.mxu0 0
      %5929 = vmatmul.mubr.bf16.gmra.mxu0 %v5718
      %v5930 = vpop.f32.mrf.mxu0
      %v5931 = vadd.f32 0.0, %v5930
      %v5932 = vpop.f32.mrf.mxu0
      %v5933 = vpop.f32.mrf.mxu0
      %v5934 = vadd.f32 0.0, %v5933
      %v5935 = vpop.f32.mrf.mxu0
      %5936 = vmatprep.mubr.bf16.mxu0 0
      %5937 = vmatmul.mubr.bf16.gmra.mxu0 %v5719
      %v5938 = vpop.f32.mrf.mxu0
      %v5939 = vadd.f32 0.0, %v5938
      %v5940 = vpop.f32.mrf.mxu0
      %v5941 = vpop.f32.mrf.mxu0
      %v5942 = vadd.f32 0.0, %v5941
      %v5943 = vpop.f32.mrf.mxu0
      %5944 = vdwg.mxu0
      %v5945 = vpack.c.bf16 %v5593, %v5592
      %v5946 = vpack.c.bf16 %v5595, %v5594
      %v5947 = vpack.c.bf16 %v5597, %v5596
      %v5948 = vpack.c.bf16 %v5599, %v5598
      %v5949 = vpack.c.bf16 %v5601, %v5600
      %v5950 = vpack.c.bf16 %v5603, %v5602
      %v5951 = vpack.c.bf16 %v5605, %v5604
      %v5952 = vpack.c.bf16 %v5607, %v5606
      %v5953 = vpack.c.bf16 %v5609, %v5608
      %v5954 = vpack.c.bf16 %v5611, %v5610
      %v5955 = vpack.c.bf16 %v5613, %v5612
      %v5956 = vpack.c.bf16 %v5615, %v5614
      %v5957 = vpack.c.bf16 %v5617, %v5616
      %v5958 = vpack.c.bf16 %v5619, %v5618
      %v5959 = vpack.c.bf16 %v5621, %v5620
      %v5960 = vpack.c.bf16 %v5623, %v5622
      %v5977 = vunpack.c.l.b16 %v5945
      %v5978 = vunpack.c.h.b16 %v5945
      %v5979 = vunpack.c.l.b16 %v5946
      %v5980 = vunpack.c.h.b16 %v5946
      %v5981 = vunpack.c.l.b16 %v5947
      %v5982 = vunpack.c.h.b16 %v5947
      %v5983 = vunpack.c.l.b16 %v5948
      %v5984 = vunpack.c.h.b16 %v5948
      %v5985 = vunpack.c.l.b16 %v5949
      %v5986 = vunpack.c.h.b16 %v5949
      %v5987 = vunpack.c.l.b16 %v5950
      %v5988 = vunpack.c.h.b16 %v5950
      %v5989 = vunpack.c.l.b16 %v5951
      %v5990 = vunpack.c.h.b16 %v5951
      %v5991 = vunpack.c.l.b16 %v5952
      %v5992 = vunpack.c.h.b16 %v5952
      %v5993 = vunpack.c.l.b16 %v5953
      %v5994 = vunpack.c.h.b16 %v5953
      %v5995 = vunpack.c.l.b16 %v5954
      %v5996 = vunpack.c.h.b16 %v5954
      %v5997 = vunpack.c.l.b16 %v5955
      %v5998 = vunpack.c.h.b16 %v5955
      %v5999 = vunpack.c.l.b16 %v5956
      %v6000 = vunpack.c.h.b16 %v5956
      %v6001 = vunpack.c.l.b16 %v5957
      %v6002 = vunpack.c.h.b16 %v5957
      %v6003 = vunpack.c.l.b16 %v5958
      %v6004 = vunpack.c.h.b16 %v5958
      %v6005 = vunpack.c.l.b16 %v5959
      %v6006 = vunpack.c.h.b16 %v5959
      %v6007 = vunpack.c.l.b16 %v5960
      %v6008 = vunpack.c.h.b16 %v5960
      %v6009 = vpack.c.b16 %v5977, %v5977
      %v6010 = vpack.c.b16 %v5978, %v5978
      %v6011 = vpack.c.b16 %v5979, %v5979
      %v6012 = vpack.c.b16 %v5980, %v5980
      %v6013 = vpack.c.b16 %v5981, %v5981
      %v6014 = vpack.c.b16 %v5982, %v5982
      %v6015 = vpack.c.b16 %v5983, %v5983
      %v6016 = vpack.c.b16 %v5984, %v5984
      %v6017 = vpack.c.b16 %v5985, %v5985
      %v6018 = vpack.c.b16 %v5986, %v5986
      %v6019 = vpack.c.b16 %v5987, %v5987
      %v6020 = vpack.c.b16 %v5988, %v5988
      %v6021 = vpack.c.b16 %v5989, %v5989
      %v6022 = vpack.c.b16 %v5990, %v5990
      %v6023 = vpack.c.b16 %v5991, %v5991
      %v6024 = vpack.c.b16 %v5992, %v5992
      %v6025 = vpack.c.b16 %v5993, %v5993
      %v6026 = vpack.c.b16 %v5994, %v5994
      %v6027 = vpack.c.b16 %v5995, %v5995
      %v6028 = vpack.c.b16 %v5996, %v5996
      %v6029 = vpack.c.b16 %v5997, %v5997
      %v6030 = vpack.c.b16 %v5998, %v5998
      %v6031 = vpack.c.b16 %v5999, %v5999
      %v6032 = vpack.c.b16 %v6000, %v6000
      %v6033 = vpack.c.b16 %v6001, %v6001
      %v6034 = vpack.c.b16 %v6002, %v6002
      %v6035 = vpack.c.b16 %v6003, %v6003
      %v6036 = vpack.c.b16 %v6004, %v6004
      %v6037 = vpack.c.b16 %v6005, %v6005
      %v6038 = vpack.c.b16 %v6006, %v6006
      %v6039 = vpack.c.b16 %v6007, %v6007
      %v6040 = vpack.c.b16 %v6008, %v6008
      %6073 = vst [vmem:[%s237] sm:$0xf] %v6009
      %6074 = vst [vmem:[%s237 + $0x4] sm:$0xf] %v6010
      %6075 = vst [vmem:[%s237 + $0x8] sm:$0xf] %v6011
      %6076 = vst [vmem:[%s237 + $0xc] sm:$0xf] %v6012
      %6077 = vst [vmem:[%s237 + $0x10] sm:$0xf] %v6013
      %6078 = vst [vmem:[%s237 + $0x14] sm:$0xf] %v6014
      %6079 = vst [vmem:[%s237 + $0x18] sm:$0xf] %v6015
      %6080 = vst [vmem:[%s237 + $0x1c] sm:$0xf] %v6016
      %6081 = vst [vmem:[%s237 + $0x20] sm:$0xf] %v6017
      %6082 = vst [vmem:[%s237 + $0x24] sm:$0xf] %v6018
      %6083 = vst [vmem:[%s237 + $0x28] sm:$0xf] %v6019
      %6084 = vst [vmem:[%s237 + $0x2c] sm:$0xf] %v6020
      %6085 = vst [vmem:[%s237 + $0x30] sm:$0xf] %v6021
      %6086 = vst [vmem:[%s237 + $0x34] sm:$0xf] %v6022
      %6087 = vst [vmem:[%s237 + $0x38] sm:$0xf] %v6023
      %6088 = vst [vmem:[%s237 + $0x3c] sm:$0xf] %v6024
      %6089 = vst [vmem:[%s237 + $0x40] sm:$0xf] %v6025
      %6090 = vst [vmem:[%s237 + $0x44] sm:$0xf] %v6026
      %6091 = vst [vmem:[%s237 + $0x48] sm:$0xf] %v6027
      %6092 = vst [vmem:[%s237 + $0x4c] sm:$0xf] %v6028
      %6093 = vst [vmem:[%s237 + $0x50] sm:$0xf] %v6029
      %6094 = vst [vmem:[%s237 + $0x54] sm:$0xf] %v6030
      %6095 = vst [vmem:[%s237 + $0x58] sm:$0xf] %v6031
      %6096 = vst [vmem:[%s237 + $0x5c] sm:$0xf] %v6032
      %6097 = vst [vmem:[%s237 + $0x60] sm:$0xf] %v6033
      %6098 = vst [vmem:[%s237 + $0x64] sm:$0xf] %v6034
      %6099 = vst [vmem:[%s237 + $0x68] sm:$0xf] %v6035
      %6100 = vst [vmem:[%s237 + $0x6c] sm:$0xf] %v6036
      %6101 = vst [vmem:[%s237 + $0x70] sm:$0xf] %v6037
      %6102 = vst [vmem:[%s237 + $0x74] sm:$0xf] %v6038
      %6103 = vst [vmem:[%s237 + $0x78] sm:$0xf] %v6039
      %6104 = vst [vmem:[%s237 + $0x7c] sm:$0xf] %v6040
      %v6105 = vadd.f32 %v5592, %v5593
      %v6106 = vadd.f32 %v6105, %v5594
      %v6107 = vadd.f32 %v6106, %v5595
      %v6108 = vadd.f32 %v6107, %v5596
      %v6109 = vadd.f32 %v6108, %v5597
      %v6110 = vadd.f32 %v6109, %v5598
      %v6111 = vadd.f32 %v6110, %v5599
      %v6112 = vadd.f32 %v6111, %v5600
      %v6113 = vadd.f32 %v6112, %v5601
      %v6114 = vadd.f32 %v6113, %v5602
      %v6115 = vadd.f32 %v6114, %v5603
      %v6116 = vadd.f32 %v6115, %v5604
      %v6117 = vadd.f32 %v6116, %v5605
      %v6118 = vadd.f32 %v6117, %v5606
      %v6119 = vadd.f32 %v6118, %v5607
      %v6120 = vadd.f32 %v6119, %v5608
      %v6121 = vadd.f32 %v6120, %v5609
      %v6122 = vadd.f32 %v6121, %v5610
      %v6123 = vadd.f32 %v6122, %v5611
      %v6124 = vadd.f32 %v6123, %v5612
      %v6125 = vadd.f32 %v6124, %v5613
      %v6126 = vadd.f32 %v6125, %v5614
      %v6127 = vadd.f32 %v6126, %v5615
      %v6128 = vadd.f32 %v6127, %v5616
      %v6129 = vadd.f32 %v6128, %v5617
      %v6130 = vadd.f32 %v6129, %v5618
      %v6131 = vadd.f32 %v6130, %v5619
      %v6132 = vadd.f32 %v6131, %v5620
      %v6133 = vadd.f32 %v6132, %v5621
      %v6134 = vadd.f32 %v6133, %v5622
      %v6135 = vadd.f32 %v6134, %v5623
      %v6136 = vrot.slane %v6135, 4
      %v6137 = vadd.f32 %v6135, %v6136
      %v6138 = vrot.slane %v6137, 2
      %v6139 = vadd.f32 %v6137, %v6138
      %v6140 = vrot.slane %v6139, 1
      %v6141 = vadd.f32 %v6139, %v6140
      %6142 = vst [vmem:[%s241] sm:$0x1] %v6141
      %v6143 = vmul.f32 %v5592, %v5592
      %v6144 = vmul.f32 %v5593, %v5593
      %v6145 = vmul.f32 %v5594, %v5594
      %v6146 = vmul.f32 %v5595, %v5595
      %v6147 = vmul.f32 %v5596, %v5596
      %v6148 = vmul.f32 %v5597, %v5597
      %v6149 = vmul.f32 %v5598, %v5598
      %v6150 = vmul.f32 %v5599, %v5599
      %v6151 = vmul.f32 %v5600, %v5600
      %v6152 = vmul.f32 %v5601, %v5601
      %v6153 = vmul.f32 %v5602, %v5602
      %v6154 = vmul.f32 %v5603, %v5603
      %v6155 = vmul.f32 %v5604, %v5604
      %v6156 = vmul.f32 %v5605, %v5605
      %v6157 = vmul.f32 %v5606, %v5606
      %v6158 = vmul.f32 %v5607, %v5607
      %v6159 = vmul.f32 %v5608, %v5608
      %v6160 = vmul.f32 %v5609, %v5609
      %v6161 = vmul.f32 %v5610, %v5610
      %v6162 = vmul.f32 %v5611, %v5611
      %v6163 = vmul.f32 %v5612, %v5612
      %v6164 = vmul.f32 %v5613, %v5613
      %v6165 = vmul.f32 %v5614, %v5614
      %v6166 = vmul.f32 %v5615, %v5615
      %v6167 = vmul.f32 %v5616, %v5616
      %v6168 = vmul.f32 %v5617, %v5617
      %v6169 = vmul.f32 %v5618, %v5618
      %v6170 = vmul.f32 %v5619, %v5619
      %v6171 = vmul.f32 %v5620, %v5620
      %v6172 = vmul.f32 %v5621, %v5621
      %v6173 = vmul.f32 %v5622, %v5622
      %v6174 = vmul.f32 %v5623, %v5623
      %v6175 = vadd.f32 %v6143, %v6144
      %v6176 = vadd.f32 %v6175, %v6145
      %v6177 = vadd.f32 %v6176, %v6146
      %v6178 = vadd.f32 %v6177, %v6147
      %v6179 = vadd.f32 %v6178, %v6148
      %v6180 = vadd.f32 %v6179, %v6149
      %v6181 = vadd.f32 %v6180, %v6150
      %v6182 = vadd.f32 %v6181, %v6151
      %v6183 = vadd.f32 %v6182, %v6152
      %v6184 = vadd.f32 %v6183, %v6153
      %v6185 = vadd.f32 %v6184, %v6154
      %v6186 = vadd.f32 %v6185, %v6155
      %v6187 = vadd.f32 %v6186, %v6156
      %v6188 = vadd.f32 %v6187, %v6157
      %v6189 = vadd.f32 %v6188, %v6158
      %v6190 = vadd.f32 %v6189, %v6159
      %v6191 = vadd.f32 %v6190, %v6160
      %v6192 = vadd.f32 %v6191, %v6161
      %v6193 = vadd.f32 %v6192, %v6162
      %v6194 = vadd.f32 %v6193, %v6163
      %v6195 = vadd.f32 %v6194, %v6164
      %v6196 = vadd.f32 %v6195, %v6165
      %v6197 = vadd.f32 %v6196, %v6166
      %v6198 = vadd.f32 %v6197, %v6167
      %v6199 = vadd.f32 %v6198, %v6168
      %v6200 = vadd.f32 %v6199, %v6169
      %v6201 = vadd.f32 %v6200, %v6170
      %v6202 = vadd.f32 %v6201, %v6171
      %v6203 = vadd.f32 %v6202, %v6172
      %v6204 = vadd.f32 %v6203, %v6173
      %v6205 = vadd.f32 %v6204, %v6174
      %v6206 = vrot.slane %v6205, 4
      %v6207 = vadd.f32 %v6205, %v6206
      %v6208 = vrot.slane %v6207, 2
      %v6209 = vadd.f32 %v6207, %v6208
      %v6210 = vrot.slane %v6209, 1
      %v6211 = vadd.f32 %v6209, %v6210
      %6212 = vst [vmem:[%s241 + $0x1] sm:$0x1] %v6211
      %v6213 = vadd.f32 %v5819, %v5822
      %v6214 = vadd.f32 %v6213, %v5827
      %v6215 = vadd.f32 %v6214, %v5830
      %v6216 = vadd.f32 %v6215, %v5835
      %v6217 = vadd.f32 %v6216, %v5838
      %v6218 = vadd.f32 %v6217, %v5843
      %v6219 = vadd.f32 %v6218, %v5846
      %v6220 = vadd.f32 %v6219, %v5851
      %v6221 = vadd.f32 %v6220, %v5854
      %v6222 = vadd.f32 %v6221, %v5859
      %v6223 = vadd.f32 %v6222, %v5862
      %v6224 = vadd.f32 %v6223, %v5867
      %v6225 = vadd.f32 %v6224, %v5870
      %v6226 = vadd.f32 %v6225, %v5875
      %v6227 = vadd.f32 %v6226, %v5878
      %v6228 = vadd.f32 %v6227, %v5883
      %v6229 = vadd.f32 %v6228, %v5886
      %v6230 = vadd.f32 %v6229, %v5891
      %v6231 = vadd.f32 %v6230, %v5894
      %v6232 = vadd.f32 %v6231, %v5899
      %v6233 = vadd.f32 %v6232, %v5902
      %v6234 = vadd.f32 %v6233, %v5907
      %v6235 = vadd.f32 %v6234, %v5910
      %v6236 = vadd.f32 %v6235, %v5915
      %v6237 = vadd.f32 %v6236, %v5918
      %v6238 = vadd.f32 %v6237, %v5923
      %v6239 = vadd.f32 %v6238, %v5926
      %v6240 = vadd.f32 %v6239, %v5931
      %v6241 = vadd.f32 %v6240, %v5934
      %v6242 = vadd.f32 %v6241, %v5939
      %v6243 = vadd.f32 %v6242, %v5942
      %v6244 = vrot.slane %v6243, 4
      %v6245 = vadd.f32 %v6243, %v6244
      %v6246 = vrot.slane %v6245, 2
      %v6247 = vadd.f32 %v6245, %v6246
      %v6248 = vrot.slane %v6247, 1
      %v6249 = vadd.f32 %v6247, %v6248
      %6250 = vst [vmem:[%s245] sm:$0x1] %v6249
      %v6251 = vmul.f32 %v5819, %v5819
      %v6252 = vmul.f32 %v5822, %v5822
      %v6253 = vmul.f32 %v5827, %v5827
      %v6254 = vmul.f32 %v5830, %v5830
      %v6255 = vmul.f32 %v5835, %v5835
      %v6256 = vmul.f32 %v5838, %v5838
      %v6257 = vmul.f32 %v5843, %v5843
      %v6258 = vmul.f32 %v5846, %v5846
      %v6259 = vmul.f32 %v5851, %v5851
      %v6260 = vmul.f32 %v5854, %v5854
      %v6261 = vmul.f32 %v5859, %v5859
      %v6262 = vmul.f32 %v5862, %v5862
      %v6263 = vmul.f32 %v5867, %v5867
      %v6264 = vmul.f32 %v5870, %v5870
      %v6265 = vmul.f32 %v5875, %v5875
      %v6266 = vmul.f32 %v5878, %v5878
      %v6267 = vmul.f32 %v5883, %v5883
      %v6268 = vmul.f32 %v5886, %v5886
      %v6269 = vmul.f32 %v5891, %v5891
      %v6270 = vmul.f32 %v5894, %v5894
      %v6271 = vmul.f32 %v5899, %v5899
      %v6272 = vmul.f32 %v5902, %v5902
      %v6273 = vmul.f32 %v5907, %v5907
      %v6274 = vmul.f32 %v5910, %v5910
      %v6275 = vmul.f32 %v5915, %v5915
      %v6276 = vmul.f32 %v5918, %v5918
      %v6277 = vmul.f32 %v5923, %v5923
      %v6278 = vmul.f32 %v5926, %v5926
      %v6279 = vmul.f32 %v5931, %v5931
      %v6280 = vmul.f32 %v5934, %v5934
      %v6281 = vmul.f32 %v5939, %v5939
      %v6282 = vmul.f32 %v5942, %v5942
      %v6283 = vadd.f32 %v6251, %v6252
      %v6284 = vadd.f32 %v6283, %v6253
      %v6285 = vadd.f32 %v6284, %v6254
      %v6286 = vadd.f32 %v6285, %v6255
      %v6287 = vadd.f32 %v6286, %v6256
      %v6288 = vadd.f32 %v6287, %v6257
      %v6289 = vadd.f32 %v6288, %v6258
      %v6290 = vadd.f32 %v6289, %v6259
      %v6291 = vadd.f32 %v6290, %v6260
      %v6292 = vadd.f32 %v6291, %v6261
      %v6293 = vadd.f32 %v6292, %v6262
      %v6294 = vadd.f32 %v6293, %v6263
      %v6295 = vadd.f32 %v6294, %v6264
      %v6296 = vadd.f32 %v6295, %v6265
      %v6297 = vadd.f32 %v6296, %v6266
      %v6298 = vadd.f32 %v6297, %v6267
      %v6299 = vadd.f32 %v6298, %v6268
      %v6300 = vadd.f32 %v6299, %v6269
      %v6301 = vadd.f32 %v6300, %v6270
      %v6302 = vadd.f32 %v6301, %v6271
      %v6303 = vadd.f32 %v6302, %v6272
      %v6304 = vadd.f32 %v6303, %v6273
      %v6305 = vadd.f32 %v6304, %v6274
      %v6306 = vadd.f32 %v6305, %v6275
      %v6307 = vadd.f32 %v6306, %v6276
      %v6308 = vadd.f32 %v6307, %v6277
      %v6309 = vadd.f32 %v6308, %v6278
      %v6310 = vadd.f32 %v6309, %v6279
      %v6311 = vadd.f32 %v6310, %v6280
      %v6312 = vadd.f32 %v6311, %v6281
      %v6313 = vadd.f32 %v6312, %v6282
      %v6314 = vrot.slane %v6313, 4
      %v6315 = vadd.f32 %v6313, %v6314
      %v6316 = vrot.slane %v6315, 2
      %v6317 = vadd.f32 %v6315, %v6316
      %v6318 = vrot.slane %v6317, 1
      %v6319 = vadd.f32 %v6317, %v6318
      %6320 = vst [vmem:[%s245 + $0x1] sm:$0x1] %v6319
      %p6321 = scmp.lt.s32.totalorder %s17, 1
      %s6322 = scalar_select %p6321, %s17, 1
      %s6323 = smul.addr %s6322, 32
      %s6324 = smul.addr %s6323, 4
      %s6325 = scalar_lea.vmem %s3, %s6324
      %p6326 = scmp.lt.s32.totalorder %s17, 1
      %s6327 = scalar_select %p6326, %s17, 1
      %s6328 = smul.addr %s6327, 2
      %s6329 = scalar_lea.vmem %s4, %s6328
      %p6330 = scmp.lt.s32.totalorder %s17, 1
      %s6331 = scalar_select %p6330, %s17, 1
      %s6332 = smul.addr %s6331, 2
      %s6333 = scalar_lea.vmem %s5, %s6332
      // Predicated region
      $region33: #{resblock_forward.3} parent=31 // pred_check
        %p6334 = pneg %p103
      $region34: #{resblock_forward.3} parent=31 // pred_check_branch
        %6336 = sbr.rel (%p6334) target = $region36
      $region35: #{resblock_forward.3} parent=31 // pred_region
        _
      $region36: #{resblock_forward.3} parent=31 // pred_fallthru
        _
      // Predicated region
      $region37: #{resblock_forward.3} parent=31 // pred_check
        %p6337 = pneg %p129
      $region38: #{resblock_forward.3} parent=31 // pred_check_branch
        %6339 = sbr.rel (%p6337) target = $region40
      $region39: #{resblock_forward.3} parent=31 // pred_region
        _
      $region40: #{resblock_forward.3} parent=31 // pred_fallthru
        _
      // Predicated region
      $region41: #{resblock_forward.3} parent=31 // pred_check
        %p6340 = pneg %p155
      $region42: #{resblock_forward.3} parent=31 // pred_check_branch
        %6342 = sbr.rel (%p6340) target = $region44
      $region43: #{resblock_forward.3} parent=31 // pred_region
        _
      $region44: #{resblock_forward.3} parent=31 // pred_fallthru
        _
    $region32: #{resblock_forward.3} parent=5 // pred_fallthru
      _
    %p6343 = scmp.le.s32.totalorder 2, %s12
    // Predicated region
    $region45: #{resblock_forward.3} parent=5 // pred_check
      %p6344 = pneg %p6343
    $region46: #{resblock_forward.3} parent=5 // pred_check_branch
      %6346 = sbr.rel (%p6344) target = $region48
    $region47: #{resblock_forward.3} parent=5 // pred_region
      %s6347 = ssub.s32 %s12, 2
      // Predicated region
      $region49: #{resblock_forward.3} parent=47 // pred_check
        %p6348 = pneg %p109
      $region50: #{resblock_forward.3} parent=47 // pred_check_branch
        %6350 = sbr.rel (%p6348) target = $region52
      $region51: #{resblock_forward.3} parent=47 // pred_region
        %p6351 = scmp.lt.s32.totalorder %s18, 1
        %s6352 = scalar_select %p6351, %s18, 1
        %s6353 = smul.addr %s6352, 32
        %s6354 = smul.addr %s6353, 4
        %s6355 = scalar_lea.vmem %s3, %s6354
      $region52: #{resblock_forward.3} parent=47 // pred_fallthru
        _
      // Predicated region
      $region53: #{resblock_forward.3} parent=47 // pred_check
        %p6356 = pneg %p135
      $region54: #{resblock_forward.3} parent=47 // pred_check_branch
        %6358 = sbr.rel (%p6356) target = $region56
      $region55: #{resblock_forward.3} parent=47 // pred_region
        %p6359 = scmp.lt.s32.totalorder %s18, 1
        %s6360 = scalar_select %p6359, %s18, 1
        %s6361 = smul.addr %s6360, 2
        %s6362 = scalar_lea.vmem %s4, %s6361
      $region56: #{resblock_forward.3} parent=47 // pred_fallthru
        _
      // Predicated region
      $region57: #{resblock_forward.3} parent=47 // pred_check
        %p6363 = pneg %p161
      $region58: #{resblock_forward.3} parent=47 // pred_check_branch
        %6365 = sbr.rel (%p6363) target = $region60
      $region59: #{resblock_forward.3} parent=47 // pred_region
        %p6366 = scmp.lt.s32.totalorder %s18, 1
        %s6367 = scalar_select %p6366, %s18, 1
        %s6368 = smul.addr %s6367, 2
        %s6369 = scalar_lea.vmem %s5, %s6368
      $region60: #{resblock_forward.3} parent=47 // pred_fallthru
        _
    $region48: #{resblock_forward.3} parent=5 // pred_fallthru
      _
  $region6: #{resblock_forward.3} parent=0 // loop_footer
    %s16 = sadd.s32 1, %s12
  $region7: #{resblock_forward.3} parent=0 // loop_footer_branch
    %11 = sbr.rel target = $region3
  $region8: #{resblock_forward.3} parent=0 // loop_exit
    _

// kernel: resblock_forward.4
$region0: #{resblock_forward.4}
  #allocation0 [shape = 'u32[]', space=smem, size = 0x4, offset = 0x4, fixed_abs, tag = 'smem constant byte address 0x4 - core index']
  #allocation1 [shape = 'u32[144,128]{1,0:T(1,128)}', space=vmem, size = 0x12000, scoped, tag = 'internal scratch']
  #allocation2 [shape = 'bf16[18,18,128]{2,1,0:T(8,128)(2,1)}', space=vmem, size = 0x1b000, scoped, tag = 'scratch operand']
  %s0 = inlined_call_operand.vmem [shape: bf16[2,16,16,128], index: 0, kind: input, shape index: {}]
  %s1 = inlined_call_operand.vmem [shape: f32[2,128], index: 1, kind: input, shape index: {}]
  %s2 = inlined_call_operand.vmem [shape: bf16[1152,128], index: 2, kind: input, shape index: {}]
  %s3 = inlined_call_operand.vmem [shape: bf16[2,16,16,128], index: 3, kind: output, shape index: {0}]
  %s4 = inlined_call_operand.vmem [shape: f32[2,2,128], index: 4, kind: output, shape index: {1}]
  %5 = xla_tuple %s3, %s4
  %s6 = sld [smem:[#allocation0]]
  $region53: #{resblock_forward.4} parent=0
    _
  %s8 = ssub.s32 1, %s6
  %s9 = scalar_select 0, %s8, %s6
  loop: start=0, step=1, limit=4
  $region2: #{resblock_forward.4} parent=0 // loop_pre_header
    _
  $region3: #{resblock_forward.4} parent=0 // loop_header
    %s11 = sphi 0, %s15
    %p12 = scmp.ge.s32.totalorder %s11, 4
    %s21 = sphi 0, %s23
    %s24 = sphi 0, %s21
    %s25 = sphi 0, %s24
    %s41 = sphi 0, %s25
    %s45 = sphi 0, %s45
    %s47 = sphi 0, %s45
    %s48 = sphi 0, %s47
    %s62 = sphi 0, %s48
    %s66 = sphi 0, %s66
    %s68 = sphi 0, %s66
    %s69 = sphi 0, %s68
    %s83 = sphi 0, %s69
    %s89 = sphi 0, %s91
    %s92 = sphi 0, %s89
    %s93 = sphi 0, %s92
    %s109 = sphi 0, %s93
    %s115 = sphi 0, %s117
    %s118 = sphi 0, %s115
    %s119 = sphi 0, %s118
    %s135 = sphi 0, %s119
  $region4: #{resblock_forward.4} parent=0 // loop_header_branch
    %14 = sbr.rel (%p12) target = $region8
  $region5: #{resblock_forward.4} parent=0 // loop_body
    %s16 = ssub.s32 %s11, 1
    %s17 = ssub.s32 %s11, 2
    %s18 = sadd.s32 %s11, 1
    %s19 = ssub.s32 %s11, %s18
    %p20 = scmp.eq.s32.totalorder %s19, 0
    %s22 = sadd.s32 %s21, 1
    %s23 = scalar_select %p20, %s21, %s22
    %p26 = pneg %p20
    %p27 = scmp.eq.s32.totalorder %s11, 1
    %p28 = por %p26, %p27
    %p29 = scmp.ne.s32.totalorder %s21, %s24
    %p30 = scmp.eq.s32.totalorder %s11, 0
    %p31 = por %p29, %p30
    %p32 = scmp.ne.s32.totalorder %s21, %s24
    %p33 = scmp.eq.s32.totalorder %s16, 1
    %p34 = por %p32, %p33
    %p35 = scmp.ne.s32.totalorder %s24, %s25
    %p36 = scmp.eq.s32.totalorder %s16, 0
    %p37 = por %p35, %p36
    %p38 = scmp.ne.s32.totalorder %s24, %s25
    %p39 = scmp.eq.s32.totalorder %s17, 1
    %p40 = por %p38, %p39
    %p42 = scmp.ne.s32.totalorder %s25, %s41
    %p43 = scmp.eq.s32.totalorder %s17, 0
    %p44 = por %p42, %p43
    %s46 = sadd.s32 %s45, 1
    %p49 = scmp.eq.s32.totalorder %s11, 1
    %p50 = scmp.ne.s32.totalorder %s45, %s47
    %p51 = scmp.eq.s32.totalorder %s11, 0
    %p52 = por %p50, %p51
    %p53 = scmp.ne.s32.totalorder %s45, %s47
    %p54 = scmp.eq.s32.totalorder %s16, 1
    %p55 = por %p53, %p54
    %p56 = scmp.ne.s32.totalorder %s47, %s48
    %p57 = scmp.eq.s32.totalorder %s16, 0
    %p58 = por %p56, %p57
    %p59 = scmp.ne.s32.totalorder %s47, %s48
    %p60 = scmp.eq.s32.totalorder %s17, 1
    %p61 = por %p59, %p60
    %p63 = scmp.ne.s32.totalorder %s48, %s62
    %p64 = scmp.eq.s32.totalorder %s17, 0
    %p65 = por %p63, %p64
    %s67 = sadd.s32 %s66, 1
    %p70 = scmp.eq.s32.totalorder %s11, 1
    %p71 = scmp.ne.s32.totalorder %s66, %s68
    %p72 = scmp.eq.s32.totalorder %s11, 0
    %p73 = por %p71, %p72
    %p74 = scmp.ne.s32.totalorder %s66, %s68
    %p75 = scmp.eq.s32.totalorder %s16, 1
    %p76 = por %p74, %p75
    %p77 = scmp.ne.s32.totalorder %s68, %s69
    %p78 = scmp.eq.s32.totalorder %s16, 0
    %p79 = por %p77, %p78
    %p80 = scmp.ne.s32.totalorder %s68, %s69
    %p81 = scmp.eq.s32.totalorder %s17, 1
    %p82 = por %p80, %p81
    %p84 = scmp.ne.s32.totalorder %s69, %s83
    %p85 = scmp.eq.s32.totalorder %s17, 0
    %p86 = por %p84, %p85
    %s87 = ssub.s32 %s11, %s18
    %p88 = scmp.eq.s32.totalorder %s87, 0
    %s90 = sadd.s32 %s89, 1
    %s91 = scalar_select %p88, %s89, %s90
    %p94 = pneg %p88
    %p95 = scmp.eq.s32.totalorder %s11, 1
    %p96 = por %p94, %p95
    %p97 = scmp.ne.s32.totalorder %s89, %s92
    %p98 = scmp.eq.s32.totalorder %s11, 0
    %p99 = por %p97, %p98
    %p100 = scmp.ne.s32.totalorder %s89, %s92
    %p101 = scmp.eq.s32.totalorder %s16, 1
    %p102 = por %p100, %p101
    %p103 = scmp.ne.s32.totalorder %s92, %s93
    %p104 = scmp.eq.s32.totalorder %s16, 0
    %p105 = por %p103, %p104
    %p106 = scmp.ne.s32.totalorder %s92, %s93
    %p107 = scmp.eq.s32.totalorder %s17, 1
    %p108 = por %p106, %p107
    %p110 = scmp.ne.s32.totalorder %s93, %s109
    %p111 = scmp.eq.s32.totalorder %s17, 0
    %p112 = por %p110, %p111
    %s113 = ssub.s32 %s11, %s18
    %p114 = scmp.eq.s32.totalorder %s113, 0
    %s116 = sadd.s32 %s115, 1
    %s117 = scalar_select %p114, %s115, %s116
    %p120 = pneg %p114
    %p121 = scmp.eq.s32.totalorder %s11, 1
    %p122 = por %p120, %p121
    %p123 = scmp.ne.s32.totalorder %s115, %s118
    %p124 = scmp.eq.s32.totalorder %s11, 0
    %p125 = por %p123, %p124
    %p126 = scmp.ne.s32.totalorder %s115, %s118
    %p127 = scmp.eq.s32.totalorder %s16, 1
    %p128 = por %p126, %p127
    %p129 = scmp.ne.s32.totalorder %s118, %s119
    %p130 = scmp.eq.s32.totalorder %s16, 0
    %p131 = por %p129, %p130
    %p132 = scmp.ne.s32.totalorder %s118, %s119
    %p133 = scmp.eq.s32.totalorder %s17, 1
    %p134 = por %p132, %p133
    %p136 = scmp.ne.s32.totalorder %s119, %s135
    %p137 = scmp.eq.s32.totalorder %s17, 0
    %p138 = por %p136, %p137
    %p139 = scmp.le.s32.totalorder 1, %s11
    %p140 = scmp.lt.s32.totalorder %s11, 3
    %p141 = pnand %p139, %p140
    %p142 = pneg %p141
    // Predicated region
    $region9: #{resblock_forward.4} parent=5 // pred_check
      _
    $region10: #{resblock_forward.4} parent=5 // pred_check_branch
      %144 = sbr.rel (%p141) target = $region12
    $region11: #{resblock_forward.4} parent=5 // pred_region
      %s145 = ssub.s32 %s11, 1
      // Predicated region
      $region13: #{resblock_forward.4} parent=11 // pred_check
        %p146 = pneg %p58
      $region14: #{resblock_forward.4} parent=11 // pred_check_branch
        %148 = sbr.rel (%p146) target = $region16
      $region15: #{resblock_forward.4} parent=11 // pred_region
        _
      $region16: #{resblock_forward.4} parent=11 // pred_fallthru
        _
      // Predicated region
      $region17: #{resblock_forward.4} parent=11 // pred_check
        %p149 = pneg %p79
      $region18: #{resblock_forward.4} parent=11 // pred_check_branch
        %151 = sbr.rel (%p149) target = $region20
      $region19: #{resblock_forward.4} parent=11 // pred_region
        _
      $region20: #{resblock_forward.4} parent=11 // pred_fallthru
        _
    $region12: #{resblock_forward.4} parent=5 // pred_fallthru
      _
    %p152 = scmp.lt.s32.totalorder %s11, 2
    // Predicated region
    $region21: #{resblock_forward.4} parent=5 // pred_check
      %p153 = pneg %p152
    $region22: #{resblock_forward.4} parent=5 // pred_check_branch
      %155 = sbr.rel (%p153) target = $region24
    $region23: #{resblock_forward.4} parent=5 // pred_region
      // Predicated region
      $region25: #{resblock_forward.4} parent=23 // pred_check
        %p156 = pneg %p31
      $region26: #{resblock_forward.4} parent=23 // pred_check_branch
        %158 = sbr.rel (%p156) target = $region28
      $region27: #{resblock_forward.4} parent=23 // pred_region
        %p159 = scmp.lt.s32.totalorder %s11, 1
        %s160 = scalar_select %p159, %s11, 1
        %s161 = smul.addr %s160, 32
        %s162 = smul.addr %s161, 4
        %s163 = scalar_lea.vmem %s0, %s162
      $region28: #{resblock_forward.4} parent=23 // pred_fallthru
        _
    $region24: #{resblock_forward.4} parent=5 // pred_fallthru
      _
    %p164 = scmp.le.s32.totalorder 1, %s11
    %p165 = scmp.lt.s32.totalorder %s11, 3
    %p166 = pnand %p164, %p165
    %p167 = pneg %p166
    // Predicated region
    $region29: #{resblock_forward.4} parent=5 // pred_check
      _
    $region30: #{resblock_forward.4} parent=5 // pred_check_branch
      %169 = sbr.rel (%p166) target = $region32
    $region31: #{resblock_forward.4} parent=5 // pred_region
      %s170 = ssub.s32 %s11, 1
      %p171 = scmp.lt.s32.totalorder %s16, 1
      %s172 = scalar_select %p171, %s16, 1
      %s173 = smul.addr %s172, 32
      %s174 = smul.addr %s173, 4
      %s175 = scalar_lea.vmem %s0, %s174
      %p176 = pneg %p37
      %p177 = pneg %p34
      %p178 = pneg %p58
      %p179 = pneg %p55
      %p180 = pneg %p79
      %p181 = pneg %p76
      %p182 = pneg %p105
      %p183 = pneg %p102
      %p184 = scmp.lt.s32.totalorder %s16, 1
      %s185 = scalar_select %p184, %s16, 1
      %s186 = smul.addr %s185, 32
      %s187 = smul.addr %s186, 4
      %s188 = scalar_lea.vmem %s3, %s187
      %p189 = pneg %p131
      %p190 = pneg %p128
      %p191 = scmp.lt.s32.totalorder %s16, 1
      %s192 = scalar_select %p191, %s16, 1
      %s193 = smul.addr %s192, 2
      %s194 = scalar_lea.vmem %s4, %s193
      %p195 = scmp.lt.s32.totalorder %s16, 1
      %s196 = scalar_select %p195, %s16, 1
      %s197 = smul.addr %s196, 32
      %s198 = smul.addr %s197, 4
      %s199 = scalar_lea.vmem %s0, %s198
      %p200 = scmp.lt.s32.totalorder %s16, 1
      %s201 = scalar_select %p200, %s16, 1
      %s202 = smul.addr %s201, 32
      %s203 = smul.addr %s202, 4
      %s204 = scalar_lea.vmem %s3, %s203
      %p205 = scmp.lt.s32.totalorder %s16, 1
      %s206 = scalar_select %p205, %s16, 1
      %s207 = smul.addr %s206, 2
      %s208 = scalar_lea.vmem %s4, %s207
      %v210 = vld [vmem:[%s1] sm:$0x1]
      %v211 = vld [vmem:[%s1 + $0x1] sm:$0x1]
      %v212 = vld [vmem:[%s199] sm:$0xf]
      %v213 = vld [vmem:[%s199 + $0x4] sm:$0xf]
      %v214 = vld [vmem:[%s199 + $0x8] sm:$0xf]
      %v215 = vld [vmem:[%s199 + $0xc] sm:$0xf]
      %v216 = vld [vmem:[%s199 + $0x10] sm:$0xf]
      %v217 = vld [vmem:[%s199 + $0x14] sm:$0xf]
      %v218 = vld [vmem:[%s199 + $0x18] sm:$0xf]
      %v219 = vld [vmem:[%s199 + $0x1c] sm:$0xf]
      %v220 = vld [vmem:[%s199 + $0x20] sm:$0xf]
      %v221 = vld [vmem:[%s199 + $0x24] sm:$0xf]
      %v222 = vld [vmem:[%s199 + $0x28] sm:$0xf]
      %v223 = vld [vmem:[%s199 + $0x2c] sm:$0xf]
      %v224 = vld [vmem:[%s199 + $0x30] sm:$0xf]
      %v225 = vld [vmem:[%s199 + $0x34] sm:$0xf]
      %v226 = vld [vmem:[%s199 + $0x38] sm:$0xf]
      %v227 = vld [vmem:[%s199 + $0x3c] sm:$0xf]
      %v228 = vld [vmem:[%s199 + $0x40] sm:$0xf]
      %v229 = vld [vmem:[%s199 + $0x44] sm:$0xf]
      %v230 = vld [vmem:[%s199 + $0x48] sm:$0xf]
      %v231 = vld [vmem:[%s199 + $0x4c] sm:$0xf]
      %v232 = vld [vmem:[%s199 + $0x50] sm:$0xf]
      %v233 = vld [vmem:[%s199 + $0x54] sm:$0xf]
      %v234 = vld [vmem:[%s199 + $0x58] sm:$0xf]
      %v235 = vld [vmem:[%s199 + $0x5c] sm:$0xf]
      %v236 = vld [vmem:[%s199 + $0x60] sm:$0xf]
      %v237 = vld [vmem:[%s199 + $0x64] sm:$0xf]
      %v238 = vld [vmem:[%s199 + $0x68] sm:$0xf]
      %v239 = vld [vmem:[%s199 + $0x6c] sm:$0xf]
      %v240 = vld [vmem:[%s199 + $0x70] sm:$0xf]
      %v241 = vld [vmem:[%s199 + $0x74] sm:$0xf]
      %v242 = vld [vmem:[%s199 + $0x78] sm:$0xf]
      %v243 = vld [vmem:[%s199 + $0x7c] sm:$0xf]
      %v244 = vunpack.c.l.bf16 %v212
      %v245 = vunpack.c.l.bf16 %v213
      %v246 = vunpack.c.l.bf16 %v214
      %v247 = vunpack.c.l.bf16 %v215
      %v248 = vunpack.c.l.bf16 %v216
      %v249 = vunpack.c.l.bf16 %v217
      %v250 = vunpack.c.l.bf16 %v218
      %v251 = vunpack.c.l.bf16 %v219
      %v252 = vunpack.c.l.bf16 %v220
      %v253 = vunpack.c.l.bf16 %v221
      %v254 = vunpack.c.l.bf16 %v222
      %v255 = vunpack.c.l.bf16 %v223
      %v256 = vunpack.c.l.bf16 %v224
      %v257 = vunpack.c.l.bf16 %v225
      %v258 = vunpack.c.l.bf16 %v226
      %v259 = vunpack.c.l.bf16 %v227
      %v260 = vunpack.c.l.bf16 %v228
      %v261 = vunpack.c.l.bf16 %v229
      %v262 = vunpack.c.l.bf16 %v230
      %v263 = vunpack.c.l.bf16 %v231
      %v264 = vunpack.c.l.bf16 %v232
      %v265 = vunpack.c.l.bf16 %v233
      %v266 = vunpack.c.l.bf16 %v234
      %v267 = vunpack.c.l.bf16 %v235
      %v268 = vunpack.c.l.bf16 %v236
      %v269 = vunpack.c.l.bf16 %v237
      %v270 = vunpack.c.l.bf16 %v238
      %v271 = vunpack.c.l.bf16 %v239
      %v272 = vunpack.c.l.bf16 %v240
      %v273 = vunpack.c.l.bf16 %v241
      %v274 = vunpack.c.l.bf16 %v242
      %v275 = vunpack.c.l.bf16 %v243
      %v276 = vlaneseq
      %v277 = vshrl.u32 %v276, 7
      %v278 = vsub.s32 0, %v277
      %v279 = vrot.slane %v210, %v278
      %v280 = vmul.f32 %v244, %v279
      %v281 = vmul.f32 %v245, %v279
      %v282 = vmul.f32 %v246, %v279
      %v283 = vmul.f32 %v247, %v279
      %v284 = vmul.f32 %v248, %v279
      %v285 = vmul.f32 %v249, %v279
      %v286 = vmul.f32 %v250, %v279
      %v287 = vmul.f32 %v251, %v279
      %v288 = vmul.f32 %v252, %v279
      %v289 = vmul.f32 %v253, %v279
      %v290 = vmul.f32 %v254, %v279
      %v291 = vmul.f32 %v255, %v279
      %v292 = vmul.f32 %v256, %v279
      %v293 = vmul.f32 %v257, %v279
      %v294 = vmul.f32 %v258, %v279
      %v295 = vmul.f32 %v259, %v279
      %v296 = vmul.f32 %v260, %v279
      %v297 = vmul.f32 %v261, %v279
      %v298 = vmul.f32 %v262, %v279
      %v299 = vmul.f32 %v263, %v279
      %v300 = vmul.f32 %v264, %v279
      %v301 = vmul.f32 %v265, %v279
      %v302 = vmul.f32 %v266, %v279
      %v303 = vmul.f32 %v267, %v279
      %v304 = vmul.f32 %v268, %v279
      %v305 = vmul.f32 %v269, %v279
      %v306 = vmul.f32 %v270, %v279
      %v307 = vmul.f32 %v271, %v279
      %v308 = vmul.f32 %v272, %v279
      %v309 = vmul.f32 %v273, %v279
      %v310 = vmul.f32 %v274, %v279
      %v311 = vmul.f32 %v275, %v279
      %v312 = vlaneseq
      %v313 = vshrl.u32 %v312, 7
      %v314 = vsub.s32 0, %v313
      %v315 = vrot.slane %v211, %v314
      %v316 = vadd.f32 %v280, %v315
      %v317 = vadd.f32 %v281, %v315
      %v318 = vadd.f32 %v282, %v315
      %v319 = vadd.f32 %v283, %v315
      %v320 = vadd.f32 %v284, %v315
      %v321 = vadd.f32 %v285, %v315
      %v322 = vadd.f32 %v286, %v315
      %v323 = vadd.f32 %v287, %v315
      %v324 = vadd.f32 %v288, %v315
      %v325 = vadd.f32 %v289, %v315
      %v326 = vadd.f32 %v290, %v315
      %v327 = vadd.f32 %v291, %v315
      %v328 = vadd.f32 %v292, %v315
      %v329 = vadd.f32 %v293, %v315
      %v330 = vadd.f32 %v294, %v315
      %v331 = vadd.f32 %v295, %v315
      %v332 = vadd.f32 %v296, %v315
      %v333 = vadd.f32 %v297, %v315
      %v334 = vadd.f32 %v298, %v315
      %v335 = vadd.f32 %v299, %v315
      %v336 = vadd.f32 %v300, %v315
      %v337 = vadd.f32 %v301, %v315
      %v338 = vadd.f32 %v302, %v315
      %v339 = vadd.f32 %v303, %v315
      %v340 = vadd.f32 %v304, %v315
      %v341 = vadd.f32 %v305, %v315
      %v342 = vadd.f32 %v306, %v315
      %v343 = vadd.f32 %v307, %v315
      %v344 = vadd.f32 %v308, %v315
      %v345 = vadd.f32 %v309, %v315
      %v346 = vadd.f32 %v310, %v315
      %v347 = vadd.f32 %v311, %v315
      %v348 = vmax.f32 %v316, 0.0
      %v349 = vmax.f32 %v317, 0.0
      %v350 = vmax.f32 %v318, 0.0
      %v351 = vmax.f32 %v319, 0.0
      %v352 = vmax.f32 %v320, 0.0
      %v353 = vmax.f32 %v321, 0.0
      %v354 = vmax.f32 %v322, 0.0
      %v355 = vmax.f32 %v323, 0.0
      %v356 = vmax.f32 %v324, 0.0
      %v357 = vmax.f32 %v325, 0.0
      %v358 = vmax.f32 %v326, 0.0
      %v359 = vmax.f32 %v327, 0.0
      %v360 = vmax.f32 %v328, 0.0
      %v361 = vmax.f32 %v329, 0.0
      %v362 = vmax.f32 %v330, 0.0
      %v363 = vmax.f32 %v331, 0.0
      %v364 = vmax.f32 %v332, 0.0
      %v365 = vmax.f32 %v333, 0.0
      %v366 = vmax.f32 %v334, 0.0
      %v367 = vmax.f32 %v335, 0.0
      %v368 = vmax.f32 %v336, 0.0
      %v369 = vmax.f32 %v337, 0.0
      %v370 = vmax.f32 %v338, 0.0
      %v371 = vmax.f32 %v339, 0.0
      %v372 = vmax.f32 %v340, 0.0
      %v373 = vmax.f32 %v341, 0.0
      %v374 = vmax.f32 %v342, 0.0
      %v375 = vmax.f32 %v343, 0.0
      %v376 = vmax.f32 %v344, 0.0
      %v377 = vmax.f32 %v345, 0.0
      %v378 = vmax.f32 %v346, 0.0
      %v379 = vmax.f32 %v347, 0.0
      %v380 = vpack.c.bf16 %v349, %v348
      %v381 = vpack.c.bf16 %v351, %v350
      %v382 = vpack.c.bf16 %v353, %v352
      %v383 = vpack.c.bf16 %v355, %v354
      %v384 = vpack.c.bf16 %v357, %v356
      %v385 = vpack.c.bf16 %v359, %v358
      %v386 = vpack.c.bf16 %v361, %v360
      %v387 = vpack.c.bf16 %v363, %v362
      %v388 = vpack.c.bf16 %v365, %v364
      %v389 = vpack.c.bf16 %v367, %v366
      %v390 = vpack.c.bf16 %v369, %v368
      %v391 = vpack.c.bf16 %v371, %v370
      %v392 = vpack.c.bf16 %v373, %v372
      %v393 = vpack.c.bf16 %v375, %v374
      %v394 = vpack.c.bf16 %v377, %v376
      %v395 = vpack.c.bf16 %v379, %v378
      %396 = vst [vmem:[#allocation2] sm:$0xf] 0
      %397 = vst [vmem:[#allocation2 + $0x4] sm:$0xf] 0
      %398 = vst [vmem:[#allocation2 + $0x8] sm:$0x1] 0
      %s399 = scalar_lea.vmem [#allocation2], 204
      %400 = vst [vmem:[%s399] sm:$0xf] 0
      %401 = vst [vmem:[%s399 + $0x4] sm:$0xf] 0
      %402 = vst [vmem:[%s399 + $0x8] sm:$0x1] 0
      %s403 = scalar_lea.vmem [#allocation2], 12
      %vm404 = vcmask 1040384
      %vm405 = vsmask.f32 256
      %vm406 = vmand %vm404, %vm405
      %v407 = vld [vmem:[%s403] sm:$0x1]
      %v408 = vsel %vm406, 0, %v407
      %409 = vst [vmem:[%s403] sm:$0x1] %v408
      %v410 = vld [vmem:[%s403 + $0xc] sm:$0x1]
      %v411 = vsel %vm406, 0, %v410
      %412 = vst [vmem:[%s403 + $0xc] sm:$0x1] %v411
      %v413 = vld [vmem:[%s403 + $0x18] sm:$0x1]
      %v414 = vsel %vm406, 0, %v413
      %415 = vst [vmem:[%s403 + $0x18] sm:$0x1] %v414
      %v416 = vld [vmem:[%s403 + $0x24] sm:$0x1]
      %v417 = vsel %vm406, 0, %v416
      %418 = vst [vmem:[%s403 + $0x24] sm:$0x1] %v417
      %v419 = vld [vmem:[%s403 + $0x30] sm:$0x1]
      %v420 = vsel %vm406, 0, %v419
      %421 = vst [vmem:[%s403 + $0x30] sm:$0x1] %v420
      %v422 = vld [vmem:[%s403 + $0x3c] sm:$0x1]
      %v423 = vsel %vm406, 0, %v422
      %424 = vst [vmem:[%s403 + $0x3c] sm:$0x1] %v423
      %v425 = vld [vmem:[%s403 + $0x48] sm:$0x1]
      %v426 = vsel %vm406, 0, %v425
      %427 = vst [vmem:[%s403 + $0x48] sm:$0x1] %v426
      %v428 = vld [vmem:[%s403 + $0x54] sm:$0x1]
      %v429 = vsel %vm406, 0, %v428
      %430 = vst [vmem:[%s403 + $0x54] sm:$0x1] %v429
      %v431 = vld [vmem:[%s403 + $0x60] sm:$0x1]
      %v432 = vsel %vm406, 0, %v431
      %433 = vst [vmem:[%s403 + $0x60] sm:$0x1] %v432
      %v434 = vld [vmem:[%s403 + $0x6c] sm:$0x1]
      %v435 = vsel %vm406, 0, %v434
      %436 = vst [vmem:[%s403 + $0x6c] sm:$0x1] %v435
      %v437 = vld [vmem:[%s403 + $0x78] sm:$0x1]
      %v438 = vsel %vm406, 0, %v437
      %439 = vst [vmem:[%s403 + $0x78] sm:$0x1] %v438
      %v440 = vld [vmem:[%s403 + $0x84] sm:$0x1]
      %v441 = vsel %vm406, 0, %v440
      %442 = vst [vmem:[%s403 + $0x84] sm:$0x1] %v441
      %v443 = vld [vmem:[%s403 + $0x90] sm:$0x1]
      %v444 = vsel %vm406, 0, %v443
      %445 = vst [vmem:[%s403 + $0x90] sm:$0x1] %v444
      %v446 = vld [vmem:[%s403 + $0x9c] sm:$0x1]
      %v447 = vsel %vm406, 0, %v446
      %448 = vst [vmem:[%s403 + $0x9c] sm:$0x1] %v447
      %v449 = vld [vmem:[%s403 + $0xa8] sm:$0x1]
      %v450 = vsel %vm406, 0, %v449
      %451 = vst [vmem:[%s403 + $0xa8] sm:$0x1] %v450
      %v452 = vld [vmem:[%s403 + $0xb4] sm:$0x1]
      %v453 = vsel %vm406, 0, %v452
      %454 = vst [vmem:[%s403 + $0xb4] sm:$0x1] %v453
      %vm455 = vsmask.f32 7938
      %vm456 = vmand %vm404, %vm455
      %v457 = vld [vmem:[%s403 + $0x8] sm:$0x1]
      %v458 = vsel %vm456, 0, %v457
      %459 = vst [vmem:[%s403 + $0x8] sm:$0x1] %v458
      %v460 = vld [vmem:[%s403 + $0x14] sm:$0x1]
      %v461 = vsel %vm456, 0, %v460
      %462 = vst [vmem:[%s403 + $0x14] sm:$0x1] %v461
      %v463 = vld [vmem:[%s403 + $0x20] sm:$0x1]
      %v464 = vsel %vm456, 0, %v463
      %465 = vst [vmem:[%s403 + $0x20] sm:$0x1] %v464
      %v466 = vld [vmem:[%s403 + $0x2c] sm:$0x1]
      %v467 = vsel %vm456, 0, %v466
      %468 = vst [vmem:[%s403 + $0x2c] sm:$0x1] %v467
      %v469 = vld [vmem:[%s403 + $0x38] sm:$0x1]
      %v470 = vsel %vm456, 0, %v469
      %471 = vst [vmem:[%s403 + $0x38] sm:$0x1] %v470
      %v472 = vld [vmem:[%s403 + $0x44] sm:$0x1]
      %v473 = vsel %vm456, 0, %v472
      %474 = vst [vmem:[%s403 + $0x44] sm:$0x1] %v473
      %v475 = vld [vmem:[%s403 + $0x50] sm:$0x1]
      %v476 = vsel %vm456, 0, %v475
      %477 = vst [vmem:[%s403 + $0x50] sm:$0x1] %v476
      %v478 = vld [vmem:[%s403 + $0x5c] sm:$0x1]
      %v479 = vsel %vm456, 0, %v478
      %480 = vst [vmem:[%s403 + $0x5c] sm:$0x1] %v479
      %v481 = vld [vmem:[%s403 + $0x68] sm:$0x1]
      %v482 = vsel %vm456, 0, %v481
      %483 = vst [vmem:[%s403 + $0x68] sm:$0x1] %v482
      %v484 = vld [vmem:[%s403 + $0x74] sm:$0x1]
      %v485 = vsel %vm456, 0, %v484
      %486 = vst [vmem:[%s403 + $0x74] sm:$0x1] %v485
      %v487 = vld [vmem:[%s403 + $0x80] sm:$0x1]
      %v488 = vsel %vm456, 0, %v487
      %489 = vst [vmem:[%s403 + $0x80] sm:$0x1] %v488
      %v490 = vld [vmem:[%s403 + $0x8c] sm:$0x1]
      %v491 = vsel %vm456, 0, %v490
      %492 = vst [vmem:[%s403 + $0x8c] sm:$0x1] %v491
      %v493 = vld [vmem:[%s403 + $0x98] sm:$0x1]
      %v494 = vsel %vm456, 0, %v493
      %495 = vst [vmem:[%s403 + $0x98] sm:$0x1] %v494
      %v496 = vld [vmem:[%s403 + $0xa4] sm:$0x1]
      %v497 = vsel %vm456, 0, %v496
      %498 = vst [vmem:[%s403 + $0xa4] sm:$0x1] %v497
      %v499 = vld [vmem:[%s403 + $0xb0] sm:$0x1]
      %v500 = vsel %vm456, 0, %v499
      %501 = vst [vmem:[%s403 + $0xb0] sm:$0x1] %v500
      %v502 = vld [vmem:[%s403 + $0xbc] sm:$0x1]
      %v503 = vsel %vm456, 0, %v502
      %504 = vst [vmem:[%s403 + $0xbc] sm:$0x1] %v503
      %v521 = vunpack.c.l.b16 %v380
      %v522 = vunpack.c.h.b16 %v380
      %v523 = vunpack.c.l.b16 %v381
      %v524 = vunpack.c.h.b16 %v381
      %v525 = vunpack.c.l.b16 %v382
      %v526 = vunpack.c.h.b16 %v382
      %v527 = vunpack.c.l.b16 %v383
      %v528 = vunpack.c.h.b16 %v383
      %v529 = vunpack.c.l.b16 %v384
      %v530 = vunpack.c.h.b16 %v384
      %v531 = vunpack.c.l.b16 %v385
      %v532 = vunpack.c.h.b16 %v385
      %v533 = vunpack.c.l.b16 %v386
      %v534 = vunpack.c.h.b16 %v386
      %v535 = vunpack.c.l.b16 %v387
      %v536 = vunpack.c.h.b16 %v387
      %v537 = vunpack.c.l.b16 %v388
      %v538 = vunpack.c.h.b16 %v388
      %v539 = vunpack.c.l.b16 %v389
      %v540 = vunpack.c.h.b16 %v389
      %v541 = vunpack.c.l.b16 %v390
      %v542 = vunpack.c.h.b16 %v390
      %v543 = vunpack.c.l.b16 %v391
      %v544 = vunpack.c.h.b16 %v391
      %v545 = vunpack.c.l.b16 %v392
      %v546 = vunpack.c.h.b16 %v392
      %v547 = vunpack.c.l.b16 %v393
      %v548 = vunpack.c.h.b16 %v393
      %v549 = vunpack.c.l.b16 %v394
      %v550 = vunpack.c.h.b16 %v394
      %v551 = vunpack.c.l.b16 %v395
      %v552 = vunpack.c.h.b16 %v395
      %v553 = vpack.c.b16 %v521, %v521
      %v554 = vpack.c.b16 %v522, %v522
      %v555 = vpack.c.b16 %v523, %v523
      %v556 = vpack.c.b16 %v524, %v524
      %v557 = vpack.c.b16 %v525, %v525
      %v558 = vpack.c.b16 %v526, %v526
      %v559 = vpack.c.b16 %v527, %v527
      %v560 = vpack.c.b16 %v528, %v528
      %v561 = vpack.c.b16 %v529, %v529
      %v562 = vpack.c.b16 %v530, %v530
      %v563 = vpack.c.b16 %v531, %v531
      %v564 = vpack.c.b16 %v532, %v532
      %v565 = vpack.c.b16 %v533, %v533
      %v566 = vpack.c.b16 %v534, %v534
      %v567 = vpack.c.b16 %v535, %v535
      %v568 = vpack.c.b16 %v536, %v536
      %v569 = vpack.c.b16 %v537, %v537
      %v570 = vpack.c.b16 %v538, %v538
      %v571 = vpack.c.b16 %v539, %v539
      %v572 = vpack.c.b16 %v540, %v540
      %v573 = vpack.c.b16 %v541, %v541
      %v574 = vpack.c.b16 %v542, %v542
      %v575 = vpack.c.b16 %v543, %v543
      %v576 = vpack.c.b16 %v544, %v544
      %v577 = vpack.c.b16 %v545, %v545
      %v578 = vpack.c.b16 %v546, %v546
      %v579 = vpack.c.b16 %v547, %v547
      %v580 = vpack.c.b16 %v548, %v548
      %v581 = vpack.c.b16 %v549, %v549
      %v582 = vpack.c.b16 %v550, %v550
      %v583 = vpack.c.b16 %v551, %v551
      %v584 = vpack.c.b16 %v552, %v552
      %vm585 = vsmask.f32 4368
      %vm586 = vmor %vm405, %vm585
      %v588 = vshrl.u32 %v553, 16
      %v590 = vrot.slane %v588, 7
      %v591 = vshll.u32 %v553, 16
      %v593 = vor.u32 %v590, %v591
      %v594 = vrot.slane %v590, 4
      %v596 = vshrl.u32 %v554, 16
      %v598 = vrot.slane %v596, 7
      %v599 = vshll.u32 %v554, 16
      %v601 = vor.u32 %v598, %v599
      %v602 = vsel %vm586, %v594, %v601
      %v603 = vrot.slane %v598, 4
      %v605 = vshrl.u32 %v555, 16
      %v607 = vrot.slane %v605, 7
      %v608 = vshll.u32 %v555, 16
      %v610 = vor.u32 %v607, %v608
      %v611 = vrot.slane %v607, 4
      %v613 = vshrl.u32 %v556, 16
      %v615 = vrot.slane %v613, 7
      %v616 = vshll.u32 %v556, 16
      %v618 = vor.u32 %v615, %v616
      %v619 = vsel %vm586, %v611, %v618
      %v620 = vrot.slane %v615, 4
      %v622 = vshrl.u32 %v557, 16
      %v624 = vrot.slane %v622, 7
      %v625 = vshll.u32 %v557, 16
      %v627 = vor.u32 %v624, %v625
      %v628 = vrot.slane %v624, 4
      %v630 = vshrl.u32 %v558, 16
      %v632 = vrot.slane %v630, 7
      %v633 = vshll.u32 %v558, 16
      %v635 = vor.u32 %v632, %v633
      %v636 = vsel %vm586, %v628, %v635
      %v637 = vrot.slane %v632, 4
      %v639 = vshrl.u32 %v559, 16
      %v641 = vrot.slane %v639, 7
      %v642 = vshll.u32 %v559, 16
      %v644 = vor.u32 %v641, %v642
      %v645 = vrot.slane %v641, 4
      %v647 = vshrl.u32 %v560, 16
      %v649 = vrot.slane %v647, 7
      %v650 = vshll.u32 %v560, 16
      %v652 = vor.u32 %v649, %v650
      %v653 = vsel %vm586, %v645, %v652
      %v654 = vrot.slane %v649, 4
      %v656 = vshrl.u32 %v561, 16
      %v658 = vrot.slane %v656, 7
      %v659 = vshll.u32 %v561, 16
      %v661 = vor.u32 %v658, %v659
      %v662 = vrot.slane %v658, 4
      %v664 = vshrl.u32 %v562, 16
      %v666 = vrot.slane %v664, 7
      %v667 = vshll.u32 %v562, 16
      %v669 = vor.u32 %v666, %v667
      %v670 = vsel %vm586, %v662, %v669
      %v671 = vrot.slane %v666, 4
      %v673 = vshrl.u32 %v563, 16
      %v675 = vrot.slane %v673, 7
      %v676 = vshll.u32 %v563, 16
      %v678 = vor.u32 %v675, %v676
      %v679 = vrot.slane %v675, 4
      %v681 = vshrl.u32 %v564, 16
      %v683 = vrot.slane %v681, 7
      %v684 = vshll.u32 %v564, 16
      %v686 = vor.u32 %v683, %v684
      %v687 = vsel %vm586, %v679, %v686
      %v688 = vrot.slane %v683, 4
      %v690 = vshrl.u32 %v565, 16
      %v692 = vrot.slane %v690, 7
      %v693 = vshll.u32 %v565, 16
      %v695 = vor.u32 %v692, %v693
      %v696 = vrot.slane %v692, 4
      %v698 = vshrl.u32 %v566, 16
      %v700 = vrot.slane %v698, 7
      %v701 = vshll.u32 %v566, 16
      %v703 = vor.u32 %v700, %v701
      %v704 = vsel %vm586, %v696, %v703
      %v705 = vrot.slane %v700, 4
      %v707 = vshrl.u32 %v567, 16
      %v709 = vrot.slane %v707, 7
      %v710 = vshll.u32 %v567, 16
      %v712 = vor.u32 %v709, %v710
      %v713 = vrot.slane %v709, 4
      %v715 = vshrl.u32 %v568, 16
      %v717 = vrot.slane %v715, 7
      %v718 = vshll.u32 %v568, 16
      %v720 = vor.u32 %v717, %v718
      %v721 = vsel %vm586, %v713, %v720
      %v722 = vrot.slane %v717, 4
      %v724 = vshrl.u32 %v569, 16
      %v726 = vrot.slane %v724, 7
      %v727 = vshll.u32 %v569, 16
      %v729 = vor.u32 %v726, %v727
      %v730 = vrot.slane %v726, 4
      %v732 = vshrl.u32 %v570, 16
      %v734 = vrot.slane %v732, 7
      %v735 = vshll.u32 %v570, 16
      %v737 = vor.u32 %v734, %v735
      %v738 = vsel %vm586, %v730, %v737
      %v739 = vrot.slane %v734, 4
      %v741 = vshrl.u32 %v571, 16
      %v743 = vrot.slane %v741, 7
      %v744 = vshll.u32 %v571, 16
      %v746 = vor.u32 %v743, %v744
      %v747 = vrot.slane %v743, 4
      %v749 = vshrl.u32 %v572, 16
      %v751 = vrot.slane %v749, 7
      %v752 = vshll.u32 %v572, 16
      %v754 = vor.u32 %v751, %v752
      %v755 = vsel %vm586, %v747, %v754
      %v756 = vrot.slane %v751, 4
      %v758 = vshrl.u32 %v573, 16
      %v760 = vrot.slane %v758, 7
      %v761 = vshll.u32 %v573, 16
      %v763 = vor.u32 %v760, %v761
      %v764 = vrot.slane %v760, 4
      %v766 = vshrl.u32 %v574, 16
      %v768 = vrot.slane %v766, 7
      %v769 = vshll.u32 %v574, 16
      %v771 = vor.u32 %v768, %v769
      %v772 = vsel %vm586, %v764, %v771
      %v773 = vrot.slane %v768, 4
      %v775 = vshrl.u32 %v575, 16
      %v777 = vrot.slane %v775, 7
      %v778 = vshll.u32 %v575, 16
      %v780 = vor.u32 %v777, %v778
      %v781 = vrot.slane %v777, 4
      %v783 = vshrl.u32 %v576, 16
      %v785 = vrot.slane %v783, 7
      %v786 = vshll.u32 %v576, 16
      %v788 = vor.u32 %v785, %v786
      %v789 = vsel %vm586, %v781, %v788
      %v790 = vrot.slane %v785, 4
      %v792 = vshrl.u32 %v577, 16
      %v794 = vrot.slane %v792, 7
      %v795 = vshll.u32 %v577, 16
      %v797 = vor.u32 %v794, %v795
      %v798 = vrot.slane %v794, 4
      %v800 = vshrl.u32 %v578, 16
      %v802 = vrot.slane %v800, 7
      %v803 = vshll.u32 %v578, 16
      %v805 = vor.u32 %v802, %v803
      %v806 = vsel %vm586, %v798, %v805
      %v807 = vrot.slane %v802, 4
      %v809 = vshrl.u32 %v579, 16
      %v811 = vrot.slane %v809, 7
      %v812 = vshll.u32 %v579, 16
      %v814 = vor.u32 %v811, %v812
      %v815 = vrot.slane %v811, 4
      %v817 = vshrl.u32 %v580, 16
      %v819 = vrot.slane %v817, 7
      %v820 = vshll.u32 %v580, 16
      %v822 = vor.u32 %v819, %v820
      %v823 = vsel %vm586, %v815, %v822
      %v824 = vrot.slane %v819, 4
      %v826 = vshrl.u32 %v581, 16
      %v828 = vrot.slane %v826, 7
      %v829 = vshll.u32 %v581, 16
      %v831 = vor.u32 %v828, %v829
      %v832 = vrot.slane %v828, 4
      %v834 = vshrl.u32 %v582, 16
      %v836 = vrot.slane %v834, 7
      %v837 = vshll.u32 %v582, 16
      %v839 = vor.u32 %v836, %v837
      %v840 = vsel %vm586, %v832, %v839
      %v841 = vrot.slane %v836, 4
      %v843 = vshrl.u32 %v583, 16
      %v845 = vrot.slane %v843, 7
      %v846 = vshll.u32 %v583, 16
      %v848 = vor.u32 %v845, %v846
      %v849 = vrot.slane %v845, 4
      %v851 = vshrl.u32 %v584, 16
      %v853 = vrot.slane %v851, 7
      %v854 = vshll.u32 %v584, 16
      %v856 = vor.u32 %v853, %v854
      %v857 = vsel %vm586, %v849, %v856
      %v858 = vrot.slane %v853, 4
      %vm907 = vcmask 1043456
      %vm908 = vmand %vm907, %vm455
      %v909 = vld [vmem:[%s403] sm:$0xf]
      %v910 = vsel %vm908, %v593, %v909
      %911 = vst [vmem:[%s403] sm:$0xf] %v910
      %912 = vst [vmem:[%s403 + $0x4] sm:$0xf] %v602
      %v913 = vld [vmem:[%s403 + $0x8] sm:$0x1]
      %v914 = vsel %vm406, %v603, %v913
      %915 = vst [vmem:[%s403 + $0x8] sm:$0x1] %v914
      %v916 = vld [vmem:[%s403 + $0xc] sm:$0xf]
      %v917 = vsel %vm908, %v610, %v916
      %918 = vst [vmem:[%s403 + $0xc] sm:$0xf] %v917
      %919 = vst [vmem:[%s403 + $0x10] sm:$0xf] %v619
      %v920 = vld [vmem:[%s403 + $0x14] sm:$0x1]
      %v921 = vsel %vm406, %v620, %v920
      %922 = vst [vmem:[%s403 + $0x14] sm:$0x1] %v921
      %v923 = vld [vmem:[%s403 + $0x18] sm:$0xf]
      %v924 = vsel %vm908, %v627, %v923
      %925 = vst [vmem:[%s403 + $0x18] sm:$0xf] %v924
      %926 = vst [vmem:[%s403 + $0x1c] sm:$0xf] %v636
      %v927 = vld [vmem:[%s403 + $0x20] sm:$0x1]
      %v928 = vsel %vm406, %v637, %v927
      %929 = vst [vmem:[%s403 + $0x20] sm:$0x1] %v928
      %v930 = vld [vmem:[%s403 + $0x24] sm:$0xf]
      %v931 = vsel %vm908, %v644, %v930
      %932 = vst [vmem:[%s403 + $0x24] sm:$0xf] %v931
      %933 = vst [vmem:[%s403 + $0x28] sm:$0xf] %v653
      %v934 = vld [vmem:[%s403 + $0x2c] sm:$0x1]
      %v935 = vsel %vm406, %v654, %v934
      %936 = vst [vmem:[%s403 + $0x2c] sm:$0x1] %v935
      %v937 = vld [vmem:[%s403 + $0x30] sm:$0xf]
      %v938 = vsel %vm908, %v661, %v937
      %939 = vst [vmem:[%s403 + $0x30] sm:$0xf] %v938
      %940 = vst [vmem:[%s403 + $0x34] sm:$0xf] %v670
      %v941 = vld [vmem:[%s403 + $0x38] sm:$0x1]
      %v942 = vsel %vm406, %v671, %v941
      %943 = vst [vmem:[%s403 + $0x38] sm:$0x1] %v942
      %v944 = vld [vmem:[%s403 + $0x3c] sm:$0xf]
      %v945 = vsel %vm908, %v678, %v944
      %946 = vst [vmem:[%s403 + $0x3c] sm:$0xf] %v945
      %947 = vst [vmem:[%s403 + $0x40] sm:$0xf] %v687
      %v948 = vld [vmem:[%s403 + $0x44] sm:$0x1]
      %v949 = vsel %vm406, %v688, %v948
      %950 = vst [vmem:[%s403 + $0x44] sm:$0x1] %v949
      %v951 = vld [vmem:[%s403 + $0x48] sm:$0xf]
      %v952 = vsel %vm908, %v695, %v951
      %953 = vst [vmem:[%s403 + $0x48] sm:$0xf] %v952
      %954 = vst [vmem:[%s403 + $0x4c] sm:$0xf] %v704
      %v955 = vld [vmem:[%s403 + $0x50] sm:$0x1]
      %v956 = vsel %vm406, %v705, %v955
      %957 = vst [vmem:[%s403 + $0x50] sm:$0x1] %v956
      %v958 = vld [vmem:[%s403 + $0x54] sm:$0xf]
      %v959 = vsel %vm908, %v712, %v958
      %960 = vst [vmem:[%s403 + $0x54] sm:$0xf] %v959
      %961 = vst [vmem:[%s403 + $0x58] sm:$0xf] %v721
      %v962 = vld [vmem:[%s403 + $0x5c] sm:$0x1]
      %v963 = vsel %vm406, %v722, %v962
      %964 = vst [vmem:[%s403 + $0x5c] sm:$0x1] %v963
      %v965 = vld [vmem:[%s403 + $0x60] sm:$0xf]
      %v966 = vsel %vm908, %v729, %v965
      %967 = vst [vmem:[%s403 + $0x60] sm:$0xf] %v966
      %968 = vst [vmem:[%s403 + $0x64] sm:$0xf] %v738
      %v969 = vld [vmem:[%s403 + $0x68] sm:$0x1]
      %v970 = vsel %vm406, %v739, %v969
      %971 = vst [vmem:[%s403 + $0x68] sm:$0x1] %v970
      %v972 = vld [vmem:[%s403 + $0x6c] sm:$0xf]
      %v973 = vsel %vm908, %v746, %v972
      %974 = vst [vmem:[%s403 + $0x6c] sm:$0xf] %v973
      %975 = vst [vmem:[%s403 + $0x70] sm:$0xf] %v755
      %v976 = vld [vmem:[%s403 + $0x74] sm:$0x1]
      %v977 = vsel %vm406, %v756, %v976
      %978 = vst [vmem:[%s403 + $0x74] sm:$0x1] %v977
      %v979 = vld [vmem:[%s403 + $0x78] sm:$0xf]
      %v980 = vsel %vm908, %v763, %v979
      %981 = vst [vmem:[%s403 + $0x78] sm:$0xf] %v980
      %982 = vst [vmem:[%s403 + $0x7c] sm:$0xf] %v772
      %v983 = vld [vmem:[%s403 + $0x80] sm:$0x1]
      %v984 = vsel %vm406, %v773, %v983
      %985 = vst [vmem:[%s403 + $0x80] sm:$0x1] %v984
      %v986 = vld [vmem:[%s403 + $0x84] sm:$0xf]
      %v987 = vsel %vm908, %v780, %v986
      %988 = vst [vmem:[%s403 + $0x84] sm:$0xf] %v987
      %989 = vst [vmem:[%s403 + $0x88] sm:$0xf] %v789
      %v990 = vld [vmem:[%s403 + $0x8c] sm:$0x1]
      %v991 = vsel %vm406, %v790, %v990
      %992 = vst [vmem:[%s403 + $0x8c] sm:$0x1] %v991
      %v993 = vld [vmem:[%s403 + $0x90] sm:$0xf]
      %v994 = vsel %vm908, %v797, %v993
      %995 = vst [vmem:[%s403 + $0x90] sm:$0xf] %v994
      %996 = vst [vmem:[%s403 + $0x94] sm:$0xf] %v806
      %v997 = vld [vmem:[%s403 + $0x98] sm:$0x1]
      %v998 = vsel %vm406, %v807, %v997
      %999 = vst [vmem:[%s403 + $0x98] sm:$0x1] %v998
      %v1000 = vld [vmem:[%s403 + $0x9c] sm:$0xf]
      %v1001 = vsel %vm908, %v814, %v1000
      %1002 = vst [vmem:[%s403 + $0x9c] sm:$0xf] %v1001
      %1003 = vst [vmem:[%s403 + $0xa0] sm:$0xf] %v823
      %v1004 = vld [vmem:[%s403 + $0xa4] sm:$0x1]
      %v1005 = vsel %vm406, %v824, %v1004
      %1006 = vst [vmem:[%s403 + $0xa4] sm:$0x1] %v1005
      %v1007 = vld [vmem:[%s403 + $0xa8] sm:$0xf]
      %v1008 = vsel %vm908, %v831, %v1007
      %1009 = vst [vmem:[%s403 + $0xa8] sm:$0xf] %v1008
      %1010 = vst [vmem:[%s403 + $0xac] sm:$0xf] %v840
      %v1011 = vld [vmem:[%s403 + $0xb0] sm:$0x1]
      %v1012 = vsel %vm406, %v841, %v1011
      %1013 = vst [vmem:[%s403 + $0xb0] sm:$0x1] %v1012
      %v1014 = vld [vmem:[%s403 + $0xb4] sm:$0xf]
      %v1015 = vsel %vm908, %v848, %v1014
      %1016 = vst [vmem:[%s403 + $0xb4] sm:$0xf] %v1015
      %1017 = vst [vmem:[%s403 + $0xb8] sm:$0xf] %v857
      %v1018 = vld [vmem:[%s403 + $0xbc] sm:$0x1]
      %v1019 = vsel %vm406, %v858, %v1018
      %1020 = vst [vmem:[%s403 + $0xbc] sm:$0x1] %v1019
      %v1021 = vld [vmem:[#allocation2] sm:$0xf]
      %v1022 = vld [vmem:[#allocation2 + $0x4] sm:$0xf]
      %v1023 = vld [vmem:[#allocation2 + $0xc] sm:$0xf]
      %v1024 = vld [vmem:[#allocation2 + $0x10] sm:$0xf]
      %v1025 = vld [vmem:[#allocation2 + $0x18] sm:$0xf]
      %v1026 = vld [vmem:[#allocation2 + $0x1c] sm:$0xf]
      %v1027 = vld [vmem:[#allocation2 + $0x24] sm:$0xf]
      %v1028 = vld [vmem:[#allocation2 + $0x28] sm:$0xf]
      %v1029 = vld [vmem:[#allocation2 + $0x30] sm:$0xf]
      %v1030 = vld [vmem:[#allocation2 + $0x34] sm:$0xf]
      %v1031 = vld [vmem:[#allocation2 + $0x3c] sm:$0xf]
      %v1032 = vld [vmem:[#allocation2 + $0x40] sm:$0xf]
      %v1033 = vld [vmem:[#allocation2 + $0x48] sm:$0xf]
      %v1034 = vld [vmem:[#allocation2 + $0x4c] sm:$0xf]
      %v1035 = vld [vmem:[#allocation2 + $0x54] sm:$0xf]
      %v1036 = vld [vmem:[#allocation2 + $0x58] sm:$0xf]
      %v1037 = vld [vmem:[#allocation2 + $0x60] sm:$0xf]
      %v1038 = vld [vmem:[#allocation2 + $0x64] sm:$0xf]
      %v1039 = vld [vmem:[#allocation2 + $0x6c] sm:$0xf]
      %v1040 = vld [vmem:[#allocation2 + $0x70] sm:$0xf]
      %v1041 = vld [vmem:[#allocation2 + $0x78] sm:$0xf]
      %v1042 = vld [vmem:[#allocation2 + $0x7c] sm:$0xf]
      %v1043 = vld [vmem:[#allocation2 + $0x84] sm:$0xf]
      %v1044 = vld [vmem:[#allocation2 + $0x88] sm:$0xf]
      %v1045 = vld [vmem:[#allocation2 + $0x90] sm:$0xf]
      %v1046 = vld [vmem:[#allocation2 + $0x94] sm:$0xf]
      %v1047 = vld [vmem:[#allocation2 + $0x9c] sm:$0xf]
      %v1048 = vld [vmem:[#allocation2 + $0xa0] sm:$0xf]
      %v1049 = vld [vmem:[#allocation2 + $0xa8] sm:$0xf]
      %v1050 = vld [vmem:[#allocation2 + $0xac] sm:$0xf]
      %v1051 = vld [vmem:[#allocation2 + $0xb4] sm:$0xf]
      %v1052 = vld [vmem:[#allocation2 + $0xb8] sm:$0xf]
      %v1053 = vld [vmem:[%s2] sm:$0xf]
      %v1054 = vld [vmem:[%s2 + $0x4] sm:$0xf]
      %v1055 = vld [vmem:[%s2 + $0x8] sm:$0xf]
      %v1056 = vld [vmem:[%s2 + $0xc] sm:$0xf]
      %v1057 = vld [vmem:[%s2 + $0x10] sm:$0xf]
      %v1058 = vld [vmem:[%s2 + $0x14] sm:$0xf]
      %v1059 = vld [vmem:[%s2 + $0x18] sm:$0xf]
      %v1060 = vld [vmem:[%s2 + $0x1c] sm:$0xf]
      %v1061 = vld [vmem:[%s2 + $0x20] sm:$0xf]
      %v1062 = vld [vmem:[%s2 + $0x24] sm:$0xf]
      %v1063 = vld [vmem:[%s2 + $0x28] sm:$0xf]
      %v1064 = vld [vmem:[%s2 + $0x2c] sm:$0xf]
      %v1065 = vld [vmem:[%s2 + $0x30] sm:$0xf]
      %v1066 = vld [vmem:[%s2 + $0x34] sm:$0xf]
      %v1067 = vld [vmem:[%s2 + $0x38] sm:$0xf]
      %v1068 = vld [vmem:[%s2 + $0x3c] sm:$0xf]
      %v1069 = vld [vmem:[#allocation2 + $0x8] sm:$0x1]
      %v1070 = vld [vmem:[#allocation2 + $0x14] sm:$0x1]
      %v1071 = vld [vmem:[#allocation2 + $0x20] sm:$0x1]
      %v1072 = vld [vmem:[#allocation2 + $0x2c] sm:$0x1]
      %v1073 = vld [vmem:[#allocation2 + $0x38] sm:$0x1]
      %v1074 = vld [vmem:[#allocation2 + $0x44] sm:$0x1]
      %v1075 = vld [vmem:[#allocation2 + $0x50] sm:$0x1]
      %v1076 = vld [vmem:[#allocation2 + $0x5c] sm:$0x1]
      %v1077 = vld [vmem:[#allocation2 + $0x68] sm:$0x1]
      %v1078 = vld [vmem:[#allocation2 + $0x74] sm:$0x1]
      %v1079 = vld [vmem:[#allocation2 + $0x80] sm:$0x1]
      %v1080 = vld [vmem:[#allocation2 + $0x8c] sm:$0x1]
      %v1081 = vld [vmem:[#allocation2 + $0x98] sm:$0x1]
      %v1082 = vld [vmem:[#allocation2 + $0xa4] sm:$0x1]
      %v1083 = vld [vmem:[#allocation2 + $0xb0] sm:$0x1]
      %v1084 = vld [vmem:[#allocation2 + $0xbc] sm:$0x1]
      %vm1085 = vsmask.f32 3328
      %vm1086 = vsmask.f32 7440
      %vm1087 = vmor %vm1085, %vm1086
      %v1089 = vshrl.u32 %v1021, 16
      %v1091 = vrot.slane %v1089, 4
      %v1092 = vshll.u32 %v1021, 16
      %v1094 = vrot.slane %v1092, 5
      %v1095 = vor.u32 %v1091, %v1094
      %v1096 = vrot.slane %v1095, 4
      %v1098 = vshll.u32 %v1022, 16
      %v1100 = vrot.slane %v1098, 5
      %v1101 = vsel %vm1087, %v1096, %v1100
      %v1102 = vshrl.u32 %v1022, 16
      %v1104 = vrot.slane %v1102, 4
      %v1105 = vor.u32 %v1104, %v1100
      %v1106 = vrot.slane %v1105, 4
      %v1108 = vshll.u32 %v1069, 16
      %v1110 = vrot.slane %v1108, 5
      %v1111 = vsel %vm1087, %v1106, %v1110
      %v1113 = vshrl.u32 %v1023, 16
      %v1115 = vrot.slane %v1113, 4
      %v1116 = vshll.u32 %v1023, 16
      %v1118 = vrot.slane %v1116, 5
      %v1119 = vor.u32 %v1115, %v1118
      %v1120 = vrot.slane %v1119, 4
      %v1122 = vshll.u32 %v1024, 16
      %v1124 = vrot.slane %v1122, 5
      %v1125 = vsel %vm1087, %v1120, %v1124
      %v1126 = vshrl.u32 %v1024, 16
      %v1128 = vrot.slane %v1126, 4
      %v1129 = vor.u32 %v1128, %v1124
      %v1130 = vrot.slane %v1129, 4
      %v1132 = vshll.u32 %v1070, 16
      %v1134 = vrot.slane %v1132, 5
      %v1135 = vsel %vm1087, %v1130, %v1134
      %v1137 = vshrl.u32 %v1025, 16
      %v1139 = vrot.slane %v1137, 4
      %v1140 = vshll.u32 %v1025, 16
      %v1142 = vrot.slane %v1140, 5
      %v1143 = vor.u32 %v1139, %v1142
      %v1144 = vrot.slane %v1143, 4
      %v1146 = vshll.u32 %v1026, 16
      %v1148 = vrot.slane %v1146, 5
      %v1149 = vsel %vm1087, %v1144, %v1148
      %v1150 = vshrl.u32 %v1026, 16
      %v1152 = vrot.slane %v1150, 4
      %v1153 = vor.u32 %v1152, %v1148
      %v1154 = vrot.slane %v1153, 4
      %v1156 = vshll.u32 %v1071, 16
      %v1158 = vrot.slane %v1156, 5
      %v1159 = vsel %vm1087, %v1154, %v1158
      %v1161 = vshrl.u32 %v1027, 16
      %v1163 = vrot.slane %v1161, 4
      %v1164 = vshll.u32 %v1027, 16
      %v1166 = vrot.slane %v1164, 5
      %v1167 = vor.u32 %v1163, %v1166
      %v1168 = vrot.slane %v1167, 4
      %v1170 = vshll.u32 %v1028, 16
      %v1172 = vrot.slane %v1170, 5
      %v1173 = vsel %vm1087, %v1168, %v1172
      %v1174 = vshrl.u32 %v1028, 16
      %v1176 = vrot.slane %v1174, 4
      %v1177 = vor.u32 %v1176, %v1172
      %v1178 = vrot.slane %v1177, 4
      %v1180 = vshll.u32 %v1072, 16
      %v1182 = vrot.slane %v1180, 5
      %v1183 = vsel %vm1087, %v1178, %v1182
      %v1185 = vshrl.u32 %v1029, 16
      %v1187 = vrot.slane %v1185, 4
      %v1188 = vshll.u32 %v1029, 16
      %v1190 = vrot.slane %v1188, 5
      %v1191 = vor.u32 %v1187, %v1190
      %v1192 = vrot.slane %v1191, 4
      %v1194 = vshll.u32 %v1030, 16
      %v1196 = vrot.slane %v1194, 5
      %v1197 = vsel %vm1087, %v1192, %v1196
      %v1198 = vshrl.u32 %v1030, 16
      %v1200 = vrot.slane %v1198, 4
      %v1201 = vor.u32 %v1200, %v1196
      %v1202 = vrot.slane %v1201, 4
      %v1204 = vshll.u32 %v1073, 16
      %v1206 = vrot.slane %v1204, 5
      %v1207 = vsel %vm1087, %v1202, %v1206
      %v1209 = vshrl.u32 %v1031, 16
      %v1211 = vrot.slane %v1209, 4
      %v1212 = vshll.u32 %v1031, 16
      %v1214 = vrot.slane %v1212, 5
      %v1215 = vor.u32 %v1211, %v1214
      %v1216 = vrot.slane %v1215, 4
      %v1218 = vshll.u32 %v1032, 16
      %v1220 = vrot.slane %v1218, 5
      %v1221 = vsel %vm1087, %v1216, %v1220
      %v1222 = vshrl.u32 %v1032, 16
      %v1224 = vrot.slane %v1222, 4
      %v1225 = vor.u32 %v1224, %v1220
      %v1226 = vrot.slane %v1225, 4
      %v1228 = vshll.u32 %v1074, 16
      %v1230 = vrot.slane %v1228, 5
      %v1231 = vsel %vm1087, %v1226, %v1230
      %v1233 = vshrl.u32 %v1033, 16
      %v1235 = vrot.slane %v1233, 4
      %v1236 = vshll.u32 %v1033, 16
      %v1238 = vrot.slane %v1236, 5
      %v1239 = vor.u32 %v1235, %v1238
      %v1240 = vrot.slane %v1239, 4
      %v1242 = vshll.u32 %v1034, 16
      %v1244 = vrot.slane %v1242, 5
      %v1245 = vsel %vm1087, %v1240, %v1244
      %v1246 = vshrl.u32 %v1034, 16
      %v1248 = vrot.slane %v1246, 4
      %v1249 = vor.u32 %v1248, %v1244
      %v1250 = vrot.slane %v1249, 4
      %v1252 = vshll.u32 %v1075, 16
      %v1254 = vrot.slane %v1252, 5
      %v1255 = vsel %vm1087, %v1250, %v1254
      %v1257 = vshrl.u32 %v1035, 16
      %v1259 = vrot.slane %v1257, 4
      %v1260 = vshll.u32 %v1035, 16
      %v1262 = vrot.slane %v1260, 5
      %v1263 = vor.u32 %v1259, %v1262
      %v1264 = vrot.slane %v1263, 4
      %v1266 = vshll.u32 %v1036, 16
      %v1268 = vrot.slane %v1266, 5
      %v1269 = vsel %vm1087, %v1264, %v1268
      %v1270 = vshrl.u32 %v1036, 16
      %v1272 = vrot.slane %v1270, 4
      %v1273 = vor.u32 %v1272, %v1268
      %v1274 = vrot.slane %v1273, 4
      %v1276 = vshll.u32 %v1076, 16
      %v1278 = vrot.slane %v1276, 5
      %v1279 = vsel %vm1087, %v1274, %v1278
      %v1281 = vshrl.u32 %v1037, 16
      %v1283 = vrot.slane %v1281, 4
      %v1284 = vshll.u32 %v1037, 16
      %v1286 = vrot.slane %v1284, 5
      %v1287 = vor.u32 %v1283, %v1286
      %v1288 = vrot.slane %v1287, 4
      %v1290 = vshll.u32 %v1038, 16
      %v1292 = vrot.slane %v1290, 5
      %v1293 = vsel %vm1087, %v1288, %v1292
      %v1294 = vshrl.u32 %v1038, 16
      %v1296 = vrot.slane %v1294, 4
      %v1297 = vor.u32 %v1296, %v1292
      %v1298 = vrot.slane %v1297, 4
      %v1300 = vshll.u32 %v1077, 16
      %v1302 = vrot.slane %v1300, 5
      %v1303 = vsel %vm1087, %v1298, %v1302
      %v1305 = vshrl.u32 %v1039, 16
      %v1307 = vrot.slane %v1305, 4
      %v1308 = vshll.u32 %v1039, 16
      %v1310 = vrot.slane %v1308, 5
      %v1311 = vor.u32 %v1307, %v1310
      %v1312 = vrot.slane %v1311, 4
      %v1314 = vshll.u32 %v1040, 16
      %v1316 = vrot.slane %v1314, 5
      %v1317 = vsel %vm1087, %v1312, %v1316
      %v1318 = vshrl.u32 %v1040, 16
      %v1320 = vrot.slane %v1318, 4
      %v1321 = vor.u32 %v1320, %v1316
      %v1322 = vrot.slane %v1321, 4
      %v1324 = vshll.u32 %v1078, 16
      %v1326 = vrot.slane %v1324, 5
      %v1327 = vsel %vm1087, %v1322, %v1326
      %v1329 = vshrl.u32 %v1041, 16
      %v1331 = vrot.slane %v1329, 4
      %v1332 = vshll.u32 %v1041, 16
      %v1334 = vrot.slane %v1332, 5
      %v1335 = vor.u32 %v1331, %v1334
      %v1336 = vrot.slane %v1335, 4
      %v1338 = vshll.u32 %v1042, 16
      %v1340 = vrot.slane %v1338, 5
      %v1341 = vsel %vm1087, %v1336, %v1340
      %v1342 = vshrl.u32 %v1042, 16
      %v1344 = vrot.slane %v1342, 4
      %v1345 = vor.u32 %v1344, %v1340
      %v1346 = vrot.slane %v1345, 4
      %v1348 = vshll.u32 %v1079, 16
      %v1350 = vrot.slane %v1348, 5
      %v1351 = vsel %vm1087, %v1346, %v1350
      %v1353 = vshrl.u32 %v1043, 16
      %v1355 = vrot.slane %v1353, 4
      %v1356 = vshll.u32 %v1043, 16
      %v1358 = vrot.slane %v1356, 5
      %v1359 = vor.u32 %v1355, %v1358
      %v1360 = vrot.slane %v1359, 4
      %v1362 = vshll.u32 %v1044, 16
      %v1364 = vrot.slane %v1362, 5
      %v1365 = vsel %vm1087, %v1360, %v1364
      %v1366 = vshrl.u32 %v1044, 16
      %v1368 = vrot.slane %v1366, 4
      %v1369 = vor.u32 %v1368, %v1364
      %v1370 = vrot.slane %v1369, 4
      %v1372 = vshll.u32 %v1080, 16
      %v1374 = vrot.slane %v1372, 5
      %v1375 = vsel %vm1087, %v1370, %v1374
      %v1377 = vshrl.u32 %v1045, 16
      %v1379 = vrot.slane %v1377, 4
      %v1380 = vshll.u32 %v1045, 16
      %v1382 = vrot.slane %v1380, 5
      %v1383 = vor.u32 %v1379, %v1382
      %v1384 = vrot.slane %v1383, 4
      %v1386 = vshll.u32 %v1046, 16
      %v1388 = vrot.slane %v1386, 5
      %v1389 = vsel %vm1087, %v1384, %v1388
      %v1390 = vshrl.u32 %v1046, 16
      %v1392 = vrot.slane %v1390, 4
      %v1393 = vor.u32 %v1392, %v1388
      %v1394 = vrot.slane %v1393, 4
      %v1396 = vshll.u32 %v1081, 16
      %v1398 = vrot.slane %v1396, 5
      %v1399 = vsel %vm1087, %v1394, %v1398
      %v1401 = vshrl.u32 %v1047, 16
      %v1403 = vrot.slane %v1401, 4
      %v1404 = vshll.u32 %v1047, 16
      %v1406 = vrot.slane %v1404, 5
      %v1407 = vor.u32 %v1403, %v1406
      %v1408 = vrot.slane %v1407, 4
      %v1410 = vshll.u32 %v1048, 16
      %v1412 = vrot.slane %v1410, 5
      %v1413 = vsel %vm1087, %v1408, %v1412
      %v1414 = vshrl.u32 %v1048, 16
      %v1416 = vrot.slane %v1414, 4
      %v1417 = vor.u32 %v1416, %v1412
      %v1418 = vrot.slane %v1417, 4
      %v1420 = vshll.u32 %v1082, 16
      %v1422 = vrot.slane %v1420, 5
      %v1423 = vsel %vm1087, %v1418, %v1422
      %v1425 = vshrl.u32 %v1049, 16
      %v1427 = vrot.slane %v1425, 4
      %v1428 = vshll.u32 %v1049, 16
      %v1430 = vrot.slane %v1428, 5
      %v1431 = vor.u32 %v1427, %v1430
      %v1432 = vrot.slane %v1431, 4
      %v1434 = vshll.u32 %v1050, 16
      %v1436 = vrot.slane %v1434, 5
      %v1437 = vsel %vm1087, %v1432, %v1436
      %v1438 = vshrl.u32 %v1050, 16
      %v1440 = vrot.slane %v1438, 4
      %v1441 = vor.u32 %v1440, %v1436
      %v1442 = vrot.slane %v1441, 4
      %v1444 = vshll.u32 %v1083, 16
      %v1446 = vrot.slane %v1444, 5
      %v1447 = vsel %vm1087, %v1442, %v1446
      %v1449 = vshrl.u32 %v1051, 16
      %v1451 = vrot.slane %v1449, 4
      %v1452 = vshll.u32 %v1051, 16
      %v1454 = vrot.slane %v1452, 5
      %v1455 = vor.u32 %v1451, %v1454
      %v1456 = vrot.slane %v1455, 4
      %v1458 = vshll.u32 %v1052, 16
      %v1460 = vrot.slane %v1458, 5
      %v1461 = vsel %vm1087, %v1456, %v1460
      %v1462 = vshrl.u32 %v1052, 16
      %v1464 = vrot.slane %v1462, 4
      %v1465 = vor.u32 %v1464, %v1460
      %v1466 = vrot.slane %v1465, 4
      %v1468 = vshll.u32 %v1084, 16
      %v1470 = vrot.slane %v1468, 5
      %v1471 = vsel %vm1087, %v1466, %v1470
      %v1472 = vld [vmem:[%s2 + $0x40] sm:$0xf]
      %v1473 = vld [vmem:[%s2 + $0x44] sm:$0xf]
      %v1474 = vld [vmem:[%s2 + $0x48] sm:$0xf]
      %v1475 = vld [vmem:[%s2 + $0x4c] sm:$0xf]
      %v1476 = vld [vmem:[%s2 + $0x50] sm:$0xf]
      %v1477 = vld [vmem:[%s2 + $0x54] sm:$0xf]
      %v1478 = vld [vmem:[%s2 + $0x58] sm:$0xf]
      %v1479 = vld [vmem:[%s2 + $0x5c] sm:$0xf]
      %v1480 = vld [vmem:[%s2 + $0x60] sm:$0xf]
      %v1481 = vld [vmem:[%s2 + $0x64] sm:$0xf]
      %v1482 = vld [vmem:[%s2 + $0x68] sm:$0xf]
      %v1483 = vld [vmem:[%s2 + $0x6c] sm:$0xf]
      %v1484 = vld [vmem:[%s2 + $0x70] sm:$0xf]
      %v1485 = vld [vmem:[%s2 + $0x74] sm:$0xf]
      %v1486 = vld [vmem:[%s2 + $0x78] sm:$0xf]
      %v1487 = vld [vmem:[%s2 + $0x7c] sm:$0xf]
      %v1488 = vunpack.c.l.b16 %v1101
      %v1489 = vunpack.c.l.b16 %v1111
      %v1490 = vunpack.c.l.b16 %v1125
      %v1491 = vunpack.c.l.b16 %v1135
      %v1492 = vunpack.c.l.b16 %v1149
      %v1493 = vunpack.c.l.b16 %v1159
      %v1494 = vunpack.c.l.b16 %v1173
      %v1495 = vunpack.c.l.b16 %v1183
      %v1496 = vunpack.c.l.b16 %v1197
      %v1497 = vunpack.c.l.b16 %v1207
      %v1498 = vunpack.c.l.b16 %v1221
      %v1499 = vunpack.c.l.b16 %v1231
      %v1500 = vunpack.c.l.b16 %v1245
      %v1501 = vunpack.c.l.b16 %v1255
      %v1502 = vunpack.c.l.b16 %v1269
      %v1503 = vunpack.c.l.b16 %v1279
      %v1504 = vunpack.c.l.b16 %v1293
      %v1505 = vunpack.c.l.b16 %v1303
      %v1506 = vunpack.c.l.b16 %v1317
      %v1507 = vunpack.c.l.b16 %v1327
      %v1508 = vunpack.c.l.b16 %v1341
      %v1509 = vunpack.c.l.b16 %v1351
      %v1510 = vunpack.c.l.b16 %v1365
      %v1511 = vunpack.c.l.b16 %v1375
      %v1512 = vunpack.c.l.b16 %v1389
      %v1513 = vunpack.c.l.b16 %v1399
      %v1514 = vunpack.c.l.b16 %v1413
      %v1515 = vunpack.c.l.b16 %v1423
      %v1516 = vunpack.c.l.b16 %v1437
      %v1517 = vunpack.c.l.b16 %v1447
      %v1518 = vunpack.c.l.b16 %v1461
      %v1519 = vunpack.c.l.b16 %v1471
      %v1520 = vpack.c.b16 %v1489, %v1488
      %v1521 = vpack.c.b16 %v1491, %v1490
      %v1522 = vpack.c.b16 %v1493, %v1492
      %v1523 = vpack.c.b16 %v1495, %v1494
      %v1524 = vpack.c.b16 %v1497, %v1496
      %v1525 = vpack.c.b16 %v1499, %v1498
      %v1526 = vpack.c.b16 %v1501, %v1500
      %v1527 = vpack.c.b16 %v1503, %v1502
      %v1528 = vpack.c.b16 %v1505, %v1504
      %v1529 = vpack.c.b16 %v1507, %v1506
      %v1530 = vpack.c.b16 %v1509, %v1508
      %v1531 = vpack.c.b16 %v1511, %v1510
      %v1532 = vpack.c.b16 %v1513, %v1512
      %v1533 = vpack.c.b16 %v1515, %v1514
      %v1534 = vpack.c.b16 %v1517, %v1516
      %v1535 = vpack.c.b16 %v1519, %v1518
      %v1568 = vunpack.c.l.b16 %v1472
      %v1569 = vunpack.c.l.b16 %v1473
      %v1570 = vunpack.c.l.b16 %v1474
      %v1571 = vunpack.c.l.b16 %v1475
      %v1572 = vunpack.c.l.b16 %v1476
      %v1573 = vunpack.c.l.b16 %v1477
      %v1574 = vunpack.c.l.b16 %v1478
      %v1575 = vunpack.c.l.b16 %v1479
      %v1576 = vunpack.c.l.b16 %v1480
      %v1577 = vunpack.c.l.b16 %v1481
      %v1578 = vunpack.c.l.b16 %v1482
      %v1579 = vunpack.c.l.b16 %v1483
      %v1580 = vunpack.c.l.b16 %v1484
      %v1581 = vunpack.c.l.b16 %v1485
      %v1582 = vunpack.c.l.b16 %v1486
      %v1583 = vunpack.c.l.b16 %v1487
      %v1584 = vpack.c.b16 %v1569, %v1568
      %v1585 = vpack.c.b16 %v1571, %v1570
      %v1586 = vpack.c.b16 %v1573, %v1572
      %v1587 = vpack.c.b16 %v1575, %v1574
      %v1588 = vpack.c.b16 %v1577, %v1576
      %v1589 = vpack.c.b16 %v1579, %v1578
      %v1590 = vpack.c.b16 %v1581, %v1580
      %v1591 = vpack.c.b16 %v1583, %v1582
      %1600 = vmatprep.subr.bf16.mxu0 0
      %1601 = vmatpush1.bf16.msra.mxu0 %v1591
      %1602 = vmatprep.subr.bf16.mxu0 0
      %1603 = vmatpush1.bf16.msra.mxu0 %v1590
      %1604 = vmatprep.subr.bf16.mxu0 0
      %1605 = vmatpush1.bf16.msra.mxu0 %v1589
      %1606 = vmatprep.subr.bf16.mxu0 0
      %1607 = vmatpush1.bf16.msra.mxu0 %v1588
      %1608 = vmatprep.subr.bf16.mxu0 0
      %1609 = vmatpush1.bf16.msra.mxu0 %v1587
      %1610 = vmatprep.subr.bf16.mxu0 0
      %1611 = vmatpush1.bf16.msra.mxu0 %v1586
      %1612 = vmatprep.subr.bf16.mxu0 0
      %1613 = vmatpush1.bf16.msra.mxu0 %v1585
      %1614 = vmatprep.subr.bf16.mxu0 0
      %1615 = vmatpush1.bf16.msra.mxu0 %v1584
      %1616 = vmatprep.subr.bf16.mxu0 0
      %1617 = vmatpush2.bf16.msra.mxu0 0
      %1618 = vmatprep.subr.bf16.mxu0 0
      %1619 = vmatpush2.bf16.msra.mxu0 0
      %1620 = vmatprep.subr.bf16.mxu0 0
      %1621 = vmatpush2.bf16.msra.mxu0 0
      %1622 = vmatprep.subr.bf16.mxu0 0
      %1623 = vmatpush2.bf16.msra.mxu0 0
      %1624 = vmatprep.subr.bf16.mxu0 0
      %1625 = vmatpush2.bf16.msra.mxu0 0
      %1626 = vmatprep.subr.bf16.mxu0 0
      %1627 = vmatpush2.bf16.msra.mxu0 0
      %1628 = vmatprep.subr.bf16.mxu0 0
      %1629 = vmatpush2.bf16.msra.mxu0 0
      %1630 = vmatprep.subr.bf16.mxu0 0
      %1631 = vmatpush2.bf16.msra.mxu0 0
      %1632 = vmatprep.mubr.bf16.mxu0 0
      %1633 = vmatmul.mubr.bf16.gmra.mxu0 %v1520
      %v1634 = vpop.f32.mrf.mxu0
      %v1635 = vadd.f32 0.0, %v1634
      %v1636 = vpop.f32.mrf.mxu0
      %v1637 = vpop.f32.mrf.mxu0
      %v1638 = vadd.f32 0.0, %v1637
      %v1639 = vpop.f32.mrf.mxu0
      %1640 = vmatprep.mubr.bf16.mxu0 0
      %1641 = vmatmul.mubr.bf16.gmra.mxu0 %v1521
      %v1642 = vpop.f32.mrf.mxu0
      %v1643 = vadd.f32 0.0, %v1642
      %v1644 = vpop.f32.mrf.mxu0
      %v1645 = vpop.f32.mrf.mxu0
      %v1646 = vadd.f32 0.0, %v1645
      %v1647 = vpop.f32.mrf.mxu0
      %1648 = vmatprep.mubr.bf16.mxu0 0
      %1649 = vmatmul.mubr.bf16.gmra.mxu0 %v1522
      %v1650 = vpop.f32.mrf.mxu0
      %v1651 = vadd.f32 0.0, %v1650
      %v1652 = vpop.f32.mrf.mxu0
      %v1653 = vpop.f32.mrf.mxu0
      %v1654 = vadd.f32 0.0, %v1653
      %v1655 = vpop.f32.mrf.mxu0
      %1656 = vmatprep.mubr.bf16.mxu0 0
      %1657 = vmatmul.mubr.bf16.gmra.mxu0 %v1523
      %v1658 = vpop.f32.mrf.mxu0
      %v1659 = vadd.f32 0.0, %v1658
      %v1660 = vpop.f32.mrf.mxu0
      %v1661 = vpop.f32.mrf.mxu0
      %v1662 = vadd.f32 0.0, %v1661
      %v1663 = vpop.f32.mrf.mxu0
      %1664 = vmatprep.mubr.bf16.mxu0 0
      %1665 = vmatmul.mubr.bf16.gmra.mxu0 %v1524
      %v1666 = vpop.f32.mrf.mxu0
      %v1667 = vadd.f32 0.0, %v1666
      %v1668 = vpop.f32.mrf.mxu0
      %v1669 = vpop.f32.mrf.mxu0
      %v1670 = vadd.f32 0.0, %v1669
      %v1671 = vpop.f32.mrf.mxu0
      %1672 = vmatprep.mubr.bf16.mxu0 0
      %1673 = vmatmul.mubr.bf16.gmra.mxu0 %v1525
      %v1674 = vpop.f32.mrf.mxu0
      %v1675 = vadd.f32 0.0, %v1674
      %v1676 = vpop.f32.mrf.mxu0
      %v1677 = vpop.f32.mrf.mxu0
      %v1678 = vadd.f32 0.0, %v1677
      %v1679 = vpop.f32.mrf.mxu0
      %1680 = vmatprep.mubr.bf16.mxu0 0
      %1681 = vmatmul.mubr.bf16.gmra.mxu0 %v1526
      %v1682 = vpop.f32.mrf.mxu0
      %v1683 = vadd.f32 0.0, %v1682
      %v1684 = vpop.f32.mrf.mxu0
      %v1685 = vpop.f32.mrf.mxu0
      %v1686 = vadd.f32 0.0, %v1685
      %v1687 = vpop.f32.mrf.mxu0
      %1688 = vmatprep.mubr.bf16.mxu0 0
      %1689 = vmatmul.mubr.bf16.gmra.mxu0 %v1527
      %v1690 = vpop.f32.mrf.mxu0
      %v1691 = vadd.f32 0.0, %v1690
      %v1692 = vpop.f32.mrf.mxu0
      %v1693 = vpop.f32.mrf.mxu0
      %v1694 = vadd.f32 0.0, %v1693
      %v1695 = vpop.f32.mrf.mxu0
      %1696 = vmatprep.mubr.bf16.mxu0 0
      %1697 = vmatmul.mubr.bf16.gmra.mxu0 %v1528
      %v1698 = vpop.f32.mrf.mxu0
      %v1699 = vadd.f32 0.0, %v1698
      %v1700 = vpop.f32.mrf.mxu0
      %v1701 = vpop.f32.mrf.mxu0
      %v1702 = vadd.f32 0.0, %v1701
      %v1703 = vpop.f32.mrf.mxu0
      %1704 = vmatprep.mubr.bf16.mxu0 0
      %1705 = vmatmul.mubr.bf16.gmra.mxu0 %v1529
      %v1706 = vpop.f32.mrf.mxu0
      %v1707 = vadd.f32 0.0, %v1706
      %v1708 = vpop.f32.mrf.mxu0
      %v1709 = vpop.f32.mrf.mxu0
      %v1710 = vadd.f32 0.0, %v1709
      %v1711 = vpop.f32.mrf.mxu0
      %1712 = vmatprep.mubr.bf16.mxu0 0
      %1713 = vmatmul.mubr.bf16.gmra.mxu0 %v1530
      %v1714 = vpop.f32.mrf.mxu0
      %v1715 = vadd.f32 0.0, %v1714
      %v1716 = vpop.f32.mrf.mxu0
      %v1717 = vpop.f32.mrf.mxu0
      %v1718 = vadd.f32 0.0, %v1717
      %v1719 = vpop.f32.mrf.mxu0
      %1720 = vmatprep.mubr.bf16.mxu0 0
      %1721 = vmatmul.mubr.bf16.gmra.mxu0 %v1531
      %v1722 = vpop.f32.mrf.mxu0
      %v1723 = vadd.f32 0.0, %v1722
      %v1724 = vpop.f32.mrf.mxu0
      %v1725 = vpop.f32.mrf.mxu0
      %v1726 = vadd.f32 0.0, %v1725
      %v1727 = vpop.f32.mrf.mxu0
      %1728 = vmatprep.mubr.bf16.mxu0 0
      %1729 = vmatmul.mubr.bf16.gmra.mxu0 %v1532
      %v1730 = vpop.f32.mrf.mxu0
      %v1731 = vadd.f32 0.0, %v1730
      %v1732 = vpop.f32.mrf.mxu0
      %v1733 = vpop.f32.mrf.mxu0
      %v1734 = vadd.f32 0.0, %v1733
      %v1735 = vpop.f32.mrf.mxu0
      %1736 = vmatprep.mubr.bf16.mxu0 0
      %1737 = vmatmul.mubr.bf16.gmra.mxu0 %v1533
      %v1738 = vpop.f32.mrf.mxu0
      %v1739 = vadd.f32 0.0, %v1738
      %v1740 = vpop.f32.mrf.mxu0
      %v1741 = vpop.f32.mrf.mxu0
      %v1742 = vadd.f32 0.0, %v1741
      %v1743 = vpop.f32.mrf.mxu0
      %1744 = vmatprep.mubr.bf16.mxu0 0
      %1745 = vmatmul.mubr.bf16.gmra.mxu0 %v1534
      %v1746 = vpop.f32.mrf.mxu0
      %v1747 = vadd.f32 0.0, %v1746
      %v1748 = vpop.f32.mrf.mxu0
      %v1749 = vpop.f32.mrf.mxu0
      %v1750 = vadd.f32 0.0, %v1749
      %v1751 = vpop.f32.mrf.mxu0
      %1752 = vmatprep.mubr.bf16.mxu0 0
      %1753 = vmatmul.mubr.bf16.gmra.mxu0 %v1535
      %v1754 = vpop.f32.mrf.mxu0
      %v1755 = vadd.f32 0.0, %v1754
      %v1756 = vpop.f32.mrf.mxu0
      %v1757 = vpop.f32.mrf.mxu0
      %v1758 = vadd.f32 0.0, %v1757
      %v1759 = vpop.f32.mrf.mxu0
      %1760 = vdwg.mxu0
      %v1793 = vunpack.c.l.b16 %v1021
      %v1794 = vunpack.c.l.b16 %v1022
      %v1795 = vunpack.c.l.b16 %v1023
      %v1796 = vunpack.c.l.b16 %v1024
      %v1797 = vunpack.c.l.b16 %v1025
      %v1798 = vunpack.c.l.b16 %v1026
      %v1799 = vunpack.c.l.b16 %v1027
      %v1800 = vunpack.c.l.b16 %v1028
      %v1801 = vunpack.c.l.b16 %v1029
      %v1802 = vunpack.c.l.b16 %v1030
      %v1803 = vunpack.c.l.b16 %v1031
      %v1804 = vunpack.c.l.b16 %v1032
      %v1805 = vunpack.c.l.b16 %v1033
      %v1806 = vunpack.c.l.b16 %v1034
      %v1807 = vunpack.c.l.b16 %v1035
      %v1808 = vunpack.c.l.b16 %v1036
      %v1809 = vunpack.c.l.b16 %v1037
      %v1810 = vunpack.c.l.b16 %v1038
      %v1811 = vunpack.c.l.b16 %v1039
      %v1812 = vunpack.c.l.b16 %v1040
      %v1813 = vunpack.c.l.b16 %v1041
      %v1814 = vunpack.c.l.b16 %v1042
      %v1815 = vunpack.c.l.b16 %v1043
      %v1816 = vunpack.c.l.b16 %v1044
      %v1817 = vunpack.c.l.b16 %v1045
      %v1818 = vunpack.c.l.b16 %v1046
      %v1819 = vunpack.c.l.b16 %v1047
      %v1820 = vunpack.c.l.b16 %v1048
      %v1821 = vunpack.c.l.b16 %v1049
      %v1822 = vunpack.c.l.b16 %v1050
      %v1823 = vunpack.c.l.b16 %v1051
      %v1824 = vunpack.c.l.b16 %v1052
      %v1825 = vpack.c.b16 %v1794, %v1793
      %v1826 = vpack.c.b16 %v1796, %v1795
      %v1827 = vpack.c.b16 %v1798, %v1797
      %v1828 = vpack.c.b16 %v1800, %v1799
      %v1829 = vpack.c.b16 %v1802, %v1801
      %v1830 = vpack.c.b16 %v1804, %v1803
      %v1831 = vpack.c.b16 %v1806, %v1805
      %v1832 = vpack.c.b16 %v1808, %v1807
      %v1833 = vpack.c.b16 %v1810, %v1809
      %v1834 = vpack.c.b16 %v1812, %v1811
      %v1835 = vpack.c.b16 %v1814, %v1813
      %v1836 = vpack.c.b16 %v1816, %v1815
      %v1837 = vpack.c.b16 %v1818, %v1817
      %v1838 = vpack.c.b16 %v1820, %v1819
      %v1839 = vpack.c.b16 %v1822, %v1821
      %v1840 = vpack.c.b16 %v1824, %v1823
      %v1873 = vunpack.c.l.b16 %v1053
      %v1874 = vunpack.c.l.b16 %v1054
      %v1875 = vunpack.c.l.b16 %v1055
      %v1876 = vunpack.c.l.b16 %v1056
      %v1877 = vunpack.c.l.b16 %v1057
      %v1878 = vunpack.c.l.b16 %v1058
      %v1879 = vunpack.c.l.b16 %v1059
      %v1880 = vunpack.c.l.b16 %v1060
      %v1881 = vunpack.c.l.b16 %v1061
      %v1882 = vunpack.c.l.b16 %v1062
      %v1883 = vunpack.c.l.b16 %v1063
      %v1884 = vunpack.c.l.b16 %v1064
      %v1885 = vunpack.c.l.b16 %v1065
      %v1886 = vunpack.c.l.b16 %v1066
      %v1887 = vunpack.c.l.b16 %v1067
      %v1888 = vunpack.c.l.b16 %v1068
      %v1889 = vpack.c.b16 %v1874, %v1873
      %v1890 = vpack.c.b16 %v1876, %v1875
      %v1891 = vpack.c.b16 %v1878, %v1877
      %v1892 = vpack.c.b16 %v1880, %v1879
      %v1893 = vpack.c.b16 %v1882, %v1881
      %v1894 = vpack.c.b16 %v1884, %v1883
      %v1895 = vpack.c.b16 %v1886, %v1885
      %v1896 = vpack.c.b16 %v1888, %v1887
      %1905 = vmatprep.subr.bf16.mxu0 0
      %1906 = vmatpush1.bf16.msra.mxu0 %v1896
      %1907 = vmatprep.subr.bf16.mxu0 0
      %1908 = vmatpush1.bf16.msra.mxu0 %v1895
      %1909 = vmatprep.subr.bf16.mxu0 0
      %1910 = vmatpush1.bf16.msra.mxu0 %v1894
      %1911 = vmatprep.subr.bf16.mxu0 0
      %1912 = vmatpush1.bf16.msra.mxu0 %v1893
      %1913 = vmatprep.subr.bf16.mxu0 0
      %1914 = vmatpush1.bf16.msra.mxu0 %v1892
      %1915 = vmatprep.subr.bf16.mxu0 0
      %1916 = vmatpush1.bf16.msra.mxu0 %v1891
      %1917 = vmatprep.subr.bf16.mxu0 0
      %1918 = vmatpush1.bf16.msra.mxu0 %v1890
      %1919 = vmatprep.subr.bf16.mxu0 0
      %1920 = vmatpush1.bf16.msra.mxu0 %v1889
      %1921 = vmatprep.subr.bf16.mxu0 0
      %1922 = vmatpush2.bf16.msra.mxu0 0
      %1923 = vmatprep.subr.bf16.mxu0 0
      %1924 = vmatpush2.bf16.msra.mxu0 0
      %1925 = vmatprep.subr.bf16.mxu0 0
      %1926 = vmatpush2.bf16.msra.mxu0 0
      %1927 = vmatprep.subr.bf16.mxu0 0
      %1928 = vmatpush2.bf16.msra.mxu0 0
      %1929 = vmatprep.subr.bf16.mxu0 0
      %1930 = vmatpush2.bf16.msra.mxu0 0
      %1931 = vmatprep.subr.bf16.mxu0 0
      %1932 = vmatpush2.bf16.msra.mxu0 0
      %1933 = vmatprep.subr.bf16.mxu0 0
      %1934 = vmatpush2.bf16.msra.mxu0 0
      %1935 = vmatprep.subr.bf16.mxu0 0
      %1936 = vmatpush2.bf16.msra.mxu0 0
      %1937 = vmatprep.mubr.bf16.mxu0 0
      %1938 = vmatmul.mubr.bf16.gmra.mxu0 %v1825
      %v1939 = vpop.f32.mrf.mxu0
      %v1940 = vadd.f32 %v1635, %v1939
      %v1941 = vpop.f32.mrf.mxu0
      %v1942 = vpop.f32.mrf.mxu0
      %v1943 = vadd.f32 %v1638, %v1942
      %v1944 = vpop.f32.mrf.mxu0
      %1945 = vmatprep.mubr.bf16.mxu0 0
      %1946 = vmatmul.mubr.bf16.gmra.mxu0 %v1826
      %v1947 = vpop.f32.mrf.mxu0
      %v1948 = vadd.f32 %v1643, %v1947
      %v1949 = vpop.f32.mrf.mxu0
      %v1950 = vpop.f32.mrf.mxu0
      %v1951 = vadd.f32 %v1646, %v1950
      %v1952 = vpop.f32.mrf.mxu0
      %1953 = vmatprep.mubr.bf16.mxu0 0
      %1954 = vmatmul.mubr.bf16.gmra.mxu0 %v1827
      %v1955 = vpop.f32.mrf.mxu0
      %v1956 = vadd.f32 %v1651, %v1955
      %v1957 = vpop.f32.mrf.mxu0
      %v1958 = vpop.f32.mrf.mxu0
      %v1959 = vadd.f32 %v1654, %v1958
      %v1960 = vpop.f32.mrf.mxu0
      %1961 = vmatprep.mubr.bf16.mxu0 0
      %1962 = vmatmul.mubr.bf16.gmra.mxu0 %v1828
      %v1963 = vpop.f32.mrf.mxu0
      %v1964 = vadd.f32 %v1659, %v1963
      %v1965 = vpop.f32.mrf.mxu0
      %v1966 = vpop.f32.mrf.mxu0
      %v1967 = vadd.f32 %v1662, %v1966
      %v1968 = vpop.f32.mrf.mxu0
      %1969 = vmatprep.mubr.bf16.mxu0 0
      %1970 = vmatmul.mubr.bf16.gmra.mxu0 %v1829
      %v1971 = vpop.f32.mrf.mxu0
      %v1972 = vadd.f32 %v1667, %v1971
      %v1973 = vpop.f32.mrf.mxu0
      %v1974 = vpop.f32.mrf.mxu0
      %v1975 = vadd.f32 %v1670, %v1974
      %v1976 = vpop.f32.mrf.mxu0
      %1977 = vmatprep.mubr.bf16.mxu0 0
      %1978 = vmatmul.mubr.bf16.gmra.mxu0 %v1830
      %v1979 = vpop.f32.mrf.mxu0
      %v1980 = vadd.f32 %v1675, %v1979
      %v1981 = vpop.f32.mrf.mxu0
      %v1982 = vpop.f32.mrf.mxu0
      %v1983 = vadd.f32 %v1678, %v1982
      %v1984 = vpop.f32.mrf.mxu0
      %1985 = vmatprep.mubr.bf16.mxu0 0
      %1986 = vmatmul.mubr.bf16.gmra.mxu0 %v1831
      %v1987 = vpop.f32.mrf.mxu0
      %v1988 = vadd.f32 %v1683, %v1987
      %v1989 = vpop.f32.mrf.mxu0
      %v1990 = vpop.f32.mrf.mxu0
      %v1991 = vadd.f32 %v1686, %v1990
      %v1992 = vpop.f32.mrf.mxu0
      %1993 = vmatprep.mubr.bf16.mxu0 0
      %1994 = vmatmul.mubr.bf16.gmra.mxu0 %v1832
      %v1995 = vpop.f32.mrf.mxu0
      %v1996 = vadd.f32 %v1691, %v1995
      %v1997 = vpop.f32.mrf.mxu0
      %v1998 = vpop.f32.mrf.mxu0
      %v1999 = vadd.f32 %v1694, %v1998
      %v2000 = vpop.f32.mrf.mxu0
      %2001 = vmatprep.mubr.bf16.mxu0 0
      %2002 = vmatmul.mubr.bf16.gmra.mxu0 %v1833
      %v2003 = vpop.f32.mrf.mxu0
      %v2004 = vadd.f32 %v1699, %v2003
      %v2005 = vpop.f32.mrf.mxu0
      %v2006 = vpop.f32.mrf.mxu0
      %v2007 = vadd.f32 %v1702, %v2006
      %v2008 = vpop.f32.mrf.mxu0
      %2009 = vmatprep.mubr.bf16.mxu0 0
      %2010 = vmatmul.mubr.bf16.gmra.mxu0 %v1834
      %v2011 = vpop.f32.mrf.mxu0
      %v2012 = vadd.f32 %v1707, %v2011
      %v2013 = vpop.f32.mrf.mxu0
      %v2014 = vpop.f32.mrf.mxu0
      %v2015 = vadd.f32 %v1710, %v2014
      %v2016 = vpop.f32.mrf.mxu0
      %2017 = vmatprep.mubr.bf16.mxu0 0
      %2018 = vmatmul.mubr.bf16.gmra.mxu0 %v1835
      %v2019 = vpop.f32.mrf.mxu0
      %v2020 = vadd.f32 %v1715, %v2019
      %v2021 = vpop.f32.mrf.mxu0
      %v2022 = vpop.f32.mrf.mxu0
      %v2023 = vadd.f32 %v1718, %v2022
      %v2024 = vpop.f32.mrf.mxu0
      %2025 = vmatprep.mubr.bf16.mxu0 0
      %2026 = vmatmul.mubr.bf16.gmra.mxu0 %v1836
      %v2027 = vpop.f32.mrf.mxu0
      %v2028 = vadd.f32 %v1723, %v2027
      %v2029 = vpop.f32.mrf.mxu0
      %v2030 = vpop.f32.mrf.mxu0
      %v2031 = vadd.f32 %v1726, %v2030
      %v2032 = vpop.f32.mrf.mxu0
      %2033 = vmatprep.mubr.bf16.mxu0 0
      %2034 = vmatmul.mubr.bf16.gmra.mxu0 %v1837
      %v2035 = vpop.f32.mrf.mxu0
      %v2036 = vadd.f32 %v1731, %v2035
      %v2037 = vpop.f32.mrf.mxu0
      %v2038 = vpop.f32.mrf.mxu0
      %v2039 = vadd.f32 %v1734, %v2038
      %v2040 = vpop.f32.mrf.mxu0
      %2041 = vmatprep.mubr.bf16.mxu0 0
      %2042 = vmatmul.mubr.bf16.gmra.mxu0 %v1838
      %v2043 = vpop.f32.mrf.mxu0
      %v2044 = vadd.f32 %v1739, %v2043
      %v2045 = vpop.f32.mrf.mxu0
      %v2046 = vpop.f32.mrf.mxu0
      %v2047 = vadd.f32 %v1742, %v2046
      %v2048 = vpop.f32.mrf.mxu0
      %2049 = vmatprep.mubr.bf16.mxu0 0
      %2050 = vmatmul.mubr.bf16.gmra.mxu0 %v1839
      %v2051 = vpop.f32.mrf.mxu0
      %v2052 = vadd.f32 %v1747, %v2051
      %v2053 = vpop.f32.mrf.mxu0
      %v2054 = vpop.f32.mrf.mxu0
      %v2055 = vadd.f32 %v1750, %v2054
      %v2056 = vpop.f32.mrf.mxu0
      %2057 = vmatprep.mubr.bf16.mxu0 0
      %2058 = vmatmul.mubr.bf16.gmra.mxu0 %v1840
      %v2059 = vpop.f32.mrf.mxu0
      %v2060 = vadd.f32 %v1755, %v2059
      %v2061 = vpop.f32.mrf.mxu0
      %v2062 = vpop.f32.mrf.mxu0
      %v2063 = vadd.f32 %v1758, %v2062
      %v2064 = vpop.f32.mrf.mxu0
      %2065 = vdwg.mxu0
      %v2066 = vld [vmem:[#allocation2] sm:$0xe]
      %v2067 = vld [vmem:[#allocation2 + $0xc] sm:$0xe]
      %v2068 = vld [vmem:[#allocation2 + $0x18] sm:$0xe]
      %v2069 = vld [vmem:[#allocation2 + $0x24] sm:$0xe]
      %v2070 = vld [vmem:[#allocation2 + $0x30] sm:$0xe]
      %v2071 = vld [vmem:[#allocation2 + $0x3c] sm:$0xe]
      %v2072 = vld [vmem:[#allocation2 + $0x48] sm:$0xe]
      %v2073 = vld [vmem:[#allocation2 + $0x54] sm:$0xe]
      %v2074 = vld [vmem:[#allocation2 + $0x60] sm:$0xe]
      %v2075 = vld [vmem:[#allocation2 + $0x6c] sm:$0xe]
      %v2076 = vld [vmem:[#allocation2 + $0x78] sm:$0xe]
      %v2077 = vld [vmem:[#allocation2 + $0x84] sm:$0xe]
      %v2078 = vld [vmem:[#allocation2 + $0x90] sm:$0xe]
      %v2079 = vld [vmem:[#allocation2 + $0x9c] sm:$0xe]
      %v2080 = vld [vmem:[#allocation2 + $0xa8] sm:$0xe]
      %v2081 = vld [vmem:[#allocation2 + $0xb4] sm:$0xe]
      %vm2114 = vcmask 1042432
      %vm2115 = vcmask 1046532
      %vm2116 = vmor %vm2114, %vm2115
      %v2117 = vrot.slane %v2066, 5
      %v2118 = vrot.slane %v2117, 4
      %v2119 = vrot.slane %v1022, 5
      %v2120 = vsel %vm2116, %v2118, %v2119
      %v2121 = vrot.slane %v2119, 4
      %v2122 = vrot.slane %v1069, 5
      %v2123 = vsel %vm2116, %v2121, %v2122
      %v2124 = vrot.slane %v2067, 5
      %v2125 = vrot.slane %v2124, 4
      %v2126 = vrot.slane %v1024, 5
      %v2127 = vsel %vm2116, %v2125, %v2126
      %v2128 = vrot.slane %v2126, 4
      %v2129 = vrot.slane %v1070, 5
      %v2130 = vsel %vm2116, %v2128, %v2129
      %v2131 = vrot.slane %v2068, 5
      %v2132 = vrot.slane %v2131, 4
      %v2133 = vrot.slane %v1026, 5
      %v2134 = vsel %vm2116, %v2132, %v2133
      %v2135 = vrot.slane %v2133, 4
      %v2136 = vrot.slane %v1071, 5
      %v2137 = vsel %vm2116, %v2135, %v2136
      %v2138 = vrot.slane %v2069, 5
      %v2139 = vrot.slane %v2138, 4
      %v2140 = vrot.slane %v1028, 5
      %v2141 = vsel %vm2116, %v2139, %v2140
      %v2142 = vrot.slane %v2140, 4
      %v2143 = vrot.slane %v1072, 5
      %v2144 = vsel %vm2116, %v2142, %v2143
      %v2145 = vrot.slane %v2070, 5
      %v2146 = vrot.slane %v2145, 4
      %v2147 = vrot.slane %v1030, 5
      %v2148 = vsel %vm2116, %v2146, %v2147
      %v2149 = vrot.slane %v2147, 4
      %v2150 = vrot.slane %v1073, 5
      %v2151 = vsel %vm2116, %v2149, %v2150
      %v2152 = vrot.slane %v2071, 5
      %v2153 = vrot.slane %v2152, 4
      %v2154 = vrot.slane %v1032, 5
      %v2155 = vsel %vm2116, %v2153, %v2154
      %v2156 = vrot.slane %v2154, 4
      %v2157 = vrot.slane %v1074, 5
      %v2158 = vsel %vm2116, %v2156, %v2157
      %v2159 = vrot.slane %v2072, 5
      %v2160 = vrot.slane %v2159, 4
      %v2161 = vrot.slane %v1034, 5
      %v2162 = vsel %vm2116, %v2160, %v2161
      %v2163 = vrot.slane %v2161, 4
      %v2164 = vrot.slane %v1075, 5
      %v2165 = vsel %vm2116, %v2163, %v2164
      %v2166 = vrot.slane %v2073, 5
      %v2167 = vrot.slane %v2166, 4
      %v2168 = vrot.slane %v1036, 5
      %v2169 = vsel %vm2116, %v2167, %v2168
      %v2170 = vrot.slane %v2168, 4
      %v2171 = vrot.slane %v1076, 5
      %v2172 = vsel %vm2116, %v2170, %v2171
      %v2173 = vrot.slane %v2074, 5
      %v2174 = vrot.slane %v2173, 4
      %v2175 = vrot.slane %v1038, 5
      %v2176 = vsel %vm2116, %v2174, %v2175
      %v2177 = vrot.slane %v2175, 4
      %v2178 = vrot.slane %v1077, 5
      %v2179 = vsel %vm2116, %v2177, %v2178
      %v2180 = vrot.slane %v2075, 5
      %v2181 = vrot.slane %v2180, 4
      %v2182 = vrot.slane %v1040, 5
      %v2183 = vsel %vm2116, %v2181, %v2182
      %v2184 = vrot.slane %v2182, 4
      %v2185 = vrot.slane %v1078, 5
      %v2186 = vsel %vm2116, %v2184, %v2185
      %v2187 = vrot.slane %v2076, 5
      %v2188 = vrot.slane %v2187, 4
      %v2189 = vrot.slane %v1042, 5
      %v2190 = vsel %vm2116, %v2188, %v2189
      %v2191 = vrot.slane %v2189, 4
      %v2192 = vrot.slane %v1079, 5
      %v2193 = vsel %vm2116, %v2191, %v2192
      %v2194 = vrot.slane %v2077, 5
      %v2195 = vrot.slane %v2194, 4
      %v2196 = vrot.slane %v1044, 5
      %v2197 = vsel %vm2116, %v2195, %v2196
      %v2198 = vrot.slane %v2196, 4
      %v2199 = vrot.slane %v1080, 5
      %v2200 = vsel %vm2116, %v2198, %v2199
      %v2201 = vrot.slane %v2078, 5
      %v2202 = vrot.slane %v2201, 4
      %v2203 = vrot.slane %v1046, 5
      %v2204 = vsel %vm2116, %v2202, %v2203
      %v2205 = vrot.slane %v2203, 4
      %v2206 = vrot.slane %v1081, 5
      %v2207 = vsel %vm2116, %v2205, %v2206
      %v2208 = vrot.slane %v2079, 5
      %v2209 = vrot.slane %v2208, 4
      %v2210 = vrot.slane %v1048, 5
      %v2211 = vsel %vm2116, %v2209, %v2210
      %v2212 = vrot.slane %v2210, 4
      %v2213 = vrot.slane %v1082, 5
      %v2214 = vsel %vm2116, %v2212, %v2213
      %v2215 = vrot.slane %v2080, 5
      %v2216 = vrot.slane %v2215, 4
      %v2217 = vrot.slane %v1050, 5
      %v2218 = vsel %vm2116, %v2216, %v2217
      %v2219 = vrot.slane %v2217, 4
      %v2220 = vrot.slane %v1083, 5
      %v2221 = vsel %vm2116, %v2219, %v2220
      %v2222 = vrot.slane %v2081, 5
      %v2223 = vrot.slane %v2222, 4
      %v2224 = vrot.slane %v1052, 5
      %v2225 = vsel %vm2116, %v2223, %v2224
      %v2226 = vrot.slane %v2224, 4
      %v2227 = vrot.slane %v1084, 5
      %v2228 = vsel %vm2116, %v2226, %v2227
      %v2229 = vld [vmem:[%s2 + $0x80] sm:$0xf]
      %v2230 = vld [vmem:[%s2 + $0x84] sm:$0xf]
      %v2231 = vld [vmem:[%s2 + $0x88] sm:$0xf]
      %v2232 = vld [vmem:[%s2 + $0x8c] sm:$0xf]
      %v2233 = vld [vmem:[%s2 + $0x90] sm:$0xf]
      %v2234 = vld [vmem:[%s2 + $0x94] sm:$0xf]
      %v2235 = vld [vmem:[%s2 + $0x98] sm:$0xf]
      %v2236 = vld [vmem:[%s2 + $0x9c] sm:$0xf]
      %v2237 = vld [vmem:[%s2 + $0xa0] sm:$0xf]
      %v2238 = vld [vmem:[%s2 + $0xa4] sm:$0xf]
      %v2239 = vld [vmem:[%s2 + $0xa8] sm:$0xf]
      %v2240 = vld [vmem:[%s2 + $0xac] sm:$0xf]
      %v2241 = vld [vmem:[%s2 + $0xb0] sm:$0xf]
      %v2242 = vld [vmem:[%s2 + $0xb4] sm:$0xf]
      %v2243 = vld [vmem:[%s2 + $0xb8] sm:$0xf]
      %v2244 = vld [vmem:[%s2 + $0xbc] sm:$0xf]
      %v2245 = vunpack.c.l.b16 %v2120
      %v2246 = vunpack.c.l.b16 %v2123
      %v2247 = vunpack.c.l.b16 %v2127
      %v2248 = vunpack.c.l.b16 %v2130
      %v2249 = vunpack.c.l.b16 %v2134
      %v2250 = vunpack.c.l.b16 %v2137
      %v2251 = vunpack.c.l.b16 %v2141
      %v2252 = vunpack.c.l.b16 %v2144
      %v2253 = vunpack.c.l.b16 %v2148
      %v2254 = vunpack.c.l.b16 %v2151
      %v2255 = vunpack.c.l.b16 %v2155
      %v2256 = vunpack.c.l.b16 %v2158
      %v2257 = vunpack.c.l.b16 %v2162
      %v2258 = vunpack.c.l.b16 %v2165
      %v2259 = vunpack.c.l.b16 %v2169
      %v2260 = vunpack.c.l.b16 %v2172
      %v2261 = vunpack.c.l.b16 %v2176
      %v2262 = vunpack.c.l.b16 %v2179
      %v2263 = vunpack.c.l.b16 %v2183
      %v2264 = vunpack.c.l.b16 %v2186
      %v2265 = vunpack.c.l.b16 %v2190
      %v2266 = vunpack.c.l.b16 %v2193
      %v2267 = vunpack.c.l.b16 %v2197
      %v2268 = vunpack.c.l.b16 %v2200
      %v2269 = vunpack.c.l.b16 %v2204
      %v2270 = vunpack.c.l.b16 %v2207
      %v2271 = vunpack.c.l.b16 %v2211
      %v2272 = vunpack.c.l.b16 %v2214
      %v2273 = vunpack.c.l.b16 %v2218
      %v2274 = vunpack.c.l.b16 %v2221
      %v2275 = vunpack.c.l.b16 %v2225
      %v2276 = vunpack.c.l.b16 %v2228
      %v2277 = vpack.c.b16 %v2246, %v2245
      %v2278 = vpack.c.b16 %v2248, %v2247
      %v2279 = vpack.c.b16 %v2250, %v2249
      %v2280 = vpack.c.b16 %v2252, %v2251
      %v2281 = vpack.c.b16 %v2254, %v2253
      %v2282 = vpack.c.b16 %v2256, %v2255
      %v2283 = vpack.c.b16 %v2258, %v2257
      %v2284 = vpack.c.b16 %v2260, %v2259
      %v2285 = vpack.c.b16 %v2262, %v2261
      %v2286 = vpack.c.b16 %v2264, %v2263
      %v2287 = vpack.c.b16 %v2266, %v2265
      %v2288 = vpack.c.b16 %v2268, %v2267
      %v2289 = vpack.c.b16 %v2270, %v2269
      %v2290 = vpack.c.b16 %v2272, %v2271
      %v2291 = vpack.c.b16 %v2274, %v2273
      %v2292 = vpack.c.b16 %v2276, %v2275
      %v2325 = vunpack.c.l.b16 %v2229
      %v2326 = vunpack.c.l.b16 %v2230
      %v2327 = vunpack.c.l.b16 %v2231
      %v2328 = vunpack.c.l.b16 %v2232
      %v2329 = vunpack.c.l.b16 %v2233
      %v2330 = vunpack.c.l.b16 %v2234
      %v2331 = vunpack.c.l.b16 %v2235
      %v2332 = vunpack.c.l.b16 %v2236
      %v2333 = vunpack.c.l.b16 %v2237
      %v2334 = vunpack.c.l.b16 %v2238
      %v2335 = vunpack.c.l.b16 %v2239
      %v2336 = vunpack.c.l.b16 %v2240
      %v2337 = vunpack.c.l.b16 %v2241
      %v2338 = vunpack.c.l.b16 %v2242
      %v2339 = vunpack.c.l.b16 %v2243
      %v2340 = vunpack.c.l.b16 %v2244
      %v2341 = vpack.c.b16 %v2326, %v2325
      %v2342 = vpack.c.b16 %v2328, %v2327
      %v2343 = vpack.c.b16 %v2330, %v2329
      %v2344 = vpack.c.b16 %v2332, %v2331
      %v2345 = vpack.c.b16 %v2334, %v2333
      %v2346 = vpack.c.b16 %v2336, %v2335
      %v2347 = vpack.c.b16 %v2338, %v2337
      %v2348 = vpack.c.b16 %v2340, %v2339
      %2357 = vmatprep.subr.bf16.mxu0 0
      %2358 = vmatpush1.bf16.msra.mxu0 %v2348
      %2359 = vmatprep.subr.bf16.mxu0 0
      %2360 = vmatpush1.bf16.msra.mxu0 %v2347
      %2361 = vmatprep.subr.bf16.mxu0 0
      %2362 = vmatpush1.bf16.msra.mxu0 %v2346
      %2363 = vmatprep.subr.bf16.mxu0 0
      %2364 = vmatpush1.bf16.msra.mxu0 %v2345
      %2365 = vmatprep.subr.bf16.mxu0 0
      %2366 = vmatpush1.bf16.msra.mxu0 %v2344
      %2367 = vmatprep.subr.bf16.mxu0 0
      %2368 = vmatpush1.bf16.msra.mxu0 %v2343
      %2369 = vmatprep.subr.bf16.mxu0 0
      %2370 = vmatpush1.bf16.msra.mxu0 %v2342
      %2371 = vmatprep.subr.bf16.mxu0 0
      %2372 = vmatpush1.bf16.msra.mxu0 %v2341
      %2373 = vmatprep.subr.bf16.mxu0 0
      %2374 = vmatpush2.bf16.msra.mxu0 0
      %2375 = vmatprep.subr.bf16.mxu0 0
      %2376 = vmatpush2.bf16.msra.mxu0 0
      %2377 = vmatprep.subr.bf16.mxu0 0
      %2378 = vmatpush2.bf16.msra.mxu0 0
      %2379 = vmatprep.subr.bf16.mxu0 0
      %2380 = vmatpush2.bf16.msra.mxu0 0
      %2381 = vmatprep.subr.bf16.mxu0 0
      %2382 = vmatpush2.bf16.msra.mxu0 0
      %2383 = vmatprep.subr.bf16.mxu0 0
      %2384 = vmatpush2.bf16.msra.mxu0 0
      %2385 = vmatprep.subr.bf16.mxu0 0
      %2386 = vmatpush2.bf16.msra.mxu0 0
      %2387 = vmatprep.subr.bf16.mxu0 0
      %2388 = vmatpush2.bf16.msra.mxu0 0
      %2389 = vmatprep.mubr.bf16.mxu0 0
      %2390 = vmatmul.mubr.bf16.gmra.mxu0 %v2277
      %v2391 = vpop.f32.mrf.mxu0
      %v2392 = vadd.f32 0.0, %v2391
      %v2393 = vpop.f32.mrf.mxu0
      %v2394 = vpop.f32.mrf.mxu0
      %v2395 = vadd.f32 0.0, %v2394
      %v2396 = vpop.f32.mrf.mxu0
      %2397 = vmatprep.mubr.bf16.mxu0 0
      %2398 = vmatmul.mubr.bf16.gmra.mxu0 %v2278
      %v2399 = vpop.f32.mrf.mxu0
      %v2400 = vadd.f32 0.0, %v2399
      %v2401 = vpop.f32.mrf.mxu0
      %v2402 = vpop.f32.mrf.mxu0
      %v2403 = vadd.f32 0.0, %v2402
      %v2404 = vpop.f32.mrf.mxu0
      %2405 = vmatprep.mubr.bf16.mxu0 0
      %2406 = vmatmul.mubr.bf16.gmra.mxu0 %v2279
      %v2407 = vpop.f32.mrf.mxu0
      %v2408 = vadd.f32 0.0, %v2407
      %v2409 = vpop.f32.mrf.mxu0
      %v2410 = vpop.f32.mrf.mxu0
      %v2411 = vadd.f32 0.0, %v2410
      %v2412 = vpop.f32.mrf.mxu0
      %2413 = vmatprep.mubr.bf16.mxu0 0
      %2414 = vmatmul.mubr.bf16.gmra.mxu0 %v2280
      %v2415 = vpop.f32.mrf.mxu0
      %v2416 = vadd.f32 0.0, %v2415
      %v2417 = vpop.f32.mrf.mxu0
      %v2418 = vpop.f32.mrf.mxu0
      %v2419 = vadd.f32 0.0, %v2418
      %v2420 = vpop.f32.mrf.mxu0
      %2421 = vmatprep.mubr.bf16.mxu0 0
      %2422 = vmatmul.mubr.bf16.gmra.mxu0 %v2281
      %v2423 = vpop.f32.mrf.mxu0
      %v2424 = vadd.f32 0.0, %v2423
      %v2425 = vpop.f32.mrf.mxu0
      %v2426 = vpop.f32.mrf.mxu0
      %v2427 = vadd.f32 0.0, %v2426
      %v2428 = vpop.f32.mrf.mxu0
      %2429 = vmatprep.mubr.bf16.mxu0 0
      %2430 = vmatmul.mubr.bf16.gmra.mxu0 %v2282
      %v2431 = vpop.f32.mrf.mxu0
      %v2432 = vadd.f32 0.0, %v2431
      %v2433 = vpop.f32.mrf.mxu0
      %v2434 = vpop.f32.mrf.mxu0
      %v2435 = vadd.f32 0.0, %v2434
      %v2436 = vpop.f32.mrf.mxu0
      %2437 = vmatprep.mubr.bf16.mxu0 0
      %2438 = vmatmul.mubr.bf16.gmra.mxu0 %v2283
      %v2439 = vpop.f32.mrf.mxu0
      %v2440 = vadd.f32 0.0, %v2439
      %v2441 = vpop.f32.mrf.mxu0
      %v2442 = vpop.f32.mrf.mxu0
      %v2443 = vadd.f32 0.0, %v2442
      %v2444 = vpop.f32.mrf.mxu0
      %2445 = vmatprep.mubr.bf16.mxu0 0
      %2446 = vmatmul.mubr.bf16.gmra.mxu0 %v2284
      %v2447 = vpop.f32.mrf.mxu0
      %v2448 = vadd.f32 0.0, %v2447
      %v2449 = vpop.f32.mrf.mxu0
      %v2450 = vpop.f32.mrf.mxu0
      %v2451 = vadd.f32 0.0, %v2450
      %v2452 = vpop.f32.mrf.mxu0
      %2453 = vmatprep.mubr.bf16.mxu0 0
      %2454 = vmatmul.mubr.bf16.gmra.mxu0 %v2285
      %v2455 = vpop.f32.mrf.mxu0
      %v2456 = vadd.f32 0.0, %v2455
      %v2457 = vpop.f32.mrf.mxu0
      %v2458 = vpop.f32.mrf.mxu0
      %v2459 = vadd.f32 0.0, %v2458
      %v2460 = vpop.f32.mrf.mxu0
      %2461 = vmatprep.mubr.bf16.mxu0 0
      %2462 = vmatmul.mubr.bf16.gmra.mxu0 %v2286
      %v2463 = vpop.f32.mrf.mxu0
      %v2464 = vadd.f32 0.0, %v2463
      %v2465 = vpop.f32.mrf.mxu0
      %v2466 = vpop.f32.mrf.mxu0
      %v2467 = vadd.f32 0.0, %v2466
      %v2468 = vpop.f32.mrf.mxu0
      %2469 = vmatprep.mubr.bf16.mxu0 0
      %2470 = vmatmul.mubr.bf16.gmra.mxu0 %v2287
      %v2471 = vpop.f32.mrf.mxu0
      %v2472 = vadd.f32 0.0, %v2471
      %v2473 = vpop.f32.mrf.mxu0
      %v2474 = vpop.f32.mrf.mxu0
      %v2475 = vadd.f32 0.0, %v2474
      %v2476 = vpop.f32.mrf.mxu0
      %2477 = vmatprep.mubr.bf16.mxu0 0
      %2478 = vmatmul.mubr.bf16.gmra.mxu0 %v2288
      %v2479 = vpop.f32.mrf.mxu0
      %v2480 = vadd.f32 0.0, %v2479
      %v2481 = vpop.f32.mrf.mxu0
      %v2482 = vpop.f32.mrf.mxu0
      %v2483 = vadd.f32 0.0, %v2482
      %v2484 = vpop.f32.mrf.mxu0
      %2485 = vmatprep.mubr.bf16.mxu0 0
      %2486 = vmatmul.mubr.bf16.gmra.mxu0 %v2289
      %v2487 = vpop.f32.mrf.mxu0
      %v2488 = vadd.f32 0.0, %v2487
      %v2489 = vpop.f32.mrf.mxu0
      %v2490 = vpop.f32.mrf.mxu0
      %v2491 = vadd.f32 0.0, %v2490
      %v2492 = vpop.f32.mrf.mxu0
      %2493 = vmatprep.mubr.bf16.mxu0 0
      %2494 = vmatmul.mubr.bf16.gmra.mxu0 %v2290
      %v2495 = vpop.f32.mrf.mxu0
      %v2496 = vadd.f32 0.0, %v2495
      %v2497 = vpop.f32.mrf.mxu0
      %v2498 = vpop.f32.mrf.mxu0
      %v2499 = vadd.f32 0.0, %v2498
      %v2500 = vpop.f32.mrf.mxu0
      %2501 = vmatprep.mubr.bf16.mxu0 0
      %2502 = vmatmul.mubr.bf16.gmra.mxu0 %v2291
      %v2503 = vpop.f32.mrf.mxu0
      %v2504 = vadd.f32 0.0, %v2503
      %v2505 = vpop.f32.mrf.mxu0
      %v2506 = vpop.f32.mrf.mxu0
      %v2507 = vadd.f32 0.0, %v2506
      %v2508 = vpop.f32.mrf.mxu0
      %2509 = vmatprep.mubr.bf16.mxu0 0
      %2510 = vmatmul.mubr.bf16.gmra.mxu0 %v2292
      %v2511 = vpop.f32.mrf.mxu0
      %v2512 = vadd.f32 0.0, %v2511
      %v2513 = vpop.f32.mrf.mxu0
      %v2514 = vpop.f32.mrf.mxu0
      %v2515 = vadd.f32 0.0, %v2514
      %v2516 = vpop.f32.mrf.mxu0
      %2517 = vdwg.mxu0
      %v2518 = vadd.f32 %v1940, %v2392
      %v2519 = vadd.f32 %v1943, %v2395
      %v2520 = vadd.f32 %v1948, %v2400
      %v2521 = vadd.f32 %v1951, %v2403
      %v2522 = vadd.f32 %v1956, %v2408
      %v2523 = vadd.f32 %v1959, %v2411
      %v2524 = vadd.f32 %v1964, %v2416
      %v2525 = vadd.f32 %v1967, %v2419
      %v2526 = vadd.f32 %v1972, %v2424
      %v2527 = vadd.f32 %v1975, %v2427
      %v2528 = vadd.f32 %v1980, %v2432
      %v2529 = vadd.f32 %v1983, %v2435
      %v2530 = vadd.f32 %v1988, %v2440
      %v2531 = vadd.f32 %v1991, %v2443
      %v2532 = vadd.f32 %v1996, %v2448
      %v2533 = vadd.f32 %v1999, %v2451
      %v2534 = vadd.f32 %v2004, %v2456
      %v2535 = vadd.f32 %v2007, %v2459
      %v2536 = vadd.f32 %v2012, %v2464
      %v2537 = vadd.f32 %v2015, %v2467
      %v2538 = vadd.f32 %v2020, %v2472
      %v2539 = vadd.f32 %v2023, %v2475
      %v2540 = vadd.f32 %v2028, %v2480
      %v2541 = vadd.f32 %v2031, %v2483
      %v2542 = vadd.f32 %v2036, %v2488
      %v2543 = vadd.f32 %v2039, %v2491
      %v2544 = vadd.f32 %v2044, %v2496
      %v2545 = vadd.f32 %v2047, %v2499
      %v2546 = vadd.f32 %v2052, %v2504
      %v2547 = vadd.f32 %v2055, %v2507
      %v2548 = vadd.f32 %v2060, %v2512
      %v2549 = vadd.f32 %v2063, %v2515
      %v2550 = vld [vmem:[%s403] sm:$0xf]
      %v2551 = vld [vmem:[%s403 + $0x4] sm:$0xf]
      %v2552 = vld [vmem:[%s403 + $0xc] sm:$0xf]
      %v2553 = vld [vmem:[%s403 + $0x10] sm:$0xf]
      %v2554 = vld [vmem:[%s403 + $0x18] sm:$0xf]
      %v2555 = vld [vmem:[%s403 + $0x1c] sm:$0xf]
      %v2556 = vld [vmem:[%s403 + $0x24] sm:$0xf]
      %v2557 = vld [vmem:[%s403 + $0x28] sm:$0xf]
      %v2558 = vld [vmem:[%s403 + $0x30] sm:$0xf]
      %v2559 = vld [vmem:[%s403 + $0x34] sm:$0xf]
      %v2560 = vld [vmem:[%s403 + $0x3c] sm:$0xf]
      %v2561 = vld [vmem:[%s403 + $0x40] sm:$0xf]
      %v2562 = vld [vmem:[%s403 + $0x48] sm:$0xf]
      %v2563 = vld [vmem:[%s403 + $0x4c] sm:$0xf]
      %v2564 = vld [vmem:[%s403 + $0x54] sm:$0xf]
      %v2565 = vld [vmem:[%s403 + $0x58] sm:$0xf]
      %v2566 = vld [vmem:[%s403 + $0x60] sm:$0xf]
      %v2567 = vld [vmem:[%s403 + $0x64] sm:$0xf]
      %v2568 = vld [vmem:[%s403 + $0x6c] sm:$0xf]
      %v2569 = vld [vmem:[%s403 + $0x70] sm:$0xf]
      %v2570 = vld [vmem:[%s403 + $0x78] sm:$0xf]
      %v2571 = vld [vmem:[%s403 + $0x7c] sm:$0xf]
      %v2572 = vld [vmem:[%s403 + $0x84] sm:$0xf]
      %v2573 = vld [vmem:[%s403 + $0x88] sm:$0xf]
      %v2574 = vld [vmem:[%s403 + $0x90] sm:$0xf]
      %v2575 = vld [vmem:[%s403 + $0x94] sm:$0xf]
      %v2576 = vld [vmem:[%s403 + $0x9c] sm:$0xf]
      %v2577 = vld [vmem:[%s403 + $0xa0] sm:$0xf]
      %v2578 = vld [vmem:[%s403 + $0xa8] sm:$0xf]
      %v2579 = vld [vmem:[%s403 + $0xac] sm:$0xf]
      %v2580 = vld [vmem:[%s403 + $0xb4] sm:$0xf]
      %v2581 = vld [vmem:[%s403 + $0xb8] sm:$0xf]
      %v2582 = vld [vmem:[%s2 + $0xc0] sm:$0xf]
      %v2583 = vld [vmem:[%s2 + $0xc4] sm:$0xf]
      %v2584 = vld [vmem:[%s2 + $0xc8] sm:$0xf]
      %v2585 = vld [vmem:[%s2 + $0xcc] sm:$0xf]
      %v2586 = vld [vmem:[%s2 + $0xd0] sm:$0xf]
      %v2587 = vld [vmem:[%s2 + $0xd4] sm:$0xf]
      %v2588 = vld [vmem:[%s2 + $0xd8] sm:$0xf]
      %v2589 = vld [vmem:[%s2 + $0xdc] sm:$0xf]
      %v2590 = vld [vmem:[%s2 + $0xe0] sm:$0xf]
      %v2591 = vld [vmem:[%s2 + $0xe4] sm:$0xf]
      %v2592 = vld [vmem:[%s2 + $0xe8] sm:$0xf]
      %v2593 = vld [vmem:[%s2 + $0xec] sm:$0xf]
      %v2594 = vld [vmem:[%s2 + $0xf0] sm:$0xf]
      %v2595 = vld [vmem:[%s2 + $0xf4] sm:$0xf]
      %v2596 = vld [vmem:[%s2 + $0xf8] sm:$0xf]
      %v2597 = vld [vmem:[%s2 + $0xfc] sm:$0xf]
      %v2630 = vunpack.c.l.b16 %v2550
      %v2631 = vunpack.c.l.b16 %v2551
      %v2632 = vunpack.c.l.b16 %v2552
      %v2633 = vunpack.c.l.b16 %v2553
      %v2634 = vunpack.c.l.b16 %v2554
      %v2635 = vunpack.c.l.b16 %v2555
      %v2636 = vunpack.c.l.b16 %v2556
      %v2637 = vunpack.c.l.b16 %v2557
      %v2638 = vunpack.c.l.b16 %v2558
      %v2639 = vunpack.c.l.b16 %v2559
      %v2640 = vunpack.c.l.b16 %v2560
      %v2641 = vunpack.c.l.b16 %v2561
      %v2642 = vunpack.c.l.b16 %v2562
      %v2643 = vunpack.c.l.b16 %v2563
      %v2644 = vunpack.c.l.b16 %v2564
      %v2645 = vunpack.c.l.b16 %v2565
      %v2646 = vunpack.c.l.b16 %v2566
      %v2647 = vunpack.c.l.b16 %v2567
      %v2648 = vunpack.c.l.b16 %v2568
      %v2649 = vunpack.c.l.b16 %v2569
      %v2650 = vunpack.c.l.b16 %v2570
      %v2651 = vunpack.c.l.b16 %v2571
      %v2652 = vunpack.c.l.b16 %v2572
      %v2653 = vunpack.c.l.b16 %v2573
      %v2654 = vunpack.c.l.b16 %v2574
      %v2655 = vunpack.c.l.b16 %v2575
      %v2656 = vunpack.c.l.b16 %v2576
      %v2657 = vunpack.c.l.b16 %v2577
      %v2658 = vunpack.c.l.b16 %v2578
      %v2659 = vunpack.c.l.b16 %v2579
      %v2660 = vunpack.c.l.b16 %v2580
      %v2661 = vunpack.c.l.b16 %v2581
      %v2662 = vpack.c.b16 %v2631, %v2630
      %v2663 = vpack.c.b16 %v2633, %v2632
      %v2664 = vpack.c.b16 %v2635, %v2634
      %v2665 = vpack.c.b16 %v2637, %v2636
      %v2666 = vpack.c.b16 %v2639, %v2638
      %v2667 = vpack.c.b16 %v2641, %v2640
      %v2668 = vpack.c.b16 %v2643, %v2642
      %v2669 = vpack.c.b16 %v2645, %v2644
      %v2670 = vpack.c.b16 %v2647, %v2646
      %v2671 = vpack.c.b16 %v2649, %v2648
      %v2672 = vpack.c.b16 %v2651, %v2650
      %v2673 = vpack.c.b16 %v2653, %v2652
      %v2674 = vpack.c.b16 %v2655, %v2654
      %v2675 = vpack.c.b16 %v2657, %v2656
      %v2676 = vpack.c.b16 %v2659, %v2658
      %v2677 = vpack.c.b16 %v2661, %v2660
      %v2710 = vunpack.c.l.b16 %v2582
      %v2711 = vunpack.c.l.b16 %v2583
      %v2712 = vunpack.c.l.b16 %v2584
      %v2713 = vunpack.c.l.b16 %v2585
      %v2714 = vunpack.c.l.b16 %v2586
      %v2715 = vunpack.c.l.b16 %v2587
      %v2716 = vunpack.c.l.b16 %v2588
      %v2717 = vunpack.c.l.b16 %v2589
      %v2718 = vunpack.c.l.b16 %v2590
      %v2719 = vunpack.c.l.b16 %v2591
      %v2720 = vunpack.c.l.b16 %v2592
      %v2721 = vunpack.c.l.b16 %v2593
      %v2722 = vunpack.c.l.b16 %v2594
      %v2723 = vunpack.c.l.b16 %v2595
      %v2724 = vunpack.c.l.b16 %v2596
      %v2725 = vunpack.c.l.b16 %v2597
      %v2726 = vpack.c.b16 %v2711, %v2710
      %v2727 = vpack.c.b16 %v2713, %v2712
      %v2728 = vpack.c.b16 %v2715, %v2714
      %v2729 = vpack.c.b16 %v2717, %v2716
      %v2730 = vpack.c.b16 %v2719, %v2718
      %v2731 = vpack.c.b16 %v2721, %v2720
      %v2732 = vpack.c.b16 %v2723, %v2722
      %v2733 = vpack.c.b16 %v2725, %v2724
      %2742 = vmatprep.subr.bf16.mxu0 0
      %2743 = vmatpush1.bf16.msra.mxu0 %v2733
      %2744 = vmatprep.subr.bf16.mxu0 0
      %2745 = vmatpush1.bf16.msra.mxu0 %v2732
      %2746 = vmatprep.subr.bf16.mxu0 0
      %2747 = vmatpush1.bf16.msra.mxu0 %v2731
      %2748 = vmatprep.subr.bf16.mxu0 0
      %2749 = vmatpush1.bf16.msra.mxu0 %v2730
      %2750 = vmatprep.subr.bf16.mxu0 0
      %2751 = vmatpush1.bf16.msra.mxu0 %v2729
      %2752 = vmatprep.subr.bf16.mxu0 0
      %2753 = vmatpush1.bf16.msra.mxu0 %v2728
      %2754 = vmatprep.subr.bf16.mxu0 0
      %2755 = vmatpush1.bf16.msra.mxu0 %v2727
      %2756 = vmatprep.subr.bf16.mxu0 0
      %2757 = vmatpush1.bf16.msra.mxu0 %v2726
      %2758 = vmatprep.subr.bf16.mxu0 0
      %2759 = vmatpush2.bf16.msra.mxu0 0
      %2760 = vmatprep.subr.bf16.mxu0 0
      %2761 = vmatpush2.bf16.msra.mxu0 0
      %2762 = vmatprep.subr.bf16.mxu0 0
      %2763 = vmatpush2.bf16.msra.mxu0 0
      %2764 = vmatprep.subr.bf16.mxu0 0
      %2765 = vmatpush2.bf16.msra.mxu0 0
      %2766 = vmatprep.subr.bf16.mxu0 0
      %2767 = vmatpush2.bf16.msra.mxu0 0
      %2768 = vmatprep.subr.bf16.mxu0 0
      %2769 = vmatpush2.bf16.msra.mxu0 0
      %2770 = vmatprep.subr.bf16.mxu0 0
      %2771 = vmatpush2.bf16.msra.mxu0 0
      %2772 = vmatprep.subr.bf16.mxu0 0
      %2773 = vmatpush2.bf16.msra.mxu0 0
      %2774 = vmatprep.mubr.bf16.mxu0 0
      %2775 = vmatmul.mubr.bf16.gmra.mxu0 %v2662
      %v2776 = vpop.f32.mrf.mxu0
      %v2777 = vadd.f32 0.0, %v2776
      %v2778 = vpop.f32.mrf.mxu0
      %v2779 = vpop.f32.mrf.mxu0
      %v2780 = vadd.f32 0.0, %v2779
      %v2781 = vpop.f32.mrf.mxu0
      %2782 = vmatprep.mubr.bf16.mxu0 0
      %2783 = vmatmul.mubr.bf16.gmra.mxu0 %v2663
      %v2784 = vpop.f32.mrf.mxu0
      %v2785 = vadd.f32 0.0, %v2784
      %v2786 = vpop.f32.mrf.mxu0
      %v2787 = vpop.f32.mrf.mxu0
      %v2788 = vadd.f32 0.0, %v2787
      %v2789 = vpop.f32.mrf.mxu0
      %2790 = vmatprep.mubr.bf16.mxu0 0
      %2791 = vmatmul.mubr.bf16.gmra.mxu0 %v2664
      %v2792 = vpop.f32.mrf.mxu0
      %v2793 = vadd.f32 0.0, %v2792
      %v2794 = vpop.f32.mrf.mxu0
      %v2795 = vpop.f32.mrf.mxu0
      %v2796 = vadd.f32 0.0, %v2795
      %v2797 = vpop.f32.mrf.mxu0
      %2798 = vmatprep.mubr.bf16.mxu0 0
      %2799 = vmatmul.mubr.bf16.gmra.mxu0 %v2665
      %v2800 = vpop.f32.mrf.mxu0
      %v2801 = vadd.f32 0.0, %v2800
      %v2802 = vpop.f32.mrf.mxu0
      %v2803 = vpop.f32.mrf.mxu0
      %v2804 = vadd.f32 0.0, %v2803
      %v2805 = vpop.f32.mrf.mxu0
      %2806 = vmatprep.mubr.bf16.mxu0 0
      %2807 = vmatmul.mubr.bf16.gmra.mxu0 %v2666
      %v2808 = vpop.f32.mrf.mxu0
      %v2809 = vadd.f32 0.0, %v2808
      %v2810 = vpop.f32.mrf.mxu0
      %v2811 = vpop.f32.mrf.mxu0
      %v2812 = vadd.f32 0.0, %v2811
      %v2813 = vpop.f32.mrf.mxu0
      %2814 = vmatprep.mubr.bf16.mxu0 0
      %2815 = vmatmul.mubr.bf16.gmra.mxu0 %v2667
      %v2816 = vpop.f32.mrf.mxu0
      %v2817 = vadd.f32 0.0, %v2816
      %v2818 = vpop.f32.mrf.mxu0
      %v2819 = vpop.f32.mrf.mxu0
      %v2820 = vadd.f32 0.0, %v2819
      %v2821 = vpop.f32.mrf.mxu0
      %2822 = vmatprep.mubr.bf16.mxu0 0
      %2823 = vmatmul.mubr.bf16.gmra.mxu0 %v2668
      %v2824 = vpop.f32.mrf.mxu0
      %v2825 = vadd.f32 0.0, %v2824
      %v2826 = vpop.f32.mrf.mxu0
      %v2827 = vpop.f32.mrf.mxu0
      %v2828 = vadd.f32 0.0, %v2827
      %v2829 = vpop.f32.mrf.mxu0
      %2830 = vmatprep.mubr.bf16.mxu0 0
      %2831 = vmatmul.mubr.bf16.gmra.mxu0 %v2669
      %v2832 = vpop.f32.mrf.mxu0
      %v2833 = vadd.f32 0.0, %v2832
      %v2834 = vpop.f32.mrf.mxu0
      %v2835 = vpop.f32.mrf.mxu0
      %v2836 = vadd.f32 0.0, %v2835
      %v2837 = vpop.f32.mrf.mxu0
      %2838 = vmatprep.mubr.bf16.mxu0 0
      %2839 = vmatmul.mubr.bf16.gmra.mxu0 %v2670
      %v2840 = vpop.f32.mrf.mxu0
      %v2841 = vadd.f32 0.0, %v2840
      %v2842 = vpop.f32.mrf.mxu0
      %v2843 = vpop.f32.mrf.mxu0
      %v2844 = vadd.f32 0.0, %v2843
      %v2845 = vpop.f32.mrf.mxu0
      %2846 = vmatprep.mubr.bf16.mxu0 0
      %2847 = vmatmul.mubr.bf16.gmra.mxu0 %v2671
      %v2848 = vpop.f32.mrf.mxu0
      %v2849 = vadd.f32 0.0, %v2848
      %v2850 = vpop.f32.mrf.mxu0
      %v2851 = vpop.f32.mrf.mxu0
      %v2852 = vadd.f32 0.0, %v2851
      %v2853 = vpop.f32.mrf.mxu0
      %2854 = vmatprep.mubr.bf16.mxu0 0
      %2855 = vmatmul.mubr.bf16.gmra.mxu0 %v2672
      %v2856 = vpop.f32.mrf.mxu0
      %v2857 = vadd.f32 0.0, %v2856
      %v2858 = vpop.f32.mrf.mxu0
      %v2859 = vpop.f32.mrf.mxu0
      %v2860 = vadd.f32 0.0, %v2859
      %v2861 = vpop.f32.mrf.mxu0
      %2862 = vmatprep.mubr.bf16.mxu0 0
      %2863 = vmatmul.mubr.bf16.gmra.mxu0 %v2673
      %v2864 = vpop.f32.mrf.mxu0
      %v2865 = vadd.f32 0.0, %v2864
      %v2866 = vpop.f32.mrf.mxu0
      %v2867 = vpop.f32.mrf.mxu0
      %v2868 = vadd.f32 0.0, %v2867
      %v2869 = vpop.f32.mrf.mxu0
      %2870 = vmatprep.mubr.bf16.mxu0 0
      %2871 = vmatmul.mubr.bf16.gmra.mxu0 %v2674
      %v2872 = vpop.f32.mrf.mxu0
      %v2873 = vadd.f32 0.0, %v2872
      %v2874 = vpop.f32.mrf.mxu0
      %v2875 = vpop.f32.mrf.mxu0
      %v2876 = vadd.f32 0.0, %v2875
      %v2877 = vpop.f32.mrf.mxu0
      %2878 = vmatprep.mubr.bf16.mxu0 0
      %2879 = vmatmul.mubr.bf16.gmra.mxu0 %v2675
      %v2880 = vpop.f32.mrf.mxu0
      %v2881 = vadd.f32 0.0, %v2880
      %v2882 = vpop.f32.mrf.mxu0
      %v2883 = vpop.f32.mrf.mxu0
      %v2884 = vadd.f32 0.0, %v2883
      %v2885 = vpop.f32.mrf.mxu0
      %2886 = vmatprep.mubr.bf16.mxu0 0
      %2887 = vmatmul.mubr.bf16.gmra.mxu0 %v2676
      %v2888 = vpop.f32.mrf.mxu0
      %v2889 = vadd.f32 0.0, %v2888
      %v2890 = vpop.f32.mrf.mxu0
      %v2891 = vpop.f32.mrf.mxu0
      %v2892 = vadd.f32 0.0, %v2891
      %v2893 = vpop.f32.mrf.mxu0
      %2894 = vmatprep.mubr.bf16.mxu0 0
      %2895 = vmatmul.mubr.bf16.gmra.mxu0 %v2677
      %v2896 = vpop.f32.mrf.mxu0
      %v2897 = vadd.f32 0.0, %v2896
      %v2898 = vpop.f32.mrf.mxu0
      %v2899 = vpop.f32.mrf.mxu0
      %v2900 = vadd.f32 0.0, %v2899
      %v2901 = vpop.f32.mrf.mxu0
      %2902 = vdwg.mxu0
      %v2903 = vadd.f32 %v2518, %v2777
      %v2904 = vadd.f32 %v2519, %v2780
      %v2905 = vadd.f32 %v2520, %v2785
      %v2906 = vadd.f32 %v2521, %v2788
      %v2907 = vadd.f32 %v2522, %v2793
      %v2908 = vadd.f32 %v2523, %v2796
      %v2909 = vadd.f32 %v2524, %v2801
      %v2910 = vadd.f32 %v2525, %v2804
      %v2911 = vadd.f32 %v2526, %v2809
      %v2912 = vadd.f32 %v2527, %v2812
      %v2913 = vadd.f32 %v2528, %v2817
      %v2914 = vadd.f32 %v2529, %v2820
      %v2915 = vadd.f32 %v2530, %v2825
      %v2916 = vadd.f32 %v2531, %v2828
      %v2917 = vadd.f32 %v2532, %v2833
      %v2918 = vadd.f32 %v2533, %v2836
      %v2919 = vadd.f32 %v2534, %v2841
      %v2920 = vadd.f32 %v2535, %v2844
      %v2921 = vadd.f32 %v2536, %v2849
      %v2922 = vadd.f32 %v2537, %v2852
      %v2923 = vadd.f32 %v2538, %v2857
      %v2924 = vadd.f32 %v2539, %v2860
      %v2925 = vadd.f32 %v2540, %v2865
      %v2926 = vadd.f32 %v2541, %v2868
      %v2927 = vadd.f32 %v2542, %v2873
      %v2928 = vadd.f32 %v2543, %v2876
      %v2929 = vadd.f32 %v2544, %v2881
      %v2930 = vadd.f32 %v2545, %v2884
      %v2931 = vadd.f32 %v2546, %v2889
      %v2932 = vadd.f32 %v2547, %v2892
      %v2933 = vadd.f32 %v2548, %v2897
      %v2934 = vadd.f32 %v2549, %v2900
      %v2935 = vld [vmem:[%s403] sm:$0xf]
      %v2936 = vld [vmem:[%s403 + $0x4] sm:$0xf]
      %v2937 = vld [vmem:[%s403 + $0x8] sm:$0x1]
      %v2938 = vld [vmem:[%s403 + $0xc] sm:$0xf]
      %v2939 = vld [vmem:[%s403 + $0x10] sm:$0xf]
      %v2940 = vld [vmem:[%s403 + $0x14] sm:$0x1]
      %v2941 = vld [vmem:[%s403 + $0x18] sm:$0xf]
      %v2942 = vld [vmem:[%s403 + $0x1c] sm:$0xf]
      %v2943 = vld [vmem:[%s403 + $0x20] sm:$0x1]
      %v2944 = vld [vmem:[%s403 + $0x24] sm:$0xf]
      %v2945 = vld [vmem:[%s403 + $0x28] sm:$0xf]
      %v2946 = vld [vmem:[%s403 + $0x2c] sm:$0x1]
      %v2947 = vld [vmem:[%s403 + $0x30] sm:$0xf]
      %v2948 = vld [vmem:[%s403 + $0x34] sm:$0xf]
      %v2949 = vld [vmem:[%s403 + $0x38] sm:$0x1]
      %v2950 = vld [vmem:[%s403 + $0x3c] sm:$0xf]
      %v2951 = vld [vmem:[%s403 + $0x40] sm:$0xf]
      %v2952 = vld [vmem:[%s403 + $0x44] sm:$0x1]
      %v2953 = vld [vmem:[%s403 + $0x48] sm:$0xf]
      %v2954 = vld [vmem:[%s403 + $0x4c] sm:$0xf]
      %v2955 = vld [vmem:[%s403 + $0x50] sm:$0x1]
      %v2956 = vld [vmem:[%s403 + $0x54] sm:$0xf]
      %v2957 = vld [vmem:[%s403 + $0x58] sm:$0xf]
      %v2958 = vld [vmem:[%s403 + $0x5c] sm:$0x1]
      %v2959 = vld [vmem:[%s403 + $0x60] sm:$0xf]
      %v2960 = vld [vmem:[%s403 + $0x64] sm:$0xf]
      %v2961 = vld [vmem:[%s403 + $0x68] sm:$0x1]
      %v2962 = vld [vmem:[%s403 + $0x6c] sm:$0xf]
      %v2963 = vld [vmem:[%s403 + $0x70] sm:$0xf]
      %v2964 = vld [vmem:[%s403 + $0x74] sm:$0x1]
      %v2965 = vld [vmem:[%s403 + $0x78] sm:$0xf]
      %v2966 = vld [vmem:[%s403 + $0x7c] sm:$0xf]
      %v2967 = vld [vmem:[%s403 + $0x80] sm:$0x1]
      %v2968 = vld [vmem:[%s403 + $0x84] sm:$0xf]
      %v2969 = vld [vmem:[%s403 + $0x88] sm:$0xf]
      %v2970 = vld [vmem:[%s403 + $0x8c] sm:$0x1]
      %v2971 = vld [vmem:[%s403 + $0x90] sm:$0xf]
      %v2972 = vld [vmem:[%s403 + $0x94] sm:$0xf]
      %v2973 = vld [vmem:[%s403 + $0x98] sm:$0x1]
      %v2974 = vld [vmem:[%s403 + $0x9c] sm:$0xf]
      %v2975 = vld [vmem:[%s403 + $0xa0] sm:$0xf]
      %v2976 = vld [vmem:[%s403 + $0xa4] sm:$0x1]
      %v2977 = vld [vmem:[%s403 + $0xa8] sm:$0xf]
      %v2978 = vld [vmem:[%s403 + $0xac] sm:$0xf]
      %v2979 = vld [vmem:[%s403 + $0xb0] sm:$0x1]
      %v2980 = vld [vmem:[%s403 + $0xb4] sm:$0xf]
      %v2981 = vld [vmem:[%s403 + $0xb8] sm:$0xf]
      %v2982 = vld [vmem:[%s403 + $0xbc] sm:$0x1]
      %v2984 = vshrl.u32 %v2935, 16
      %v2986 = vrot.slane %v2984, 4
      %v2987 = vshll.u32 %v2935, 16
      %v2989 = vrot.slane %v2987, 5
      %v2990 = vor.u32 %v2986, %v2989
      %v2991 = vrot.slane %v2990, 4
      %v2993 = vshll.u32 %v2936, 16
      %v2995 = vrot.slane %v2993, 5
      %v2996 = vsel %vm1087, %v2991, %v2995
      %v2997 = vshrl.u32 %v2936, 16
      %v2999 = vrot.slane %v2997, 4
      %v3000 = vor.u32 %v2999, %v2995
      %v3001 = vrot.slane %v3000, 4
      %v3003 = vshll.u32 %v2937, 16
      %v3005 = vrot.slane %v3003, 5
      %v3006 = vsel %vm1087, %v3001, %v3005
      %v3008 = vshrl.u32 %v2938, 16
      %v3010 = vrot.slane %v3008, 4
      %v3011 = vshll.u32 %v2938, 16
      %v3013 = vrot.slane %v3011, 5
      %v3014 = vor.u32 %v3010, %v3013
      %v3015 = vrot.slane %v3014, 4
      %v3017 = vshll.u32 %v2939, 16
      %v3019 = vrot.slane %v3017, 5
      %v3020 = vsel %vm1087, %v3015, %v3019
      %v3021 = vshrl.u32 %v2939, 16
      %v3023 = vrot.slane %v3021, 4
      %v3024 = vor.u32 %v3023, %v3019
      %v3025 = vrot.slane %v3024, 4
      %v3027 = vshll.u32 %v2940, 16
      %v3029 = vrot.slane %v3027, 5
      %v3030 = vsel %vm1087, %v3025, %v3029
      %v3032 = vshrl.u32 %v2941, 16
      %v3034 = vrot.slane %v3032, 4
      %v3035 = vshll.u32 %v2941, 16
      %v3037 = vrot.slane %v3035, 5
      %v3038 = vor.u32 %v3034, %v3037
      %v3039 = vrot.slane %v3038, 4
      %v3041 = vshll.u32 %v2942, 16
      %v3043 = vrot.slane %v3041, 5
      %v3044 = vsel %vm1087, %v3039, %v3043
      %v3045 = vshrl.u32 %v2942, 16
      %v3047 = vrot.slane %v3045, 4
      %v3048 = vor.u32 %v3047, %v3043
      %v3049 = vrot.slane %v3048, 4
      %v3051 = vshll.u32 %v2943, 16
      %v3053 = vrot.slane %v3051, 5
      %v3054 = vsel %vm1087, %v3049, %v3053
      %v3056 = vshrl.u32 %v2944, 16
      %v3058 = vrot.slane %v3056, 4
      %v3059 = vshll.u32 %v2944, 16
      %v3061 = vrot.slane %v3059, 5
      %v3062 = vor.u32 %v3058, %v3061
      %v3063 = vrot.slane %v3062, 4
      %v3065 = vshll.u32 %v2945, 16
      %v3067 = vrot.slane %v3065, 5
      %v3068 = vsel %vm1087, %v3063, %v3067
      %v3069 = vshrl.u32 %v2945, 16
      %v3071 = vrot.slane %v3069, 4
      %v3072 = vor.u32 %v3071, %v3067
      %v3073 = vrot.slane %v3072, 4
      %v3075 = vshll.u32 %v2946, 16
      %v3077 = vrot.slane %v3075, 5
      %v3078 = vsel %vm1087, %v3073, %v3077
      %v3080 = vshrl.u32 %v2947, 16
      %v3082 = vrot.slane %v3080, 4
      %v3083 = vshll.u32 %v2947, 16
      %v3085 = vrot.slane %v3083, 5
      %v3086 = vor.u32 %v3082, %v3085
      %v3087 = vrot.slane %v3086, 4
      %v3089 = vshll.u32 %v2948, 16
      %v3091 = vrot.slane %v3089, 5
      %v3092 = vsel %vm1087, %v3087, %v3091
      %v3093 = vshrl.u32 %v2948, 16
      %v3095 = vrot.slane %v3093, 4
      %v3096 = vor.u32 %v3095, %v3091
      %v3097 = vrot.slane %v3096, 4
      %v3099 = vshll.u32 %v2949, 16
      %v3101 = vrot.slane %v3099, 5
      %v3102 = vsel %vm1087, %v3097, %v3101
      %v3104 = vshrl.u32 %v2950, 16
      %v3106 = vrot.slane %v3104, 4
      %v3107 = vshll.u32 %v2950, 16
      %v3109 = vrot.slane %v3107, 5
      %v3110 = vor.u32 %v3106, %v3109
      %v3111 = vrot.slane %v3110, 4
      %v3113 = vshll.u32 %v2951, 16
      %v3115 = vrot.slane %v3113, 5
      %v3116 = vsel %vm1087, %v3111, %v3115
      %v3117 = vshrl.u32 %v2951, 16
      %v3119 = vrot.slane %v3117, 4
      %v3120 = vor.u32 %v3119, %v3115
      %v3121 = vrot.slane %v3120, 4
      %v3123 = vshll.u32 %v2952, 16
      %v3125 = vrot.slane %v3123, 5
      %v3126 = vsel %vm1087, %v3121, %v3125
      %v3128 = vshrl.u32 %v2953, 16
      %v3130 = vrot.slane %v3128, 4
      %v3131 = vshll.u32 %v2953, 16
      %v3133 = vrot.slane %v3131, 5
      %v3134 = vor.u32 %v3130, %v3133
      %v3135 = vrot.slane %v3134, 4
      %v3137 = vshll.u32 %v2954, 16
      %v3139 = vrot.slane %v3137, 5
      %v3140 = vsel %vm1087, %v3135, %v3139
      %v3141 = vshrl.u32 %v2954, 16
      %v3143 = vrot.slane %v3141, 4
      %v3144 = vor.u32 %v3143, %v3139
      %v3145 = vrot.slane %v3144, 4
      %v3147 = vshll.u32 %v2955, 16
      %v3149 = vrot.slane %v3147, 5
      %v3150 = vsel %vm1087, %v3145, %v3149
      %v3152 = vshrl.u32 %v2956, 16
      %v3154 = vrot.slane %v3152, 4
      %v3155 = vshll.u32 %v2956, 16
      %v3157 = vrot.slane %v3155, 5
      %v3158 = vor.u32 %v3154, %v3157
      %v3159 = vrot.slane %v3158, 4
      %v3161 = vshll.u32 %v2957, 16
      %v3163 = vrot.slane %v3161, 5
      %v3164 = vsel %vm1087, %v3159, %v3163
      %v3165 = vshrl.u32 %v2957, 16
      %v3167 = vrot.slane %v3165, 4
      %v3168 = vor.u32 %v3167, %v3163
      %v3169 = vrot.slane %v3168, 4
      %v3171 = vshll.u32 %v2958, 16
      %v3173 = vrot.slane %v3171, 5
      %v3174 = vsel %vm1087, %v3169, %v3173
      %v3176 = vshrl.u32 %v2959, 16
      %v3178 = vrot.slane %v3176, 4
      %v3179 = vshll.u32 %v2959, 16
      %v3181 = vrot.slane %v3179, 5
      %v3182 = vor.u32 %v3178, %v3181
      %v3183 = vrot.slane %v3182, 4
      %v3185 = vshll.u32 %v2960, 16
      %v3187 = vrot.slane %v3185, 5
      %v3188 = vsel %vm1087, %v3183, %v3187
      %v3189 = vshrl.u32 %v2960, 16
      %v3191 = vrot.slane %v3189, 4
      %v3192 = vor.u32 %v3191, %v3187
      %v3193 = vrot.slane %v3192, 4
      %v3195 = vshll.u32 %v2961, 16
      %v3197 = vrot.slane %v3195, 5
      %v3198 = vsel %vm1087, %v3193, %v3197
      %v3200 = vshrl.u32 %v2962, 16
      %v3202 = vrot.slane %v3200, 4
      %v3203 = vshll.u32 %v2962, 16
      %v3205 = vrot.slane %v3203, 5
      %v3206 = vor.u32 %v3202, %v3205
      %v3207 = vrot.slane %v3206, 4
      %v3209 = vshll.u32 %v2963, 16
      %v3211 = vrot.slane %v3209, 5
      %v3212 = vsel %vm1087, %v3207, %v3211
      %v3213 = vshrl.u32 %v2963, 16
      %v3215 = vrot.slane %v3213, 4
      %v3216 = vor.u32 %v3215, %v3211
      %v3217 = vrot.slane %v3216, 4
      %v3219 = vshll.u32 %v2964, 16
      %v3221 = vrot.slane %v3219, 5
      %v3222 = vsel %vm1087, %v3217, %v3221
      %v3224 = vshrl.u32 %v2965, 16
      %v3226 = vrot.slane %v3224, 4
      %v3227 = vshll.u32 %v2965, 16
      %v3229 = vrot.slane %v3227, 5
      %v3230 = vor.u32 %v3226, %v3229
      %v3231 = vrot.slane %v3230, 4
      %v3233 = vshll.u32 %v2966, 16
      %v3235 = vrot.slane %v3233, 5
      %v3236 = vsel %vm1087, %v3231, %v3235
      %v3237 = vshrl.u32 %v2966, 16
      %v3239 = vrot.slane %v3237, 4
      %v3240 = vor.u32 %v3239, %v3235
      %v3241 = vrot.slane %v3240, 4
      %v3243 = vshll.u32 %v2967, 16
      %v3245 = vrot.slane %v3243, 5
      %v3246 = vsel %vm1087, %v3241, %v3245
      %v3248 = vshrl.u32 %v2968, 16
      %v3250 = vrot.slane %v3248, 4
      %v3251 = vshll.u32 %v2968, 16
      %v3253 = vrot.slane %v3251, 5
      %v3254 = vor.u32 %v3250, %v3253
      %v3255 = vrot.slane %v3254, 4
      %v3257 = vshll.u32 %v2969, 16
      %v3259 = vrot.slane %v3257, 5
      %v3260 = vsel %vm1087, %v3255, %v3259
      %v3261 = vshrl.u32 %v2969, 16
      %v3263 = vrot.slane %v3261, 4
      %v3264 = vor.u32 %v3263, %v3259
      %v3265 = vrot.slane %v3264, 4
      %v3267 = vshll.u32 %v2970, 16
      %v3269 = vrot.slane %v3267, 5
      %v3270 = vsel %vm1087, %v3265, %v3269
      %v3272 = vshrl.u32 %v2971, 16
      %v3274 = vrot.slane %v3272, 4
      %v3275 = vshll.u32 %v2971, 16
      %v3277 = vrot.slane %v3275, 5
      %v3278 = vor.u32 %v3274, %v3277
      %v3279 = vrot.slane %v3278, 4
      %v3281 = vshll.u32 %v2972, 16
      %v3283 = vrot.slane %v3281, 5
      %v3284 = vsel %vm1087, %v3279, %v3283
      %v3285 = vshrl.u32 %v2972, 16
      %v3287 = vrot.slane %v3285, 4
      %v3288 = vor.u32 %v3287, %v3283
      %v3289 = vrot.slane %v3288, 4
      %v3291 = vshll.u32 %v2973, 16
      %v3293 = vrot.slane %v3291, 5
      %v3294 = vsel %vm1087, %v3289, %v3293
      %v3296 = vshrl.u32 %v2974, 16
      %v3298 = vrot.slane %v3296, 4
      %v3299 = vshll.u32 %v2974, 16
      %v3301 = vrot.slane %v3299, 5
      %v3302 = vor.u32 %v3298, %v3301
      %v3303 = vrot.slane %v3302, 4
      %v3305 = vshll.u32 %v2975, 16
      %v3307 = vrot.slane %v3305, 5
      %v3308 = vsel %vm1087, %v3303, %v3307
      %v3309 = vshrl.u32 %v2975, 16
      %v3311 = vrot.slane %v3309, 4
      %v3312 = vor.u32 %v3311, %v3307
      %v3313 = vrot.slane %v3312, 4
      %v3315 = vshll.u32 %v2976, 16
      %v3317 = vrot.slane %v3315, 5
      %v3318 = vsel %vm1087, %v3313, %v3317
      %v3320 = vshrl.u32 %v2977, 16
      %v3322 = vrot.slane %v3320, 4
      %v3323 = vshll.u32 %v2977, 16
      %v3325 = vrot.slane %v3323, 5
      %v3326 = vor.u32 %v3322, %v3325
      %v3327 = vrot.slane %v3326, 4
      %v3329 = vshll.u32 %v2978, 16
      %v3331 = vrot.slane %v3329, 5
      %v3332 = vsel %vm1087, %v3327, %v3331
      %v3333 = vshrl.u32 %v2978, 16
      %v3335 = vrot.slane %v3333, 4
      %v3336 = vor.u32 %v3335, %v3331
      %v3337 = vrot.slane %v3336, 4
      %v3339 = vshll.u32 %v2979, 16
      %v3341 = vrot.slane %v3339, 5
      %v3342 = vsel %vm1087, %v3337, %v3341
      %v3344 = vshrl.u32 %v2980, 16
      %v3346 = vrot.slane %v3344, 4
      %v3347 = vshll.u32 %v2980, 16
      %v3349 = vrot.slane %v3347, 5
      %v3350 = vor.u32 %v3346, %v3349
      %v3351 = vrot.slane %v3350, 4
      %v3353 = vshll.u32 %v2981, 16
      %v3355 = vrot.slane %v3353, 5
      %v3356 = vsel %vm1087, %v3351, %v3355
      %v3357 = vshrl.u32 %v2981, 16
      %v3359 = vrot.slane %v3357, 4
      %v3360 = vor.u32 %v3359, %v3355
      %v3361 = vrot.slane %v3360, 4
      %v3363 = vshll.u32 %v2982, 16
      %v3365 = vrot.slane %v3363, 5
      %v3366 = vsel %vm1087, %v3361, %v3365
      %v3367 = vld [vmem:[%s2 + $0x100] sm:$0xf]
      %v3368 = vld [vmem:[%s2 + $0x104] sm:$0xf]
      %v3369 = vld [vmem:[%s2 + $0x108] sm:$0xf]
      %v3370 = vld [vmem:[%s2 + $0x10c] sm:$0xf]
      %v3371 = vld [vmem:[%s2 + $0x110] sm:$0xf]
      %v3372 = vld [vmem:[%s2 + $0x114] sm:$0xf]
      %v3373 = vld [vmem:[%s2 + $0x118] sm:$0xf]
      %v3374 = vld [vmem:[%s2 + $0x11c] sm:$0xf]
      %v3375 = vld [vmem:[%s2 + $0x120] sm:$0xf]
      %v3376 = vld [vmem:[%s2 + $0x124] sm:$0xf]
      %v3377 = vld [vmem:[%s2 + $0x128] sm:$0xf]
      %v3378 = vld [vmem:[%s2 + $0x12c] sm:$0xf]
      %v3379 = vld [vmem:[%s2 + $0x130] sm:$0xf]
      %v3380 = vld [vmem:[%s2 + $0x134] sm:$0xf]
      %v3381 = vld [vmem:[%s2 + $0x138] sm:$0xf]
      %v3382 = vld [vmem:[%s2 + $0x13c] sm:$0xf]
      %v3383 = vunpack.c.l.b16 %v2996
      %v3384 = vunpack.c.l.b16 %v3006
      %v3385 = vunpack.c.l.b16 %v3020
      %v3386 = vunpack.c.l.b16 %v3030
      %v3387 = vunpack.c.l.b16 %v3044
      %v3388 = vunpack.c.l.b16 %v3054
      %v3389 = vunpack.c.l.b16 %v3068
      %v3390 = vunpack.c.l.b16 %v3078
      %v3391 = vunpack.c.l.b16 %v3092
      %v3392 = vunpack.c.l.b16 %v3102
      %v3393 = vunpack.c.l.b16 %v3116
      %v3394 = vunpack.c.l.b16 %v3126
      %v3395 = vunpack.c.l.b16 %v3140
      %v3396 = vunpack.c.l.b16 %v3150
      %v3397 = vunpack.c.l.b16 %v3164
      %v3398 = vunpack.c.l.b16 %v3174
      %v3399 = vunpack.c.l.b16 %v3188
      %v3400 = vunpack.c.l.b16 %v3198
      %v3401 = vunpack.c.l.b16 %v3212
      %v3402 = vunpack.c.l.b16 %v3222
      %v3403 = vunpack.c.l.b16 %v3236
      %v3404 = vunpack.c.l.b16 %v3246
      %v3405 = vunpack.c.l.b16 %v3260
      %v3406 = vunpack.c.l.b16 %v3270
      %v3407 = vunpack.c.l.b16 %v3284
      %v3408 = vunpack.c.l.b16 %v3294
      %v3409 = vunpack.c.l.b16 %v3308
      %v3410 = vunpack.c.l.b16 %v3318
      %v3411 = vunpack.c.l.b16 %v3332
      %v3412 = vunpack.c.l.b16 %v3342
      %v3413 = vunpack.c.l.b16 %v3356
      %v3414 = vunpack.c.l.b16 %v3366
      %v3415 = vpack.c.b16 %v3384, %v3383
      %v3416 = vpack.c.b16 %v3386, %v3385
      %v3417 = vpack.c.b16 %v3388, %v3387
      %v3418 = vpack.c.b16 %v3390, %v3389
      %v3419 = vpack.c.b16 %v3392, %v3391
      %v3420 = vpack.c.b16 %v3394, %v3393
      %v3421 = vpack.c.b16 %v3396, %v3395
      %v3422 = vpack.c.b16 %v3398, %v3397
      %v3423 = vpack.c.b16 %v3400, %v3399
      %v3424 = vpack.c.b16 %v3402, %v3401
      %v3425 = vpack.c.b16 %v3404, %v3403
      %v3426 = vpack.c.b16 %v3406, %v3405
      %v3427 = vpack.c.b16 %v3408, %v3407
      %v3428 = vpack.c.b16 %v3410, %v3409
      %v3429 = vpack.c.b16 %v3412, %v3411
      %v3430 = vpack.c.b16 %v3414, %v3413
      %v3463 = vunpack.c.l.b16 %v3367
      %v3464 = vunpack.c.l.b16 %v3368
      %v3465 = vunpack.c.l.b16 %v3369
      %v3466 = vunpack.c.l.b16 %v3370
      %v3467 = vunpack.c.l.b16 %v3371
      %v3468 = vunpack.c.l.b16 %v3372
      %v3469 = vunpack.c.l.b16 %v3373
      %v3470 = vunpack.c.l.b16 %v3374
      %v3471 = vunpack.c.l.b16 %v3375
      %v3472 = vunpack.c.l.b16 %v3376
      %v3473 = vunpack.c.l.b16 %v3377
      %v3474 = vunpack.c.l.b16 %v3378
      %v3475 = vunpack.c.l.b16 %v3379
      %v3476 = vunpack.c.l.b16 %v3380
      %v3477 = vunpack.c.l.b16 %v3381
      %v3478 = vunpack.c.l.b16 %v3382
      %v3479 = vpack.c.b16 %v3464, %v3463
      %v3480 = vpack.c.b16 %v3466, %v3465
      %v3481 = vpack.c.b16 %v3468, %v3467
      %v3482 = vpack.c.b16 %v3470, %v3469
      %v3483 = vpack.c.b16 %v3472, %v3471
      %v3484 = vpack.c.b16 %v3474, %v3473
      %v3485 = vpack.c.b16 %v3476, %v3475
      %v3486 = vpack.c.b16 %v3478, %v3477
      %3495 = vmatprep.subr.bf16.mxu0 0
      %3496 = vmatpush1.bf16.msra.mxu0 %v3486
      %3497 = vmatprep.subr.bf16.mxu0 0
      %3498 = vmatpush1.bf16.msra.mxu0 %v3485
      %3499 = vmatprep.subr.bf16.mxu0 0
      %3500 = vmatpush1.bf16.msra.mxu0 %v3484
      %3501 = vmatprep.subr.bf16.mxu0 0
      %3502 = vmatpush1.bf16.msra.mxu0 %v3483
      %3503 = vmatprep.subr.bf16.mxu0 0
      %3504 = vmatpush1.bf16.msra.mxu0 %v3482
      %3505 = vmatprep.subr.bf16.mxu0 0
      %3506 = vmatpush1.bf16.msra.mxu0 %v3481
      %3507 = vmatprep.subr.bf16.mxu0 0
      %3508 = vmatpush1.bf16.msra.mxu0 %v3480
      %3509 = vmatprep.subr.bf16.mxu0 0
      %3510 = vmatpush1.bf16.msra.mxu0 %v3479
      %3511 = vmatprep.subr.bf16.mxu0 0
      %3512 = vmatpush2.bf16.msra.mxu0 0
      %3513 = vmatprep.subr.bf16.mxu0 0
      %3514 = vmatpush2.bf16.msra.mxu0 0
      %3515 = vmatprep.subr.bf16.mxu0 0
      %3516 = vmatpush2.bf16.msra.mxu0 0
      %3517 = vmatprep.subr.bf16.mxu0 0
      %3518 = vmatpush2.bf16.msra.mxu0 0
      %3519 = vmatprep.subr.bf16.mxu0 0
      %3520 = vmatpush2.bf16.msra.mxu0 0
      %3521 = vmatprep.subr.bf16.mxu0 0
      %3522 = vmatpush2.bf16.msra.mxu0 0
      %3523 = vmatprep.subr.bf16.mxu0 0
      %3524 = vmatpush2.bf16.msra.mxu0 0
      %3525 = vmatprep.subr.bf16.mxu0 0
      %3526 = vmatpush2.bf16.msra.mxu0 0
      %3527 = vmatprep.mubr.bf16.mxu0 0
      %3528 = vmatmul.mubr.bf16.gmra.mxu0 %v3415
      %v3529 = vpop.f32.mrf.mxu0
      %v3530 = vadd.f32 0.0, %v3529
      %v3531 = vpop.f32.mrf.mxu0
      %v3532 = vpop.f32.mrf.mxu0
      %v3533 = vadd.f32 0.0, %v3532
      %v3534 = vpop.f32.mrf.mxu0
      %3535 = vmatprep.mubr.bf16.mxu0 0
      %3536 = vmatmul.mubr.bf16.gmra.mxu0 %v3416
      %v3537 = vpop.f32.mrf.mxu0
      %v3538 = vadd.f32 0.0, %v3537
      %v3539 = vpop.f32.mrf.mxu0
      %v3540 = vpop.f32.mrf.mxu0
      %v3541 = vadd.f32 0.0, %v3540
      %v3542 = vpop.f32.mrf.mxu0
      %3543 = vmatprep.mubr.bf16.mxu0 0
      %3544 = vmatmul.mubr.bf16.gmra.mxu0 %v3417
      %v3545 = vpop.f32.mrf.mxu0
      %v3546 = vadd.f32 0.0, %v3545
      %v3547 = vpop.f32.mrf.mxu0
      %v3548 = vpop.f32.mrf.mxu0
      %v3549 = vadd.f32 0.0, %v3548
      %v3550 = vpop.f32.mrf.mxu0
      %3551 = vmatprep.mubr.bf16.mxu0 0
      %3552 = vmatmul.mubr.bf16.gmra.mxu0 %v3418
      %v3553 = vpop.f32.mrf.mxu0
      %v3554 = vadd.f32 0.0, %v3553
      %v3555 = vpop.f32.mrf.mxu0
      %v3556 = vpop.f32.mrf.mxu0
      %v3557 = vadd.f32 0.0, %v3556
      %v3558 = vpop.f32.mrf.mxu0
      %3559 = vmatprep.mubr.bf16.mxu0 0
      %3560 = vmatmul.mubr.bf16.gmra.mxu0 %v3419
      %v3561 = vpop.f32.mrf.mxu0
      %v3562 = vadd.f32 0.0, %v3561
      %v3563 = vpop.f32.mrf.mxu0
      %v3564 = vpop.f32.mrf.mxu0
      %v3565 = vadd.f32 0.0, %v3564
      %v3566 = vpop.f32.mrf.mxu0
      %3567 = vmatprep.mubr.bf16.mxu0 0
      %3568 = vmatmul.mubr.bf16.gmra.mxu0 %v3420
      %v3569 = vpop.f32.mrf.mxu0
      %v3570 = vadd.f32 0.0, %v3569
      %v3571 = vpop.f32.mrf.mxu0
      %v3572 = vpop.f32.mrf.mxu0
      %v3573 = vadd.f32 0.0, %v3572
      %v3574 = vpop.f32.mrf.mxu0
      %3575 = vmatprep.mubr.bf16.mxu0 0
      %3576 = vmatmul.mubr.bf16.gmra.mxu0 %v3421
      %v3577 = vpop.f32.mrf.mxu0
      %v3578 = vadd.f32 0.0, %v3577
      %v3579 = vpop.f32.mrf.mxu0
      %v3580 = vpop.f32.mrf.mxu0
      %v3581 = vadd.f32 0.0, %v3580
      %v3582 = vpop.f32.mrf.mxu0
      %3583 = vmatprep.mubr.bf16.mxu0 0
      %3584 = vmatmul.mubr.bf16.gmra.mxu0 %v3422
      %v3585 = vpop.f32.mrf.mxu0
      %v3586 = vadd.f32 0.0, %v3585
      %v3587 = vpop.f32.mrf.mxu0
      %v3588 = vpop.f32.mrf.mxu0
      %v3589 = vadd.f32 0.0, %v3588
      %v3590 = vpop.f32.mrf.mxu0
      %3591 = vmatprep.mubr.bf16.mxu0 0
      %3592 = vmatmul.mubr.bf16.gmra.mxu0 %v3423
      %v3593 = vpop.f32.mrf.mxu0
      %v3594 = vadd.f32 0.0, %v3593
      %v3595 = vpop.f32.mrf.mxu0
      %v3596 = vpop.f32.mrf.mxu0
      %v3597 = vadd.f32 0.0, %v3596
      %v3598 = vpop.f32.mrf.mxu0
      %3599 = vmatprep.mubr.bf16.mxu0 0
      %3600 = vmatmul.mubr.bf16.gmra.mxu0 %v3424
      %v3601 = vpop.f32.mrf.mxu0
      %v3602 = vadd.f32 0.0, %v3601
      %v3603 = vpop.f32.mrf.mxu0
      %v3604 = vpop.f32.mrf.mxu0
      %v3605 = vadd.f32 0.0, %v3604
      %v3606 = vpop.f32.mrf.mxu0
      %3607 = vmatprep.mubr.bf16.mxu0 0
      %3608 = vmatmul.mubr.bf16.gmra.mxu0 %v3425
      %v3609 = vpop.f32.mrf.mxu0
      %v3610 = vadd.f32 0.0, %v3609
      %v3611 = vpop.f32.mrf.mxu0
      %v3612 = vpop.f32.mrf.mxu0
      %v3613 = vadd.f32 0.0, %v3612
      %v3614 = vpop.f32.mrf.mxu0
      %3615 = vmatprep.mubr.bf16.mxu0 0
      %3616 = vmatmul.mubr.bf16.gmra.mxu0 %v3426
      %v3617 = vpop.f32.mrf.mxu0
      %v3618 = vadd.f32 0.0, %v3617
      %v3619 = vpop.f32.mrf.mxu0
      %v3620 = vpop.f32.mrf.mxu0
      %v3621 = vadd.f32 0.0, %v3620
      %v3622 = vpop.f32.mrf.mxu0
      %3623 = vmatprep.mubr.bf16.mxu0 0
      %3624 = vmatmul.mubr.bf16.gmra.mxu0 %v3427
      %v3625 = vpop.f32.mrf.mxu0
      %v3626 = vadd.f32 0.0, %v3625
      %v3627 = vpop.f32.mrf.mxu0
      %v3628 = vpop.f32.mrf.mxu0
      %v3629 = vadd.f32 0.0, %v3628
      %v3630 = vpop.f32.mrf.mxu0
      %3631 = vmatprep.mubr.bf16.mxu0 0
      %3632 = vmatmul.mubr.bf16.gmra.mxu0 %v3428
      %v3633 = vpop.f32.mrf.mxu0
      %v3634 = vadd.f32 0.0, %v3633
      %v3635 = vpop.f32.mrf.mxu0
      %v3636 = vpop.f32.mrf.mxu0
      %v3637 = vadd.f32 0.0, %v3636
      %v3638 = vpop.f32.mrf.mxu0
      %3639 = vmatprep.mubr.bf16.mxu0 0
      %3640 = vmatmul.mubr.bf16.gmra.mxu0 %v3429
      %v3641 = vpop.f32.mrf.mxu0
      %v3642 = vadd.f32 0.0, %v3641
      %v3643 = vpop.f32.mrf.mxu0
      %v3644 = vpop.f32.mrf.mxu0
      %v3645 = vadd.f32 0.0, %v3644
      %v3646 = vpop.f32.mrf.mxu0
      %3647 = vmatprep.mubr.bf16.mxu0 0
      %3648 = vmatmul.mubr.bf16.gmra.mxu0 %v3430
      %v3649 = vpop.f32.mrf.mxu0
      %v3650 = vadd.f32 0.0, %v3649
      %v3651 = vpop.f32.mrf.mxu0
      %v3652 = vpop.f32.mrf.mxu0
      %v3653 = vadd.f32 0.0, %v3652
      %v3654 = vpop.f32.mrf.mxu0
      %3655 = vdwg.mxu0
      %v3656 = vadd.f32 %v2903, %v3530
      %v3657 = vadd.f32 %v2904, %v3533
      %v3658 = vadd.f32 %v2905, %v3538
      %v3659 = vadd.f32 %v2906, %v3541
      %v3660 = vadd.f32 %v2907, %v3546
      %v3661 = vadd.f32 %v2908, %v3549
      %v3662 = vadd.f32 %v2909, %v3554
      %v3663 = vadd.f32 %v2910, %v3557
      %v3664 = vadd.f32 %v2911, %v3562
      %v3665 = vadd.f32 %v2912, %v3565
      %v3666 = vadd.f32 %v2913, %v3570
      %v3667 = vadd.f32 %v2914, %v3573
      %v3668 = vadd.f32 %v2915, %v3578
      %v3669 = vadd.f32 %v2916, %v3581
      %v3670 = vadd.f32 %v2917, %v3586
      %v3671 = vadd.f32 %v2918, %v3589
      %v3672 = vadd.f32 %v2919, %v3594
      %v3673 = vadd.f32 %v2920, %v3597
      %v3674 = vadd.f32 %v2921, %v3602
      %v3675 = vadd.f32 %v2922, %v3605
      %v3676 = vadd.f32 %v2923, %v3610
      %v3677 = vadd.f32 %v2924, %v3613
      %v3678 = vadd.f32 %v2925, %v3618
      %v3679 = vadd.f32 %v2926, %v3621
      %v3680 = vadd.f32 %v2927, %v3626
      %v3681 = vadd.f32 %v2928, %v3629
      %v3682 = vadd.f32 %v2929, %v3634
      %v3683 = vadd.f32 %v2930, %v3637
      %v3684 = vadd.f32 %v2931, %v3642
      %v3685 = vadd.f32 %v2932, %v3645
      %v3686 = vadd.f32 %v2933, %v3650
      %v3687 = vadd.f32 %v2934, %v3653
      %v3688 = vld [vmem:[%s403] sm:$0xe]
      %v3689 = vld [vmem:[%s403 + $0xc] sm:$0xe]
      %v3690 = vld [vmem:[%s403 + $0x18] sm:$0xe]
      %v3691 = vld [vmem:[%s403 + $0x24] sm:$0xe]
      %v3692 = vld [vmem:[%s403 + $0x30] sm:$0xe]
      %v3693 = vld [vmem:[%s403 + $0x3c] sm:$0xe]
      %v3694 = vld [vmem:[%s403 + $0x48] sm:$0xe]
      %v3695 = vld [vmem:[%s403 + $0x54] sm:$0xe]
      %v3696 = vld [vmem:[%s403 + $0x60] sm:$0xe]
      %v3697 = vld [vmem:[%s403 + $0x6c] sm:$0xe]
      %v3698 = vld [vmem:[%s403 + $0x78] sm:$0xe]
      %v3699 = vld [vmem:[%s403 + $0x84] sm:$0xe]
      %v3700 = vld [vmem:[%s403 + $0x90] sm:$0xe]
      %v3701 = vld [vmem:[%s403 + $0x9c] sm:$0xe]
      %v3702 = vld [vmem:[%s403 + $0xa8] sm:$0xe]
      %v3703 = vld [vmem:[%s403 + $0xb4] sm:$0xe]
      %v3752 = vrot.slane %v3688, 5
      %v3753 = vrot.slane %v3752, 4
      %v3754 = vrot.slane %v2936, 5
      %v3755 = vsel %vm2116, %v3753, %v3754
      %v3756 = vrot.slane %v3754, 4
      %v3757 = vrot.slane %v2937, 5
      %v3758 = vsel %vm2116, %v3756, %v3757
      %v3759 = vrot.slane %v3689, 5
      %v3760 = vrot.slane %v3759, 4
      %v3761 = vrot.slane %v2939, 5
      %v3762 = vsel %vm2116, %v3760, %v3761
      %v3763 = vrot.slane %v3761, 4
      %v3764 = vrot.slane %v2940, 5
      %v3765 = vsel %vm2116, %v3763, %v3764
      %v3766 = vrot.slane %v3690, 5
      %v3767 = vrot.slane %v3766, 4
      %v3768 = vrot.slane %v2942, 5
      %v3769 = vsel %vm2116, %v3767, %v3768
      %v3770 = vrot.slane %v3768, 4
      %v3771 = vrot.slane %v2943, 5
      %v3772 = vsel %vm2116, %v3770, %v3771
      %v3773 = vrot.slane %v3691, 5
      %v3774 = vrot.slane %v3773, 4
      %v3775 = vrot.slane %v2945, 5
      %v3776 = vsel %vm2116, %v3774, %v3775
      %v3777 = vrot.slane %v3775, 4
      %v3778 = vrot.slane %v2946, 5
      %v3779 = vsel %vm2116, %v3777, %v3778
      %v3780 = vrot.slane %v3692, 5
      %v3781 = vrot.slane %v3780, 4
      %v3782 = vrot.slane %v2948, 5
      %v3783 = vsel %vm2116, %v3781, %v3782
      %v3784 = vrot.slane %v3782, 4
      %v3785 = vrot.slane %v2949, 5
      %v3786 = vsel %vm2116, %v3784, %v3785
      %v3787 = vrot.slane %v3693, 5
      %v3788 = vrot.slane %v3787, 4
      %v3789 = vrot.slane %v2951, 5
      %v3790 = vsel %vm2116, %v3788, %v3789
      %v3791 = vrot.slane %v3789, 4
      %v3792 = vrot.slane %v2952, 5
      %v3793 = vsel %vm2116, %v3791, %v3792
      %v3794 = vrot.slane %v3694, 5
      %v3795 = vrot.slane %v3794, 4
      %v3796 = vrot.slane %v2954, 5
      %v3797 = vsel %vm2116, %v3795, %v3796
      %v3798 = vrot.slane %v3796, 4
      %v3799 = vrot.slane %v2955, 5
      %v3800 = vsel %vm2116, %v3798, %v3799
      %v3801 = vrot.slane %v3695, 5
      %v3802 = vrot.slane %v3801, 4
      %v3803 = vrot.slane %v2957, 5
      %v3804 = vsel %vm2116, %v3802, %v3803
      %v3805 = vrot.slane %v3803, 4
      %v3806 = vrot.slane %v2958, 5
      %v3807 = vsel %vm2116, %v3805, %v3806
      %v3808 = vrot.slane %v3696, 5
      %v3809 = vrot.slane %v3808, 4
      %v3810 = vrot.slane %v2960, 5
      %v3811 = vsel %vm2116, %v3809, %v3810
      %v3812 = vrot.slane %v3810, 4
      %v3813 = vrot.slane %v2961, 5
      %v3814 = vsel %vm2116, %v3812, %v3813
      %v3815 = vrot.slane %v3697, 5
      %v3816 = vrot.slane %v3815, 4
      %v3817 = vrot.slane %v2963, 5
      %v3818 = vsel %vm2116, %v3816, %v3817
      %v3819 = vrot.slane %v3817, 4
      %v3820 = vrot.slane %v2964, 5
      %v3821 = vsel %vm2116, %v3819, %v3820
      %v3822 = vrot.slane %v3698, 5
      %v3823 = vrot.slane %v3822, 4
      %v3824 = vrot.slane %v2966, 5
      %v3825 = vsel %vm2116, %v3823, %v3824
      %v3826 = vrot.slane %v3824, 4
      %v3827 = vrot.slane %v2967, 5
      %v3828 = vsel %vm2116, %v3826, %v3827
      %v3829 = vrot.slane %v3699, 5
      %v3830 = vrot.slane %v3829, 4
      %v3831 = vrot.slane %v2969, 5
      %v3832 = vsel %vm2116, %v3830, %v3831
      %v3833 = vrot.slane %v3831, 4
      %v3834 = vrot.slane %v2970, 5
      %v3835 = vsel %vm2116, %v3833, %v3834
      %v3836 = vrot.slane %v3700, 5
      %v3837 = vrot.slane %v3836, 4
      %v3838 = vrot.slane %v2972, 5
      %v3839 = vsel %vm2116, %v3837, %v3838
      %v3840 = vrot.slane %v3838, 4
      %v3841 = vrot.slane %v2973, 5
      %v3842 = vsel %vm2116, %v3840, %v3841
      %v3843 = vrot.slane %v3701, 5
      %v3844 = vrot.slane %v3843, 4
      %v3845 = vrot.slane %v2975, 5
      %v3846 = vsel %vm2116, %v3844, %v3845
      %v3847 = vrot.slane %v3845, 4
      %v3848 = vrot.slane %v2976, 5
      %v3849 = vsel %vm2116, %v3847, %v3848
      %v3850 = vrot.slane %v3702, 5
      %v3851 = vrot.slane %v3850, 4
      %v3852 = vrot.slane %v2978, 5
      %v3853 = vsel %vm2116, %v3851, %v3852
      %v3854 = vrot.slane %v3852, 4
      %v3855 = vrot.slane %v2979, 5
      %v3856 = vsel %vm2116, %v3854, %v3855
      %v3857 = vrot.slane %v3703, 5
      %v3858 = vrot.slane %v3857, 4
      %v3859 = vrot.slane %v2981, 5
      %v3860 = vsel %vm2116, %v3858, %v3859
      %v3861 = vrot.slane %v3859, 4
      %v3862 = vrot.slane %v2982, 5
      %v3863 = vsel %vm2116, %v3861, %v3862
      %v3864 = vld [vmem:[%s2 + $0x140] sm:$0xf]
      %v3865 = vld [vmem:[%s2 + $0x144] sm:$0xf]
      %v3866 = vld [vmem:[%s2 + $0x148] sm:$0xf]
      %v3867 = vld [vmem:[%s2 + $0x14c] sm:$0xf]
      %v3868 = vld [vmem:[%s2 + $0x150] sm:$0xf]
      %v3869 = vld [vmem:[%s2 + $0x154] sm:$0xf]
      %v3870 = vld [vmem:[%s2 + $0x158] sm:$0xf]
      %v3871 = vld [vmem:[%s2 + $0x15c] sm:$0xf]
      %v3872 = vld [vmem:[%s2 + $0x160] sm:$0xf]
      %v3873 = vld [vmem:[%s2 + $0x164] sm:$0xf]
      %v3874 = vld [vmem:[%s2 + $0x168] sm:$0xf]
      %v3875 = vld [vmem:[%s2 + $0x16c] sm:$0xf]
      %v3876 = vld [vmem:[%s2 + $0x170] sm:$0xf]
      %v3877 = vld [vmem:[%s2 + $0x174] sm:$0xf]
      %v3878 = vld [vmem:[%s2 + $0x178] sm:$0xf]
      %v3879 = vld [vmem:[%s2 + $0x17c] sm:$0xf]
      %v3880 = vunpack.c.l.b16 %v3755
      %v3881 = vunpack.c.l.b16 %v3758
      %v3882 = vunpack.c.l.b16 %v3762
      %v3883 = vunpack.c.l.b16 %v3765
      %v3884 = vunpack.c.l.b16 %v3769
      %v3885 = vunpack.c.l.b16 %v3772
      %v3886 = vunpack.c.l.b16 %v3776
      %v3887 = vunpack.c.l.b16 %v3779
      %v3888 = vunpack.c.l.b16 %v3783
      %v3889 = vunpack.c.l.b16 %v3786
      %v3890 = vunpack.c.l.b16 %v3790
      %v3891 = vunpack.c.l.b16 %v3793
      %v3892 = vunpack.c.l.b16 %v3797
      %v3893 = vunpack.c.l.b16 %v3800
      %v3894 = vunpack.c.l.b16 %v3804
      %v3895 = vunpack.c.l.b16 %v3807
      %v3896 = vunpack.c.l.b16 %v3811
      %v3897 = vunpack.c.l.b16 %v3814
      %v3898 = vunpack.c.l.b16 %v3818
      %v3899 = vunpack.c.l.b16 %v3821
      %v3900 = vunpack.c.l.b16 %v3825
      %v3901 = vunpack.c.l.b16 %v3828
      %v3902 = vunpack.c.l.b16 %v3832
      %v3903 = vunpack.c.l.b16 %v3835
      %v3904 = vunpack.c.l.b16 %v3839
      %v3905 = vunpack.c.l.b16 %v3842
      %v3906 = vunpack.c.l.b16 %v3846
      %v3907 = vunpack.c.l.b16 %v3849
      %v3908 = vunpack.c.l.b16 %v3853
      %v3909 = vunpack.c.l.b16 %v3856
      %v3910 = vunpack.c.l.b16 %v3860
      %v3911 = vunpack.c.l.b16 %v3863
      %v3912 = vpack.c.b16 %v3881, %v3880
      %v3913 = vpack.c.b16 %v3883, %v3882
      %v3914 = vpack.c.b16 %v3885, %v3884
      %v3915 = vpack.c.b16 %v3887, %v3886
      %v3916 = vpack.c.b16 %v3889, %v3888
      %v3917 = vpack.c.b16 %v3891, %v3890
      %v3918 = vpack.c.b16 %v3893, %v3892
      %v3919 = vpack.c.b16 %v3895, %v3894
      %v3920 = vpack.c.b16 %v3897, %v3896
      %v3921 = vpack.c.b16 %v3899, %v3898
      %v3922 = vpack.c.b16 %v3901, %v3900
      %v3923 = vpack.c.b16 %v3903, %v3902
      %v3924 = vpack.c.b16 %v3905, %v3904
      %v3925 = vpack.c.b16 %v3907, %v3906
      %v3926 = vpack.c.b16 %v3909, %v3908
      %v3927 = vpack.c.b16 %v3911, %v3910
      %v3960 = vunpack.c.l.b16 %v3864
      %v3961 = vunpack.c.l.b16 %v3865
      %v3962 = vunpack.c.l.b16 %v3866
      %v3963 = vunpack.c.l.b16 %v3867
      %v3964 = vunpack.c.l.b16 %v3868
      %v3965 = vunpack.c.l.b16 %v3869
      %v3966 = vunpack.c.l.b16 %v3870
      %v3967 = vunpack.c.l.b16 %v3871
      %v3968 = vunpack.c.l.b16 %v3872
      %v3969 = vunpack.c.l.b16 %v3873
      %v3970 = vunpack.c.l.b16 %v3874
      %v3971 = vunpack.c.l.b16 %v3875
      %v3972 = vunpack.c.l.b16 %v3876
      %v3973 = vunpack.c.l.b16 %v3877
      %v3974 = vunpack.c.l.b16 %v3878
      %v3975 = vunpack.c.l.b16 %v3879
      %v3976 = vpack.c.b16 %v3961, %v3960
      %v3977 = vpack.c.b16 %v3963, %v3962
      %v3978 = vpack.c.b16 %v3965, %v3964
      %v3979 = vpack.c.b16 %v3967, %v3966
      %v3980 = vpack.c.b16 %v3969, %v3968
      %v3981 = vpack.c.b16 %v3971, %v3970
      %v3982 = vpack.c.b16 %v3973, %v3972
      %v3983 = vpack.c.b16 %v3975, %v3974
      %3992 = vmatprep.subr.bf16.mxu0 0
      %3993 = vmatpush1.bf16.msra.mxu0 %v3983
      %3994 = vmatprep.subr.bf16.mxu0 0
      %3995 = vmatpush1.bf16.msra.mxu0 %v3982
      %3996 = vmatprep.subr.bf16.mxu0 0
      %3997 = vmatpush1.bf16.msra.mxu0 %v3981
      %3998 = vmatprep.subr.bf16.mxu0 0
      %3999 = vmatpush1.bf16.msra.mxu0 %v3980
      %4000 = vmatprep.subr.bf16.mxu0 0
      %4001 = vmatpush1.bf16.msra.mxu0 %v3979
      %4002 = vmatprep.subr.bf16.mxu0 0
      %4003 = vmatpush1.bf16.msra.mxu0 %v3978
      %4004 = vmatprep.subr.bf16.mxu0 0
      %4005 = vmatpush1.bf16.msra.mxu0 %v3977
      %4006 = vmatprep.subr.bf16.mxu0 0
      %4007 = vmatpush1.bf16.msra.mxu0 %v3976
      %4008 = vmatprep.subr.bf16.mxu0 0
      %4009 = vmatpush2.bf16.msra.mxu0 0
      %4010 = vmatprep.subr.bf16.mxu0 0
      %4011 = vmatpush2.bf16.msra.mxu0 0
      %4012 = vmatprep.subr.bf16.mxu0 0
      %4013 = vmatpush2.bf16.msra.mxu0 0
      %4014 = vmatprep.subr.bf16.mxu0 0
      %4015 = vmatpush2.bf16.msra.mxu0 0
      %4016 = vmatprep.subr.bf16.mxu0 0
      %4017 = vmatpush2.bf16.msra.mxu0 0
      %4018 = vmatprep.subr.bf16.mxu0 0
      %4019 = vmatpush2.bf16.msra.mxu0 0
      %4020 = vmatprep.subr.bf16.mxu0 0
      %4021 = vmatpush2.bf16.msra.mxu0 0
      %4022 = vmatprep.subr.bf16.mxu0 0
      %4023 = vmatpush2.bf16.msra.mxu0 0
      %4024 = vmatprep.mubr.bf16.mxu0 0
      %4025 = vmatmul.mubr.bf16.gmra.mxu0 %v3912
      %v4026 = vpop.f32.mrf.mxu0
      %v4027 = vadd.f32 0.0, %v4026
      %v4028 = vpop.f32.mrf.mxu0
      %v4029 = vpop.f32.mrf.mxu0
      %v4030 = vadd.f32 0.0, %v4029
      %v4031 = vpop.f32.mrf.mxu0
      %4032 = vmatprep.mubr.bf16.mxu0 0
      %4033 = vmatmul.mubr.bf16.gmra.mxu0 %v3913
      %v4034 = vpop.f32.mrf.mxu0
      %v4035 = vadd.f32 0.0, %v4034
      %v4036 = vpop.f32.mrf.mxu0
      %v4037 = vpop.f32.mrf.mxu0
      %v4038 = vadd.f32 0.0, %v4037
      %v4039 = vpop.f32.mrf.mxu0
      %4040 = vmatprep.mubr.bf16.mxu0 0
      %4041 = vmatmul.mubr.bf16.gmra.mxu0 %v3914
      %v4042 = vpop.f32.mrf.mxu0
      %v4043 = vadd.f32 0.0, %v4042
      %v4044 = vpop.f32.mrf.mxu0
      %v4045 = vpop.f32.mrf.mxu0
      %v4046 = vadd.f32 0.0, %v4045
      %v4047 = vpop.f32.mrf.mxu0
      %4048 = vmatprep.mubr.bf16.mxu0 0
      %4049 = vmatmul.mubr.bf16.gmra.mxu0 %v3915
      %v4050 = vpop.f32.mrf.mxu0
      %v4051 = vadd.f32 0.0, %v4050
      %v4052 = vpop.f32.mrf.mxu0
      %v4053 = vpop.f32.mrf.mxu0
      %v4054 = vadd.f32 0.0, %v4053
      %v4055 = vpop.f32.mrf.mxu0
      %4056 = vmatprep.mubr.bf16.mxu0 0
      %4057 = vmatmul.mubr.bf16.gmra.mxu0 %v3916
      %v4058 = vpop.f32.mrf.mxu0
      %v4059 = vadd.f32 0.0, %v4058
      %v4060 = vpop.f32.mrf.mxu0
      %v4061 = vpop.f32.mrf.mxu0
      %v4062 = vadd.f32 0.0, %v4061
      %v4063 = vpop.f32.mrf.mxu0
      %4064 = vmatprep.mubr.bf16.mxu0 0
      %4065 = vmatmul.mubr.bf16.gmra.mxu0 %v3917
      %v4066 = vpop.f32.mrf.mxu0
      %v4067 = vadd.f32 0.0, %v4066
      %v4068 = vpop.f32.mrf.mxu0
      %v4069 = vpop.f32.mrf.mxu0
      %v4070 = vadd.f32 0.0, %v4069
      %v4071 = vpop.f32.mrf.mxu0
      %4072 = vmatprep.mubr.bf16.mxu0 0
      %4073 = vmatmul.mubr.bf16.gmra.mxu0 %v3918
      %v4074 = vpop.f32.mrf.mxu0
      %v4075 = vadd.f32 0.0, %v4074
      %v4076 = vpop.f32.mrf.mxu0
      %v4077 = vpop.f32.mrf.mxu0
      %v4078 = vadd.f32 0.0, %v4077
      %v4079 = vpop.f32.mrf.mxu0
      %4080 = vmatprep.mubr.bf16.mxu0 0
      %4081 = vmatmul.mubr.bf16.gmra.mxu0 %v3919
      %v4082 = vpop.f32.mrf.mxu0
      %v4083 = vadd.f32 0.0, %v4082
      %v4084 = vpop.f32.mrf.mxu0
      %v4085 = vpop.f32.mrf.mxu0
      %v4086 = vadd.f32 0.0, %v4085
      %v4087 = vpop.f32.mrf.mxu0
      %4088 = vmatprep.mubr.bf16.mxu0 0
      %4089 = vmatmul.mubr.bf16.gmra.mxu0 %v3920
      %v4090 = vpop.f32.mrf.mxu0
      %v4091 = vadd.f32 0.0, %v4090
      %v4092 = vpop.f32.mrf.mxu0
      %v4093 = vpop.f32.mrf.mxu0
      %v4094 = vadd.f32 0.0, %v4093
      %v4095 = vpop.f32.mrf.mxu0
      %4096 = vmatprep.mubr.bf16.mxu0 0
      %4097 = vmatmul.mubr.bf16.gmra.mxu0 %v3921
      %v4098 = vpop.f32.mrf.mxu0
      %v4099 = vadd.f32 0.0, %v4098
      %v4100 = vpop.f32.mrf.mxu0
      %v4101 = vpop.f32.mrf.mxu0
      %v4102 = vadd.f32 0.0, %v4101
      %v4103 = vpop.f32.mrf.mxu0
      %4104 = vmatprep.mubr.bf16.mxu0 0
      %4105 = vmatmul.mubr.bf16.gmra.mxu0 %v3922
      %v4106 = vpop.f32.mrf.mxu0
      %v4107 = vadd.f32 0.0, %v4106
      %v4108 = vpop.f32.mrf.mxu0
      %v4109 = vpop.f32.mrf.mxu0
      %v4110 = vadd.f32 0.0, %v4109
      %v4111 = vpop.f32.mrf.mxu0
      %4112 = vmatprep.mubr.bf16.mxu0 0
      %4113 = vmatmul.mubr.bf16.gmra.mxu0 %v3923
      %v4114 = vpop.f32.mrf.mxu0
      %v4115 = vadd.f32 0.0, %v4114
      %v4116 = vpop.f32.mrf.mxu0
      %v4117 = vpop.f32.mrf.mxu0
      %v4118 = vadd.f32 0.0, %v4117
      %v4119 = vpop.f32.mrf.mxu0
      %4120 = vmatprep.mubr.bf16.mxu0 0
      %4121 = vmatmul.mubr.bf16.gmra.mxu0 %v3924
      %v4122 = vpop.f32.mrf.mxu0
      %v4123 = vadd.f32 0.0, %v4122
      %v4124 = vpop.f32.mrf.mxu0
      %v4125 = vpop.f32.mrf.mxu0
      %v4126 = vadd.f32 0.0, %v4125
      %v4127 = vpop.f32.mrf.mxu0
      %4128 = vmatprep.mubr.bf16.mxu0 0
      %4129 = vmatmul.mubr.bf16.gmra.mxu0 %v3925
      %v4130 = vpop.f32.mrf.mxu0
      %v4131 = vadd.f32 0.0, %v4130
      %v4132 = vpop.f32.mrf.mxu0
      %v4133 = vpop.f32.mrf.mxu0
      %v4134 = vadd.f32 0.0, %v4133
      %v4135 = vpop.f32.mrf.mxu0
      %4136 = vmatprep.mubr.bf16.mxu0 0
      %4137 = vmatmul.mubr.bf16.gmra.mxu0 %v3926
      %v4138 = vpop.f32.mrf.mxu0
      %v4139 = vadd.f32 0.0, %v4138
      %v4140 = vpop.f32.mrf.mxu0
      %v4141 = vpop.f32.mrf.mxu0
      %v4142 = vadd.f32 0.0, %v4141
      %v4143 = vpop.f32.mrf.mxu0
      %4144 = vmatprep.mubr.bf16.mxu0 0
      %4145 = vmatmul.mubr.bf16.gmra.mxu0 %v3927
      %v4146 = vpop.f32.mrf.mxu0
      %v4147 = vadd.f32 0.0, %v4146
      %v4148 = vpop.f32.mrf.mxu0
      %v4149 = vpop.f32.mrf.mxu0
      %v4150 = vadd.f32 0.0, %v4149
      %v4151 = vpop.f32.mrf.mxu0
      %4152 = vdwg.mxu0
      %v4153 = vadd.f32 %v3656, %v4027
      %v4154 = vadd.f32 %v3657, %v4030
      %v4155 = vadd.f32 %v3658, %v4035
      %v4156 = vadd.f32 %v3659, %v4038
      %v4157 = vadd.f32 %v3660, %v4043
      %v4158 = vadd.f32 %v3661, %v4046
      %v4159 = vadd.f32 %v3662, %v4051
      %v4160 = vadd.f32 %v3663, %v4054
      %v4161 = vadd.f32 %v3664, %v4059
      %v4162 = vadd.f32 %v3665, %v4062
      %v4163 = vadd.f32 %v3666, %v4067
      %v4164 = vadd.f32 %v3667, %v4070
      %v4165 = vadd.f32 %v3668, %v4075
      %v4166 = vadd.f32 %v3669, %v4078
      %v4167 = vadd.f32 %v3670, %v4083
      %v4168 = vadd.f32 %v3671, %v4086
      %v4169 = vadd.f32 %v3672, %v4091
      %v4170 = vadd.f32 %v3673, %v4094
      %v4171 = vadd.f32 %v3674, %v4099
      %v4172 = vadd.f32 %v3675, %v4102
      %v4173 = vadd.f32 %v3676, %v4107
      %v4174 = vadd.f32 %v3677, %v4110
      %v4175 = vadd.f32 %v3678, %v4115
      %v4176 = vadd.f32 %v3679, %v4118
      %v4177 = vadd.f32 %v3680, %v4123
      %v4178 = vadd.f32 %v3681, %v4126
      %v4179 = vadd.f32 %v3682, %v4131
      %v4180 = vadd.f32 %v3683, %v4134
      %v4181 = vadd.f32 %v3684, %v4139
      %v4182 = vadd.f32 %v3685, %v4142
      %v4183 = vadd.f32 %v3686, %v4147
      %v4184 = vadd.f32 %v3687, %v4150
      %s4185 = scalar_lea.vmem [#allocation2], 24
      %v4186 = vld [vmem:[%s4185] sm:$0xf]
      %v4187 = vld [vmem:[%s4185 + $0x4] sm:$0xf]
      %v4188 = vld [vmem:[%s4185 + $0xc] sm:$0xf]
      %v4189 = vld [vmem:[%s4185 + $0x10] sm:$0xf]
      %v4190 = vld [vmem:[%s4185 + $0x18] sm:$0xf]
      %v4191 = vld [vmem:[%s4185 + $0x1c] sm:$0xf]
      %v4192 = vld [vmem:[%s4185 + $0x24] sm:$0xf]
      %v4193 = vld [vmem:[%s4185 + $0x28] sm:$0xf]
      %v4194 = vld [vmem:[%s4185 + $0x30] sm:$0xf]
      %v4195 = vld [vmem:[%s4185 + $0x34] sm:$0xf]
      %v4196 = vld [vmem:[%s4185 + $0x3c] sm:$0xf]
      %v4197 = vld [vmem:[%s4185 + $0x40] sm:$0xf]
      %v4198 = vld [vmem:[%s4185 + $0x48] sm:$0xf]
      %v4199 = vld [vmem:[%s4185 + $0x4c] sm:$0xf]
      %v4200 = vld [vmem:[%s4185 + $0x54] sm:$0xf]
      %v4201 = vld [vmem:[%s4185 + $0x58] sm:$0xf]
      %v4202 = vld [vmem:[%s4185 + $0x60] sm:$0xf]
      %v4203 = vld [vmem:[%s4185 + $0x64] sm:$0xf]
      %v4204 = vld [vmem:[%s4185 + $0x6c] sm:$0xf]
      %v4205 = vld [vmem:[%s4185 + $0x70] sm:$0xf]
      %v4206 = vld [vmem:[%s4185 + $0x78] sm:$0xf]
      %v4207 = vld [vmem:[%s4185 + $0x7c] sm:$0xf]
      %v4208 = vld [vmem:[%s4185 + $0x84] sm:$0xf]
      %v4209 = vld [vmem:[%s4185 + $0x88] sm:$0xf]
      %v4210 = vld [vmem:[%s4185 + $0x90] sm:$0xf]
      %v4211 = vld [vmem:[%s4185 + $0x94] sm:$0xf]
      %v4212 = vld [vmem:[%s4185 + $0x9c] sm:$0xf]
      %v4213 = vld [vmem:[%s4185 + $0xa0] sm:$0xf]
      %v4214 = vld [vmem:[%s4185 + $0xa8] sm:$0xf]
      %v4215 = vld [vmem:[%s4185 + $0xac] sm:$0xf]
      %v4216 = vld [vmem:[%s4185 + $0xb4] sm:$0xf]
      %v4217 = vld [vmem:[%s4185 + $0xb8] sm:$0xf]
      %v4218 = vld [vmem:[%s2 + $0x180] sm:$0xf]
      %v4219 = vld [vmem:[%s2 + $0x184] sm:$0xf]
      %v4220 = vld [vmem:[%s2 + $0x188] sm:$0xf]
      %v4221 = vld [vmem:[%s2 + $0x18c] sm:$0xf]
      %v4222 = vld [vmem:[%s2 + $0x190] sm:$0xf]
      %v4223 = vld [vmem:[%s2 + $0x194] sm:$0xf]
      %v4224 = vld [vmem:[%s2 + $0x198] sm:$0xf]
      %v4225 = vld [vmem:[%s2 + $0x19c] sm:$0xf]
      %v4226 = vld [vmem:[%s2 + $0x1a0] sm:$0xf]
      %v4227 = vld [vmem:[%s2 + $0x1a4] sm:$0xf]
      %v4228 = vld [vmem:[%s2 + $0x1a8] sm:$0xf]
      %v4229 = vld [vmem:[%s2 + $0x1ac] sm:$0xf]
      %v4230 = vld [vmem:[%s2 + $0x1b0] sm:$0xf]
      %v4231 = vld [vmem:[%s2 + $0x1b4] sm:$0xf]
      %v4232 = vld [vmem:[%s2 + $0x1b8] sm:$0xf]
      %v4233 = vld [vmem:[%s2 + $0x1bc] sm:$0xf]
      %v4266 = vunpack.c.l.b16 %v4186
      %v4267 = vunpack.c.l.b16 %v4187
      %v4268 = vunpack.c.l.b16 %v4188
      %v4269 = vunpack.c.l.b16 %v4189
      %v4270 = vunpack.c.l.b16 %v4190
      %v4271 = vunpack.c.l.b16 %v4191
      %v4272 = vunpack.c.l.b16 %v4192
      %v4273 = vunpack.c.l.b16 %v4193
      %v4274 = vunpack.c.l.b16 %v4194
      %v4275 = vunpack.c.l.b16 %v4195
      %v4276 = vunpack.c.l.b16 %v4196
      %v4277 = vunpack.c.l.b16 %v4197
      %v4278 = vunpack.c.l.b16 %v4198
      %v4279 = vunpack.c.l.b16 %v4199
      %v4280 = vunpack.c.l.b16 %v4200
      %v4281 = vunpack.c.l.b16 %v4201
      %v4282 = vunpack.c.l.b16 %v4202
      %v4283 = vunpack.c.l.b16 %v4203
      %v4284 = vunpack.c.l.b16 %v4204
      %v4285 = vunpack.c.l.b16 %v4205
      %v4286 = vunpack.c.l.b16 %v4206
      %v4287 = vunpack.c.l.b16 %v4207
      %v4288 = vunpack.c.l.b16 %v4208
      %v4289 = vunpack.c.l.b16 %v4209
      %v4290 = vunpack.c.l.b16 %v4210
      %v4291 = vunpack.c.l.b16 %v4211
      %v4292 = vunpack.c.l.b16 %v4212
      %v4293 = vunpack.c.l.b16 %v4213
      %v4294 = vunpack.c.l.b16 %v4214
      %v4295 = vunpack.c.l.b16 %v4215
      %v4296 = vunpack.c.l.b16 %v4216
      %v4297 = vunpack.c.l.b16 %v4217
      %v4298 = vpack.c.b16 %v4267, %v4266
      %v4299 = vpack.c.b16 %v4269, %v4268
      %v4300 = vpack.c.b16 %v4271, %v4270
      %v4301 = vpack.c.b16 %v4273, %v4272
      %v4302 = vpack.c.b16 %v4275, %v4274
      %v4303 = vpack.c.b16 %v4277, %v4276
      %v4304 = vpack.c.b16 %v4279, %v4278
      %v4305 = vpack.c.b16 %v4281, %v4280
      %v4306 = vpack.c.b16 %v4283, %v4282
      %v4307 = vpack.c.b16 %v4285, %v4284
      %v4308 = vpack.c.b16 %v4287, %v4286
      %v4309 = vpack.c.b16 %v4289, %v4288
      %v4310 = vpack.c.b16 %v4291, %v4290
      %v4311 = vpack.c.b16 %v4293, %v4292
      %v4312 = vpack.c.b16 %v4295, %v4294
      %v4313 = vpack.c.b16 %v4297, %v4296
      %v4346 = vunpack.c.l.b16 %v4218
      %v4347 = vunpack.c.l.b16 %v4219
      %v4348 = vunpack.c.l.b16 %v4220
      %v4349 = vunpack.c.l.b16 %v4221
      %v4350 = vunpack.c.l.b16 %v4222
      %v4351 = vunpack.c.l.b16 %v4223
      %v4352 = vunpack.c.l.b16 %v4224
      %v4353 = vunpack.c.l.b16 %v4225
      %v4354 = vunpack.c.l.b16 %v4226
      %v4355 = vunpack.c.l.b16 %v4227
      %v4356 = vunpack.c.l.b16 %v4228
      %v4357 = vunpack.c.l.b16 %v4229
      %v4358 = vunpack.c.l.b16 %v4230
      %v4359 = vunpack.c.l.b16 %v4231
      %v4360 = vunpack.c.l.b16 %v4232
      %v4361 = vunpack.c.l.b16 %v4233
      %v4362 = vpack.c.b16 %v4347, %v4346
      %v4363 = vpack.c.b16 %v4349, %v4348
      %v4364 = vpack.c.b16 %v4351, %v4350
      %v4365 = vpack.c.b16 %v4353, %v4352
      %v4366 = vpack.c.b16 %v4355, %v4354
      %v4367 = vpack.c.b16 %v4357, %v4356
      %v4368 = vpack.c.b16 %v4359, %v4358
      %v4369 = vpack.c.b16 %v4361, %v4360
      %4378 = vmatprep.subr.bf16.mxu0 0
      %4379 = vmatpush1.bf16.msra.mxu0 %v4369
      %4380 = vmatprep.subr.bf16.mxu0 0
      %4381 = vmatpush1.bf16.msra.mxu0 %v4368
      %4382 = vmatprep.subr.bf16.mxu0 0
      %4383 = vmatpush1.bf16.msra.mxu0 %v4367
      %4384 = vmatprep.subr.bf16.mxu0 0
      %4385 = vmatpush1.bf16.msra.mxu0 %v4366
      %4386 = vmatprep.subr.bf16.mxu0 0
      %4387 = vmatpush1.bf16.msra.mxu0 %v4365
      %4388 = vmatprep.subr.bf16.mxu0 0
      %4389 = vmatpush1.bf16.msra.mxu0 %v4364
      %4390 = vmatprep.subr.bf16.mxu0 0
      %4391 = vmatpush1.bf16.msra.mxu0 %v4363
      %4392 = vmatprep.subr.bf16.mxu0 0
      %4393 = vmatpush1.bf16.msra.mxu0 %v4362
      %4394 = vmatprep.subr.bf16.mxu0 0
      %4395 = vmatpush2.bf16.msra.mxu0 0
      %4396 = vmatprep.subr.bf16.mxu0 0
      %4397 = vmatpush2.bf16.msra.mxu0 0
      %4398 = vmatprep.subr.bf16.mxu0 0
      %4399 = vmatpush2.bf16.msra.mxu0 0
      %4400 = vmatprep.subr.bf16.mxu0 0
      %4401 = vmatpush2.bf16.msra.mxu0 0
      %4402 = vmatprep.subr.bf16.mxu0 0
      %4403 = vmatpush2.bf16.msra.mxu0 0
      %4404 = vmatprep.subr.bf16.mxu0 0
      %4405 = vmatpush2.bf16.msra.mxu0 0
      %4406 = vmatprep.subr.bf16.mxu0 0
      %4407 = vmatpush2.bf16.msra.mxu0 0
      %4408 = vmatprep.subr.bf16.mxu0 0
      %4409 = vmatpush2.bf16.msra.mxu0 0
      %4410 = vmatprep.mubr.bf16.mxu0 0
      %4411 = vmatmul.mubr.bf16.gmra.mxu0 %v4298
      %v4412 = vpop.f32.mrf.mxu0
      %v4413 = vadd.f32 0.0, %v4412
      %v4414 = vpop.f32.mrf.mxu0
      %v4415 = vpop.f32.mrf.mxu0
      %v4416 = vadd.f32 0.0, %v4415
      %v4417 = vpop.f32.mrf.mxu0
      %4418 = vmatprep.mubr.bf16.mxu0 0
      %4419 = vmatmul.mubr.bf16.gmra.mxu0 %v4299
      %v4420 = vpop.f32.mrf.mxu0
      %v4421 = vadd.f32 0.0, %v4420
      %v4422 = vpop.f32.mrf.mxu0
      %v4423 = vpop.f32.mrf.mxu0
      %v4424 = vadd.f32 0.0, %v4423
      %v4425 = vpop.f32.mrf.mxu0
      %4426 = vmatprep.mubr.bf16.mxu0 0
      %4427 = vmatmul.mubr.bf16.gmra.mxu0 %v4300
      %v4428 = vpop.f32.mrf.mxu0
      %v4429 = vadd.f32 0.0, %v4428
      %v4430 = vpop.f32.mrf.mxu0
      %v4431 = vpop.f32.mrf.mxu0
      %v4432 = vadd.f32 0.0, %v4431
      %v4433 = vpop.f32.mrf.mxu0
      %4434 = vmatprep.mubr.bf16.mxu0 0
      %4435 = vmatmul.mubr.bf16.gmra.mxu0 %v4301
      %v4436 = vpop.f32.mrf.mxu0
      %v4437 = vadd.f32 0.0, %v4436
      %v4438 = vpop.f32.mrf.mxu0
      %v4439 = vpop.f32.mrf.mxu0
      %v4440 = vadd.f32 0.0, %v4439
      %v4441 = vpop.f32.mrf.mxu0
      %4442 = vmatprep.mubr.bf16.mxu0 0
      %4443 = vmatmul.mubr.bf16.gmra.mxu0 %v4302
      %v4444 = vpop.f32.mrf.mxu0
      %v4445 = vadd.f32 0.0, %v4444
      %v4446 = vpop.f32.mrf.mxu0
      %v4447 = vpop.f32.mrf.mxu0
      %v4448 = vadd.f32 0.0, %v4447
      %v4449 = vpop.f32.mrf.mxu0
      %4450 = vmatprep.mubr.bf16.mxu0 0
      %4451 = vmatmul.mubr.bf16.gmra.mxu0 %v4303
      %v4452 = vpop.f32.mrf.mxu0
      %v4453 = vadd.f32 0.0, %v4452
      %v4454 = vpop.f32.mrf.mxu0
      %v4455 = vpop.f32.mrf.mxu0
      %v4456 = vadd.f32 0.0, %v4455
      %v4457 = vpop.f32.mrf.mxu0
      %4458 = vmatprep.mubr.bf16.mxu0 0
      %4459 = vmatmul.mubr.bf16.gmra.mxu0 %v4304
      %v4460 = vpop.f32.mrf.mxu0
      %v4461 = vadd.f32 0.0, %v4460
      %v4462 = vpop.f32.mrf.mxu0
      %v4463 = vpop.f32.mrf.mxu0
      %v4464 = vadd.f32 0.0, %v4463
      %v4465 = vpop.f32.mrf.mxu0
      %4466 = vmatprep.mubr.bf16.mxu0 0
      %4467 = vmatmul.mubr.bf16.gmra.mxu0 %v4305
      %v4468 = vpop.f32.mrf.mxu0
      %v4469 = vadd.f32 0.0, %v4468
      %v4470 = vpop.f32.mrf.mxu0
      %v4471 = vpop.f32.mrf.mxu0
      %v4472 = vadd.f32 0.0, %v4471
      %v4473 = vpop.f32.mrf.mxu0
      %4474 = vmatprep.mubr.bf16.mxu0 0
      %4475 = vmatmul.mubr.bf16.gmra.mxu0 %v4306
      %v4476 = vpop.f32.mrf.mxu0
      %v4477 = vadd.f32 0.0, %v4476
      %v4478 = vpop.f32.mrf.mxu0
      %v4479 = vpop.f32.mrf.mxu0
      %v4480 = vadd.f32 0.0, %v4479
      %v4481 = vpop.f32.mrf.mxu0
      %4482 = vmatprep.mubr.bf16.mxu0 0
      %4483 = vmatmul.mubr.bf16.gmra.mxu0 %v4307
      %v4484 = vpop.f32.mrf.mxu0
      %v4485 = vadd.f32 0.0, %v4484
      %v4486 = vpop.f32.mrf.mxu0
      %v4487 = vpop.f32.mrf.mxu0
      %v4488 = vadd.f32 0.0, %v4487
      %v4489 = vpop.f32.mrf.mxu0
      %4490 = vmatprep.mubr.bf16.mxu0 0
      %4491 = vmatmul.mubr.bf16.gmra.mxu0 %v4308
      %v4492 = vpop.f32.mrf.mxu0
      %v4493 = vadd.f32 0.0, %v4492
      %v4494 = vpop.f32.mrf.mxu0
      %v4495 = vpop.f32.mrf.mxu0
      %v4496 = vadd.f32 0.0, %v4495
      %v4497 = vpop.f32.mrf.mxu0
      %4498 = vmatprep.mubr.bf16.mxu0 0
      %4499 = vmatmul.mubr.bf16.gmra.mxu0 %v4309
      %v4500 = vpop.f32.mrf.mxu0
      %v4501 = vadd.f32 0.0, %v4500
      %v4502 = vpop.f32.mrf.mxu0
      %v4503 = vpop.f32.mrf.mxu0
      %v4504 = vadd.f32 0.0, %v4503
      %v4505 = vpop.f32.mrf.mxu0
      %4506 = vmatprep.mubr.bf16.mxu0 0
      %4507 = vmatmul.mubr.bf16.gmra.mxu0 %v4310
      %v4508 = vpop.f32.mrf.mxu0
      %v4509 = vadd.f32 0.0, %v4508
      %v4510 = vpop.f32.mrf.mxu0
      %v4511 = vpop.f32.mrf.mxu0
      %v4512 = vadd.f32 0.0, %v4511
      %v4513 = vpop.f32.mrf.mxu0
      %4514 = vmatprep.mubr.bf16.mxu0 0
      %4515 = vmatmul.mubr.bf16.gmra.mxu0 %v4311
      %v4516 = vpop.f32.mrf.mxu0
      %v4517 = vadd.f32 0.0, %v4516
      %v4518 = vpop.f32.mrf.mxu0
      %v4519 = vpop.f32.mrf.mxu0
      %v4520 = vadd.f32 0.0, %v4519
      %v4521 = vpop.f32.mrf.mxu0
      %4522 = vmatprep.mubr.bf16.mxu0 0
      %4523 = vmatmul.mubr.bf16.gmra.mxu0 %v4312
      %v4524 = vpop.f32.mrf.mxu0
      %v4525 = vadd.f32 0.0, %v4524
      %v4526 = vpop.f32.mrf.mxu0
      %v4527 = vpop.f32.mrf.mxu0
      %v4528 = vadd.f32 0.0, %v4527
      %v4529 = vpop.f32.mrf.mxu0
      %4530 = vmatprep.mubr.bf16.mxu0 0
      %4531 = vmatmul.mubr.bf16.gmra.mxu0 %v4313
      %v4532 = vpop.f32.mrf.mxu0
      %v4533 = vadd.f32 0.0, %v4532
      %v4534 = vpop.f32.mrf.mxu0
      %v4535 = vpop.f32.mrf.mxu0
      %v4536 = vadd.f32 0.0, %v4535
      %v4537 = vpop.f32.mrf.mxu0
      %4538 = vdwg.mxu0
      %v4539 = vadd.f32 %v4153, %v4413
      %v4540 = vadd.f32 %v4154, %v4416
      %v4541 = vadd.f32 %v4155, %v4421
      %v4542 = vadd.f32 %v4156, %v4424
      %v4543 = vadd.f32 %v4157, %v4429
      %v4544 = vadd.f32 %v4158, %v4432
      %v4545 = vadd.f32 %v4159, %v4437
      %v4546 = vadd.f32 %v4160, %v4440
      %v4547 = vadd.f32 %v4161, %v4445
      %v4548 = vadd.f32 %v4162, %v4448
      %v4549 = vadd.f32 %v4163, %v4453
      %v4550 = vadd.f32 %v4164, %v4456
      %v4551 = vadd.f32 %v4165, %v4461
      %v4552 = vadd.f32 %v4166, %v4464
      %v4553 = vadd.f32 %v4167, %v4469
      %v4554 = vadd.f32 %v4168, %v4472
      %v4555 = vadd.f32 %v4169, %v4477
      %v4556 = vadd.f32 %v4170, %v4480
      %v4557 = vadd.f32 %v4171, %v4485
      %v4558 = vadd.f32 %v4172, %v4488
      %v4559 = vadd.f32 %v4173, %v4493
      %v4560 = vadd.f32 %v4174, %v4496
      %v4561 = vadd.f32 %v4175, %v4501
      %v4562 = vadd.f32 %v4176, %v4504
      %v4563 = vadd.f32 %v4177, %v4509
      %v4564 = vadd.f32 %v4178, %v4512
      %v4565 = vadd.f32 %v4179, %v4517
      %v4566 = vadd.f32 %v4180, %v4520
      %v4567 = vadd.f32 %v4181, %v4525
      %v4568 = vadd.f32 %v4182, %v4528
      %v4569 = vadd.f32 %v4183, %v4533
      %v4570 = vadd.f32 %v4184, %v4536
      %v4571 = vld [vmem:[%s4185] sm:$0xf]
      %v4572 = vld [vmem:[%s4185 + $0x4] sm:$0xf]
      %v4573 = vld [vmem:[%s4185 + $0x8] sm:$0x1]
      %v4574 = vld [vmem:[%s4185 + $0xc] sm:$0xf]
      %v4575 = vld [vmem:[%s4185 + $0x10] sm:$0xf]
      %v4576 = vld [vmem:[%s4185 + $0x14] sm:$0x1]
      %v4577 = vld [vmem:[%s4185 + $0x18] sm:$0xf]
      %v4578 = vld [vmem:[%s4185 + $0x1c] sm:$0xf]
      %v4579 = vld [vmem:[%s4185 + $0x20] sm:$0x1]
      %v4580 = vld [vmem:[%s4185 + $0x24] sm:$0xf]
      %v4581 = vld [vmem:[%s4185 + $0x28] sm:$0xf]
      %v4582 = vld [vmem:[%s4185 + $0x2c] sm:$0x1]
      %v4583 = vld [vmem:[%s4185 + $0x30] sm:$0xf]
      %v4584 = vld [vmem:[%s4185 + $0x34] sm:$0xf]
      %v4585 = vld [vmem:[%s4185 + $0x38] sm:$0x1]
      %v4586 = vld [vmem:[%s4185 + $0x3c] sm:$0xf]
      %v4587 = vld [vmem:[%s4185 + $0x40] sm:$0xf]
      %v4588 = vld [vmem:[%s4185 + $0x44] sm:$0x1]
      %v4589 = vld [vmem:[%s4185 + $0x48] sm:$0xf]
      %v4590 = vld [vmem:[%s4185 + $0x4c] sm:$0xf]
      %v4591 = vld [vmem:[%s4185 + $0x50] sm:$0x1]
      %v4592 = vld [vmem:[%s4185 + $0x54] sm:$0xf]
      %v4593 = vld [vmem:[%s4185 + $0x58] sm:$0xf]
      %v4594 = vld [vmem:[%s4185 + $0x5c] sm:$0x1]
      %v4595 = vld [vmem:[%s4185 + $0x60] sm:$0xf]
      %v4596 = vld [vmem:[%s4185 + $0x64] sm:$0xf]
      %v4597 = vld [vmem:[%s4185 + $0x68] sm:$0x1]
      %v4598 = vld [vmem:[%s4185 + $0x6c] sm:$0xf]
      %v4599 = vld [vmem:[%s4185 + $0x70] sm:$0xf]
      %v4600 = vld [vmem:[%s4185 + $0x74] sm:$0x1]
      %v4601 = vld [vmem:[%s4185 + $0x78] sm:$0xf]
      %v4602 = vld [vmem:[%s4185 + $0x7c] sm:$0xf]
      %v4603 = vld [vmem:[%s4185 + $0x80] sm:$0x1]
      %v4604 = vld [vmem:[%s4185 + $0x84] sm:$0xf]
      %v4605 = vld [vmem:[%s4185 + $0x88] sm:$0xf]
      %v4606 = vld [vmem:[%s4185 + $0x8c] sm:$0x1]
      %v4607 = vld [vmem:[%s4185 + $0x90] sm:$0xf]
      %v4608 = vld [vmem:[%s4185 + $0x94] sm:$0xf]
      %v4609 = vld [vmem:[%s4185 + $0x98] sm:$0x1]
      %v4610 = vld [vmem:[%s4185 + $0x9c] sm:$0xf]
      %v4611 = vld [vmem:[%s4185 + $0xa0] sm:$0xf]
      %v4612 = vld [vmem:[%s4185 + $0xa4] sm:$0x1]
      %v4613 = vld [vmem:[%s4185 + $0xa8] sm:$0xf]
      %v4614 = vld [vmem:[%s4185 + $0xac] sm:$0xf]
      %v4615 = vld [vmem:[%s4185 + $0xb0] sm:$0x1]
      %v4616 = vld [vmem:[%s4185 + $0xb4] sm:$0xf]
      %v4617 = vld [vmem:[%s4185 + $0xb8] sm:$0xf]
      %v4618 = vld [vmem:[%s4185 + $0xbc] sm:$0x1]
      %v4620 = vshrl.u32 %v4571, 16
      %v4622 = vrot.slane %v4620, 4
      %v4623 = vshll.u32 %v4571, 16
      %v4625 = vrot.slane %v4623, 5
      %v4626 = vor.u32 %v4622, %v4625
      %v4627 = vrot.slane %v4626, 4
      %v4629 = vshll.u32 %v4572, 16
      %v4631 = vrot.slane %v4629, 5
      %v4632 = vsel %vm1087, %v4627, %v4631
      %v4633 = vshrl.u32 %v4572, 16
      %v4635 = vrot.slane %v4633, 4
      %v4636 = vor.u32 %v4635, %v4631
      %v4637 = vrot.slane %v4636, 4
      %v4639 = vshll.u32 %v4573, 16
      %v4641 = vrot.slane %v4639, 5
      %v4642 = vsel %vm1087, %v4637, %v4641
      %v4644 = vshrl.u32 %v4574, 16
      %v4646 = vrot.slane %v4644, 4
      %v4647 = vshll.u32 %v4574, 16
      %v4649 = vrot.slane %v4647, 5
      %v4650 = vor.u32 %v4646, %v4649
      %v4651 = vrot.slane %v4650, 4
      %v4653 = vshll.u32 %v4575, 16
      %v4655 = vrot.slane %v4653, 5
      %v4656 = vsel %vm1087, %v4651, %v4655
      %v4657 = vshrl.u32 %v4575, 16
      %v4659 = vrot.slane %v4657, 4
      %v4660 = vor.u32 %v4659, %v4655
      %v4661 = vrot.slane %v4660, 4
      %v4663 = vshll.u32 %v4576, 16
      %v4665 = vrot.slane %v4663, 5
      %v4666 = vsel %vm1087, %v4661, %v4665
      %v4668 = vshrl.u32 %v4577, 16
      %v4670 = vrot.slane %v4668, 4
      %v4671 = vshll.u32 %v4577, 16
      %v4673 = vrot.slane %v4671, 5
      %v4674 = vor.u32 %v4670, %v4673
      %v4675 = vrot.slane %v4674, 4
      %v4677 = vshll.u32 %v4578, 16
      %v4679 = vrot.slane %v4677, 5
      %v4680 = vsel %vm1087, %v4675, %v4679
      %v4681 = vshrl.u32 %v4578, 16
      %v4683 = vrot.slane %v4681, 4
      %v4684 = vor.u32 %v4683, %v4679
      %v4685 = vrot.slane %v4684, 4
      %v4687 = vshll.u32 %v4579, 16
      %v4689 = vrot.slane %v4687, 5
      %v4690 = vsel %vm1087, %v4685, %v4689
      %v4692 = vshrl.u32 %v4580, 16
      %v4694 = vrot.slane %v4692, 4
      %v4695 = vshll.u32 %v4580, 16
      %v4697 = vrot.slane %v4695, 5
      %v4698 = vor.u32 %v4694, %v4697
      %v4699 = vrot.slane %v4698, 4
      %v4701 = vshll.u32 %v4581, 16
      %v4703 = vrot.slane %v4701, 5
      %v4704 = vsel %vm1087, %v4699, %v4703
      %v4705 = vshrl.u32 %v4581, 16
      %v4707 = vrot.slane %v4705, 4
      %v4708 = vor.u32 %v4707, %v4703
      %v4709 = vrot.slane %v4708, 4
      %v4711 = vshll.u32 %v4582, 16
      %v4713 = vrot.slane %v4711, 5
      %v4714 = vsel %vm1087, %v4709, %v4713
      %v4716 = vshrl.u32 %v4583, 16
      %v4718 = vrot.slane %v4716, 4
      %v4719 = vshll.u32 %v4583, 16
      %v4721 = vrot.slane %v4719, 5
      %v4722 = vor.u32 %v4718, %v4721
      %v4723 = vrot.slane %v4722, 4
      %v4725 = vshll.u32 %v4584, 16
      %v4727 = vrot.slane %v4725, 5
      %v4728 = vsel %vm1087, %v4723, %v4727
      %v4729 = vshrl.u32 %v4584, 16
      %v4731 = vrot.slane %v4729, 4
      %v4732 = vor.u32 %v4731, %v4727
      %v4733 = vrot.slane %v4732, 4
      %v4735 = vshll.u32 %v4585, 16
      %v4737 = vrot.slane %v4735, 5
      %v4738 = vsel %vm1087, %v4733, %v4737
      %v4740 = vshrl.u32 %v4586, 16
      %v4742 = vrot.slane %v4740, 4
      %v4743 = vshll.u32 %v4586, 16
      %v4745 = vrot.slane %v4743, 5
      %v4746 = vor.u32 %v4742, %v4745
      %v4747 = vrot.slane %v4746, 4
      %v4749 = vshll.u32 %v4587, 16
      %v4751 = vrot.slane %v4749, 5
      %v4752 = vsel %vm1087, %v4747, %v4751
      %v4753 = vshrl.u32 %v4587, 16
      %v4755 = vrot.slane %v4753, 4
      %v4756 = vor.u32 %v4755, %v4751
      %v4757 = vrot.slane %v4756, 4
      %v4759 = vshll.u32 %v4588, 16
      %v4761 = vrot.slane %v4759, 5
      %v4762 = vsel %vm1087, %v4757, %v4761
      %v4764 = vshrl.u32 %v4589, 16
      %v4766 = vrot.slane %v4764, 4
      %v4767 = vshll.u32 %v4589, 16
      %v4769 = vrot.slane %v4767, 5
      %v4770 = vor.u32 %v4766, %v4769
      %v4771 = vrot.slane %v4770, 4
      %v4773 = vshll.u32 %v4590, 16
      %v4775 = vrot.slane %v4773, 5
      %v4776 = vsel %vm1087, %v4771, %v4775
      %v4777 = vshrl.u32 %v4590, 16
      %v4779 = vrot.slane %v4777, 4
      %v4780 = vor.u32 %v4779, %v4775
      %v4781 = vrot.slane %v4780, 4
      %v4783 = vshll.u32 %v4591, 16
      %v4785 = vrot.slane %v4783, 5
      %v4786 = vsel %vm1087, %v4781, %v4785
      %v4788 = vshrl.u32 %v4592, 16
      %v4790 = vrot.slane %v4788, 4
      %v4791 = vshll.u32 %v4592, 16
      %v4793 = vrot.slane %v4791, 5
      %v4794 = vor.u32 %v4790, %v4793
      %v4795 = vrot.slane %v4794, 4
      %v4797 = vshll.u32 %v4593, 16
      %v4799 = vrot.slane %v4797, 5
      %v4800 = vsel %vm1087, %v4795, %v4799
      %v4801 = vshrl.u32 %v4593, 16
      %v4803 = vrot.slane %v4801, 4
      %v4804 = vor.u32 %v4803, %v4799
      %v4805 = vrot.slane %v4804, 4
      %v4807 = vshll.u32 %v4594, 16
      %v4809 = vrot.slane %v4807, 5
      %v4810 = vsel %vm1087, %v4805, %v4809
      %v4812 = vshrl.u32 %v4595, 16
      %v4814 = vrot.slane %v4812, 4
      %v4815 = vshll.u32 %v4595, 16
      %v4817 = vrot.slane %v4815, 5
      %v4818 = vor.u32 %v4814, %v4817
      %v4819 = vrot.slane %v4818, 4
      %v4821 = vshll.u32 %v4596, 16
      %v4823 = vrot.slane %v4821, 5
      %v4824 = vsel %vm1087, %v4819, %v4823
      %v4825 = vshrl.u32 %v4596, 16
      %v4827 = vrot.slane %v4825, 4
      %v4828 = vor.u32 %v4827, %v4823
      %v4829 = vrot.slane %v4828, 4
      %v4831 = vshll.u32 %v4597, 16
      %v4833 = vrot.slane %v4831, 5
      %v4834 = vsel %vm1087, %v4829, %v4833
      %v4836 = vshrl.u32 %v4598, 16
      %v4838 = vrot.slane %v4836, 4
      %v4839 = vshll.u32 %v4598, 16
      %v4841 = vrot.slane %v4839, 5
      %v4842 = vor.u32 %v4838, %v4841
      %v4843 = vrot.slane %v4842, 4
      %v4845 = vshll.u32 %v4599, 16
      %v4847 = vrot.slane %v4845, 5
      %v4848 = vsel %vm1087, %v4843, %v4847
      %v4849 = vshrl.u32 %v4599, 16
      %v4851 = vrot.slane %v4849, 4
      %v4852 = vor.u32 %v4851, %v4847
      %v4853 = vrot.slane %v4852, 4
      %v4855 = vshll.u32 %v4600, 16
      %v4857 = vrot.slane %v4855, 5
      %v4858 = vsel %vm1087, %v4853, %v4857
      %v4860 = vshrl.u32 %v4601, 16
      %v4862 = vrot.slane %v4860, 4
      %v4863 = vshll.u32 %v4601, 16
      %v4865 = vrot.slane %v4863, 5
      %v4866 = vor.u32 %v4862, %v4865
      %v4867 = vrot.slane %v4866, 4
      %v4869 = vshll.u32 %v4602, 16
      %v4871 = vrot.slane %v4869, 5
      %v4872 = vsel %vm1087, %v4867, %v4871
      %v4873 = vshrl.u32 %v4602, 16
      %v4875 = vrot.slane %v4873, 4
      %v4876 = vor.u32 %v4875, %v4871
      %v4877 = vrot.slane %v4876, 4
      %v4879 = vshll.u32 %v4603, 16
      %v4881 = vrot.slane %v4879, 5
      %v4882 = vsel %vm1087, %v4877, %v4881
      %v4884 = vshrl.u32 %v4604, 16
      %v4886 = vrot.slane %v4884, 4
      %v4887 = vshll.u32 %v4604, 16
      %v4889 = vrot.slane %v4887, 5
      %v4890 = vor.u32 %v4886, %v4889
      %v4891 = vrot.slane %v4890, 4
      %v4893 = vshll.u32 %v4605, 16
      %v4895 = vrot.slane %v4893, 5
      %v4896 = vsel %vm1087, %v4891, %v4895
      %v4897 = vshrl.u32 %v4605, 16
      %v4899 = vrot.slane %v4897, 4
      %v4900 = vor.u32 %v4899, %v4895
      %v4901 = vrot.slane %v4900, 4
      %v4903 = vshll.u32 %v4606, 16
      %v4905 = vrot.slane %v4903, 5
      %v4906 = vsel %vm1087, %v4901, %v4905
      %v4908 = vshrl.u32 %v4607, 16
      %v4910 = vrot.slane %v4908, 4
      %v4911 = vshll.u32 %v4607, 16
      %v4913 = vrot.slane %v4911, 5
      %v4914 = vor.u32 %v4910, %v4913
      %v4915 = vrot.slane %v4914, 4
      %v4917 = vshll.u32 %v4608, 16
      %v4919 = vrot.slane %v4917, 5
      %v4920 = vsel %vm1087, %v4915, %v4919
      %v4921 = vshrl.u32 %v4608, 16
      %v4923 = vrot.slane %v4921, 4
      %v4924 = vor.u32 %v4923, %v4919
      %v4925 = vrot.slane %v4924, 4
      %v4927 = vshll.u32 %v4609, 16
      %v4929 = vrot.slane %v4927, 5
      %v4930 = vsel %vm1087, %v4925, %v4929
      %v4932 = vshrl.u32 %v4610, 16
      %v4934 = vrot.slane %v4932, 4
      %v4935 = vshll.u32 %v4610, 16
      %v4937 = vrot.slane %v4935, 5
      %v4938 = vor.u32 %v4934, %v4937
      %v4939 = vrot.slane %v4938, 4
      %v4941 = vshll.u32 %v4611, 16
      %v4943 = vrot.slane %v4941, 5
      %v4944 = vsel %vm1087, %v4939, %v4943
      %v4945 = vshrl.u32 %v4611, 16
      %v4947 = vrot.slane %v4945, 4
      %v4948 = vor.u32 %v4947, %v4943
      %v4949 = vrot.slane %v4948, 4
      %v4951 = vshll.u32 %v4612, 16
      %v4953 = vrot.slane %v4951, 5
      %v4954 = vsel %vm1087, %v4949, %v4953
      %v4956 = vshrl.u32 %v4613, 16
      %v4958 = vrot.slane %v4956, 4
      %v4959 = vshll.u32 %v4613, 16
      %v4961 = vrot.slane %v4959, 5
      %v4962 = vor.u32 %v4958, %v4961
      %v4963 = vrot.slane %v4962, 4
      %v4965 = vshll.u32 %v4614, 16
      %v4967 = vrot.slane %v4965, 5
      %v4968 = vsel %vm1087, %v4963, %v4967
      %v4969 = vshrl.u32 %v4614, 16
      %v4971 = vrot.slane %v4969, 4
      %v4972 = vor.u32 %v4971, %v4967
      %v4973 = vrot.slane %v4972, 4
      %v4975 = vshll.u32 %v4615, 16
      %v4977 = vrot.slane %v4975, 5
      %v4978 = vsel %vm1087, %v4973, %v4977
      %v4980 = vshrl.u32 %v4616, 16
      %v4982 = vrot.slane %v4980, 4
      %v4983 = vshll.u32 %v4616, 16
      %v4985 = vrot.slane %v4983, 5
      %v4986 = vor.u32 %v4982, %v4985
      %v4987 = vrot.slane %v4986, 4
      %v4989 = vshll.u32 %v4617, 16
      %v4991 = vrot.slane %v4989, 5
      %v4992 = vsel %vm1087, %v4987, %v4991
      %v4993 = vshrl.u32 %v4617, 16
      %v4995 = vrot.slane %v4993, 4
      %v4996 = vor.u32 %v4995, %v4991
      %v4997 = vrot.slane %v4996, 4
      %v4999 = vshll.u32 %v4618, 16
      %v5001 = vrot.slane %v4999, 5
      %v5002 = vsel %vm1087, %v4997, %v5001
      %v5003 = vld [vmem:[%s2 + $0x1c0] sm:$0xf]
      %v5004 = vld [vmem:[%s2 + $0x1c4] sm:$0xf]
      %v5005 = vld [vmem:[%s2 + $0x1c8] sm:$0xf]
      %v5006 = vld [vmem:[%s2 + $0x1cc] sm:$0xf]
      %v5007 = vld [vmem:[%s2 + $0x1d0] sm:$0xf]
      %v5008 = vld [vmem:[%s2 + $0x1d4] sm:$0xf]
      %v5009 = vld [vmem:[%s2 + $0x1d8] sm:$0xf]
      %v5010 = vld [vmem:[%s2 + $0x1dc] sm:$0xf]
      %v5011 = vld [vmem:[%s2 + $0x1e0] sm:$0xf]
      %v5012 = vld [vmem:[%s2 + $0x1e4] sm:$0xf]
      %v5013 = vld [vmem:[%s2 + $0x1e8] sm:$0xf]
      %v5014 = vld [vmem:[%s2 + $0x1ec] sm:$0xf]
      %v5015 = vld [vmem:[%s2 + $0x1f0] sm:$0xf]
      %v5016 = vld [vmem:[%s2 + $0x1f4] sm:$0xf]
      %v5017 = vld [vmem:[%s2 + $0x1f8] sm:$0xf]
      %v5018 = vld [vmem:[%s2 + $0x1fc] sm:$0xf]
      %v5019 = vunpack.c.l.b16 %v4632
      %v5020 = vunpack.c.l.b16 %v4642
      %v5021 = vunpack.c.l.b16 %v4656
      %v5022 = vunpack.c.l.b16 %v4666
      %v5023 = vunpack.c.l.b16 %v4680
      %v5024 = vunpack.c.l.b16 %v4690
      %v5025 = vunpack.c.l.b16 %v4704
      %v5026 = vunpack.c.l.b16 %v4714
      %v5027 = vunpack.c.l.b16 %v4728
      %v5028 = vunpack.c.l.b16 %v4738
      %v5029 = vunpack.c.l.b16 %v4752
      %v5030 = vunpack.c.l.b16 %v4762
      %v5031 = vunpack.c.l.b16 %v4776
      %v5032 = vunpack.c.l.b16 %v4786
      %v5033 = vunpack.c.l.b16 %v4800
      %v5034 = vunpack.c.l.b16 %v4810
      %v5035 = vunpack.c.l.b16 %v4824
      %v5036 = vunpack.c.l.b16 %v4834
      %v5037 = vunpack.c.l.b16 %v4848
      %v5038 = vunpack.c.l.b16 %v4858
      %v5039 = vunpack.c.l.b16 %v4872
      %v5040 = vunpack.c.l.b16 %v4882
      %v5041 = vunpack.c.l.b16 %v4896
      %v5042 = vunpack.c.l.b16 %v4906
      %v5043 = vunpack.c.l.b16 %v4920
      %v5044 = vunpack.c.l.b16 %v4930
      %v5045 = vunpack.c.l.b16 %v4944
      %v5046 = vunpack.c.l.b16 %v4954
      %v5047 = vunpack.c.l.b16 %v4968
      %v5048 = vunpack.c.l.b16 %v4978
      %v5049 = vunpack.c.l.b16 %v4992
      %v5050 = vunpack.c.l.b16 %v5002
      %v5051 = vpack.c.b16 %v5020, %v5019
      %v5052 = vpack.c.b16 %v5022, %v5021
      %v5053 = vpack.c.b16 %v5024, %v5023
      %v5054 = vpack.c.b16 %v5026, %v5025
      %v5055 = vpack.c.b16 %v5028, %v5027
      %v5056 = vpack.c.b16 %v5030, %v5029
      %v5057 = vpack.c.b16 %v5032, %v5031
      %v5058 = vpack.c.b16 %v5034, %v5033
      %v5059 = vpack.c.b16 %v5036, %v5035
      %v5060 = vpack.c.b16 %v5038, %v5037
      %v5061 = vpack.c.b16 %v5040, %v5039
      %v5062 = vpack.c.b16 %v5042, %v5041
      %v5063 = vpack.c.b16 %v5044, %v5043
      %v5064 = vpack.c.b16 %v5046, %v5045
      %v5065 = vpack.c.b16 %v5048, %v5047
      %v5066 = vpack.c.b16 %v5050, %v5049
      %v5099 = vunpack.c.l.b16 %v5003
      %v5100 = vunpack.c.l.b16 %v5004
      %v5101 = vunpack.c.l.b16 %v5005
      %v5102 = vunpack.c.l.b16 %v5006
      %v5103 = vunpack.c.l.b16 %v5007
      %v5104 = vunpack.c.l.b16 %v5008
      %v5105 = vunpack.c.l.b16 %v5009
      %v5106 = vunpack.c.l.b16 %v5010
      %v5107 = vunpack.c.l.b16 %v5011
      %v5108 = vunpack.c.l.b16 %v5012
      %v5109 = vunpack.c.l.b16 %v5013
      %v5110 = vunpack.c.l.b16 %v5014
      %v5111 = vunpack.c.l.b16 %v5015
      %v5112 = vunpack.c.l.b16 %v5016
      %v5113 = vunpack.c.l.b16 %v5017
      %v5114 = vunpack.c.l.b16 %v5018
      %v5115 = vpack.c.b16 %v5100, %v5099
      %v5116 = vpack.c.b16 %v5102, %v5101
      %v5117 = vpack.c.b16 %v5104, %v5103
      %v5118 = vpack.c.b16 %v5106, %v5105
      %v5119 = vpack.c.b16 %v5108, %v5107
      %v5120 = vpack.c.b16 %v5110, %v5109
      %v5121 = vpack.c.b16 %v5112, %v5111
      %v5122 = vpack.c.b16 %v5114, %v5113
      %5131 = vmatprep.subr.bf16.mxu0 0
      %5132 = vmatpush1.bf16.msra.mxu0 %v5122
      %5133 = vmatprep.subr.bf16.mxu0 0
      %5134 = vmatpush1.bf16.msra.mxu0 %v5121
      %5135 = vmatprep.subr.bf16.mxu0 0
      %5136 = vmatpush1.bf16.msra.mxu0 %v5120
      %5137 = vmatprep.subr.bf16.mxu0 0
      %5138 = vmatpush1.bf16.msra.mxu0 %v5119
      %5139 = vmatprep.subr.bf16.mxu0 0
      %5140 = vmatpush1.bf16.msra.mxu0 %v5118
      %5141 = vmatprep.subr.bf16.mxu0 0
      %5142 = vmatpush1.bf16.msra.mxu0 %v5117
      %5143 = vmatprep.subr.bf16.mxu0 0
      %5144 = vmatpush1.bf16.msra.mxu0 %v5116
      %5145 = vmatprep.subr.bf16.mxu0 0
      %5146 = vmatpush1.bf16.msra.mxu0 %v5115
      %5147 = vmatprep.subr.bf16.mxu0 0
      %5148 = vmatpush2.bf16.msra.mxu0 0
      %5149 = vmatprep.subr.bf16.mxu0 0
      %5150 = vmatpush2.bf16.msra.mxu0 0
      %5151 = vmatprep.subr.bf16.mxu0 0
      %5152 = vmatpush2.bf16.msra.mxu0 0
      %5153 = vmatprep.subr.bf16.mxu0 0
      %5154 = vmatpush2.bf16.msra.mxu0 0
      %5155 = vmatprep.subr.bf16.mxu0 0
      %5156 = vmatpush2.bf16.msra.mxu0 0
      %5157 = vmatprep.subr.bf16.mxu0 0
      %5158 = vmatpush2.bf16.msra.mxu0 0
      %5159 = vmatprep.subr.bf16.mxu0 0
      %5160 = vmatpush2.bf16.msra.mxu0 0
      %5161 = vmatprep.subr.bf16.mxu0 0
      %5162 = vmatpush2.bf16.msra.mxu0 0
      %5163 = vmatprep.mubr.bf16.mxu0 0
      %5164 = vmatmul.mubr.bf16.gmra.mxu0 %v5051
      %v5165 = vpop.f32.mrf.mxu0
      %v5166 = vadd.f32 0.0, %v5165
      %v5167 = vpop.f32.mrf.mxu0
      %v5168 = vpop.f32.mrf.mxu0
      %v5169 = vadd.f32 0.0, %v5168
      %v5170 = vpop.f32.mrf.mxu0
      %5171 = vmatprep.mubr.bf16.mxu0 0
      %5172 = vmatmul.mubr.bf16.gmra.mxu0 %v5052
      %v5173 = vpop.f32.mrf.mxu0
      %v5174 = vadd.f32 0.0, %v5173
      %v5175 = vpop.f32.mrf.mxu0
      %v5176 = vpop.f32.mrf.mxu0
      %v5177 = vadd.f32 0.0, %v5176
      %v5178 = vpop.f32.mrf.mxu0
      %5179 = vmatprep.mubr.bf16.mxu0 0
      %5180 = vmatmul.mubr.bf16.gmra.mxu0 %v5053
      %v5181 = vpop.f32.mrf.mxu0
      %v5182 = vadd.f32 0.0, %v5181
      %v5183 = vpop.f32.mrf.mxu0
      %v5184 = vpop.f32.mrf.mxu0
      %v5185 = vadd.f32 0.0, %v5184
      %v5186 = vpop.f32.mrf.mxu0
      %5187 = vmatprep.mubr.bf16.mxu0 0
      %5188 = vmatmul.mubr.bf16.gmra.mxu0 %v5054
      %v5189 = vpop.f32.mrf.mxu0
      %v5190 = vadd.f32 0.0, %v5189
      %v5191 = vpop.f32.mrf.mxu0
      %v5192 = vpop.f32.mrf.mxu0
      %v5193 = vadd.f32 0.0, %v5192
      %v5194 = vpop.f32.mrf.mxu0
      %5195 = vmatprep.mubr.bf16.mxu0 0
      %5196 = vmatmul.mubr.bf16.gmra.mxu0 %v5055
      %v5197 = vpop.f32.mrf.mxu0
      %v5198 = vadd.f32 0.0, %v5197
      %v5199 = vpop.f32.mrf.mxu0
      %v5200 = vpop.f32.mrf.mxu0
      %v5201 = vadd.f32 0.0, %v5200
      %v5202 = vpop.f32.mrf.mxu0
      %5203 = vmatprep.mubr.bf16.mxu0 0
      %5204 = vmatmul.mubr.bf16.gmra.mxu0 %v5056
      %v5205 = vpop.f32.mrf.mxu0
      %v5206 = vadd.f32 0.0, %v5205
      %v5207 = vpop.f32.mrf.mxu0
      %v5208 = vpop.f32.mrf.mxu0
      %v5209 = vadd.f32 0.0, %v5208
      %v5210 = vpop.f32.mrf.mxu0
      %5211 = vmatprep.mubr.bf16.mxu0 0
      %5212 = vmatmul.mubr.bf16.gmra.mxu0 %v5057
      %v5213 = vpop.f32.mrf.mxu0
      %v5214 = vadd.f32 0.0, %v5213
      %v5215 = vpop.f32.mrf.mxu0
      %v5216 = vpop.f32.mrf.mxu0
      %v5217 = vadd.f32 0.0, %v5216
      %v5218 = vpop.f32.mrf.mxu0
      %5219 = vmatprep.mubr.bf16.mxu0 0
      %5220 = vmatmul.mubr.bf16.gmra.mxu0 %v5058
      %v5221 = vpop.f32.mrf.mxu0
      %v5222 = vadd.f32 0.0, %v5221
      %v5223 = vpop.f32.mrf.mxu0
      %v5224 = vpop.f32.mrf.mxu0
      %v5225 = vadd.f32 0.0, %v5224
      %v5226 = vpop.f32.mrf.mxu0
      %5227 = vmatprep.mubr.bf16.mxu0 0
      %5228 = vmatmul.mubr.bf16.gmra.mxu0 %v5059
      %v5229 = vpop.f32.mrf.mxu0
      %v5230 = vadd.f32 0.0, %v5229
      %v5231 = vpop.f32.mrf.mxu0
      %v5232 = vpop.f32.mrf.mxu0
      %v5233 = vadd.f32 0.0, %v5232
      %v5234 = vpop.f32.mrf.mxu0
      %5235 = vmatprep.mubr.bf16.mxu0 0
      %5236 = vmatmul.mubr.bf16.gmra.mxu0 %v5060
      %v5237 = vpop.f32.mrf.mxu0
      %v5238 = vadd.f32 0.0, %v5237
      %v5239 = vpop.f32.mrf.mxu0
      %v5240 = vpop.f32.mrf.mxu0
      %v5241 = vadd.f32 0.0, %v5240
      %v5242 = vpop.f32.mrf.mxu0
      %5243 = vmatprep.mubr.bf16.mxu0 0
      %5244 = vmatmul.mubr.bf16.gmra.mxu0 %v5061
      %v5245 = vpop.f32.mrf.mxu0
      %v5246 = vadd.f32 0.0, %v5245
      %v5247 = vpop.f32.mrf.mxu0
      %v5248 = vpop.f32.mrf.mxu0
      %v5249 = vadd.f32 0.0, %v5248
      %v5250 = vpop.f32.mrf.mxu0
      %5251 = vmatprep.mubr.bf16.mxu0 0
      %5252 = vmatmul.mubr.bf16.gmra.mxu0 %v5062
      %v5253 = vpop.f32.mrf.mxu0
      %v5254 = vadd.f32 0.0, %v5253
      %v5255 = vpop.f32.mrf.mxu0
      %v5256 = vpop.f32.mrf.mxu0
      %v5257 = vadd.f32 0.0, %v5256
      %v5258 = vpop.f32.mrf.mxu0
      %5259 = vmatprep.mubr.bf16.mxu0 0
      %5260 = vmatmul.mubr.bf16.gmra.mxu0 %v5063
      %v5261 = vpop.f32.mrf.mxu0
      %v5262 = vadd.f32 0.0, %v5261
      %v5263 = vpop.f32.mrf.mxu0
      %v5264 = vpop.f32.mrf.mxu0
      %v5265 = vadd.f32 0.0, %v5264
      %v5266 = vpop.f32.mrf.mxu0
      %5267 = vmatprep.mubr.bf16.mxu0 0
      %5268 = vmatmul.mubr.bf16.gmra.mxu0 %v5064
      %v5269 = vpop.f32.mrf.mxu0
      %v5270 = vadd.f32 0.0, %v5269
      %v5271 = vpop.f32.mrf.mxu0
      %v5272 = vpop.f32.mrf.mxu0
      %v5273 = vadd.f32 0.0, %v5272
      %v5274 = vpop.f32.mrf.mxu0
      %5275 = vmatprep.mubr.bf16.mxu0 0
      %5276 = vmatmul.mubr.bf16.gmra.mxu0 %v5065
      %v5277 = vpop.f32.mrf.mxu0
      %v5278 = vadd.f32 0.0, %v5277
      %v5279 = vpop.f32.mrf.mxu0
      %v5280 = vpop.f32.mrf.mxu0
      %v5281 = vadd.f32 0.0, %v5280
      %v5282 = vpop.f32.mrf.mxu0
      %5283 = vmatprep.mubr.bf16.mxu0 0
      %5284 = vmatmul.mubr.bf16.gmra.mxu0 %v5066
      %v5285 = vpop.f32.mrf.mxu0
      %v5286 = vadd.f32 0.0, %v5285
      %v5287 = vpop.f32.mrf.mxu0
      %v5288 = vpop.f32.mrf.mxu0
      %v5289 = vadd.f32 0.0, %v5288
      %v5290 = vpop.f32.mrf.mxu0
      %5291 = vdwg.mxu0
      %v5292 = vadd.f32 %v4539, %v5166
      %v5293 = vadd.f32 %v4540, %v5169
      %v5294 = vadd.f32 %v4541, %v5174
      %v5295 = vadd.f32 %v4542, %v5177
      %v5296 = vadd.f32 %v4543, %v5182
      %v5297 = vadd.f32 %v4544, %v5185
      %v5298 = vadd.f32 %v4545, %v5190
      %v5299 = vadd.f32 %v4546, %v5193
      %v5300 = vadd.f32 %v4547, %v5198
      %v5301 = vadd.f32 %v4548, %v5201
      %v5302 = vadd.f32 %v4549, %v5206
      %v5303 = vadd.f32 %v4550, %v5209
      %v5304 = vadd.f32 %v4551, %v5214
      %v5305 = vadd.f32 %v4552, %v5217
      %v5306 = vadd.f32 %v4553, %v5222
      %v5307 = vadd.f32 %v4554, %v5225
      %v5308 = vadd.f32 %v4555, %v5230
      %v5309 = vadd.f32 %v4556, %v5233
      %v5310 = vadd.f32 %v4557, %v5238
      %v5311 = vadd.f32 %v4558, %v5241
      %v5312 = vadd.f32 %v4559, %v5246
      %v5313 = vadd.f32 %v4560, %v5249
      %v5314 = vadd.f32 %v4561, %v5254
      %v5315 = vadd.f32 %v4562, %v5257
      %v5316 = vadd.f32 %v4563, %v5262
      %v5317 = vadd.f32 %v4564, %v5265
      %v5318 = vadd.f32 %v4565, %v5270
      %v5319 = vadd.f32 %v4566, %v5273
      %v5320 = vadd.f32 %v4567, %v5278
      %v5321 = vadd.f32 %v4568, %v5281
      %v5322 = vadd.f32 %v4569, %v5286
      %v5323 = vadd.f32 %v4570, %v5289
      %v5324 = vld [vmem:[%s4185] sm:$0xe]
      %v5325 = vld [vmem:[%s4185 + $0xc] sm:$0xe]
      %v5326 = vld [vmem:[%s4185 + $0x18] sm:$0xe]
      %v5327 = vld [vmem:[%s4185 + $0x24] sm:$0xe]
      %v5328 = vld [vmem:[%s4185 + $0x30] sm:$0xe]
      %v5329 = vld [vmem:[%s4185 + $0x3c] sm:$0xe]
      %v5330 = vld [vmem:[%s4185 + $0x48] sm:$0xe]
      %v5331 = vld [vmem:[%s4185 + $0x54] sm:$0xe]
      %v5332 = vld [vmem:[%s4185 + $0x60] sm:$0xe]
      %v5333 = vld [vmem:[%s4185 + $0x6c] sm:$0xe]
      %v5334 = vld [vmem:[%s4185 + $0x78] sm:$0xe]
      %v5335 = vld [vmem:[%s4185 + $0x84] sm:$0xe]
      %v5336 = vld [vmem:[%s4185 + $0x90] sm:$0xe]
      %v5337 = vld [vmem:[%s4185 + $0x9c] sm:$0xe]
      %v5338 = vld [vmem:[%s4185 + $0xa8] sm:$0xe]
      %v5339 = vld [vmem:[%s4185 + $0xb4] sm:$0xe]
      %v5388 = vrot.slane %v5324, 5
      %v5389 = vrot.slane %v5388, 4
      %v5390 = vrot.slane %v4572, 5
      %v5391 = vsel %vm2116, %v5389, %v5390
      %v5392 = vrot.slane %v5390, 4
      %v5393 = vrot.slane %v4573, 5
      %v5394 = vsel %vm2116, %v5392, %v5393
      %v5395 = vrot.slane %v5325, 5
      %v5396 = vrot.slane %v5395, 4
      %v5397 = vrot.slane %v4575, 5
      %v5398 = vsel %vm2116, %v5396, %v5397
      %v5399 = vrot.slane %v5397, 4
      %v5400 = vrot.slane %v4576, 5
      %v5401 = vsel %vm2116, %v5399, %v5400
      %v5402 = vrot.slane %v5326, 5
      %v5403 = vrot.slane %v5402, 4
      %v5404 = vrot.slane %v4578, 5
      %v5405 = vsel %vm2116, %v5403, %v5404
      %v5406 = vrot.slane %v5404, 4
      %v5407 = vrot.slane %v4579, 5
      %v5408 = vsel %vm2116, %v5406, %v5407
      %v5409 = vrot.slane %v5327, 5
      %v5410 = vrot.slane %v5409, 4
      %v5411 = vrot.slane %v4581, 5
      %v5412 = vsel %vm2116, %v5410, %v5411
      %v5413 = vrot.slane %v5411, 4
      %v5414 = vrot.slane %v4582, 5
      %v5415 = vsel %vm2116, %v5413, %v5414
      %v5416 = vrot.slane %v5328, 5
      %v5417 = vrot.slane %v5416, 4
      %v5418 = vrot.slane %v4584, 5
      %v5419 = vsel %vm2116, %v5417, %v5418
      %v5420 = vrot.slane %v5418, 4
      %v5421 = vrot.slane %v4585, 5
      %v5422 = vsel %vm2116, %v5420, %v5421
      %v5423 = vrot.slane %v5329, 5
      %v5424 = vrot.slane %v5423, 4
      %v5425 = vrot.slane %v4587, 5
      %v5426 = vsel %vm2116, %v5424, %v5425
      %v5427 = vrot.slane %v5425, 4
      %v5428 = vrot.slane %v4588, 5
      %v5429 = vsel %vm2116, %v5427, %v5428
      %v5430 = vrot.slane %v5330, 5
      %v5431 = vrot.slane %v5430, 4
      %v5432 = vrot.slane %v4590, 5
      %v5433 = vsel %vm2116, %v5431, %v5432
      %v5434 = vrot.slane %v5432, 4
      %v5435 = vrot.slane %v4591, 5
      %v5436 = vsel %vm2116, %v5434, %v5435
      %v5437 = vrot.slane %v5331, 5
      %v5438 = vrot.slane %v5437, 4
      %v5439 = vrot.slane %v4593, 5
      %v5440 = vsel %vm2116, %v5438, %v5439
      %v5441 = vrot.slane %v5439, 4
      %v5442 = vrot.slane %v4594, 5
      %v5443 = vsel %vm2116, %v5441, %v5442
      %v5444 = vrot.slane %v5332, 5
      %v5445 = vrot.slane %v5444, 4
      %v5446 = vrot.slane %v4596, 5
      %v5447 = vsel %vm2116, %v5445, %v5446
      %v5448 = vrot.slane %v5446, 4
      %v5449 = vrot.slane %v4597, 5
      %v5450 = vsel %vm2116, %v5448, %v5449
      %v5451 = vrot.slane %v5333, 5
      %v5452 = vrot.slane %v5451, 4
      %v5453 = vrot.slane %v4599, 5
      %v5454 = vsel %vm2116, %v5452, %v5453
      %v5455 = vrot.slane %v5453, 4
      %v5456 = vrot.slane %v4600, 5
      %v5457 = vsel %vm2116, %v5455, %v5456
      %v5458 = vrot.slane %v5334, 5
      %v5459 = vrot.slane %v5458, 4
      %v5460 = vrot.slane %v4602, 5
      %v5461 = vsel %vm2116, %v5459, %v5460
      %v5462 = vrot.slane %v5460, 4
      %v5463 = vrot.slane %v4603, 5
      %v5464 = vsel %vm2116, %v5462, %v5463
      %v5465 = vrot.slane %v5335, 5
      %v5466 = vrot.slane %v5465, 4
      %v5467 = vrot.slane %v4605, 5
      %v5468 = vsel %vm2116, %v5466, %v5467
      %v5469 = vrot.slane %v5467, 4
      %v5470 = vrot.slane %v4606, 5
      %v5471 = vsel %vm2116, %v5469, %v5470
      %v5472 = vrot.slane %v5336, 5
      %v5473 = vrot.slane %v5472, 4
      %v5474 = vrot.slane %v4608, 5
      %v5475 = vsel %vm2116, %v5473, %v5474
      %v5476 = vrot.slane %v5474, 4
      %v5477 = vrot.slane %v4609, 5
      %v5478 = vsel %vm2116, %v5476, %v5477
      %v5479 = vrot.slane %v5337, 5
      %v5480 = vrot.slane %v5479, 4
      %v5481 = vrot.slane %v4611, 5
      %v5482 = vsel %vm2116, %v5480, %v5481
      %v5483 = vrot.slane %v5481, 4
      %v5484 = vrot.slane %v4612, 5
      %v5485 = vsel %vm2116, %v5483, %v5484
      %v5486 = vrot.slane %v5338, 5
      %v5487 = vrot.slane %v5486, 4
      %v5488 = vrot.slane %v4614, 5
      %v5489 = vsel %vm2116, %v5487, %v5488
      %v5490 = vrot.slane %v5488, 4
      %v5491 = vrot.slane %v4615, 5
      %v5492 = vsel %vm2116, %v5490, %v5491
      %v5493 = vrot.slane %v5339, 5
      %v5494 = vrot.slane %v5493, 4
      %v5495 = vrot.slane %v4617, 5
      %v5496 = vsel %vm2116, %v5494, %v5495
      %v5497 = vrot.slane %v5495, 4
      %v5498 = vrot.slane %v4618, 5
      %v5499 = vsel %vm2116, %v5497, %v5498
      %v5500 = vld [vmem:[%s2 + $0x200] sm:$0xf]
      %v5501 = vld [vmem:[%s2 + $0x204] sm:$0xf]
      %v5502 = vld [vmem:[%s2 + $0x208] sm:$0xf]
      %v5503 = vld [vmem:[%s2 + $0x20c] sm:$0xf]
      %v5504 = vld [vmem:[%s2 + $0x210] sm:$0xf]
      %v5505 = vld [vmem:[%s2 + $0x214] sm:$0xf]
      %v5506 = vld [vmem:[%s2 + $0x218] sm:$0xf]
      %v5507 = vld [vmem:[%s2 + $0x21c] sm:$0xf]
      %v5508 = vld [vmem:[%s2 + $0x220] sm:$0xf]
      %v5509 = vld [vmem:[%s2 + $0x224] sm:$0xf]
      %v5510 = vld [vmem:[%s2 + $0x228] sm:$0xf]
      %v5511 = vld [vmem:[%s2 + $0x22c] sm:$0xf]
      %v5512 = vld [vmem:[%s2 + $0x230] sm:$0xf]
      %v5513 = vld [vmem:[%s2 + $0x234] sm:$0xf]
      %v5514 = vld [vmem:[%s2 + $0x238] sm:$0xf]
      %v5515 = vld [vmem:[%s2 + $0x23c] sm:$0xf]
      %v5516 = vunpack.c.l.b16 %v5391
      %v5517 = vunpack.c.l.b16 %v5394
      %v5518 = vunpack.c.l.b16 %v5398
      %v5519 = vunpack.c.l.b16 %v5401
      %v5520 = vunpack.c.l.b16 %v5405
      %v5521 = vunpack.c.l.b16 %v5408
      %v5522 = vunpack.c.l.b16 %v5412
      %v5523 = vunpack.c.l.b16 %v5415
      %v5524 = vunpack.c.l.b16 %v5419
      %v5525 = vunpack.c.l.b16 %v5422
      %v5526 = vunpack.c.l.b16 %v5426
      %v5527 = vunpack.c.l.b16 %v5429
      %v5528 = vunpack.c.l.b16 %v5433
      %v5529 = vunpack.c.l.b16 %v5436
      %v5530 = vunpack.c.l.b16 %v5440
      %v5531 = vunpack.c.l.b16 %v5443
      %v5532 = vunpack.c.l.b16 %v5447
      %v5533 = vunpack.c.l.b16 %v5450
      %v5534 = vunpack.c.l.b16 %v5454
      %v5535 = vunpack.c.l.b16 %v5457
      %v5536 = vunpack.c.l.b16 %v5461
      %v5537 = vunpack.c.l.b16 %v5464
      %v5538 = vunpack.c.l.b16 %v5468
      %v5539 = vunpack.c.l.b16 %v5471
      %v5540 = vunpack.c.l.b16 %v5475
      %v5541 = vunpack.c.l.b16 %v5478
      %v5542 = vunpack.c.l.b16 %v5482
      %v5543 = vunpack.c.l.b16 %v5485
      %v5544 = vunpack.c.l.b16 %v5489
      %v5545 = vunpack.c.l.b16 %v5492
      %v5546 = vunpack.c.l.b16 %v5496
      %v5547 = vunpack.c.l.b16 %v5499
      %v5548 = vpack.c.b16 %v5517, %v5516
      %v5549 = vpack.c.b16 %v5519, %v5518
      %v5550 = vpack.c.b16 %v5521, %v5520
      %v5551 = vpack.c.b16 %v5523, %v5522
      %v5552 = vpack.c.b16 %v5525, %v5524
      %v5553 = vpack.c.b16 %v5527, %v5526
      %v5554 = vpack.c.b16 %v5529, %v5528
      %v5555 = vpack.c.b16 %v5531, %v5530
      %v5556 = vpack.c.b16 %v5533, %v5532
      %v5557 = vpack.c.b16 %v5535, %v5534
      %v5558 = vpack.c.b16 %v5537, %v5536
      %v5559 = vpack.c.b16 %v5539, %v5538
      %v5560 = vpack.c.b16 %v5541, %v5540
      %v5561 = vpack.c.b16 %v5543, %v5542
      %v5562 = vpack.c.b16 %v5545, %v5544
      %v5563 = vpack.c.b16 %v5547, %v5546
      %v5596 = vunpack.c.l.b16 %v5500
      %v5597 = vunpack.c.l.b16 %v5501
      %v5598 = vunpack.c.l.b16 %v5502
      %v5599 = vunpack.c.l.b16 %v5503
      %v5600 = vunpack.c.l.b16 %v5504
      %v5601 = vunpack.c.l.b16 %v5505
      %v5602 = vunpack.c.l.b16 %v5506
      %v5603 = vunpack.c.l.b16 %v5507
      %v5604 = vunpack.c.l.b16 %v5508
      %v5605 = vunpack.c.l.b16 %v5509
      %v5606 = vunpack.c.l.b16 %v5510
      %v5607 = vunpack.c.l.b16 %v5511
      %v5608 = vunpack.c.l.b16 %v5512
      %v5609 = vunpack.c.l.b16 %v5513
      %v5610 = vunpack.c.l.b16 %v5514
      %v5611 = vunpack.c.l.b16 %v5515
      %v5612 = vpack.c.b16 %v5597, %v5596
      %v5613 = vpack.c.b16 %v5599, %v5598
      %v5614 = vpack.c.b16 %v5601, %v5600
      %v5615 = vpack.c.b16 %v5603, %v5602
      %v5616 = vpack.c.b16 %v5605, %v5604
      %v5617 = vpack.c.b16 %v5607, %v5606
      %v5618 = vpack.c.b16 %v5609, %v5608
      %v5619 = vpack.c.b16 %v5611, %v5610
      %5628 = vmatprep.subr.bf16.mxu0 0
      %5629 = vmatpush1.bf16.msra.mxu0 %v5619
      %5630 = vmatprep.subr.bf16.mxu0 0
      %5631 = vmatpush1.bf16.msra.mxu0 %v5618
      %5632 = vmatprep.subr.bf16.mxu0 0
      %5633 = vmatpush1.bf16.msra.mxu0 %v5617
      %5634 = vmatprep.subr.bf16.mxu0 0
      %5635 = vmatpush1.bf16.msra.mxu0 %v5616
      %5636 = vmatprep.subr.bf16.mxu0 0
      %5637 = vmatpush1.bf16.msra.mxu0 %v5615
      %5638 = vmatprep.subr.bf16.mxu0 0
      %5639 = vmatpush1.bf16.msra.mxu0 %v5614
      %5640 = vmatprep.subr.bf16.mxu0 0
      %5641 = vmatpush1.bf16.msra.mxu0 %v5613
      %5642 = vmatprep.subr.bf16.mxu0 0
      %5643 = vmatpush1.bf16.msra.mxu0 %v5612
      %5644 = vmatprep.subr.bf16.mxu0 0
      %5645 = vmatpush2.bf16.msra.mxu0 0
      %5646 = vmatprep.subr.bf16.mxu0 0
      %5647 = vmatpush2.bf16.msra.mxu0 0
      %5648 = vmatprep.subr.bf16.mxu0 0
      %5649 = vmatpush2.bf16.msra.mxu0 0
      %5650 = vmatprep.subr.bf16.mxu0 0
      %5651 = vmatpush2.bf16.msra.mxu0 0
      %5652 = vmatprep.subr.bf16.mxu0 0
      %5653 = vmatpush2.bf16.msra.mxu0 0
      %5654 = vmatprep.subr.bf16.mxu0 0
      %5655 = vmatpush2.bf16.msra.mxu0 0
      %5656 = vmatprep.subr.bf16.mxu0 0
      %5657 = vmatpush2.bf16.msra.mxu0 0
      %5658 = vmatprep.subr.bf16.mxu0 0
      %5659 = vmatpush2.bf16.msra.mxu0 0
      %5660 = vmatprep.mubr.bf16.mxu0 0
      %5661 = vmatmul.mubr.bf16.gmra.mxu0 %v5548
      %v5662 = vpop.f32.mrf.mxu0
      %v5663 = vadd.f32 0.0, %v5662
      %v5664 = vpop.f32.mrf.mxu0
      %v5665 = vpop.f32.mrf.mxu0
      %v5666 = vadd.f32 0.0, %v5665
      %v5667 = vpop.f32.mrf.mxu0
      %5668 = vmatprep.mubr.bf16.mxu0 0
      %5669 = vmatmul.mubr.bf16.gmra.mxu0 %v5549
      %v5670 = vpop.f32.mrf.mxu0
      %v5671 = vadd.f32 0.0, %v5670
      %v5672 = vpop.f32.mrf.mxu0
      %v5673 = vpop.f32.mrf.mxu0
      %v5674 = vadd.f32 0.0, %v5673
      %v5675 = vpop.f32.mrf.mxu0
      %5676 = vmatprep.mubr.bf16.mxu0 0
      %5677 = vmatmul.mubr.bf16.gmra.mxu0 %v5550
      %v5678 = vpop.f32.mrf.mxu0
      %v5679 = vadd.f32 0.0, %v5678
      %v5680 = vpop.f32.mrf.mxu0
      %v5681 = vpop.f32.mrf.mxu0
      %v5682 = vadd.f32 0.0, %v5681
      %v5683 = vpop.f32.mrf.mxu0
      %5684 = vmatprep.mubr.bf16.mxu0 0
      %5685 = vmatmul.mubr.bf16.gmra.mxu0 %v5551
      %v5686 = vpop.f32.mrf.mxu0
      %v5687 = vadd.f32 0.0, %v5686
      %v5688 = vpop.f32.mrf.mxu0
      %v5689 = vpop.f32.mrf.mxu0
      %v5690 = vadd.f32 0.0, %v5689
      %v5691 = vpop.f32.mrf.mxu0
      %5692 = vmatprep.mubr.bf16.mxu0 0
      %5693 = vmatmul.mubr.bf16.gmra.mxu0 %v5552
      %v5694 = vpop.f32.mrf.mxu0
      %v5695 = vadd.f32 0.0, %v5694
      %v5696 = vpop.f32.mrf.mxu0
      %v5697 = vpop.f32.mrf.mxu0
      %v5698 = vadd.f32 0.0, %v5697
      %v5699 = vpop.f32.mrf.mxu0
      %5700 = vmatprep.mubr.bf16.mxu0 0
      %5701 = vmatmul.mubr.bf16.gmra.mxu0 %v5553
      %v5702 = vpop.f32.mrf.mxu0
      %v5703 = vadd.f32 0.0, %v5702
      %v5704 = vpop.f32.mrf.mxu0
      %v5705 = vpop.f32.mrf.mxu0
      %v5706 = vadd.f32 0.0, %v5705
      %v5707 = vpop.f32.mrf.mxu0
      %5708 = vmatprep.mubr.bf16.mxu0 0
      %5709 = vmatmul.mubr.bf16.gmra.mxu0 %v5554
      %v5710 = vpop.f32.mrf.mxu0
      %v5711 = vadd.f32 0.0, %v5710
      %v5712 = vpop.f32.mrf.mxu0
      %v5713 = vpop.f32.mrf.mxu0
      %v5714 = vadd.f32 0.0, %v5713
      %v5715 = vpop.f32.mrf.mxu0
      %5716 = vmatprep.mubr.bf16.mxu0 0
      %5717 = vmatmul.mubr.bf16.gmra.mxu0 %v5555
      %v5718 = vpop.f32.mrf.mxu0
      %v5719 = vadd.f32 0.0, %v5718
      %v5720 = vpop.f32.mrf.mxu0
      %v5721 = vpop.f32.mrf.mxu0
      %v5722 = vadd.f32 0.0, %v5721
      %v5723 = vpop.f32.mrf.mxu0
      %5724 = vmatprep.mubr.bf16.mxu0 0
      %5725 = vmatmul.mubr.bf16.gmra.mxu0 %v5556
      %v5726 = vpop.f32.mrf.mxu0
      %v5727 = vadd.f32 0.0, %v5726
      %v5728 = vpop.f32.mrf.mxu0
      %v5729 = vpop.f32.mrf.mxu0
      %v5730 = vadd.f32 0.0, %v5729
      %v5731 = vpop.f32.mrf.mxu0
      %5732 = vmatprep.mubr.bf16.mxu0 0
      %5733 = vmatmul.mubr.bf16.gmra.mxu0 %v5557
      %v5734 = vpop.f32.mrf.mxu0
      %v5735 = vadd.f32 0.0, %v5734
      %v5736 = vpop.f32.mrf.mxu0
      %v5737 = vpop.f32.mrf.mxu0
      %v5738 = vadd.f32 0.0, %v5737
      %v5739 = vpop.f32.mrf.mxu0
      %5740 = vmatprep.mubr.bf16.mxu0 0
      %5741 = vmatmul.mubr.bf16.gmra.mxu0 %v5558
      %v5742 = vpop.f32.mrf.mxu0
      %v5743 = vadd.f32 0.0, %v5742
      %v5744 = vpop.f32.mrf.mxu0
      %v5745 = vpop.f32.mrf.mxu0
      %v5746 = vadd.f32 0.0, %v5745
      %v5747 = vpop.f32.mrf.mxu0
      %5748 = vmatprep.mubr.bf16.mxu0 0
      %5749 = vmatmul.mubr.bf16.gmra.mxu0 %v5559
      %v5750 = vpop.f32.mrf.mxu0
      %v5751 = vadd.f32 0.0, %v5750
      %v5752 = vpop.f32.mrf.mxu0
      %v5753 = vpop.f32.mrf.mxu0
      %v5754 = vadd.f32 0.0, %v5753
      %v5755 = vpop.f32.mrf.mxu0
      %5756 = vmatprep.mubr.bf16.mxu0 0
      %5757 = vmatmul.mubr.bf16.gmra.mxu0 %v5560
      %v5758 = vpop.f32.mrf.mxu0
      %v5759 = vadd.f32 0.0, %v5758
      %v5760 = vpop.f32.mrf.mxu0
      %v5761 = vpop.f32.mrf.mxu0
      %v5762 = vadd.f32 0.0, %v5761
      %v5763 = vpop.f32.mrf.mxu0
      %5764 = vmatprep.mubr.bf16.mxu0 0
      %5765 = vmatmul.mubr.bf16.gmra.mxu0 %v5561
      %v5766 = vpop.f32.mrf.mxu0
      %v5767 = vadd.f32 0.0, %v5766
      %v5768 = vpop.f32.mrf.mxu0
      %v5769 = vpop.f32.mrf.mxu0
      %v5770 = vadd.f32 0.0, %v5769
      %v5771 = vpop.f32.mrf.mxu0
      %5772 = vmatprep.mubr.bf16.mxu0 0
      %5773 = vmatmul.mubr.bf16.gmra.mxu0 %v5562
      %v5774 = vpop.f32.mrf.mxu0
      %v5775 = vadd.f32 0.0, %v5774
      %v5776 = vpop.f32.mrf.mxu0
      %v5777 = vpop.f32.mrf.mxu0
      %v5778 = vadd.f32 0.0, %v5777
      %v5779 = vpop.f32.mrf.mxu0
      %5780 = vmatprep.mubr.bf16.mxu0 0
      %5781 = vmatmul.mubr.bf16.gmra.mxu0 %v5563
      %v5782 = vpop.f32.mrf.mxu0
      %v5783 = vadd.f32 0.0, %v5782
      %v5784 = vpop.f32.mrf.mxu0
      %v5785 = vpop.f32.mrf.mxu0
      %v5786 = vadd.f32 0.0, %v5785
      %v5787 = vpop.f32.mrf.mxu0
      %5788 = vdwg.mxu0
      %v5789 = vadd.f32 %v5292, %v5663
      %v5790 = vadd.f32 %v5293, %v5666
      %v5791 = vadd.f32 %v5294, %v5671
      %v5792 = vadd.f32 %v5295, %v5674
      %v5793 = vadd.f32 %v5296, %v5679
      %v5794 = vadd.f32 %v5297, %v5682
      %v5795 = vadd.f32 %v5298, %v5687
      %v5796 = vadd.f32 %v5299, %v5690
      %v5797 = vadd.f32 %v5300, %v5695
      %v5798 = vadd.f32 %v5301, %v5698
      %v5799 = vadd.f32 %v5302, %v5703
      %v5800 = vadd.f32 %v5303, %v5706
      %v5801 = vadd.f32 %v5304, %v5711
      %v5802 = vadd.f32 %v5305, %v5714
      %v5803 = vadd.f32 %v5306, %v5719
      %v5804 = vadd.f32 %v5307, %v5722
      %v5805 = vadd.f32 %v5308, %v5727
      %v5806 = vadd.f32 %v5309, %v5730
      %v5807 = vadd.f32 %v5310, %v5735
      %v5808 = vadd.f32 %v5311, %v5738
      %v5809 = vadd.f32 %v5312, %v5743
      %v5810 = vadd.f32 %v5313, %v5746
      %v5811 = vadd.f32 %v5314, %v5751
      %v5812 = vadd.f32 %v5315, %v5754
      %v5813 = vadd.f32 %v5316, %v5759
      %v5814 = vadd.f32 %v5317, %v5762
      %v5815 = vadd.f32 %v5318, %v5767
      %v5816 = vadd.f32 %v5319, %v5770
      %v5817 = vadd.f32 %v5320, %v5775
      %v5818 = vadd.f32 %v5321, %v5778
      %v5819 = vadd.f32 %v5322, %v5783
      %v5820 = vadd.f32 %v5323, %v5786
      %v5821 = vpack.c.bf16 %v5790, %v5789
      %v5822 = vpack.c.bf16 %v5792, %v5791
      %v5823 = vpack.c.bf16 %v5794, %v5793
      %v5824 = vpack.c.bf16 %v5796, %v5795
      %v5825 = vpack.c.bf16 %v5798, %v5797
      %v5826 = vpack.c.bf16 %v5800, %v5799
      %v5827 = vpack.c.bf16 %v5802, %v5801
      %v5828 = vpack.c.bf16 %v5804, %v5803
      %v5829 = vpack.c.bf16 %v5806, %v5805
      %v5830 = vpack.c.bf16 %v5808, %v5807
      %v5831 = vpack.c.bf16 %v5810, %v5809
      %v5832 = vpack.c.bf16 %v5812, %v5811
      %v5833 = vpack.c.bf16 %v5814, %v5813
      %v5834 = vpack.c.bf16 %v5816, %v5815
      %v5835 = vpack.c.bf16 %v5818, %v5817
      %v5836 = vpack.c.bf16 %v5820, %v5819
      %v5853 = vunpack.c.l.b16 %v5821
      %v5854 = vunpack.c.h.b16 %v5821
      %v5855 = vunpack.c.l.b16 %v5822
      %v5856 = vunpack.c.h.b16 %v5822
      %v5857 = vunpack.c.l.b16 %v5823
      %v5858 = vunpack.c.h.b16 %v5823
      %v5859 = vunpack.c.l.b16 %v5824
      %v5860 = vunpack.c.h.b16 %v5824
      %v5861 = vunpack.c.l.b16 %v5825
      %v5862 = vunpack.c.h.b16 %v5825
      %v5863 = vunpack.c.l.b16 %v5826
      %v5864 = vunpack.c.h.b16 %v5826
      %v5865 = vunpack.c.l.b16 %v5827
      %v5866 = vunpack.c.h.b16 %v5827
      %v5867 = vunpack.c.l.b16 %v5828
      %v5868 = vunpack.c.h.b16 %v5828
      %v5869 = vunpack.c.l.b16 %v5829
      %v5870 = vunpack.c.h.b16 %v5829
      %v5871 = vunpack.c.l.b16 %v5830
      %v5872 = vunpack.c.h.b16 %v5830
      %v5873 = vunpack.c.l.b16 %v5831
      %v5874 = vunpack.c.h.b16 %v5831
      %v5875 = vunpack.c.l.b16 %v5832
      %v5876 = vunpack.c.h.b16 %v5832
      %v5877 = vunpack.c.l.b16 %v5833
      %v5878 = vunpack.c.h.b16 %v5833
      %v5879 = vunpack.c.l.b16 %v5834
      %v5880 = vunpack.c.h.b16 %v5834
      %v5881 = vunpack.c.l.b16 %v5835
      %v5882 = vunpack.c.h.b16 %v5835
      %v5883 = vunpack.c.l.b16 %v5836
      %v5884 = vunpack.c.h.b16 %v5836
      %v5885 = vpack.c.b16 %v5853, %v5853
      %v5886 = vpack.c.b16 %v5854, %v5854
      %v5887 = vpack.c.b16 %v5855, %v5855
      %v5888 = vpack.c.b16 %v5856, %v5856
      %v5889 = vpack.c.b16 %v5857, %v5857
      %v5890 = vpack.c.b16 %v5858, %v5858
      %v5891 = vpack.c.b16 %v5859, %v5859
      %v5892 = vpack.c.b16 %v5860, %v5860
      %v5893 = vpack.c.b16 %v5861, %v5861
      %v5894 = vpack.c.b16 %v5862, %v5862
      %v5895 = vpack.c.b16 %v5863, %v5863
      %v5896 = vpack.c.b16 %v5864, %v5864
      %v5897 = vpack.c.b16 %v5865, %v5865
      %v5898 = vpack.c.b16 %v5866, %v5866
      %v5899 = vpack.c.b16 %v5867, %v5867
      %v5900 = vpack.c.b16 %v5868, %v5868
      %v5901 = vpack.c.b16 %v5869, %v5869
      %v5902 = vpack.c.b16 %v5870, %v5870
      %v5903 = vpack.c.b16 %v5871, %v5871
      %v5904 = vpack.c.b16 %v5872, %v5872
      %v5905 = vpack.c.b16 %v5873, %v5873
      %v5906 = vpack.c.b16 %v5874, %v5874
      %v5907 = vpack.c.b16 %v5875, %v5875
      %v5908 = vpack.c.b16 %v5876, %v5876
      %v5909 = vpack.c.b16 %v5877, %v5877
      %v5910 = vpack.c.b16 %v5878, %v5878
      %v5911 = vpack.c.b16 %v5879, %v5879
      %v5912 = vpack.c.b16 %v5880, %v5880
      %v5913 = vpack.c.b16 %v5881, %v5881
      %v5914 = vpack.c.b16 %v5882, %v5882
      %v5915 = vpack.c.b16 %v5883, %v5883
      %v5916 = vpack.c.b16 %v5884, %v5884
      %5949 = vst [vmem:[%s204] sm:$0xf] %v5885
      %5950 = vst [vmem:[%s204 + $0x4] sm:$0xf] %v5886
      %5951 = vst [vmem:[%s204 + $0x8] sm:$0xf] %v5887
      %5952 = vst [vmem:[%s204 + $0xc] sm:$0xf] %v5888
      %5953 = vst [vmem:[%s204 + $0x10] sm:$0xf] %v5889
      %5954 = vst [vmem:[%s204 + $0x14] sm:$0xf] %v5890
      %5955 = vst [vmem:[%s204 + $0x18] sm:$0xf] %v5891
      %5956 = vst [vmem:[%s204 + $0x1c] sm:$0xf] %v5892
      %5957 = vst [vmem:[%s204 + $0x20] sm:$0xf] %v5893
      %5958 = vst [vmem:[%s204 + $0x24] sm:$0xf] %v5894
      %5959 = vst [vmem:[%s204 + $0x28] sm:$0xf] %v5895
      %5960 = vst [vmem:[%s204 + $0x2c] sm:$0xf] %v5896
      %5961 = vst [vmem:[%s204 + $0x30] sm:$0xf] %v5897
      %5962 = vst [vmem:[%s204 + $0x34] sm:$0xf] %v5898
      %5963 = vst [vmem:[%s204 + $0x38] sm:$0xf] %v5899
      %5964 = vst [vmem:[%s204 + $0x3c] sm:$0xf] %v5900
      %5965 = vst [vmem:[%s204 + $0x40] sm:$0xf] %v5901
      %5966 = vst [vmem:[%s204 + $0x44] sm:$0xf] %v5902
      %5967 = vst [vmem:[%s204 + $0x48] sm:$0xf] %v5903
      %5968 = vst [vmem:[%s204 + $0x4c] sm:$0xf] %v5904
      %5969 = vst [vmem:[%s204 + $0x50] sm:$0xf] %v5905
      %5970 = vst [vmem:[%s204 + $0x54] sm:$0xf] %v5906
      %5971 = vst [vmem:[%s204 + $0x58] sm:$0xf] %v5907
      %5972 = vst [vmem:[%s204 + $0x5c] sm:$0xf] %v5908
      %5973 = vst [vmem:[%s204 + $0x60] sm:$0xf] %v5909
      %5974 = vst [vmem:[%s204 + $0x64] sm:$0xf] %v5910
      %5975 = vst [vmem:[%s204 + $0x68] sm:$0xf] %v5911
      %5976 = vst [vmem:[%s204 + $0x6c] sm:$0xf] %v5912
      %5977 = vst [vmem:[%s204 + $0x70] sm:$0xf] %v5913
      %5978 = vst [vmem:[%s204 + $0x74] sm:$0xf] %v5914
      %5979 = vst [vmem:[%s204 + $0x78] sm:$0xf] %v5915
      %5980 = vst [vmem:[%s204 + $0x7c] sm:$0xf] %v5916
      %v5981 = vadd.f32 %v5789, %v5790
      %v5982 = vadd.f32 %v5981, %v5791
      %v5983 = vadd.f32 %v5982, %v5792
      %v5984 = vadd.f32 %v5983, %v5793
      %v5985 = vadd.f32 %v5984, %v5794
      %v5986 = vadd.f32 %v5985, %v5795
      %v5987 = vadd.f32 %v5986, %v5796
      %v5988 = vadd.f32 %v5987, %v5797
      %v5989 = vadd.f32 %v5988, %v5798
      %v5990 = vadd.f32 %v5989, %v5799
      %v5991 = vadd.f32 %v5990, %v5800
      %v5992 = vadd.f32 %v5991, %v5801
      %v5993 = vadd.f32 %v5992, %v5802
      %v5994 = vadd.f32 %v5993, %v5803
      %v5995 = vadd.f32 %v5994, %v5804
      %v5996 = vadd.f32 %v5995, %v5805
      %v5997 = vadd.f32 %v5996, %v5806
      %v5998 = vadd.f32 %v5997, %v5807
      %v5999 = vadd.f32 %v5998, %v5808
      %v6000 = vadd.f32 %v5999, %v5809
      %v6001 = vadd.f32 %v6000, %v5810
      %v6002 = vadd.f32 %v6001, %v5811
      %v6003 = vadd.f32 %v6002, %v5812
      %v6004 = vadd.f32 %v6003, %v5813
      %v6005 = vadd.f32 %v6004, %v5814
      %v6006 = vadd.f32 %v6005, %v5815
      %v6007 = vadd.f32 %v6006, %v5816
      %v6008 = vadd.f32 %v6007, %v5817
      %v6009 = vadd.f32 %v6008, %v5818
      %v6010 = vadd.f32 %v6009, %v5819
      %v6011 = vadd.f32 %v6010, %v5820
      %v6012 = vrot.slane %v6011, 4
      %v6013 = vadd.f32 %v6011, %v6012
      %v6014 = vrot.slane %v6013, 2
      %v6015 = vadd.f32 %v6013, %v6014
      %v6016 = vrot.slane %v6015, 1
      %v6017 = vadd.f32 %v6015, %v6016
      %6018 = vst [vmem:[%s208] sm:$0x1] %v6017
      %v6019 = vmul.f32 %v5789, %v5789
      %v6020 = vmul.f32 %v5790, %v5790
      %v6021 = vmul.f32 %v5791, %v5791
      %v6022 = vmul.f32 %v5792, %v5792
      %v6023 = vmul.f32 %v5793, %v5793
      %v6024 = vmul.f32 %v5794, %v5794
      %v6025 = vmul.f32 %v5795, %v5795
      %v6026 = vmul.f32 %v5796, %v5796
      %v6027 = vmul.f32 %v5797, %v5797
      %v6028 = vmul.f32 %v5798, %v5798
      %v6029 = vmul.f32 %v5799, %v5799
      %v6030 = vmul.f32 %v5800, %v5800
      %v6031 = vmul.f32 %v5801, %v5801
      %v6032 = vmul.f32 %v5802, %v5802
      %v6033 = vmul.f32 %v5803, %v5803
      %v6034 = vmul.f32 %v5804, %v5804
      %v6035 = vmul.f32 %v5805, %v5805
      %v6036 = vmul.f32 %v5806, %v5806
      %v6037 = vmul.f32 %v5807, %v5807
      %v6038 = vmul.f32 %v5808, %v5808
      %v6039 = vmul.f32 %v5809, %v5809
      %v6040 = vmul.f32 %v5810, %v5810
      %v6041 = vmul.f32 %v5811, %v5811
      %v6042 = vmul.f32 %v5812, %v5812
      %v6043 = vmul.f32 %v5813, %v5813
      %v6044 = vmul.f32 %v5814, %v5814
      %v6045 = vmul.f32 %v5815, %v5815
      %v6046 = vmul.f32 %v5816, %v5816
      %v6047 = vmul.f32 %v5817, %v5817
      %v6048 = vmul.f32 %v5818, %v5818
      %v6049 = vmul.f32 %v5819, %v5819
      %v6050 = vmul.f32 %v5820, %v5820
      %v6051 = vadd.f32 %v6019, %v6020
      %v6052 = vadd.f32 %v6051, %v6021
      %v6053 = vadd.f32 %v6052, %v6022
      %v6054 = vadd.f32 %v6053, %v6023
      %v6055 = vadd.f32 %v6054, %v6024
      %v6056 = vadd.f32 %v6055, %v6025
      %v6057 = vadd.f32 %v6056, %v6026
      %v6058 = vadd.f32 %v6057, %v6027
      %v6059 = vadd.f32 %v6058, %v6028
      %v6060 = vadd.f32 %v6059, %v6029
      %v6061 = vadd.f32 %v6060, %v6030
      %v6062 = vadd.f32 %v6061, %v6031
      %v6063 = vadd.f32 %v6062, %v6032
      %v6064 = vadd.f32 %v6063, %v6033
      %v6065 = vadd.f32 %v6064, %v6034
      %v6066 = vadd.f32 %v6065, %v6035
      %v6067 = vadd.f32 %v6066, %v6036
      %v6068 = vadd.f32 %v6067, %v6037
      %v6069 = vadd.f32 %v6068, %v6038
      %v6070 = vadd.f32 %v6069, %v6039
      %v6071 = vadd.f32 %v6070, %v6040
      %v6072 = vadd.f32 %v6071, %v6041
      %v6073 = vadd.f32 %v6072, %v6042
      %v6074 = vadd.f32 %v6073, %v6043
      %v6075 = vadd.f32 %v6074, %v6044
      %v6076 = vadd.f32 %v6075, %v6045
      %v6077 = vadd.f32 %v6076, %v6046
      %v6078 = vadd.f32 %v6077, %v6047
      %v6079 = vadd.f32 %v6078, %v6048
      %v6080 = vadd.f32 %v6079, %v6049
      %v6081 = vadd.f32 %v6080, %v6050
      %v6082 = vrot.slane %v6081, 4
      %v6083 = vadd.f32 %v6081, %v6082
      %v6084 = vrot.slane %v6083, 2
      %v6085 = vadd.f32 %v6083, %v6084
      %v6086 = vrot.slane %v6085, 1
      %v6087 = vadd.f32 %v6085, %v6086
      %6088 = vst [vmem:[%s208 + $0x1] sm:$0x1] %v6087
      %p6089 = scmp.lt.s32.totalorder %s16, 1
      %s6090 = scalar_select %p6089, %s16, 1
      %s6091 = smul.addr %s6090, 32
      %s6092 = smul.addr %s6091, 4
      %s6093 = scalar_lea.vmem %s3, %s6092
      %p6094 = scmp.lt.s32.totalorder %s16, 1
      %s6095 = scalar_select %p6094, %s16, 1
      %s6096 = smul.addr %s6095, 2
      %s6097 = scalar_lea.vmem %s4, %s6096
      // Predicated region
      $region33: #{resblock_forward.4} parent=31 // pred_check
        %p6098 = pneg %p102
      $region34: #{resblock_forward.4} parent=31 // pred_check_branch
        %6100 = sbr.rel (%p6098) target = $region36
      $region35: #{resblock_forward.4} parent=31 // pred_region
        _
      $region36: #{resblock_forward.4} parent=31 // pred_fallthru
        _
      // Predicated region
      $region37: #{resblock_forward.4} parent=31 // pred_check
        %p6101 = pneg %p128
      $region38: #{resblock_forward.4} parent=31 // pred_check_branch
        %6103 = sbr.rel (%p6101) target = $region40
      $region39: #{resblock_forward.4} parent=31 // pred_region
        _
      $region40: #{resblock_forward.4} parent=31 // pred_fallthru
        _
    $region32: #{resblock_forward.4} parent=5 // pred_fallthru
      _
    %p6104 = scmp.le.s32.totalorder 2, %s11
    // Predicated region
    $region41: #{resblock_forward.4} parent=5 // pred_check
      %p6105 = pneg %p6104
    $region42: #{resblock_forward.4} parent=5 // pred_check_branch
      %6107 = sbr.rel (%p6105) target = $region44
    $region43: #{resblock_forward.4} parent=5 // pred_region
      %s6108 = ssub.s32 %s11, 2
      // Predicated region
      $region45: #{resblock_forward.4} parent=43 // pred_check
        %p6109 = pneg %p108
      $region46: #{resblock_forward.4} parent=43 // pred_check_branch
        %6111 = sbr.rel (%p6109) target = $region48
      $region47: #{resblock_forward.4} parent=43 // pred_region
        %p6112 = scmp.lt.s32.totalorder %s17, 1
        %s6113 = scalar_select %p6112, %s17, 1
        %s6114 = smul.addr %s6113, 32
        %s6115 = smul.addr %s6114, 4
        %s6116 = scalar_lea.vmem %s3, %s6115
      $region48: #{resblock_forward.4} parent=43 // pred_fallthru
        _
      // Predicated region
      $region49: #{resblock_forward.4} parent=43 // pred_check
        %p6117 = pneg %p134
      $region50: #{resblock_forward.4} parent=43 // pred_check_branch
        %6119 = sbr.rel (%p6117) target = $region52
      $region51: #{resblock_forward.4} parent=43 // pred_region
        %p6120 = scmp.lt.s32.totalorder %s17, 1
        %s6121 = scalar_select %p6120, %s17, 1
        %s6122 = smul.addr %s6121, 2
        %s6123 = scalar_lea.vmem %s4, %s6122
      $region52: #{resblock_forward.4} parent=43 // pred_fallthru
        _
    $region44: #{resblock_forward.4} parent=5 // pred_fallthru
      _
  $region6: #{resblock_forward.4} parent=0 // loop_footer
    %s15 = sadd.s32 1, %s11
  $region7: #{resblock_forward.4} parent=0 // loop_footer_branch
    %10 = sbr.rel target = $region3
  $region8: #{resblock_forward.4} parent=0 // loop_exit
    _

</llo_original>
